<compile_context>
chip_gen: v7x
topology: tpu7x:2x2x1
jax: 0.10.0
libtpu: 0.0.40
codegen_flags: <defaults>
</compile_context>

<pallas_src>
import functools

import jax
import jax.numpy as jnp
import numpy as np
from jax.experimental import pallas as pl
from jax.experimental.pallas import tpu as pltpu

_EPS = 1e-5


def _round_up(x, m):
    return (x + m - 1) // m * m


# ---------------------------------------------------------------------------
# Pallas kernels
# ---------------------------------------------------------------------------
def _bn_relu_kernel(x_ref, scale_ref, bias_ref, o_ref):
    o_ref[...] = jnp.maximum(x_ref[...] * scale_ref[...] + bias_ref[...], 0.0)


def _conv_taps_acc(a_ref, w_ref, tap_starts, mout):
    """3x3 conv as 9 accumulated shifted matmuls on the flattened slab.

    a_ref: (1, P*Lin, Cin) bf16 slab for one image (stride-phase decomposed).
    w_ref: (9, Cin, tn)    bf16 per-tap weight matrices.
    Returns f32 (mout, tn) accumulator.
    """
    acc = None
    for t, start in enumerate(tap_starts):          # static, unrolled (9 taps)
        a = a_ref[0, pl.ds(start, mout), :]          # (mout, Cin) bf16
        d = jnp.dot(a, w_ref[t], preferred_element_type=jnp.float32)
        acc = d if acc is None else acc + d
    return acc


def _conv3x3_bn_relu_kernel(a_ref, w_ref, scale_ref, bias_ref, o_ref, *,
                            tap_starts, mout):
    acc = _conv_taps_acc(a_ref, w_ref, tap_starts, mout)
    o_ref[0] = jnp.maximum(acc * scale_ref[...] + bias_ref[...], 0.0
                           ).astype(o_ref.dtype)


def _conv3x3_add_kernel(a_ref, w_ref, r_ref, o_ref, *, tap_starts, mout):
    acc = _conv_taps_acc(a_ref, w_ref, tap_starts, mout)
    o_ref[0] = (acc + r_ref[0]).astype(o_ref.dtype)


def _conv3x3_shortcut_kernel(a_ref, w_ref, hs_ref, wsc_ref, o_ref, *,
                             tap_starts, mout):
    acc = _conv_taps_acc(a_ref, w_ref, tap_starts, mout)
    res = jnp.dot(hs_ref[0], wsc_ref[...], preferred_element_type=jnp.float32)
    o_ref[0] = (acc + res).astype(o_ref.dtype)


# ---------------------------------------------------------------------------
# pallas_call wrappers
# ---------------------------------------------------------------------------
def _pick_tn(cout):
    """Tile the output-channel axis (lane dim) when it is large & 128-aligned."""
    for tn in (256, 128):
        if cout % tn == 0 and cout > tn:
            return tn
    return cout


def bn_relu_pallas(x2d, scale, bias):
    """relu(x * scale + bias); x2d: (M, C), scale/bias: (C,)."""
    m, c = x2d.shape
    tm = min(1024, _round_up(m, 8))
    mp = _round_up(m, tm)
    xp = jnp.pad(x2d, ((0, mp - m), (0, 0))) if mp != m else x2d
    out = pl.pallas_call(
        _bn_relu_kernel,
        out_shape=jax.ShapeDtypeStruct((mp, c), jnp.float32),
        grid=(mp // tm,),
        in_specs=[
            pl.BlockSpec((tm, c), lambda i: (i, 0)),
            pl.BlockSpec((1, c), lambda i: (0, 0)),
            pl.BlockSpec((1, c), lambda i: (0, 0)),
        ],
        out_specs=pl.BlockSpec((tm, c), lambda i: (i, 0)),
        compiler_params=pltpu.CompilerParams(dimension_semantics=("parallel",)),
    )(xp, scale.reshape(1, c).astype(jnp.float32),
      bias.reshape(1, c).astype(jnp.float32))
    return out[:m] if mp != m else out


def conv3x3_bn_relu_pallas(a_slab, w_taps, scale, bias, tap_starts, mout, cout):
    n, lin_total, cin = a_slab.shape
    tn = _pick_tn(cout)
    kernel = functools.partial(_conv3x3_bn_relu_kernel,
                               tap_starts=tap_starts, mout=mout)
    return pl.pallas_call(
        kernel,
        out_shape=jax.ShapeDtypeStruct((n, mout, cout), jnp.float32),
        grid=(n, cout // tn),
        in_specs=[
            pl.BlockSpec((1, lin_total, cin), lambda i, j: (i, 0, 0)),
            pl.BlockSpec((9, cin, tn), lambda i, j: (0, 0, j)),
            pl.BlockSpec((1, tn), lambda i, j: (0, j)),
            pl.BlockSpec((1, tn), lambda i, j: (0, j)),
        ],
        out_specs=pl.BlockSpec((1, mout, tn), lambda i, j: (i, 0, j)),
        compiler_params=pltpu.CompilerParams(
            dimension_semantics=("parallel", "parallel")),
    )(a_slab, w_taps,
      scale.reshape(1, cout).astype(jnp.float32),
      bias.reshape(1, cout).astype(jnp.float32))


def conv3x3_add_pallas(a_slab, w_taps, residual, tap_starts, mout, cout):
    n, lin_total, cin = a_slab.shape
    tn = _pick_tn(cout)
    kernel = functools.partial(_conv3x3_add_kernel,
                               tap_starts=tap_starts, mout=mout)
    return pl.pallas_call(
        kernel,
        out_shape=jax.ShapeDtypeStruct((n, mout, cout), jnp.float32),
        grid=(n, cout // tn),
        in_specs=[
            pl.BlockSpec((1, lin_total, cin), lambda i, j: (i, 0, 0)),
            pl.BlockSpec((9, cin, tn), lambda i, j: (0, 0, j)),
            pl.BlockSpec((1, mout, tn), lambda i, j: (i, 0, j)),
        ],
        out_specs=pl.BlockSpec((1, mout, tn), lambda i, j: (i, 0, j)),
        compiler_params=pltpu.CompilerParams(
            dimension_semantics=("parallel", "parallel")),
    )(a_slab, w_taps, residual)


def conv3x3_shortcut_pallas(a_slab, w_taps, hs, wsc, tap_starts, mout, cout):
    n, lin_total, cin_conv = a_slab.shape
    cin_sc = hs.shape[-1]
    tn = _pick_tn(cout)
    kernel = functools.partial(_conv3x3_shortcut_kernel,
                               tap_starts=tap_starts, mout=mout)
    return pl.pallas_call(
        kernel,
        out_shape=jax.ShapeDtypeStruct((n, mout, cout), jnp.float32),
        grid=(n, cout // tn),
        in_specs=[
            pl.BlockSpec((1, lin_total, cin_conv), lambda i, j: (i, 0, 0)),
            pl.BlockSpec((9, cin_conv, tn), lambda i, j: (0, 0, j)),
            pl.BlockSpec((1, mout, cin_sc), lambda i, j: (i, 0, 0)),
            pl.BlockSpec((cin_sc, tn), lambda i, j: (0, j)),
        ],
        out_specs=pl.BlockSpec((1, mout, tn), lambda i, j: (i, 0, j)),
        compiler_params=pltpu.CompilerParams(
            dimension_semantics=("parallel", "parallel")),
    )(a_slab, w_taps, hs, wsc)


# ---------------------------------------------------------------------------
# Glue: slab construction (written to HBM once, bf16), weights, params
# ---------------------------------------------------------------------------
def _conv_input_slabs(x_nhwc, stride):
    """Zero-pad by 1, stride-phase decompose, flatten per image.

    For output (ho, wo) and tap (dh, dw), the kernel reads flat row
    `ho*wt + wo + starts[dh*3+dw]` of the returned slab, which equals
    x_pad[stride*ho + dh, stride*wo + dw].  Columns wo >= wo_valid are garbage
    and sliced off by the caller.

    Returns: slab (N, P*Lin, C) bf16, tap_starts, mout, ho, wo_valid, wt.
    """
    n, h, w, c = x_nhwc.shape
    assert stride in (1, 2)
    if stride > 1:
        assert h % stride == 0 and w % stride == 0, "even spatial dims required"
    ho = (h - 1) // stride + 1
    wo = (w - 1) // stride + 1
    xp = jnp.pad(x_nhwc, ((0, 0), (1, 1), (1, 1), (0, 0)))
    phases = [xp[:, ph::stride, pw::stride, :]
              for ph in range(stride) for pw in range(stride)]
    hs_, wt = phases[0].shape[1], phases[0].shape[2]
    lin = _round_up(hs_ * wt + 2, 8)                  # +2 headroom for max shift
    slabs = [jnp.pad(p.reshape(n, hs_ * wt, c),
                     ((0, 0), (0, lin - hs_ * wt), (0, 0))) for p in phases]
    slab = jnp.concatenate(slabs, axis=1) if len(slabs) > 1 else slabs[0]
    slab = slab.astype(jnp.bfloat16)
    starts = tuple(((dh % stride) * stride + (dw % stride)) * lin
                   + (dh // stride) * wt + (dw // stride)
                   for dh in range(3) for dw in range(3))
    return slab, starts, ho * wt, ho, wo, wt


def _w3x3_taps(w_oihw):
    # (Cout, Cin, 3, 3) -> (9, Cin, Cout), tap order (dh, dw), bf16 for the MXU.
    cout, cin = w_oihw.shape[0], w_oihw.shape[1]
    return jnp.transpose(w_oihw, (2, 3, 1, 0)).reshape(9, cin, cout
                                                       ).astype(jnp.bfloat16)


def _bn_affine(gamma, beta, mean, var):
    scale = gamma / jnp.sqrt(var + _EPS)
    return scale, beta - mean * scale


def init_basic_block(key, in_planes, out_planes, stride):
    ks = jax.random.split(key, 10)

    def conv_w(k, cout, cin, kh, kw):
        fan = cin * kh * kw
        return jax.random.normal(k, (cout, cin, kh, kw), jnp.float32) * (2.0 / fan) ** 0.5

    def bn_params(k, c):
        k1, k2, k3, k4 = jax.random.split(k, 4)
        return dict(
            gamma=1.0 + 0.1 * jax.random.normal(k1, (c,), jnp.float32),
            beta=0.1 * jax.random.normal(k2, (c,), jnp.float32),
            mean=0.1 * jax.random.normal(k3, (c,), jnp.float32),
            var=jax.random.uniform(k4, (c,), jnp.float32, 0.8, 1.2),
        )

    equal = (in_planes == out_planes)
    p = dict(
        stride=stride, equal=equal,
        bn1=bn_params(ks[0], in_planes),
        bn2=bn_params(ks[1], out_planes),
        w1=conv_w(ks[2], out_planes, in_planes, 3, 3),
        w2=conv_w(ks[3], out_planes, out_planes, 3, 3),
    )
    if not equal:
        p["w_sc"] = conv_w(ks[4], out_planes, in_planes, 1, 1)
    return p


def basic_block_forward_pallas(x_nhwc, p):
    n, h, w, cin = x_nhwc.shape
    stride = p["stride"]
    cout = p["w1"].shape[0]

    s1, b1 = _bn_affine(**p["bn1"])
    s2, b2 = _bn_affine(**p["bn2"])

    # pre-activation: h = relu(bn1(x))  (Pallas elementwise, big row tiles)
    h_act = bn_relu_pallas(x_nhwc.reshape(-1, cin), s1, b1).reshape(n, h, w, cin)

    # conv1 (3x3, stride) + bn2 + relu fused into one kernel
    a1, starts1, mout1, ho, wo, wt1 = _conv_input_slabs(h_act, stride)
    o1 = conv3x3_bn_relu_pallas(a1, _w3x3_taps(p["w1"]), s2, b2,
                                starts1, mout1, cout)
    # TODO(synk): dropout omitted — module uses dropout_p=0.0 / eval mode (identity)
    o1_nhwc = o1.reshape(n, ho, wt1, cout)[:, :, :wo, :]

    # conv2 (3x3, stride 1) fused with residual / 1x1-shortcut add
    a2, starts2, mout2, ho2, wo2, wt2 = _conv_input_slabs(o1_nhwc, 1)
    w2t = _w3x3_taps(p["w2"])
    if p["equal"]:
        # equal in/out => stride 1 => x spatial == conv2 output spatial
        r = jnp.pad(x_nhwc, ((0, 0), (0, 0), (0, wt2 - w), (0, 0)))
        r = r.reshape(n, mout2, cout)
        out = conv3x3_add_pallas(a2, w2t, r, starts2, mout2, cout)
    else:
        hs = h_act[:, ::stride, ::stride, :]                    # 1x1 conv input
        hs = jnp.pad(hs, ((0, 0), (0, 0), (0, wt2 - wo), (0, 0)))
        hs = hs.astype(jnp.bfloat16).reshape(n, mout2, cin)
        wsc = jnp.transpose(p["w_sc"][:, :, 0, 0]).astype(jnp.bfloat16)
        out = conv3x3_shortcut_pallas(a2, w2t, hs, wsc, starts2, mout2, cout)
    return out.reshape(n, ho2, wt2, cout)[:, :, :wo2, :]


def init_network_block(key, nb_layers, in_planes, out_planes, stride):
    keys = jax.random.split(key, nb_layers)
    blocks = []
    for i in range(int(nb_layers)):
        blocks.append(init_basic_block(
            keys[i],
            in_planes if i == 0 else out_planes,
            out_planes,
            stride if i == 0 else 1))
    return blocks


def network_block_forward(x_nchw, blocks):
    """Input/output in NCHW, matching the PyTorch module."""
    x = jnp.transpose(x_nchw, (0, 2, 3, 1))       # -> NHWC (channels on lanes)
    for p in blocks:
        x = basic_block_forward_pallas(x, p)
    return jnp.transpose(x, (0, 3, 1, 2))         # -> NCHW


# ---------------------------------------------------------------------------
# Pure-JAX reference (f32, for verification only)
# ---------------------------------------------------------------------------
def _conv_ref(x_nhwc, w_oihw, stride, padding):
    w_hwio = jnp.transpose(w_oihw, (2, 3, 1, 0))
    return jax.lax.conv_general_dilated(
        x_nhwc, w_hwio, (stride, stride), [(padding, padding)] * 2,
        dimension_numbers=("NHWC", "HWIO", "NHWC"),
        precision=jax.lax.Precision.HIGHEST)


def _block_ref(x, p):
    s1, b1 = _bn_affine(**p["bn1"])
    s2, b2 = _bn_affine(**p["bn2"])
    h = jnp.maximum(x * s1 + b1, 0.0)
    out = _conv_ref(h, p["w1"], p["stride"], 1)
    out = jnp.maximum(out * s2 + b2, 0.0)
    out = _conv_ref(out, p["w2"], 1, 1)
    res = x if p["equal"] else _conv_ref(h, p["w_sc"], p["stride"], 0)
    return res + out


def network_block_ref(x_nchw, blocks):
    x = jnp.transpose(x_nchw, (0, 2, 3, 1))
    for p in blocks:
        x = _block_ref(x, p)
    return jnp.transpose(x, (0, 3, 1, 2))


# ---------------------------------------------------------------------------
if __name__ == "__main__":
    key = jax.random.PRNGKey(0)
    k_x, k_p = jax.random.split(key)

    # NetworkBlock(nb_layers=2, in_planes=8, out_planes=16, block=BasicBlock,
    #              stride=2, dropout_p=0.0)
    N, C, H, W = 2, 8, 16, 16
    x = jax.random.normal(k_x, (N, C, H, W), jnp.float32)   # NCHW like PyTorch
    blocks = init_network_block(k_p, nb_layers=2, in_planes=8,
                                out_planes=16, stride=2)

    fwd = jax.jit(functools.partial(network_block_forward, blocks=blocks))
    y = jax.block_until_ready(fwd(x))

    y_ref = jax.block_until_ready(network_block_ref(x, blocks))
    assert y.shape == (N, 16, H // 2, W // 2), y.shape
    # bf16 matmuls with f32 accumulation -> looser tolerance than pure-f32.
    np.testing.assert_allclose(np.asarray(y), np.asarray(y_ref),
                               rtol=3e-2, atol=3e-2)
    print("KERNEL_OK")
</pallas_src>

<mosaic_0001>
module attributes {stable_mosaic.version = 11 : i64} {
  func.func @_bn_relu_kernel(%arg0: i32, %arg1: memref<512x8xf32, #tpu.memory_space<vmem>>, %arg2: memref<1x8xf32, #tpu.memory_space<vmem>>, %arg3: memref<1x8xf32, #tpu.memory_space<vmem>>, %arg4: memref<512x8xf32, #tpu.memory_space<vmem>>) attributes {dimension_semantics = [#tpu.dimension_semantics<parallel>], iteration_bounds = array<i64: 1>, scalar_prefetch = 0 : i64, scratch_operands = 0 : i64, tpu.core_type = #tpu.core_type<tc>, window_params = [{transform_indices = @transform_0, window_bounds = array<i64: 512, 8>}, {pipeline_mode = #tpu.pipeline_mode<synchronous>, transform_indices = @transform_1, window_bounds = array<i64: 1, 8>}, {pipeline_mode = #tpu.pipeline_mode<synchronous>, transform_indices = @transform_2, window_bounds = array<i64: 1, 8>}, {transform_indices = @transform_3, window_bounds = array<i64: 512, 8>}]} {
    %c0 = arith.constant 0 : index
    %c0_0 = arith.constant 0 : index
    %0 = vector.load %arg1[%c0, %c0_0] : memref<512x8xf32, #tpu.memory_space<vmem>>, vector<512x8xf32>
    %c0_1 = arith.constant 0 : index
    %c0_2 = arith.constant 0 : index
    %1 = vector.load %arg2[%c0_1, %c0_2] : memref<1x8xf32, #tpu.memory_space<vmem>>, vector<1x8xf32>
    %2 = vector.broadcast %1 : vector<1x8xf32> to vector<512x8xf32>
    %3 = arith.mulf %0, %2 : vector<512x8xf32>
    %c0_3 = arith.constant 0 : index
    %c0_4 = arith.constant 0 : index
    %4 = vector.load %arg3[%c0_3, %c0_4] : memref<1x8xf32, #tpu.memory_space<vmem>>, vector<1x8xf32>
    %5 = vector.broadcast %4 : vector<1x8xf32> to vector<512x8xf32>
    %6 = arith.addf %3, %5 : vector<512x8xf32>
    %cst = arith.constant 0.000000e+00 : f32
    %7 = vector.broadcast %cst : f32 to vector<512x8xf32>
    %8 = arith.maximumf %6, %7 : vector<512x8xf32>
    %c0_5 = arith.constant 0 : index
    %c0_6 = arith.constant 0 : index
    %9 = vector.load %arg4[%c0_5, %c0_6] : memref<512x8xf32, #tpu.memory_space<vmem>>, vector<512x8xf32>
    tpu.vector_store %arg4[%c0_5, %c0_6], %8 {strides = array<i32>} : memref<512x8xf32, #tpu.memory_space<vmem>>, vector<512x8xf32>,
    return
  }
  func.func @transform_0(%arg0: i32) -> (i32, i32) {
    %c0_i32 = arith.constant 0 : i32
    %c0_i32_0 = arith.constant 0 : i32
    return %arg0, %c0_i32 : i32, i32
  }
  func.func @transform_1(%arg0: i32) -> (i32, i32) {
    %c0_i32 = arith.constant 0 : i32
    %c0_i32_0 = arith.constant 0 : i32
    %c0_i32_1 = arith.constant 0 : i32
    return %c0_i32, %c0_i32_0 : i32, i32
  }
  func.func @transform_2(%arg0: i32) -> (i32, i32) {
    %c0_i32 = arith.constant 0 : i32
    %c0_i32_0 = arith.constant 0 : i32
    %c0_i32_1 = arith.constant 0 : i32
    return %c0_i32, %c0_i32_0 : i32, i32
  }
  func.func @transform_3(%arg0: i32) -> (i32, i32) {
    %c0_i32 = arith.constant 0 : i32
    %c0_i32_0 = arith.constant 0 : i32
    return %arg0, %c0_i32 : i32, i32
  }
}

module attributes {stable_mosaic.version = 11 : i64} {
  func.func @_conv3x3_bn_relu_kernel(%arg0: i32, %arg1: i32, %arg2: memref<1x352x8xbf16, #tpu.memory_space<vmem>>, %arg3: memref<9x8x16xbf16, #tpu.memory_space<vmem>>, %arg4: memref<1x16xf32, #tpu.memory_space<vmem>>, %arg5: memref<1x16xf32, #tpu.memory_space<vmem>>, %arg6: memref<1x72x16xf32, #tpu.memory_space<vmem>>) attributes {dimension_semantics = [#tpu.dimension_semantics<parallel>, #tpu.dimension_semantics<parallel>], iteration_bounds = array<i64: 2, 1>, scalar_prefetch = 0 : i64, scratch_operands = 0 : i64, tpu.core_type = #tpu.core_type<tc>, window_params = [{transform_indices = @transform_0, window_bounds = array<i64: 1, 352, 8>}, {transform_indices = @transform_1, window_bounds = array<i64: 9, 8, 16>}, {transform_indices = @transform_2, window_bounds = array<i64: 1, 16>}, {transform_indices = @transform_3, window_bounds = array<i64: 1, 16>}, {transform_indices = @transform_4, window_bounds = array<i64: 1, 72, 16>}]} {
    %c0 = arith.constant 0 : index
    %c0_0 = arith.constant 0 : index
    %c0_1 = arith.constant 0 : index
    %0 = vector.load %arg2[%c0, %c0_0, %c0_1] : memref<1x352x8xbf16, #tpu.memory_space<vmem>>, vector<1x72x8xbf16>
    %1 = vector.shape_cast %0 : vector<1x72x8xbf16> to vector<72x8xbf16>
    %c0_2 = arith.constant 0 : index
    %c0_3 = arith.constant 0 : index
    %c0_4 = arith.constant 0 : index
    %2 = vector.load %arg3[%c0_2, %c0_3, %c0_4] : memref<9x8x16xbf16, #tpu.memory_space<vmem>>, vector<1x8x16xbf16>
    %3 = vector.shape_cast %2 : vector<1x8x16xbf16> to vector<8x16xbf16>
    %cst = arith.constant dense<0.000000e+00> : vector<72x16xf32>
    %4 = tpu.matmul %1, %3, %cst {dimension_numbers = #tpu.dot_dimension_numbers<[1], [0], [0], [1], [0, 0, 1, 1], [], []>} : vector<72x8xbf16>, vector<8x16xbf16>, vector<72x16xf32> -> vector<72x16xf32>
    %c0_5 = arith.constant 0 : index
    %c88 = arith.constant 88 : index
    %c0_6 = arith.constant 0 : index
    %5 = vector.load %arg2[%c0_5, %c88, %c0_6] : memref<1x352x8xbf16, #tpu.memory_space<vmem>>, vector<1x72x8xbf16>
    %6 = vector.shape_cast %5 : vector<1x72x8xbf16> to vector<72x8xbf16>
    %c1 = arith.constant 1 : index
    %c0_7 = arith.constant 0 : index
    %c0_8 = arith.constant 0 : index
    %7 = vector.load %arg3[%c1, %c0_7, %c0_8] : memref<9x8x16xbf16, #tpu.memory_space<vmem>>, vector<1x8x16xbf16>
    %8 = vector.shape_cast %7 : vector<1x8x16xbf16> to vector<8x16xbf16>
    %cst_9 = arith.constant dense<0.000000e+00> : vector<72x16xf32>
    %9 = tpu.matmul %6, %8, %cst_9 {dimension_numbers = #tpu.dot_dimension_numbers<[1], [0], [0], [1], [0, 0, 1, 1], [], []>} : vector<72x8xbf16>, vector<8x16xbf16>, vector<72x16xf32> -> vector<72x16xf32>
    %10 = arith.addf %4, %9 : vector<72x16xf32>
    %c0_10 = arith.constant 0 : index
    %c1_11 = arith.constant 1 : index
    %c0_12 = arith.constant 0 : index
    %11 = vector.load %arg2[%c0_10, %c1_11, %c0_12] : memref<1x352x8xbf16, #tpu.memory_space<vmem>>, vector<1x72x8xbf16>
    %12 = vector.shape_cast %11 : vector<1x72x8xbf16> to vector<72x8xbf16>
    %c2 = arith.constant 2 : index
    %c0_13 = arith.constant 0 : index
    %c0_14 = arith.constant 0 : index
    %13 = vector.load %arg3[%c2, %c0_13, %c0_14] : memref<9x8x16xbf16, #tpu.memory_space<vmem>>, vector<1x8x16xbf16>
    %14 = vector.shape_cast %13 : vector<1x8x16xbf16> to vector<8x16xbf16>
    %cst_15 = arith.constant dense<0.000000e+00> : vector<72x16xf32>
    %15 = tpu.matmul %12, %14, %cst_15 {dimension_numbers = #tpu.dot_dimension_numbers<[1], [0], [0], [1], [0, 0, 1, 1], [], []>} : vector<72x8xbf16>, vector<8x16xbf16>, vector<72x16xf32> -> vector<72x16xf32>
    %16 = arith.addf %10, %15 : vector<72x16xf32>
    %c0_16 = arith.constant 0 : index
    %c176 = arith.constant 176 : index
    %c0_17 = arith.constant 0 : index
    %17 = vector.load %arg2[%c0_16, %c176, %c0_17] : memref<1x352x8xbf16, #tpu.memory_space<vmem>>, vector<1x72x8xbf16>
    %18 = vector.shape_cast %17 : vector<1x72x8xbf16> to vector<72x8xbf16>
    %c3 = arith.constant 3 : index
    %c0_18 = arith.constant 0 : index
    %c0_19 = arith.constant 0 : index
    %19 = vector.load %arg3[%c3, %c0_18, %c0_19] : memref<9x8x16xbf16, #tpu.memory_space<vmem>>, vector<1x8x16xbf16>
    %20 = vector.shape_cast %19 : vector<1x8x16xbf16> to vector<8x16xbf16>
    %cst_20 = arith.constant dense<0.000000e+00> : vector<72x16xf32>
    %21 = tpu.matmul %18, %20, %cst_20 {dimension_numbers = #tpu.dot_dimension_numbers<[1], [0], [0], [1], [0, 0, 1, 1], [], []>} : vector<72x8xbf16>, vector<8x16xbf16>, vector<72x16xf32> -> vector<72x16xf32>
    %22 = arith.addf %16, %21 : vector<72x16xf32>
    %c0_21 = arith.constant 0 : index
    %c264 = arith.constant 264 : index
    %c0_22 = arith.constant 0 : index
    %23 = vector.load %arg2[%c0_21, %c264, %c0_22] : memref<1x352x8xbf16, #tpu.memory_space<vmem>>, vector<1x72x8xbf16>
    %24 = vector.shape_cast %23 : vector<1x72x8xbf16> to vector<72x8xbf16>
    %c4 = arith.constant 4 : index
    %c0_23 = arith.constant 0 : index
    %c0_24 = arith.constant 0 : index
    %25 = vector.load %arg3[%c4, %c0_23, %c0_24] : memref<9x8x16xbf16, #tpu.memory_space<vmem>>, vector<1x8x16xbf16>
    %26 = vector.shape_cast %25 : vector<1x8x16xbf16> to vector<8x16xbf16>
    %cst_25 = arith.constant dense<0.000000e+00> : vector<72x16xf32>
    %27 = tpu.matmul %24, %26, %cst_25 {dimension_numbers = #tpu.dot_dimension_numbers<[1], [0], [0], [1], [0, 0, 1, 1], [], []>} : vector<72x8xbf16>, vector<8x16xbf16>, vector<72x16xf32> -> vector<72x16xf32>
    %28 = arith.addf %22, %27 : vector<72x16xf32>
    %c0_26 = arith.constant 0 : index
    %c177 = arith.constant 177 : index
    %c0_27 = arith.constant 0 : index
    %29 = vector.load %arg2[%c0_26, %c177, %c0_27] : memref<1x352x8xbf16, #tpu.memory_space<vmem>>, vector<1x72x8xbf16>
    %30 = vector.shape_cast %29 : vector<1x72x8xbf16> to vector<72x8xbf16>
    %c5 = arith.constant 5 : index
    %c0_28 = arith.constant 0 : index
    %c0_29 = arith.constant 0 : index
    %31 = vector.load %arg3[%c5, %c0_28, %c0_29] : memref<9x8x16xbf16, #tpu.memory_space<vmem>>, vector<1x8x16xbf16>
    %32 = vector.shape_cast %31 : vector<1x8x16xbf16> to vector<8x16xbf16>
    %cst_30 = arith.constant dense<0.000000e+00> : vector<72x16xf32>
    %33 = tpu.matmul %30, %32, %cst_30 {dimension_numbers = #tpu.dot_dimension_numbers<[1], [0], [0], [1], [0, 0, 1, 1], [], []>} : vector<72x8xbf16>, vector<8x16xbf16>, vector<72x16xf32> -> vector<72x16xf32>
    %34 = arith.addf %28, %33 : vector<72x16xf32>
    %c0_31 = arith.constant 0 : index
    %c9 = arith.constant 9 : index
    %c0_32 = arith.constant 0 : index
    %35 = vector.load %arg2[%c0_31, %c9, %c0_32] : memref<1x352x8xbf16, #tpu.memory_space<vmem>>, vector<1x72x8xbf16>
    %36 = vector.shape_cast %35 : vector<1x72x8xbf16> to vector<72x8xbf16>
    %c6 = arith.constant 6 : index
    %c0_33 = arith.constant 0 : index
    %c0_34 = arith.constant 0 : index
    %37 = vector.load %arg3[%c6, %c0_33, %c0_34] : memref<9x8x16xbf16, #tpu.memory_space<vmem>>, vector<1x8x16xbf16>
    %38 = vector.shape_cast %37 : vector<1x8x16xbf16> to vector<8x16xbf16>
    %cst_35 = arith.constant dense<0.000000e+00> : vector<72x16xf32>
    %39 = tpu.matmul %36, %38, %cst_35 {dimension_numbers = #tpu.dot_dimension_numbers<[1], [0], [0], [1], [0, 0, 1, 1], [], []>} : vector<72x8xbf16>, vector<8x16xbf16>, vector<72x16xf32> -> vector<72x16xf32>
    %40 = arith.addf %34, %39 : vector<72x16xf32>
    %c0_36 = arith.constant 0 : index
    %c97 = arith.constant 97 : index
    %c0_37 = arith.constant 0 : index
    %41 = vector.load %arg2[%c0_36, %c97, %c0_37] : memref<1x352x8xbf16, #tpu.memory_space<vmem>>, vector<1x72x8xbf16>
    %42 = vector.shape_cast %41 : vector<1x72x8xbf16> to vector<72x8xbf16>
    %c7 = arith.constant 7 : index
    %c0_38 = arith.constant 0 : index
    %c0_39 = arith.constant 0 : index
    %43 = vector.load %arg3[%c7, %c0_38, %c0_39] : memref<9x8x16xbf16, #tpu.memory_space<vmem>>, vector<1x8x16xbf16>
    %44 = vector.shape_cast %43 : vector<1x8x16xbf16> to vector<8x16xbf16>
    %cst_40 = arith.constant dense<0.000000e+00> : vector<72x16xf32>
    %45 = tpu.matmul %42, %44, %cst_40 {dimension_numbers = #tpu.dot_dimension_numbers<[1], [0], [0], [1], [0, 0, 1, 1], [], []>} : vector<72x8xbf16>, vector<8x16xbf16>, vector<72x16xf32> -> vector<72x16xf32>
    %46 = arith.addf %40, %45 : vector<72x16xf32>
    %c0_41 = arith.constant 0 : index
    %c10 = arith.constant 10 : index
    %c0_42 = arith.constant 0 : index
    %47 = vector.load %arg2[%c0_41, %c10, %c0_42] : memref<1x352x8xbf16, #tpu.memory_space<vmem>>, vector<1x72x8xbf16>
    %48 = vector.shape_cast %47 : vector<1x72x8xbf16> to vector<72x8xbf16>
    %c8 = arith.constant 8 : index
    %c0_43 = arith.constant 0 : index
    %c0_44 = arith.constant 0 : index
    %49 = vector.load %arg3[%c8, %c0_43, %c0_44] : memref<9x8x16xbf16, #tpu.memory_space<vmem>>, vector<1x8x16xbf16>
    %50 = vector.shape_cast %49 : vector<1x8x16xbf16> to vector<8x16xbf16>
    %cst_45 = arith.constant dense<0.000000e+00> : vector<72x16xf32>
    %51 = tpu.matmul %48, %50, %cst_45 {dimension_numbers = #tpu.dot_dimension_numbers<[1], [0], [0], [1], [0, 0, 1, 1], [], []>} : vector<72x8xbf16>, vector<8x16xbf16>, vector<72x16xf32> -> vector<72x16xf32>
    %52 = arith.addf %46, %51 : vector<72x16xf32>
    %c0_46 = arith.constant 0 : index
    %c0_47 = arith.constant 0 : index
    %53 = vector.load %arg4[%c0_46, %c0_47] : memref<1x16xf32, #tpu.memory_space<vmem>>, vector<1x16xf32>
    %54 = vector.broadcast %53 : vector<1x16xf32> to vector<72x16xf32>
    %55 = arith.mulf %52, %54 : vector<72x16xf32>
    %c0_48 = arith.constant 0 : index
    %c0_49 = arith.constant 0 : index
    %56 = vector.load %arg5[%c0_48, %c0_49] : memref<1x16xf32, #tpu.memory_space<vmem>>, vector<1x16xf32>
    %57 = vector.broadcast %56 : vector<1x16xf32> to vector<72x16xf32>
    %58 = arith.addf %55, %57 : vector<72x16xf32>
    %cst_50 = arith.constant 0.000000e+00 : f32
    %59 = vector.broadcast %cst_50 : f32 to vector<72x16xf32>
    %60 = arith.maximumf %58, %59 : vector<72x16xf32>
    %c0_51 = arith.constant 0 : index
    %c0_52 = arith.constant 0 : index
    %c0_53 = arith.constant 0 : index
    %61 = vector.load %arg6[%c0_51, %c0_52, %c0_53] : memref<1x72x16xf32, #tpu.memory_space<vmem>>, vector<1x72x16xf32>
    %62 = vector.shape_cast %61 : vector<1x72x16xf32> to vector<72x16xf32>
    %63 = vector.shape_cast %60 : vector<72x16xf32> to vector<1x72x16xf32>
    tpu.vector_store %arg6[%c0_51, %c0_52, %c0_53], %63 {strides = array<i32>} : memref<1x72x16xf32, #tpu.memory_space<vmem>>, vector<1x72x16xf32>,
    return
  }
  func.func @transform_0(%arg0: i32, %arg1: i32) -> (i32, i32, i32) {
    %c0_i32 = arith.constant 0 : i32
    %c0_i32_0 = arith.constant 0 : i32
    %c0_i32_1 = arith.constant 0 : i32
    return %arg0, %c0_i32, %c0_i32_0 : i32, i32, i32
  }
  func.func @transform_1(%arg0: i32, %arg1: i32) -> (i32, i32, i32) {
    %c0_i32 = arith.constant 0 : i32
    %c0_i32_0 = arith.constant 0 : i32
    %c0_i32_1 = arith.constant 0 : i32
    return %c0_i32, %c0_i32_0, %arg1 : i32, i32, i32
  }
  func.func @transform_2(%arg0: i32, %arg1: i32) -> (i32, i32) {
    %c0_i32 = arith.constant 0 : i32
    %c0_i32_0 = arith.constant 0 : i32
    return %c0_i32, %arg1 : i32, i32
  }
  func.func @transform_3(%arg0: i32, %arg1: i32) -> (i32, i32) {
    %c0_i32 = arith.constant 0 : i32
    %c0_i32_0 = arith.constant 0 : i32
    return %c0_i32, %arg1 : i32, i32
  }
  func.func @transform_4(%arg0: i32, %arg1: i32) -> (i32, i32, i32) {
    %c0_i32 = arith.constant 0 : i32
    %c0_i32_0 = arith.constant 0 : i32
    return %arg0, %c0_i32, %arg1 : i32, i32, i32
  }
}

module attributes {stable_mosaic.version = 11 : i64} {
  func.func @_conv3x3_shortcut_kernel(%arg0: i32, %arg1: i32, %arg2: memref<1x104x16xbf16, #tpu.memory_space<vmem>>, %arg3: memref<9x16x16xbf16, #tpu.memory_space<vmem>>, %arg4: memref<1x80x8xbf16, #tpu.memory_space<vmem>>, %arg5: memref<8x16xbf16, #tpu.memory_space<vmem>>, %arg6: memref<1x80x16xf32, #tpu.memory_space<vmem>>) attributes {dimension_semantics = [#tpu.dimension_semantics<parallel>, #tpu.dimension_semantics<parallel>], iteration_bounds = array<i64: 2, 1>, scalar_prefetch = 0 : i64, scratch_operands = 0 : i64, tpu.core_type = #tpu.core_type<tc>, window_params = [{transform_indices = @transform_0, window_bounds = array<i64: 1, 104, 16>}, {transform_indices = @transform_1, window_bounds = array<i64: 9, 16, 16>}, {transform_indices = @transform_2, window_bounds = array<i64: 1, 80, 8>}, {transform_indices = @transform_3, window_bounds = array<i64: 8, 16>}, {transform_indices = @transform_4, window_bounds = array<i64: 1, 80, 16>}]} {
    %c0 = arith.constant 0 : index
    %c0_0 = arith.constant 0 : index
    %c0_1 = arith.constant 0 : index
    %0 = vector.load %arg2[%c0, %c0_0, %c0_1] : memref<1x104x16xbf16, #tpu.memory_space<vmem>>, vector<1x80x16xbf16>
    %1 = vector.shape_cast %0 : vector<1x80x16xbf16> to vector<80x16xbf16>
    %c0_2 = arith.constant 0 : index
    %c0_3 = arith.constant 0 : index
    %c0_4 = arith.constant 0 : index
    %2 = vector.load %arg3[%c0_2, %c0_3, %c0_4] : memref<9x16x16xbf16, #tpu.memory_space<vmem>>, vector<1x16x16xbf16>
    %3 = vector.shape_cast %2 : vector<1x16x16xbf16> to vector<16x16xbf16>
    %cst = arith.constant dense<0.000000e+00> : vector<80x16xf32>
    %4 = tpu.matmul %1, %3, %cst {dimension_numbers = #tpu.dot_dimension_numbers<[1], [0], [0], [1], [0, 0, 1, 1], [], []>} : vector<80x16xbf16>, vector<16x16xbf16>, vector<80x16xf32> -> vector<80x16xf32>
    %c0_5 = arith.constant 0 : index
    %c1 = arith.constant 1 : index
    %c0_6 = arith.constant 0 : index
    %5 = vector.load %arg2[%c0_5, %c1, %c0_6] : memref<1x104x16xbf16, #tpu.memory_space<vmem>>, vector<1x80x16xbf16>
    %6 = vector.shape_cast %5 : vector<1x80x16xbf16> to vector<80x16xbf16>
    %c1_7 = arith.constant 1 : index
    %c0_8 = arith.constant 0 : index
    %c0_9 = arith.constant 0 : index
    %7 = vector.load %arg3[%c1_7, %c0_8, %c0_9] : memref<9x16x16xbf16, #tpu.memory_space<vmem>>, vector<1x16x16xbf16>
    %8 = vector.shape_cast %7 : vector<1x16x16xbf16> to vector<16x16xbf16>
    %cst_10 = arith.constant dense<0.000000e+00> : vector<80x16xf32>
    %9 = tpu.matmul %6, %8, %cst_10 {dimension_numbers = #tpu.dot_dimension_numbers<[1], [0], [0], [1], [0, 0, 1, 1], [], []>} : vector<80x16xbf16>, vector<16x16xbf16>, vector<80x16xf32> -> vector<80x16xf32>
    %10 = arith.addf %4, %9 : vector<80x16xf32>
    %c0_11 = arith.constant 0 : index
    %c2 = arith.constant 2 : index
    %c0_12 = arith.constant 0 : index
    %11 = vector.load %arg2[%c0_11, %c2, %c0_12] : memref<1x104x16xbf16, #tpu.memory_space<vmem>>, vector<1x80x16xbf16>
    %12 = vector.shape_cast %11 : vector<1x80x16xbf16> to vector<80x16xbf16>
    %c2_13 = arith.constant 2 : index
    %c0_14 = arith.constant 0 : index
    %c0_15 = arith.constant 0 : index
    %13 = vector.load %arg3[%c2_13, %c0_14, %c0_15] : memref<9x16x16xbf16, #tpu.memory_space<vmem>>, vector<1x16x16xbf16>
    %14 = vector.shape_cast %13 : vector<1x16x16xbf16> to vector<16x16xbf16>
    %cst_16 = arith.constant dense<0.000000e+00> : vector<80x16xf32>
    %15 = tpu.matmul %12, %14, %cst_16 {dimension_numbers = #tpu.dot_dimension_numbers<[1], [0], [0], [1], [0, 0, 1, 1], [], []>} : vector<80x16xbf16>, vector<16x16xbf16>, vector<80x16xf32> -> vector<80x16xf32>
    %16 = arith.addf %10, %15 : vector<80x16xf32>
    %c0_17 = arith.constant 0 : index
    %c10 = arith.constant 10 : index
    %c0_18 = arith.constant 0 : index
    %17 = vector.load %arg2[%c0_17, %c10, %c0_18] : memref<1x104x16xbf16, #tpu.memory_space<vmem>>, vector<1x80x16xbf16>
    %18 = vector.shape_cast %17 : vector<1x80x16xbf16> to vector<80x16xbf16>
    %c3 = arith.constant 3 : index
    %c0_19 = arith.constant 0 : index
    %c0_20 = arith.constant 0 : index
    %19 = vector.load %arg3[%c3, %c0_19, %c0_20] : memref<9x16x16xbf16, #tpu.memory_space<vmem>>, vector<1x16x16xbf16>
    %20 = vector.shape_cast %19 : vector<1x16x16xbf16> to vector<16x16xbf16>
    %cst_21 = arith.constant dense<0.000000e+00> : vector<80x16xf32>
    %21 = tpu.matmul %18, %20, %cst_21 {dimension_numbers = #tpu.dot_dimension_numbers<[1], [0], [0], [1], [0, 0, 1, 1], [], []>} : vector<80x16xbf16>, vector<16x16xbf16>, vector<80x16xf32> -> vector<80x16xf32>
    %22 = arith.addf %16, %21 : vector<80x16xf32>
    %c0_22 = arith.constant 0 : index
    %c11 = arith.constant 11 : index
    %c0_23 = arith.constant 0 : index
    %23 = vector.load %arg2[%c0_22, %c11, %c0_23] : memref<1x104x16xbf16, #tpu.memory_space<vmem>>, vector<1x80x16xbf16>
    %24 = vector.shape_cast %23 : vector<1x80x16xbf16> to vector<80x16xbf16>
    %c4 = arith.constant 4 : index
    %c0_24 = arith.constant 0 : index
    %c0_25 = arith.constant 0 : index
    %25 = vector.load %arg3[%c4, %c0_24, %c0_25] : memref<9x16x16xbf16, #tpu.memory_space<vmem>>, vector<1x16x16xbf16>
    %26 = vector.shape_cast %25 : vector<1x16x16xbf16> to vector<16x16xbf16>
    %cst_26 = arith.constant dense<0.000000e+00> : vector<80x16xf32>
    %27 = tpu.matmul %24, %26, %cst_26 {dimension_numbers = #tpu.dot_dimension_numbers<[1], [0], [0], [1], [0, 0, 1, 1], [], []>} : vector<80x16xbf16>, vector<16x16xbf16>, vector<80x16xf32> -> vector<80x16xf32>
    %28 = arith.addf %22, %27 : vector<80x16xf32>
    %c0_27 = arith.constant 0 : index
    %c12 = arith.constant 12 : index
    %c0_28 = arith.constant 0 : index
    %29 = vector.load %arg2[%c0_27, %c12, %c0_28] : memref<1x104x16xbf16, #tpu.memory_space<vmem>>, vector<1x80x16xbf16>
    %30 = vector.shape_cast %29 : vector<1x80x16xbf16> to vector<80x16xbf16>
    %c5 = arith.constant 5 : index
    %c0_29 = arith.constant 0 : index
    %c0_30 = arith.constant 0 : index
    %31 = vector.load %arg3[%c5, %c0_29, %c0_30] : memref<9x16x16xbf16, #tpu.memory_space<vmem>>, vector<1x16x16xbf16>
    %32 = vector.shape_cast %31 : vector<1x16x16xbf16> to vector<16x16xbf16>
    %cst_31 = arith.constant dense<0.000000e+00> : vector<80x16xf32>
    %33 = tpu.matmul %30, %32, %cst_31 {dimension_numbers = #tpu.dot_dimension_numbers<[1], [0], [0], [1], [0, 0, 1, 1], [], []>} : vector<80x16xbf16>, vector<16x16xbf16>, vector<80x16xf32> -> vector<80x16xf32>
    %34 = arith.addf %28, %33 : vector<80x16xf32>
    %c0_32 = arith.constant 0 : index
    %c20 = arith.constant 20 : index
    %c0_33 = arith.constant 0 : index
    %35 = vector.load %arg2[%c0_32, %c20, %c0_33] : memref<1x104x16xbf16, #tpu.memory_space<vmem>>, vector<1x80x16xbf16>
    %36 = vector.shape_cast %35 : vector<1x80x16xbf16> to vector<80x16xbf16>
    %c6 = arith.constant 6 : index
    %c0_34 = arith.constant 0 : index
    %c0_35 = arith.constant 0 : index
    %37 = vector.load %arg3[%c6, %c0_34, %c0_35] : memref<9x16x16xbf16, #tpu.memory_space<vmem>>, vector<1x16x16xbf16>
    %38 = vector.shape_cast %37 : vector<1x16x16xbf16> to vector<16x16xbf16>
    %cst_36 = arith.constant dense<0.000000e+00> : vector<80x16xf32>
    %39 = tpu.matmul %36, %38, %cst_36 {dimension_numbers = #tpu.dot_dimension_numbers<[1], [0], [0], [1], [0, 0, 1, 1], [], []>} : vector<80x16xbf16>, vector<16x16xbf16>, vector<80x16xf32> -> vector<80x16xf32>
    %40 = arith.addf %34, %39 : vector<80x16xf32>
    %c0_37 = arith.constant 0 : index
    %c21 = arith.constant 21 : index
    %c0_38 = arith.constant 0 : index
    %41 = vector.load %arg2[%c0_37, %c21, %c0_38] : memref<1x104x16xbf16, #tpu.memory_space<vmem>>, vector<1x80x16xbf16>
    %42 = vector.shape_cast %41 : vector<1x80x16xbf16> to vector<80x16xbf16>
    %c7 = arith.constant 7 : index
    %c0_39 = arith.constant 0 : index
    %c0_40 = arith.constant 0 : index
    %43 = vector.load %arg3[%c7, %c0_39, %c0_40] : memref<9x16x16xbf16, #tpu.memory_space<vmem>>, vector<1x16x16xbf16>
    %44 = vector.shape_cast %43 : vector<1x16x16xbf16> to vector<16x16xbf16>
    %cst_41 = arith.constant dense<0.000000e+00> : vector<80x16xf32>
    %45 = tpu.matmul %42, %44, %cst_41 {dimension_numbers = #tpu.dot_dimension_numbers<[1], [0], [0], [1], [0, 0, 1, 1], [], []>} : vector<80x16xbf16>, vector<16x16xbf16>, vector<80x16xf32> -> vector<80x16xf32>
    %46 = arith.addf %40, %45 : vector<80x16xf32>
    %c0_42 = arith.constant 0 : index
    %c22 = arith.constant 22 : index
    %c0_43 = arith.constant 0 : index
    %47 = vector.load %arg2[%c0_42, %c22, %c0_43] : memref<1x104x16xbf16, #tpu.memory_space<vmem>>, vector<1x80x16xbf16>
    %48 = vector.shape_cast %47 : vector<1x80x16xbf16> to vector<80x16xbf16>
    %c8 = arith.constant 8 : index
    %c0_44 = arith.constant 0 : index
    %c0_45 = arith.constant 0 : index
    %49 = vector.load %arg3[%c8, %c0_44, %c0_45] : memref<9x16x16xbf16, #tpu.memory_space<vmem>>, vector<1x16x16xbf16>
    %50 = vector.shape_cast %49 : vector<1x16x16xbf16> to vector<16x16xbf16>
    %cst_46 = arith.constant dense<0.000000e+00> : vector<80x16xf32>
    %51 = tpu.matmul %48, %50, %cst_46 {dimension_numbers = #tpu.dot_dimension_numbers<[1], [0], [0], [1], [0, 0, 1, 1], [], []>} : vector<80x16xbf16>, vector<16x16xbf16>, vector<80x16xf32> -> vector<80x16xf32>
    %52 = arith.addf %46, %51 : vector<80x16xf32>
    %c0_47 = arith.constant 0 : index
    %c0_48 = arith.constant 0 : index
    %c0_49 = arith.constant 0 : index
    %53 = vector.load %arg4[%c0_47, %c0_48, %c0_49] : memref<1x80x8xbf16, #tpu.memory_space<vmem>>, vector<1x80x8xbf16>
    %54 = vector.shape_cast %53 : vector<1x80x8xbf16> to vector<80x8xbf16>
    %c0_50 = arith.constant 0 : index
    %c0_51 = arith.constant 0 : index
    %55 = vector.load %arg5[%c0_50, %c0_51] : memref<8x16xbf16, #tpu.memory_space<vmem>>, vector<8x16xbf16>
    %cst_52 = arith.constant dense<0.000000e+00> : vector<80x16xf32>
    %56 = tpu.matmul %54, %55, %cst_52 {dimension_numbers = #tpu.dot_dimension_numbers<[1], [0], [0], [1], [0, 0, 1, 1], [], []>} : vector<80x8xbf16>, vector<8x16xbf16>, vector<80x16xf32> -> vector<80x16xf32>
    %57 = arith.addf %52, %56 : vector<80x16xf32>
    %c0_53 = arith.constant 0 : index
    %c0_54 = arith.constant 0 : index
    %c0_55 = arith.constant 0 : index
    %58 = vector.load %arg6[%c0_53, %c0_54, %c0_55] : memref<1x80x16xf32, #tpu.memory_space<vmem>>, vector<1x80x16xf32>
    %59 = vector.shape_cast %58 : vector<1x80x16xf32> to vector<80x16xf32>
    %60 = vector.shape_cast %57 : vector<80x16xf32> to vector<1x80x16xf32>
    tpu.vector_store %arg6[%c0_53, %c0_54, %c0_55], %60 {strides = array<i32>} : memref<1x80x16xf32, #tpu.memory_space<vmem>>, vector<1x80x16xf32>,
    return
  }
  func.func @transform_0(%arg0: i32, %arg1: i32) -> (i32, i32, i32) {
    %c0_i32 = arith.constant 0 : i32
    %c0_i32_0 = arith.constant 0 : i32
    %c0_i32_1 = arith.constant 0 : i32
    return %arg0, %c0_i32, %c0_i32_0 : i32, i32, i32
  }
  func.func @transform_1(%arg0: i32, %arg1: i32) -> (i32, i32, i32) {
    %c0_i32 = arith.constant 0 : i32
    %c0_i32_0 = arith.constant 0 : i32
    %c0_i32_1 = arith.constant 0 : i32
    return %c0_i32, %c0_i32_0, %arg1 : i32, i32, i32
  }
  func.func @transform_2(%arg0: i32, %arg1: i32) -> (i32, i32, i32) {
    %c0_i32 = arith.constant 0 : i32
    %c0_i32_0 = arith.constant 0 : i32
    %c0_i32_1 = arith.constant 0 : i32
    return %arg0, %c0_i32, %c0_i32_0 : i32, i32, i32
  }
  func.func @transform_3(%arg0: i32, %arg1: i32) -> (i32, i32) {
    %c0_i32 = arith.constant 0 : i32
    %c0_i32_0 = arith.constant 0 : i32
    return %c0_i32, %arg1 : i32, i32
  }
  func.func @transform_4(%arg0: i32, %arg1: i32) -> (i32, i32, i32) {
    %c0_i32 = arith.constant 0 : i32
    %c0_i32_0 = arith.constant 0 : i32
    return %arg0, %c0_i32, %arg1 : i32, i32, i32
  }
}

module attributes {stable_mosaic.version = 11 : i64} {
  func.func @_bn_relu_kernel(%arg0: i32, %arg1: memref<128x16xf32, #tpu.memory_space<vmem>>, %arg2: memref<1x16xf32, #tpu.memory_space<vmem>>, %arg3: memref<1x16xf32, #tpu.memory_space<vmem>>, %arg4: memref<128x16xf32, #tpu.memory_space<vmem>>) attributes {dimension_semantics = [#tpu.dimension_semantics<parallel>], iteration_bounds = array<i64: 1>, scalar_prefetch = 0 : i64, scratch_operands = 0 : i64, tpu.core_type = #tpu.core_type<tc>, window_params = [{transform_indices = @transform_0, window_bounds = array<i64: 128, 16>}, {pipeline_mode = #tpu.pipeline_mode<synchronous>, transform_indices = @transform_1, window_bounds = array<i64: 1, 16>}, {pipeline_mode = #tpu.pipeline_mode<synchronous>, transform_indices = @transform_2, window_bounds = array<i64: 1, 16>}, {transform_indices = @transform_3, window_bounds = array<i64: 128, 16>}]} {
    %c0 = arith.constant 0 : index
    %c0_0 = arith.constant 0 : index
    %0 = vector.load %arg1[%c0, %c0_0] : memref<128x16xf32, #tpu.memory_space<vmem>>, vector<128x16xf32>
    %c0_1 = arith.constant 0 : index
    %c0_2 = arith.constant 0 : index
    %1 = vector.load %arg2[%c0_1, %c0_2] : memref<1x16xf32, #tpu.memory_space<vmem>>, vector<1x16xf32>
    %2 = vector.broadcast %1 : vector<1x16xf32> to vector<128x16xf32>
    %3 = arith.mulf %0, %2 : vector<128x16xf32>
    %c0_3 = arith.constant 0 : index
    %c0_4 = arith.constant 0 : index
    %4 = vector.load %arg3[%c0_3, %c0_4] : memref<1x16xf32, #tpu.memory_space<vmem>>, vector<1x16xf32>
    %5 = vector.broadcast %4 : vector<1x16xf32> to vector<128x16xf32>
    %6 = arith.addf %3, %5 : vector<128x16xf32>
    %cst = arith.constant 0.000000e+00 : f32
    %7 = vector.broadcast %cst : f32 to vector<128x16xf32>
    %8 = arith.maximumf %6, %7 : vector<128x16xf32>
    %c0_5 = arith.constant 0 : index
    %c0_6 = arith.constant 0 : index
    %9 = vector.load %arg4[%c0_5, %c0_6] : memref<128x16xf32, #tpu.memory_space<vmem>>, vector<128x16xf32>
    tpu.vector_store %arg4[%c0_5, %c0_6], %8 {strides = array<i32>} : memref<128x16xf32, #tpu.memory_space<vmem>>, vector<128x16xf32>,
    return
  }
  func.func @transform_0(%arg0: i32) -> (i32, i32) {
    %c0_i32 = arith.constant 0 : i32
    %c0_i32_0 = arith.constant 0 : i32
    return %arg0, %c0_i32 : i32, i32
  }
  func.func @transform_1(%arg0: i32) -> (i32, i32) {
    %c0_i32 = arith.constant 0 : i32
    %c0_i32_0 = arith.constant 0 : i32
    %c0_i32_1 = arith.constant 0 : i32
    return %c0_i32, %c0_i32_0 : i32, i32
  }
  func.func @transform_2(%arg0: i32) -> (i32, i32) {
    %c0_i32 = arith.constant 0 : i32
    %c0_i32_0 = arith.constant 0 : i32
    %c0_i32_1 = arith.constant 0 : i32
    return %c0_i32, %c0_i32_0 : i32, i32
  }
  func.func @transform_3(%arg0: i32) -> (i32, i32) {
    %c0_i32 = arith.constant 0 : i32
    %c0_i32_0 = arith.constant 0 : i32
    return %arg0, %c0_i32 : i32, i32
  }
}

module attributes {stable_mosaic.version = 11 : i64} {
  func.func @_conv3x3_bn_relu_kernel(%arg0: i32, %arg1: i32, %arg2: memref<1x104x16xbf16, #tpu.memory_space<vmem>>, %arg3: memref<9x16x16xbf16, #tpu.memory_space<vmem>>, %arg4: memref<1x16xf32, #tpu.memory_space<vmem>>, %arg5: memref<1x16xf32, #tpu.memory_space<vmem>>, %arg6: memref<1x80x16xf32, #tpu.memory_space<vmem>>) attributes {dimension_semantics = [#tpu.dimension_semantics<parallel>, #tpu.dimension_semantics<parallel>], iteration_bounds = array<i64: 2, 1>, scalar_prefetch = 0 : i64, scratch_operands = 0 : i64, tpu.core_type = #tpu.core_type<tc>, window_params = [{transform_indices = @transform_0, window_bounds = array<i64: 1, 104, 16>}, {transform_indices = @transform_1, window_bounds = array<i64: 9, 16, 16>}, {transform_indices = @transform_2, window_bounds = array<i64: 1, 16>}, {transform_indices = @transform_3, window_bounds = array<i64: 1, 16>}, {transform_indices = @transform_4, window_bounds = array<i64: 1, 80, 16>}]} {
    %c0 = arith.constant 0 : index
    %c0_0 = arith.constant 0 : index
    %c0_1 = arith.constant 0 : index
    %0 = vector.load %arg2[%c0, %c0_0, %c0_1] : memref<1x104x16xbf16, #tpu.memory_space<vmem>>, vector<1x80x16xbf16>
    %1 = vector.shape_cast %0 : vector<1x80x16xbf16> to vector<80x16xbf16>
    %c0_2 = arith.constant 0 : index
    %c0_3 = arith.constant 0 : index
    %c0_4 = arith.constant 0 : index
    %2 = vector.load %arg3[%c0_2, %c0_3, %c0_4] : memref<9x16x16xbf16, #tpu.memory_space<vmem>>, vector<1x16x16xbf16>
    %3 = vector.shape_cast %2 : vector<1x16x16xbf16> to vector<16x16xbf16>
    %cst = arith.constant dense<0.000000e+00> : vector<80x16xf32>
    %4 = tpu.matmul %1, %3, %cst {dimension_numbers = #tpu.dot_dimension_numbers<[1], [0], [0], [1], [0, 0, 1, 1], [], []>} : vector<80x16xbf16>, vector<16x16xbf16>, vector<80x16xf32> -> vector<80x16xf32>
    %c0_5 = arith.constant 0 : index
    %c1 = arith.constant 1 : index
    %c0_6 = arith.constant 0 : index
    %5 = vector.load %arg2[%c0_5, %c1, %c0_6] : memref<1x104x16xbf16, #tpu.memory_space<vmem>>, vector<1x80x16xbf16>
    %6 = vector.shape_cast %5 : vector<1x80x16xbf16> to vector<80x16xbf16>
    %c1_7 = arith.constant 1 : index
    %c0_8 = arith.constant 0 : index
    %c0_9 = arith.constant 0 : index
    %7 = vector.load %arg3[%c1_7, %c0_8, %c0_9] : memref<9x16x16xbf16, #tpu.memory_space<vmem>>, vector<1x16x16xbf16>
    %8 = vector.shape_cast %7 : vector<1x16x16xbf16> to vector<16x16xbf16>
    %cst_10 = arith.constant dense<0.000000e+00> : vector<80x16xf32>
    %9 = tpu.matmul %6, %8, %cst_10 {dimension_numbers = #tpu.dot_dimension_numbers<[1], [0], [0], [1], [0, 0, 1, 1], [], []>} : vector<80x16xbf16>, vector<16x16xbf16>, vector<80x16xf32> -> vector<80x16xf32>
    %10 = arith.addf %4, %9 : vector<80x16xf32>
    %c0_11 = arith.constant 0 : index
    %c2 = arith.constant 2 : index
    %c0_12 = arith.constant 0 : index
    %11 = vector.load %arg2[%c0_11, %c2, %c0_12] : memref<1x104x16xbf16, #tpu.memory_space<vmem>>, vector<1x80x16xbf16>
    %12 = vector.shape_cast %11 : vector<1x80x16xbf16> to vector<80x16xbf16>
    %c2_13 = arith.constant 2 : index
    %c0_14 = arith.constant 0 : index
    %c0_15 = arith.constant 0 : index
    %13 = vector.load %arg3[%c2_13, %c0_14, %c0_15] : memref<9x16x16xbf16, #tpu.memory_space<vmem>>, vector<1x16x16xbf16>
    %14 = vector.shape_cast %13 : vector<1x16x16xbf16> to vector<16x16xbf16>
    %cst_16 = arith.constant dense<0.000000e+00> : vector<80x16xf32>
    %15 = tpu.matmul %12, %14, %cst_16 {dimension_numbers = #tpu.dot_dimension_numbers<[1], [0], [0], [1], [0, 0, 1, 1], [], []>} : vector<80x16xbf16>, vector<16x16xbf16>, vector<80x16xf32> -> vector<80x16xf32>
    %16 = arith.addf %10, %15 : vector<80x16xf32>
    %c0_17 = arith.constant 0 : index
    %c10 = arith.constant 10 : index
    %c0_18 = arith.constant 0 : index
    %17 = vector.load %arg2[%c0_17, %c10, %c0_18] : memref<1x104x16xbf16, #tpu.memory_space<vmem>>, vector<1x80x16xbf16>
    %18 = vector.shape_cast %17 : vector<1x80x16xbf16> to vector<80x16xbf16>
    %c3 = arith.constant 3 : index
    %c0_19 = arith.constant 0 : index
    %c0_20 = arith.constant 0 : index
    %19 = vector.load %arg3[%c3, %c0_19, %c0_20] : memref<9x16x16xbf16, #tpu.memory_space<vmem>>, vector<1x16x16xbf16>
    %20 = vector.shape_cast %19 : vector<1x16x16xbf16> to vector<16x16xbf16>
    %cst_21 = arith.constant dense<0.000000e+00> : vector<80x16xf32>
    %21 = tpu.matmul %18, %20, %cst_21 {dimension_numbers = #tpu.dot_dimension_numbers<[1], [0], [0], [1], [0, 0, 1, 1], [], []>} : vector<80x16xbf16>, vector<16x16xbf16>, vector<80x16xf32> -> vector<80x16xf32>
    %22 = arith.addf %16, %21 : vector<80x16xf32>
    %c0_22 = arith.constant 0 : index
    %c11 = arith.constant 11 : index
    %c0_23 = arith.constant 0 : index
    %23 = vector.load %arg2[%c0_22, %c11, %c0_23] : memref<1x104x16xbf16, #tpu.memory_space<vmem>>, vector<1x80x16xbf16>
    %24 = vector.shape_cast %23 : vector<1x80x16xbf16> to vector<80x16xbf16>
    %c4 = arith.constant 4 : index
    %c0_24 = arith.constant 0 : index
    %c0_25 = arith.constant 0 : index
    %25 = vector.load %arg3[%c4, %c0_24, %c0_25] : memref<9x16x16xbf16, #tpu.memory_space<vmem>>, vector<1x16x16xbf16>
    %26 = vector.shape_cast %25 : vector<1x16x16xbf16> to vector<16x16xbf16>
    %cst_26 = arith.constant dense<0.000000e+00> : vector<80x16xf32>
    %27 = tpu.matmul %24, %26, %cst_26 {dimension_numbers = #tpu.dot_dimension_numbers<[1], [0], [0], [1], [0, 0, 1, 1], [], []>} : vector<80x16xbf16>, vector<16x16xbf16>, vector<80x16xf32> -> vector<80x16xf32>
    %28 = arith.addf %22, %27 : vector<80x16xf32>
    %c0_27 = arith.constant 0 : index
    %c12 = arith.constant 12 : index
    %c0_28 = arith.constant 0 : index
    %29 = vector.load %arg2[%c0_27, %c12, %c0_28] : memref<1x104x16xbf16, #tpu.memory_space<vmem>>, vector<1x80x16xbf16>
    %30 = vector.shape_cast %29 : vector<1x80x16xbf16> to vector<80x16xbf16>
    %c5 = arith.constant 5 : index
    %c0_29 = arith.constant 0 : index
    %c0_30 = arith.constant 0 : index
    %31 = vector.load %arg3[%c5, %c0_29, %c0_30] : memref<9x16x16xbf16, #tpu.memory_space<vmem>>, vector<1x16x16xbf16>
    %32 = vector.shape_cast %31 : vector<1x16x16xbf16> to vector<16x16xbf16>
    %cst_31 = arith.constant dense<0.000000e+00> : vector<80x16xf32>
    %33 = tpu.matmul %30, %32, %cst_31 {dimension_numbers = #tpu.dot_dimension_numbers<[1], [0], [0], [1], [0, 0, 1, 1], [], []>} : vector<80x16xbf16>, vector<16x16xbf16>, vector<80x16xf32> -> vector<80x16xf32>
    %34 = arith.addf %28, %33 : vector<80x16xf32>
    %c0_32 = arith.constant 0 : index
    %c20 = arith.constant 20 : index
    %c0_33 = arith.constant 0 : index
    %35 = vector.load %arg2[%c0_32, %c20, %c0_33] : memref<1x104x16xbf16, #tpu.memory_space<vmem>>, vector<1x80x16xbf16>
    %36 = vector.shape_cast %35 : vector<1x80x16xbf16> to vector<80x16xbf16>
    %c6 = arith.constant 6 : index
    %c0_34 = arith.constant 0 : index
    %c0_35 = arith.constant 0 : index
    %37 = vector.load %arg3[%c6, %c0_34, %c0_35] : memref<9x16x16xbf16, #tpu.memory_space<vmem>>, vector<1x16x16xbf16>
    %38 = vector.shape_cast %37 : vector<1x16x16xbf16> to vector<16x16xbf16>
    %cst_36 = arith.constant dense<0.000000e+00> : vector<80x16xf32>
    %39 = tpu.matmul %36, %38, %cst_36 {dimension_numbers = #tpu.dot_dimension_numbers<[1], [0], [0], [1], [0, 0, 1, 1], [], []>} : vector<80x16xbf16>, vector<16x16xbf16>, vector<80x16xf32> -> vector<80x16xf32>
    %40 = arith.addf %34, %39 : vector<80x16xf32>
    %c0_37 = arith.constant 0 : index
    %c21 = arith.constant 21 : index
    %c0_38 = arith.constant 0 : index
    %41 = vector.load %arg2[%c0_37, %c21, %c0_38] : memref<1x104x16xbf16, #tpu.memory_space<vmem>>, vector<1x80x16xbf16>
    %42 = vector.shape_cast %41 : vector<1x80x16xbf16> to vector<80x16xbf16>
    %c7 = arith.constant 7 : index
    %c0_39 = arith.constant 0 : index
    %c0_40 = arith.constant 0 : index
    %43 = vector.load %arg3[%c7, %c0_39, %c0_40] : memref<9x16x16xbf16, #tpu.memory_space<vmem>>, vector<1x16x16xbf16>
    %44 = vector.shape_cast %43 : vector<1x16x16xbf16> to vector<16x16xbf16>
    %cst_41 = arith.constant dense<0.000000e+00> : vector<80x16xf32>
    %45 = tpu.matmul %42, %44, %cst_41 {dimension_numbers = #tpu.dot_dimension_numbers<[1], [0], [0], [1], [0, 0, 1, 1], [], []>} : vector<80x16xbf16>, vector<16x16xbf16>, vector<80x16xf32> -> vector<80x16xf32>
    %46 = arith.addf %40, %45 : vector<80x16xf32>
    %c0_42 = arith.constant 0 : index
    %c22 = arith.constant 22 : index
    %c0_43 = arith.constant 0 : index
    %47 = vector.load %arg2[%c0_42, %c22, %c0_43] : memref<1x104x16xbf16, #tpu.memory_space<vmem>>, vector<1x80x16xbf16>
    %48 = vector.shape_cast %47 : vector<1x80x16xbf16> to vector<80x16xbf16>
    %c8 = arith.constant 8 : index
    %c0_44 = arith.constant 0 : index
    %c0_45 = arith.constant 0 : index
    %49 = vector.load %arg3[%c8, %c0_44, %c0_45] : memref<9x16x16xbf16, #tpu.memory_space<vmem>>, vector<1x16x16xbf16>
    %50 = vector.shape_cast %49 : vector<1x16x16xbf16> to vector<16x16xbf16>
    %cst_46 = arith.constant dense<0.000000e+00> : vector<80x16xf32>
    %51 = tpu.matmul %48, %50, %cst_46 {dimension_numbers = #tpu.dot_dimension_numbers<[1], [0], [0], [1], [0, 0, 1, 1], [], []>} : vector<80x16xbf16>, vector<16x16xbf16>, vector<80x16xf32> -> vector<80x16xf32>
    %52 = arith.addf %46, %51 : vector<80x16xf32>
    %c0_47 = arith.constant 0 : index
    %c0_48 = arith.constant 0 : index
    %53 = vector.load %arg4[%c0_47, %c0_48] : memref<1x16xf32, #tpu.memory_space<vmem>>, vector<1x16xf32>
    %54 = vector.broadcast %53 : vector<1x16xf32> to vector<80x16xf32>
    %55 = arith.mulf %52, %54 : vector<80x16xf32>
    %c0_49 = arith.constant 0 : index
    %c0_50 = arith.constant 0 : index
    %56 = vector.load %arg5[%c0_49, %c0_50] : memref<1x16xf32, #tpu.memory_space<vmem>>, vector<1x16xf32>
    %57 = vector.broadcast %56 : vector<1x16xf32> to vector<80x16xf32>
    %58 = arith.addf %55, %57 : vector<80x16xf32>
    %cst_51 = arith.constant 0.000000e+00 : f32
    %59 = vector.broadcast %cst_51 : f32 to vector<80x16xf32>
    %60 = arith.maximumf %58, %59 : vector<80x16xf32>
    %c0_52 = arith.constant 0 : index
    %c0_53 = arith.constant 0 : index
    %c0_54 = arith.constant 0 : index
    %61 = vector.load %arg6[%c0_52, %c0_53, %c0_54] : memref<1x80x16xf32, #tpu.memory_space<vmem>>, vector<1x80x16xf32>
    %62 = vector.shape_cast %61 : vector<1x80x16xf32> to vector<80x16xf32>
    %63 = vector.shape_cast %60 : vector<80x16xf32> to vector<1x80x16xf32>
    tpu.vector_store %arg6[%c0_52, %c0_53, %c0_54], %63 {strides = array<i32>} : memref<1x80x16xf32, #tpu.memory_space<vmem>>, vector<1x80x16xf32>,
    return
  }
  func.func @transform_0(%arg0: i32, %arg1: i32) -> (i32, i32, i32) {
    %c0_i32 = arith.constant 0 : i32
    %c0_i32_0 = arith.constant 0 : i32
    %c0_i32_1 = arith.constant 0 : i32
    return %arg0, %c0_i32, %c0_i32_0 : i32, i32, i32
  }
  func.func @transform_1(%arg0: i32, %arg1: i32) -> (i32, i32, i32) {
    %c0_i32 = arith.constant 0 : i32
    %c0_i32_0 = arith.constant 0 : i32
    %c0_i32_1 = arith.constant 0 : i32
    return %c0_i32, %c0_i32_0, %arg1 : i32, i32, i32
  }
  func.func @transform_2(%arg0: i32, %arg1: i32) -> (i32, i32) {
    %c0_i32 = arith.constant 0 : i32
    %c0_i32_0 = arith.constant 0 : i32
    return %c0_i32, %arg1 : i32, i32
  }
  func.func @transform_3(%arg0: i32, %arg1: i32) -> (i32, i32) {
    %c0_i32 = arith.constant 0 : i32
    %c0_i32_0 = arith.constant 0 : i32
    return %c0_i32, %arg1 : i32, i32
  }
  func.func @transform_4(%arg0: i32, %arg1: i32) -> (i32, i32, i32) {
    %c0_i32 = arith.constant 0 : i32
    %c0_i32_0 = arith.constant 0 : i32
    return %arg0, %c0_i32, %arg1 : i32, i32, i32
  }
}

module attributes {stable_mosaic.version = 11 : i64} {
  func.func @_conv3x3_add_kernel(%arg0: i32, %arg1: i32, %arg2: memref<1x104x16xbf16, #tpu.memory_space<vmem>>, %arg3: memref<9x16x16xbf16, #tpu.memory_space<vmem>>, %arg4: memref<1x80x16xf32, #tpu.memory_space<vmem>>, %arg5: memref<1x80x16xf32, #tpu.memory_space<vmem>>) attributes {dimension_semantics = [#tpu.dimension_semantics<parallel>, #tpu.dimension_semantics<parallel>], iteration_bounds = array<i64: 2, 1>, scalar_prefetch = 0 : i64, scratch_operands = 0 : i64, tpu.core_type = #tpu.core_type<tc>, window_params = [{transform_indices = @transform_0, window_bounds = array<i64: 1, 104, 16>}, {transform_indices = @transform_1, window_bounds = array<i64: 9, 16, 16>}, {transform_indices = @transform_2, window_bounds = array<i64: 1, 80, 16>}, {transform_indices = @transform_3, window_bounds = array<i64: 1, 80, 16>}]} {
    %c0 = arith.constant 0 : index
    %c0_0 = arith.constant 0 : index
    %c0_1 = arith.constant 0 : index
    %0 = vector.load %arg2[%c0, %c0_0, %c0_1] : memref<1x104x16xbf16, #tpu.memory_space<vmem>>, vector<1x80x16xbf16>
    %1 = vector.shape_cast %0 : vector<1x80x16xbf16> to vector<80x16xbf16>
    %c0_2 = arith.constant 0 : index
    %c0_3 = arith.constant 0 : index
    %c0_4 = arith.constant 0 : index
    %2 = vector.load %arg3[%c0_2, %c0_3, %c0_4] : memref<9x16x16xbf16, #tpu.memory_space<vmem>>, vector<1x16x16xbf16>
    %3 = vector.shape_cast %2 : vector<1x16x16xbf16> to vector<16x16xbf16>
    %cst = arith.constant dense<0.000000e+00> : vector<80x16xf32>
    %4 = tpu.matmul %1, %3, %cst {dimension_numbers = #tpu.dot_dimension_numbers<[1], [0], [0], [1], [0, 0, 1, 1], [], []>} : vector<80x16xbf16>, vector<16x16xbf16>, vector<80x16xf32> -> vector<80x16xf32>
    %c0_5 = arith.constant 0 : index
    %c1 = arith.constant 1 : index
    %c0_6 = arith.constant 0 : index
    %5 = vector.load %arg2[%c0_5, %c1, %c0_6] : memref<1x104x16xbf16, #tpu.memory_space<vmem>>, vector<1x80x16xbf16>
    %6 = vector.shape_cast %5 : vector<1x80x16xbf16> to vector<80x16xbf16>
    %c1_7 = arith.constant 1 : index
    %c0_8 = arith.constant 0 : index
    %c0_9 = arith.constant 0 : index
    %7 = vector.load %arg3[%c1_7, %c0_8, %c0_9] : memref<9x16x16xbf16, #tpu.memory_space<vmem>>, vector<1x16x16xbf16>
    %8 = vector.shape_cast %7 : vector<1x16x16xbf16> to vector<16x16xbf16>
    %cst_10 = arith.constant dense<0.000000e+00> : vector<80x16xf32>
    %9 = tpu.matmul %6, %8, %cst_10 {dimension_numbers = #tpu.dot_dimension_numbers<[1], [0], [0], [1], [0, 0, 1, 1], [], []>} : vector<80x16xbf16>, vector<16x16xbf16>, vector<80x16xf32> -> vector<80x16xf32>
    %10 = arith.addf %4, %9 : vector<80x16xf32>
    %c0_11 = arith.constant 0 : index
    %c2 = arith.constant 2 : index
    %c0_12 = arith.constant 0 : index
    %11 = vector.load %arg2[%c0_11, %c2, %c0_12] : memref<1x104x16xbf16, #tpu.memory_space<vmem>>, vector<1x80x16xbf16>
    %12 = vector.shape_cast %11 : vector<1x80x16xbf16> to vector<80x16xbf16>
    %c2_13 = arith.constant 2 : index
    %c0_14 = arith.constant 0 : index
    %c0_15 = arith.constant 0 : index
    %13 = vector.load %arg3[%c2_13, %c0_14, %c0_15] : memref<9x16x16xbf16, #tpu.memory_space<vmem>>, vector<1x16x16xbf16>
    %14 = vector.shape_cast %13 : vector<1x16x16xbf16> to vector<16x16xbf16>
    %cst_16 = arith.constant dense<0.000000e+00> : vector<80x16xf32>
    %15 = tpu.matmul %12, %14, %cst_16 {dimension_numbers = #tpu.dot_dimension_numbers<[1], [0], [0], [1], [0, 0, 1, 1], [], []>} : vector<80x16xbf16>, vector<16x16xbf16>, vector<80x16xf32> -> vector<80x16xf32>
    %16 = arith.addf %10, %15 : vector<80x16xf32>
    %c0_17 = arith.constant 0 : index
    %c10 = arith.constant 10 : index
    %c0_18 = arith.constant 0 : index
    %17 = vector.load %arg2[%c0_17, %c10, %c0_18] : memref<1x104x16xbf16, #tpu.memory_space<vmem>>, vector<1x80x16xbf16>
    %18 = vector.shape_cast %17 : vector<1x80x16xbf16> to vector<80x16xbf16>
    %c3 = arith.constant 3 : index
    %c0_19 = arith.constant 0 : index
    %c0_20 = arith.constant 0 : index
    %19 = vector.load %arg3[%c3, %c0_19, %c0_20] : memref<9x16x16xbf16, #tpu.memory_space<vmem>>, vector<1x16x16xbf16>
    %20 = vector.shape_cast %19 : vector<1x16x16xbf16> to vector<16x16xbf16>
    %cst_21 = arith.constant dense<0.000000e+00> : vector<80x16xf32>
    %21 = tpu.matmul %18, %20, %cst_21 {dimension_numbers = #tpu.dot_dimension_numbers<[1], [0], [0], [1], [0, 0, 1, 1], [], []>} : vector<80x16xbf16>, vector<16x16xbf16>, vector<80x16xf32> -> vector<80x16xf32>
    %22 = arith.addf %16, %21 : vector<80x16xf32>
    %c0_22 = arith.constant 0 : index
    %c11 = arith.constant 11 : index
    %c0_23 = arith.constant 0 : index
    %23 = vector.load %arg2[%c0_22, %c11, %c0_23] : memref<1x104x16xbf16, #tpu.memory_space<vmem>>, vector<1x80x16xbf16>
    %24 = vector.shape_cast %23 : vector<1x80x16xbf16> to vector<80x16xbf16>
    %c4 = arith.constant 4 : index
    %c0_24 = arith.constant 0 : index
    %c0_25 = arith.constant 0 : index
    %25 = vector.load %arg3[%c4, %c0_24, %c0_25] : memref<9x16x16xbf16, #tpu.memory_space<vmem>>, vector<1x16x16xbf16>
    %26 = vector.shape_cast %25 : vector<1x16x16xbf16> to vector<16x16xbf16>
    %cst_26 = arith.constant dense<0.000000e+00> : vector<80x16xf32>
    %27 = tpu.matmul %24, %26, %cst_26 {dimension_numbers = #tpu.dot_dimension_numbers<[1], [0], [0], [1], [0, 0, 1, 1], [], []>} : vector<80x16xbf16>, vector<16x16xbf16>, vector<80x16xf32> -> vector<80x16xf32>
    %28 = arith.addf %22, %27 : vector<80x16xf32>
    %c0_27 = arith.constant 0 : index
    %c12 = arith.constant 12 : index
    %c0_28 = arith.constant 0 : index
    %29 = vector.load %arg2[%c0_27, %c12, %c0_28] : memref<1x104x16xbf16, #tpu.memory_space<vmem>>, vector<1x80x16xbf16>
    %30 = vector.shape_cast %29 : vector<1x80x16xbf16> to vector<80x16xbf16>
    %c5 = arith.constant 5 : index
    %c0_29 = arith.constant 0 : index
    %c0_30 = arith.constant 0 : index
    %31 = vector.load %arg3[%c5, %c0_29, %c0_30] : memref<9x16x16xbf16, #tpu.memory_space<vmem>>, vector<1x16x16xbf16>
    %32 = vector.shape_cast %31 : vector<1x16x16xbf16> to vector<16x16xbf16>
    %cst_31 = arith.constant dense<0.000000e+00> : vector<80x16xf32>
    %33 = tpu.matmul %30, %32, %cst_31 {dimension_numbers = #tpu.dot_dimension_numbers<[1], [0], [0], [1], [0, 0, 1, 1], [], []>} : vector<80x16xbf16>, vector<16x16xbf16>, vector<80x16xf32> -> vector<80x16xf32>
    %34 = arith.addf %28, %33 : vector<80x16xf32>
    %c0_32 = arith.constant 0 : index
    %c20 = arith.constant 20 : index
    %c0_33 = arith.constant 0 : index
    %35 = vector.load %arg2[%c0_32, %c20, %c0_33] : memref<1x104x16xbf16, #tpu.memory_space<vmem>>, vector<1x80x16xbf16>
    %36 = vector.shape_cast %35 : vector<1x80x16xbf16> to vector<80x16xbf16>
    %c6 = arith.constant 6 : index
    %c0_34 = arith.constant 0 : index
    %c0_35 = arith.constant 0 : index
    %37 = vector.load %arg3[%c6, %c0_34, %c0_35] : memref<9x16x16xbf16, #tpu.memory_space<vmem>>, vector<1x16x16xbf16>
    %38 = vector.shape_cast %37 : vector<1x16x16xbf16> to vector<16x16xbf16>
    %cst_36 = arith.constant dense<0.000000e+00> : vector<80x16xf32>
    %39 = tpu.matmul %36, %38, %cst_36 {dimension_numbers = #tpu.dot_dimension_numbers<[1], [0], [0], [1], [0, 0, 1, 1], [], []>} : vector<80x16xbf16>, vector<16x16xbf16>, vector<80x16xf32> -> vector<80x16xf32>
    %40 = arith.addf %34, %39 : vector<80x16xf32>
    %c0_37 = arith.constant 0 : index
    %c21 = arith.constant 21 : index
    %c0_38 = arith.constant 0 : index
    %41 = vector.load %arg2[%c0_37, %c21, %c0_38] : memref<1x104x16xbf16, #tpu.memory_space<vmem>>, vector<1x80x16xbf16>
    %42 = vector.shape_cast %41 : vector<1x80x16xbf16> to vector<80x16xbf16>
    %c7 = arith.constant 7 : index
    %c0_39 = arith.constant 0 : index
    %c0_40 = arith.constant 0 : index
    %43 = vector.load %arg3[%c7, %c0_39, %c0_40] : memref<9x16x16xbf16, #tpu.memory_space<vmem>>, vector<1x16x16xbf16>
    %44 = vector.shape_cast %43 : vector<1x16x16xbf16> to vector<16x16xbf16>
    %cst_41 = arith.constant dense<0.000000e+00> : vector<80x16xf32>
    %45 = tpu.matmul %42, %44, %cst_41 {dimension_numbers = #tpu.dot_dimension_numbers<[1], [0], [0], [1], [0, 0, 1, 1], [], []>} : vector<80x16xbf16>, vector<16x16xbf16>, vector<80x16xf32> -> vector<80x16xf32>
    %46 = arith.addf %40, %45 : vector<80x16xf32>
    %c0_42 = arith.constant 0 : index
    %c22 = arith.constant 22 : index
    %c0_43 = arith.constant 0 : index
    %47 = vector.load %arg2[%c0_42, %c22, %c0_43] : memref<1x104x16xbf16, #tpu.memory_space<vmem>>, vector<1x80x16xbf16>
    %48 = vector.shape_cast %47 : vector<1x80x16xbf16> to vector<80x16xbf16>
    %c8 = arith.constant 8 : index
    %c0_44 = arith.constant 0 : index
    %c0_45 = arith.constant 0 : index
    %49 = vector.load %arg3[%c8, %c0_44, %c0_45] : memref<9x16x16xbf16, #tpu.memory_space<vmem>>, vector<1x16x16xbf16>
    %50 = vector.shape_cast %49 : vector<1x16x16xbf16> to vector<16x16xbf16>
    %cst_46 = arith.constant dense<0.000000e+00> : vector<80x16xf32>
    %51 = tpu.matmul %48, %50, %cst_46 {dimension_numbers = #tpu.dot_dimension_numbers<[1], [0], [0], [1], [0, 0, 1, 1], [], []>} : vector<80x16xbf16>, vector<16x16xbf16>, vector<80x16xf32> -> vector<80x16xf32>
    %52 = arith.addf %46, %51 : vector<80x16xf32>
    %c0_47 = arith.constant 0 : index
    %c0_48 = arith.constant 0 : index
    %c0_49 = arith.constant 0 : index
    %53 = vector.load %arg4[%c0_47, %c0_48, %c0_49] : memref<1x80x16xf32, #tpu.memory_space<vmem>>, vector<1x80x16xf32>
    %54 = vector.shape_cast %53 : vector<1x80x16xf32> to vector<80x16xf32>
    %55 = arith.addf %52, %54 : vector<80x16xf32>
    %c0_50 = arith.constant 0 : index
    %c0_51 = arith.constant 0 : index
    %c0_52 = arith.constant 0 : index
    %56 = vector.load %arg5[%c0_50, %c0_51, %c0_52] : memref<1x80x16xf32, #tpu.memory_space<vmem>>, vector<1x80x16xf32>
    %57 = vector.shape_cast %56 : vector<1x80x16xf32> to vector<80x16xf32>
    %58 = vector.shape_cast %55 : vector<80x16xf32> to vector<1x80x16xf32>
    tpu.vector_store %arg5[%c0_50, %c0_51, %c0_52], %58 {strides = array<i32>} : memref<1x80x16xf32, #tpu.memory_space<vmem>>, vector<1x80x16xf32>,
    return
  }
  func.func @transform_0(%arg0: i32, %arg1: i32) -> (i32, i32, i32) {
    %c0_i32 = arith.constant 0 : i32
    %c0_i32_0 = arith.constant 0 : i32
    %c0_i32_1 = arith.constant 0 : i32
    return %arg0, %c0_i32, %c0_i32_0 : i32, i32, i32
  }
  func.func @transform_1(%arg0: i32, %arg1: i32) -> (i32, i32, i32) {
    %c0_i32 = arith.constant 0 : i32
    %c0_i32_0 = arith.constant 0 : i32
    %c0_i32_1 = arith.constant 0 : i32
    return %c0_i32, %c0_i32_0, %arg1 : i32, i32, i32
  }
  func.func @transform_2(%arg0: i32, %arg1: i32) -> (i32, i32, i32) {
    %c0_i32 = arith.constant 0 : i32
    %c0_i32_0 = arith.constant 0 : i32
    return %arg0, %c0_i32, %arg1 : i32, i32, i32
  }
  func.func @transform_3(%arg0: i32, %arg1: i32) -> (i32, i32, i32) {
    %c0_i32 = arith.constant 0 : i32
    %c0_i32_0 = arith.constant 0 : i32
    return %arg0, %c0_i32, %arg1 : i32, i32, i32
  }
}

</mosaic_0001>

<llo_original>
// kernel: network_block_forward.6
$region0: #{network_block_forward.6}
  #allocation0 [shape = 'u32[]', space=smem, size = 0x4, offset = 0x4, fixed_abs, tag = 'smem constant byte address 0x4 - core index']
  #allocation1 [shape = 'u32[144,128]{1,0:T(1,128)}', space=vmem, size = 0x12000, scoped, tag = 'internal scratch']
  %s0 = inlined_call_operand.vmem [shape: f32[512,8], index: 0, kind: input, shape index: {}]
  %s1 = inlined_call_operand.vmem [shape: f32[1,8], index: 1, kind: input, shape index: {}]
  %s2 = inlined_call_operand.vmem [shape: f32[1,8], index: 2, kind: input, shape index: {}]
  %s3 = inlined_call_operand.vmem [shape: f32[512,8], index: 3, kind: output, shape index: {}]
  %s4 = sld [smem:[#allocation0]]
  $region22: #{network_block_forward.6} parent=0
    _
  %s6 = ssub.s32 1, %s4
  %s7 = scalar_select 0, %s6, %s4
  // Predicated region
  $region2: #{network_block_forward.6} parent=0 // pred_check
    _
  $region3: #{network_block_forward.6} parent=0 // pred_check_branch
    %9 = sbr.rel (0) target = $region5
  $region4: #{network_block_forward.6} parent=0 // pred_region
    _
  $region5: #{network_block_forward.6} parent=0 // pred_fallthru
    _
  // Predicated region
  $region6: #{network_block_forward.6} parent=0 // pred_check
    _
  $region7: #{network_block_forward.6} parent=0 // pred_check_branch
    %11 = sbr.rel (0) target = $region9
  $region8: #{network_block_forward.6} parent=0 // pred_region
    _
  $region9: #{network_block_forward.6} parent=0 // pred_fallthru
    _
  // Predicated region
  $region10: #{network_block_forward.6} parent=0 // pred_check
    _
  $region11: #{network_block_forward.6} parent=0 // pred_check_branch
    %13 = sbr.rel (0) target = $region13
  $region12: #{network_block_forward.6} parent=0 // pred_region
    _
  $region13: #{network_block_forward.6} parent=0 // pred_fallthru
    _
  %v14 = vld [vmem:[%s0] sm:$0xff]
  %v15 = vld [vmem:[%s0 + $0x8] sm:$0xff]
  %v16 = vld [vmem:[%s0 + $0x10] sm:$0xff]
  %v17 = vld [vmem:[%s0 + $0x18] sm:$0xff]
  %v18 = vld [vmem:[%s0 + $0x20] sm:$0xff]
  %v19 = vld [vmem:[%s0 + $0x28] sm:$0xff]
  %v20 = vld [vmem:[%s0 + $0x30] sm:$0xff]
  %v21 = vld [vmem:[%s0 + $0x38] sm:$0xff]
  %v22 = vld [vmem:[%s0 + $0x40] sm:$0xff]
  %v23 = vld [vmem:[%s0 + $0x48] sm:$0xff]
  %v24 = vld [vmem:[%s0 + $0x50] sm:$0xff]
  %v25 = vld [vmem:[%s0 + $0x58] sm:$0xff]
  %v26 = vld [vmem:[%s0 + $0x60] sm:$0xff]
  %v27 = vld [vmem:[%s0 + $0x68] sm:$0xff]
  %v28 = vld [vmem:[%s0 + $0x70] sm:$0xff]
  %v29 = vld [vmem:[%s0 + $0x78] sm:$0xff]
  %v30 = vld [vmem:[%s0 + $0x80] sm:$0xff]
  %v31 = vld [vmem:[%s0 + $0x88] sm:$0xff]
  %v32 = vld [vmem:[%s0 + $0x90] sm:$0xff]
  %v33 = vld [vmem:[%s0 + $0x98] sm:$0xff]
  %v34 = vld [vmem:[%s0 + $0xa0] sm:$0xff]
  %v35 = vld [vmem:[%s0 + $0xa8] sm:$0xff]
  %v36 = vld [vmem:[%s0 + $0xb0] sm:$0xff]
  %v37 = vld [vmem:[%s0 + $0xb8] sm:$0xff]
  %v38 = vld [vmem:[%s0 + $0xc0] sm:$0xff]
  %v39 = vld [vmem:[%s0 + $0xc8] sm:$0xff]
  %v40 = vld [vmem:[%s0 + $0xd0] sm:$0xff]
  %v41 = vld [vmem:[%s0 + $0xd8] sm:$0xff]
  %v42 = vld [vmem:[%s0 + $0xe0] sm:$0xff]
  %v43 = vld [vmem:[%s0 + $0xe8] sm:$0xff]
  %v44 = vld [vmem:[%s0 + $0xf0] sm:$0xff]
  %v45 = vld [vmem:[%s0 + $0xf8] sm:$0xff]
  %v46 = vld [vmem:[%s0 + $0x100] sm:$0xff]
  %v47 = vld [vmem:[%s0 + $0x108] sm:$0xff]
  %v48 = vld [vmem:[%s0 + $0x110] sm:$0xff]
  %v49 = vld [vmem:[%s0 + $0x118] sm:$0xff]
  %v50 = vld [vmem:[%s0 + $0x120] sm:$0xff]
  %v51 = vld [vmem:[%s0 + $0x128] sm:$0xff]
  %v52 = vld [vmem:[%s0 + $0x130] sm:$0xff]
  %v53 = vld [vmem:[%s0 + $0x138] sm:$0xff]
  %v54 = vld [vmem:[%s0 + $0x140] sm:$0xff]
  %v55 = vld [vmem:[%s0 + $0x148] sm:$0xff]
  %v56 = vld [vmem:[%s0 + $0x150] sm:$0xff]
  %v57 = vld [vmem:[%s0 + $0x158] sm:$0xff]
  %v58 = vld [vmem:[%s0 + $0x160] sm:$0xff]
  %v59 = vld [vmem:[%s0 + $0x168] sm:$0xff]
  %v60 = vld [vmem:[%s0 + $0x170] sm:$0xff]
  %v61 = vld [vmem:[%s0 + $0x178] sm:$0xff]
  %v62 = vld [vmem:[%s0 + $0x180] sm:$0xff]
  %v63 = vld [vmem:[%s0 + $0x188] sm:$0xff]
  %v64 = vld [vmem:[%s0 + $0x190] sm:$0xff]
  %v65 = vld [vmem:[%s0 + $0x198] sm:$0xff]
  %v66 = vld [vmem:[%s0 + $0x1a0] sm:$0xff]
  %v67 = vld [vmem:[%s0 + $0x1a8] sm:$0xff]
  %v68 = vld [vmem:[%s0 + $0x1b0] sm:$0xff]
  %v69 = vld [vmem:[%s0 + $0x1b8] sm:$0xff]
  %v70 = vld [vmem:[%s0 + $0x1c0] sm:$0xff]
  %v71 = vld [vmem:[%s0 + $0x1c8] sm:$0xff]
  %v72 = vld [vmem:[%s0 + $0x1d0] sm:$0xff]
  %v73 = vld [vmem:[%s0 + $0x1d8] sm:$0xff]
  %v74 = vld [vmem:[%s0 + $0x1e0] sm:$0xff]
  %v75 = vld [vmem:[%s0 + $0x1e8] sm:$0xff]
  %v76 = vld [vmem:[%s0 + $0x1f0] sm:$0xff]
  %v77 = vld [vmem:[%s0 + $0x1f8] sm:$0xff]
  %v78 = vld [vmem:[%s1] sm:$0x1]
  %v80 = vlaneseq
  %v81 = vshrl.u32 %v80, 7
  %v82 = vsub.s32 0, %v81
  %v83 = vrot.slane %v78, %v82
  %v85 = vmul.f32 %v14, %v83
  %v86 = vmul.f32 %v15, %v83
  %v87 = vmul.f32 %v16, %v83
  %v88 = vmul.f32 %v17, %v83
  %v89 = vmul.f32 %v18, %v83
  %v90 = vmul.f32 %v19, %v83
  %v91 = vmul.f32 %v20, %v83
  %v92 = vmul.f32 %v21, %v83
  %v93 = vmul.f32 %v22, %v83
  %v94 = vmul.f32 %v23, %v83
  %v95 = vmul.f32 %v24, %v83
  %v96 = vmul.f32 %v25, %v83
  %v97 = vmul.f32 %v26, %v83
  %v98 = vmul.f32 %v27, %v83
  %v99 = vmul.f32 %v28, %v83
  %v100 = vmul.f32 %v29, %v83
  %v101 = vmul.f32 %v30, %v83
  %v102 = vmul.f32 %v31, %v83
  %v103 = vmul.f32 %v32, %v83
  %v104 = vmul.f32 %v33, %v83
  %v105 = vmul.f32 %v34, %v83
  %v106 = vmul.f32 %v35, %v83
  %v107 = vmul.f32 %v36, %v83
  %v108 = vmul.f32 %v37, %v83
  %v109 = vmul.f32 %v38, %v83
  %v110 = vmul.f32 %v39, %v83
  %v111 = vmul.f32 %v40, %v83
  %v112 = vmul.f32 %v41, %v83
  %v113 = vmul.f32 %v42, %v83
  %v114 = vmul.f32 %v43, %v83
  %v115 = vmul.f32 %v44, %v83
  %v116 = vmul.f32 %v45, %v83
  %v117 = vmul.f32 %v46, %v83
  %v118 = vmul.f32 %v47, %v83
  %v119 = vmul.f32 %v48, %v83
  %v120 = vmul.f32 %v49, %v83
  %v121 = vmul.f32 %v50, %v83
  %v122 = vmul.f32 %v51, %v83
  %v123 = vmul.f32 %v52, %v83
  %v124 = vmul.f32 %v53, %v83
  %v125 = vmul.f32 %v54, %v83
  %v126 = vmul.f32 %v55, %v83
  %v127 = vmul.f32 %v56, %v83
  %v128 = vmul.f32 %v57, %v83
  %v129 = vmul.f32 %v58, %v83
  %v130 = vmul.f32 %v59, %v83
  %v131 = vmul.f32 %v60, %v83
  %v132 = vmul.f32 %v61, %v83
  %v133 = vmul.f32 %v62, %v83
  %v134 = vmul.f32 %v63, %v83
  %v135 = vmul.f32 %v64, %v83
  %v136 = vmul.f32 %v65, %v83
  %v137 = vmul.f32 %v66, %v83
  %v138 = vmul.f32 %v67, %v83
  %v139 = vmul.f32 %v68, %v83
  %v140 = vmul.f32 %v69, %v83
  %v141 = vmul.f32 %v70, %v83
  %v142 = vmul.f32 %v71, %v83
  %v143 = vmul.f32 %v72, %v83
  %v144 = vmul.f32 %v73, %v83
  %v145 = vmul.f32 %v74, %v83
  %v146 = vmul.f32 %v75, %v83
  %v147 = vmul.f32 %v76, %v83
  %v148 = vmul.f32 %v77, %v83
  %v149 = vld [vmem:[%s2] sm:$0x1]
  %v151 = vlaneseq
  %v152 = vshrl.u32 %v151, 7
  %v153 = vsub.s32 0, %v152
  %v154 = vrot.slane %v149, %v153
  %v156 = vadd.f32 %v85, %v154
  %v157 = vadd.f32 %v86, %v154
  %v158 = vadd.f32 %v87, %v154
  %v159 = vadd.f32 %v88, %v154
  %v160 = vadd.f32 %v89, %v154
  %v161 = vadd.f32 %v90, %v154
  %v162 = vadd.f32 %v91, %v154
  %v163 = vadd.f32 %v92, %v154
  %v164 = vadd.f32 %v93, %v154
  %v165 = vadd.f32 %v94, %v154
  %v166 = vadd.f32 %v95, %v154
  %v167 = vadd.f32 %v96, %v154
  %v168 = vadd.f32 %v97, %v154
  %v169 = vadd.f32 %v98, %v154
  %v170 = vadd.f32 %v99, %v154
  %v171 = vadd.f32 %v100, %v154
  %v172 = vadd.f32 %v101, %v154
  %v173 = vadd.f32 %v102, %v154
  %v174 = vadd.f32 %v103, %v154
  %v175 = vadd.f32 %v104, %v154
  %v176 = vadd.f32 %v105, %v154
  %v177 = vadd.f32 %v106, %v154
  %v178 = vadd.f32 %v107, %v154
  %v179 = vadd.f32 %v108, %v154
  %v180 = vadd.f32 %v109, %v154
  %v181 = vadd.f32 %v110, %v154
  %v182 = vadd.f32 %v111, %v154
  %v183 = vadd.f32 %v112, %v154
  %v184 = vadd.f32 %v113, %v154
  %v185 = vadd.f32 %v114, %v154
  %v186 = vadd.f32 %v115, %v154
  %v187 = vadd.f32 %v116, %v154
  %v188 = vadd.f32 %v117, %v154
  %v189 = vadd.f32 %v118, %v154
  %v190 = vadd.f32 %v119, %v154
  %v191 = vadd.f32 %v120, %v154
  %v192 = vadd.f32 %v121, %v154
  %v193 = vadd.f32 %v122, %v154
  %v194 = vadd.f32 %v123, %v154
  %v195 = vadd.f32 %v124, %v154
  %v196 = vadd.f32 %v125, %v154
  %v197 = vadd.f32 %v126, %v154
  %v198 = vadd.f32 %v127, %v154
  %v199 = vadd.f32 %v128, %v154
  %v200 = vadd.f32 %v129, %v154
  %v201 = vadd.f32 %v130, %v154
  %v202 = vadd.f32 %v131, %v154
  %v203 = vadd.f32 %v132, %v154
  %v204 = vadd.f32 %v133, %v154
  %v205 = vadd.f32 %v134, %v154
  %v206 = vadd.f32 %v135, %v154
  %v207 = vadd.f32 %v136, %v154
  %v208 = vadd.f32 %v137, %v154
  %v209 = vadd.f32 %v138, %v154
  %v210 = vadd.f32 %v139, %v154
  %v211 = vadd.f32 %v140, %v154
  %v212 = vadd.f32 %v141, %v154
  %v213 = vadd.f32 %v142, %v154
  %v214 = vadd.f32 %v143, %v154
  %v215 = vadd.f32 %v144, %v154
  %v216 = vadd.f32 %v145, %v154
  %v217 = vadd.f32 %v146, %v154
  %v218 = vadd.f32 %v147, %v154
  %v219 = vadd.f32 %v148, %v154
  %v220 = vmax.f32 %v156, 0.0
  %v221 = vmax.f32 %v157, 0.0
  %v222 = vmax.f32 %v158, 0.0
  %v223 = vmax.f32 %v159, 0.0
  %v224 = vmax.f32 %v160, 0.0
  %v225 = vmax.f32 %v161, 0.0
  %v226 = vmax.f32 %v162, 0.0
  %v227 = vmax.f32 %v163, 0.0
  %v228 = vmax.f32 %v164, 0.0
  %v229 = vmax.f32 %v165, 0.0
  %v230 = vmax.f32 %v166, 0.0
  %v231 = vmax.f32 %v167, 0.0
  %v232 = vmax.f32 %v168, 0.0
  %v233 = vmax.f32 %v169, 0.0
  %v234 = vmax.f32 %v170, 0.0
  %v235 = vmax.f32 %v171, 0.0
  %v236 = vmax.f32 %v172, 0.0
  %v237 = vmax.f32 %v173, 0.0
  %v238 = vmax.f32 %v174, 0.0
  %v239 = vmax.f32 %v175, 0.0
  %v240 = vmax.f32 %v176, 0.0
  %v241 = vmax.f32 %v177, 0.0
  %v242 = vmax.f32 %v178, 0.0
  %v243 = vmax.f32 %v179, 0.0
  %v244 = vmax.f32 %v180, 0.0
  %v245 = vmax.f32 %v181, 0.0
  %v246 = vmax.f32 %v182, 0.0
  %v247 = vmax.f32 %v183, 0.0
  %v248 = vmax.f32 %v184, 0.0
  %v249 = vmax.f32 %v185, 0.0
  %v250 = vmax.f32 %v186, 0.0
  %v251 = vmax.f32 %v187, 0.0
  %v252 = vmax.f32 %v188, 0.0
  %v253 = vmax.f32 %v189, 0.0
  %v254 = vmax.f32 %v190, 0.0
  %v255 = vmax.f32 %v191, 0.0
  %v256 = vmax.f32 %v192, 0.0
  %v257 = vmax.f32 %v193, 0.0
  %v258 = vmax.f32 %v194, 0.0
  %v259 = vmax.f32 %v195, 0.0
  %v260 = vmax.f32 %v196, 0.0
  %v261 = vmax.f32 %v197, 0.0
  %v262 = vmax.f32 %v198, 0.0
  %v263 = vmax.f32 %v199, 0.0
  %v264 = vmax.f32 %v200, 0.0
  %v265 = vmax.f32 %v201, 0.0
  %v266 = vmax.f32 %v202, 0.0
  %v267 = vmax.f32 %v203, 0.0
  %v268 = vmax.f32 %v204, 0.0
  %v269 = vmax.f32 %v205, 0.0
  %v270 = vmax.f32 %v206, 0.0
  %v271 = vmax.f32 %v207, 0.0
  %v272 = vmax.f32 %v208, 0.0
  %v273 = vmax.f32 %v209, 0.0
  %v274 = vmax.f32 %v210, 0.0
  %v275 = vmax.f32 %v211, 0.0
  %v276 = vmax.f32 %v212, 0.0
  %v277 = vmax.f32 %v213, 0.0
  %v278 = vmax.f32 %v214, 0.0
  %v279 = vmax.f32 %v215, 0.0
  %v280 = vmax.f32 %v216, 0.0
  %v281 = vmax.f32 %v217, 0.0
  %v282 = vmax.f32 %v218, 0.0
  %v283 = vmax.f32 %v219, 0.0
  %vm284 = vcmask 64512
  %285 = vst.msk [vmem:[%s3] sm:$0xff] %vm284, %v220
  %286 = vst.msk [vmem:[%s3 + $0x8] sm:$0xff] %vm284, %v221
  %287 = vst.msk [vmem:[%s3 + $0x10] sm:$0xff] %vm284, %v222
  %288 = vst.msk [vmem:[%s3 + $0x18] sm:$0xff] %vm284, %v223
  %289 = vst.msk [vmem:[%s3 + $0x20] sm:$0xff] %vm284, %v224
  %290 = vst.msk [vmem:[%s3 + $0x28] sm:$0xff] %vm284, %v225
  %291 = vst.msk [vmem:[%s3 + $0x30] sm:$0xff] %vm284, %v226
  %292 = vst.msk [vmem:[%s3 + $0x38] sm:$0xff] %vm284, %v227
  %293 = vst.msk [vmem:[%s3 + $0x40] sm:$0xff] %vm284, %v228
  %294 = vst.msk [vmem:[%s3 + $0x48] sm:$0xff] %vm284, %v229
  %295 = vst.msk [vmem:[%s3 + $0x50] sm:$0xff] %vm284, %v230
  %296 = vst.msk [vmem:[%s3 + $0x58] sm:$0xff] %vm284, %v231
  %297 = vst.msk [vmem:[%s3 + $0x60] sm:$0xff] %vm284, %v232
  %298 = vst.msk [vmem:[%s3 + $0x68] sm:$0xff] %vm284, %v233
  %299 = vst.msk [vmem:[%s3 + $0x70] sm:$0xff] %vm284, %v234
  %300 = vst.msk [vmem:[%s3 + $0x78] sm:$0xff] %vm284, %v235
  %301 = vst.msk [vmem:[%s3 + $0x80] sm:$0xff] %vm284, %v236
  %302 = vst.msk [vmem:[%s3 + $0x88] sm:$0xff] %vm284, %v237
  %303 = vst.msk [vmem:[%s3 + $0x90] sm:$0xff] %vm284, %v238
  %304 = vst.msk [vmem:[%s3 + $0x98] sm:$0xff] %vm284, %v239
  %305 = vst.msk [vmem:[%s3 + $0xa0] sm:$0xff] %vm284, %v240
  %306 = vst.msk [vmem:[%s3 + $0xa8] sm:$0xff] %vm284, %v241
  %307 = vst.msk [vmem:[%s3 + $0xb0] sm:$0xff] %vm284, %v242
  %308 = vst.msk [vmem:[%s3 + $0xb8] sm:$0xff] %vm284, %v243
  %309 = vst.msk [vmem:[%s3 + $0xc0] sm:$0xff] %vm284, %v244
  %310 = vst.msk [vmem:[%s3 + $0xc8] sm:$0xff] %vm284, %v245
  %311 = vst.msk [vmem:[%s3 + $0xd0] sm:$0xff] %vm284, %v246
  %312 = vst.msk [vmem:[%s3 + $0xd8] sm:$0xff] %vm284, %v247
  %313 = vst.msk [vmem:[%s3 + $0xe0] sm:$0xff] %vm284, %v248
  %314 = vst.msk [vmem:[%s3 + $0xe8] sm:$0xff] %vm284, %v249
  %315 = vst.msk [vmem:[%s3 + $0xf0] sm:$0xff] %vm284, %v250
  %316 = vst.msk [vmem:[%s3 + $0xf8] sm:$0xff] %vm284, %v251
  %317 = vst.msk [vmem:[%s3 + $0x100] sm:$0xff] %vm284, %v252
  %318 = vst.msk [vmem:[%s3 + $0x108] sm:$0xff] %vm284, %v253
  %319 = vst.msk [vmem:[%s3 + $0x110] sm:$0xff] %vm284, %v254
  %320 = vst.msk [vmem:[%s3 + $0x118] sm:$0xff] %vm284, %v255
  %321 = vst.msk [vmem:[%s3 + $0x120] sm:$0xff] %vm284, %v256
  %322 = vst.msk [vmem:[%s3 + $0x128] sm:$0xff] %vm284, %v257
  %323 = vst.msk [vmem:[%s3 + $0x130] sm:$0xff] %vm284, %v258
  %324 = vst.msk [vmem:[%s3 + $0x138] sm:$0xff] %vm284, %v259
  %325 = vst.msk [vmem:[%s3 + $0x140] sm:$0xff] %vm284, %v260
  %326 = vst.msk [vmem:[%s3 + $0x148] sm:$0xff] %vm284, %v261
  %327 = vst.msk [vmem:[%s3 + $0x150] sm:$0xff] %vm284, %v262
  %328 = vst.msk [vmem:[%s3 + $0x158] sm:$0xff] %vm284, %v263
  %329 = vst.msk [vmem:[%s3 + $0x160] sm:$0xff] %vm284, %v264
  %330 = vst.msk [vmem:[%s3 + $0x168] sm:$0xff] %vm284, %v265
  %331 = vst.msk [vmem:[%s3 + $0x170] sm:$0xff] %vm284, %v266
  %332 = vst.msk [vmem:[%s3 + $0x178] sm:$0xff] %vm284, %v267
  %333 = vst.msk [vmem:[%s3 + $0x180] sm:$0xff] %vm284, %v268
  %334 = vst.msk [vmem:[%s3 + $0x188] sm:$0xff] %vm284, %v269
  %335 = vst.msk [vmem:[%s3 + $0x190] sm:$0xff] %vm284, %v270
  %336 = vst.msk [vmem:[%s3 + $0x198] sm:$0xff] %vm284, %v271
  %337 = vst.msk [vmem:[%s3 + $0x1a0] sm:$0xff] %vm284, %v272
  %338 = vst.msk [vmem:[%s3 + $0x1a8] sm:$0xff] %vm284, %v273
  %339 = vst.msk [vmem:[%s3 + $0x1b0] sm:$0xff] %vm284, %v274
  %340 = vst.msk [vmem:[%s3 + $0x1b8] sm:$0xff] %vm284, %v275
  %341 = vst.msk [vmem:[%s3 + $0x1c0] sm:$0xff] %vm284, %v276
  %342 = vst.msk [vmem:[%s3 + $0x1c8] sm:$0xff] %vm284, %v277
  %343 = vst.msk [vmem:[%s3 + $0x1d0] sm:$0xff] %vm284, %v278
  %344 = vst.msk [vmem:[%s3 + $0x1d8] sm:$0xff] %vm284, %v279
  %345 = vst.msk [vmem:[%s3 + $0x1e0] sm:$0xff] %vm284, %v280
  %346 = vst.msk [vmem:[%s3 + $0x1e8] sm:$0xff] %vm284, %v281
  %347 = vst.msk [vmem:[%s3 + $0x1f0] sm:$0xff] %vm284, %v282
  %348 = vst.msk [vmem:[%s3 + $0x1f8] sm:$0xff] %vm284, %v283
  // Predicated region
  $region14: #{network_block_forward.6} parent=0 // pred_check
    _
  $region15: #{network_block_forward.6} parent=0 // pred_check_branch
    %350 = sbr.rel (0) target = $region17
  $region16: #{network_block_forward.6} parent=0 // pred_region
    _
  $region17: #{network_block_forward.6} parent=0 // pred_fallthru
    _
  // Predicated region
  $region18: #{network_block_forward.6} parent=0 // pred_check
    _
  $region19: #{network_block_forward.6} parent=0 // pred_check_branch
    %352 = sbr.rel (0) target = $region21
  $region20: #{network_block_forward.6} parent=0 // pred_region
    _
  $region21: #{network_block_forward.6} parent=0 // pred_fallthru
    _

// kernel: network_block_forward.7
$region0: #{network_block_forward.7}
  #allocation0 [shape = 'u32[]', space=smem, size = 0x4, offset = 0x4, fixed_abs, tag = 'smem constant byte address 0x4 - core index']
  #allocation1 [shape = 'u32[144,128]{1,0:T(1,128)}', space=vmem, size = 0x12000, scoped, tag = 'internal scratch']
  %s0 = inlined_call_operand.vmem [shape: bf16[2,352,8], index: 0, kind: input, shape index: {}]
  %s1 = inlined_call_operand.vmem [shape: bf16[9,8,16], index: 1, kind: input, shape index: {}]
  %s2 = inlined_call_operand.vmem [shape: f32[1,16], index: 2, kind: input, shape index: {}]
  %s3 = inlined_call_operand.vmem [shape: f32[1,16], index: 3, kind: input, shape index: {}]
  %s4 = inlined_call_operand.vmem [shape: f32[2,72,16], index: 4, kind: output, shape index: {}]
  %s5 = sld [smem:[#allocation0]]
  $region49: #{network_block_forward.7} parent=0
    _
  %s7 = ssub.s32 1, %s5
  %s8 = scalar_select 0, %s7, %s5
  loop: start=0, step=1, limit=4
  $region2: #{network_block_forward.7} parent=0 // loop_pre_header
    _
  $region3: #{network_block_forward.7} parent=0 // loop_header
    %s10 = sphi 0, %s14
    %p11 = scmp.ge.s32.totalorder %s10, 4
    %s17 = sphi 0, %s29
    %s18 = sphi 0, %s25
    %s19 = sphi 0, %s17
    %s20 = sphi 0, %s18
    %s21 = sphi 0, %s19
    %s22 = sphi 0, %s20
    %s32 = sphi 0, %s34
    %s35 = sphi 0, %s32
    %s36 = sphi 0, %s35
    %s52 = sphi 0, %s36
    %s58 = sphi 0, %s60
    %s61 = sphi 0, %s58
    %s62 = sphi 0, %s61
    %s78 = sphi 0, %s62
    %s84 = sphi 0, %s86
    %s87 = sphi 0, %s84
    %s88 = sphi 0, %s87
    %s104 = sphi 0, %s88
    %s110 = sphi 0, %s112
    %s113 = sphi 0, %s110
    %s114 = sphi 0, %s113
    %s130 = sphi 0, %s114
    %s138 = sphi 0, %s140
    %s141 = sphi 0, %s138
    %s142 = sphi 0, %s141
    %s158 = sphi 0, %s142
  $region4: #{network_block_forward.7} parent=0 // loop_header_branch
    %13 = sbr.rel (%p11) target = $region8
  $region5: #{network_block_forward.7} parent=0 // loop_body
    %s15 = ssub.s32 %s10, 1
    %s16 = ssub.s32 %s10, 2
    %s23 = sadd.s32 1, %s18
    %p24 = scmp.ge.s32.totalorder %s23, 1
    %s25 = scalar_select %p24, 0, %s23
    %s26 = sadd.s32 1, %s17
    %s27 = scalar_select %p24, %s26, %s17
    %p28 = scmp.ge.s32.totalorder %s27, 2
    %s29 = scalar_select %p28, 0, %s27
    %s30 = ssub.s32 %s17, %s29
    %p31 = scmp.eq.s32.totalorder %s30, 0
    %s33 = sadd.s32 %s32, 1
    %s34 = scalar_select %p31, %s32, %s33
    %p37 = pneg %p31
    %p38 = scmp.eq.s32.totalorder %s10, 1
    %p39 = por %p37, %p38
    %p40 = scmp.ne.s32.totalorder %s32, %s35
    %p41 = scmp.eq.s32.totalorder %s10, 0
    %p42 = por %p40, %p41
    %p43 = scmp.ne.s32.totalorder %s32, %s35
    %p44 = scmp.eq.s32.totalorder %s15, 1
    %p45 = por %p43, %p44
    %p46 = scmp.ne.s32.totalorder %s35, %s36
    %p47 = scmp.eq.s32.totalorder %s15, 0
    %p48 = por %p46, %p47
    %p49 = scmp.ne.s32.totalorder %s35, %s36
    %p50 = scmp.eq.s32.totalorder %s16, 1
    %p51 = por %p49, %p50
    %p53 = scmp.ne.s32.totalorder %s36, %s52
    %p54 = scmp.eq.s32.totalorder %s16, 0
    %p55 = por %p53, %p54
    %s56 = ssub.s32 %s18, %s25
    %p57 = scmp.eq.s32.totalorder %s56, 0
    %s59 = sadd.s32 %s58, 1
    %s60 = scalar_select %p57, %s58, %s59
    %p63 = pneg %p57
    %p64 = scmp.eq.s32.totalorder %s10, 1
    %p65 = por %p63, %p64
    %p66 = scmp.ne.s32.totalorder %s58, %s61
    %p67 = scmp.eq.s32.totalorder %s10, 0
    %p68 = por %p66, %p67
    %p69 = scmp.ne.s32.totalorder %s58, %s61
    %p70 = scmp.eq.s32.totalorder %s15, 1
    %p71 = por %p69, %p70
    %p72 = scmp.ne.s32.totalorder %s61, %s62
    %p73 = scmp.eq.s32.totalorder %s15, 0
    %p74 = por %p72, %p73
    %p75 = scmp.ne.s32.totalorder %s61, %s62
    %p76 = scmp.eq.s32.totalorder %s16, 1
    %p77 = por %p75, %p76
    %p79 = scmp.ne.s32.totalorder %s62, %s78
    %p80 = scmp.eq.s32.totalorder %s16, 0
    %p81 = por %p79, %p80
    %s82 = ssub.s32 %s18, %s25
    %p83 = scmp.eq.s32.totalorder %s82, 0
    %s85 = sadd.s32 %s84, 1
    %s86 = scalar_select %p83, %s84, %s85
    %p89 = pneg %p83
    %p90 = scmp.eq.s32.totalorder %s10, 1
    %p91 = por %p89, %p90
    %p92 = scmp.ne.s32.totalorder %s84, %s87
    %p93 = scmp.eq.s32.totalorder %s10, 0
    %p94 = por %p92, %p93
    %p95 = scmp.ne.s32.totalorder %s84, %s87
    %p96 = scmp.eq.s32.totalorder %s15, 1
    %p97 = por %p95, %p96
    %p98 = scmp.ne.s32.totalorder %s87, %s88
    %p99 = scmp.eq.s32.totalorder %s15, 0
    %p100 = por %p98, %p99
    %p101 = scmp.ne.s32.totalorder %s87, %s88
    %p102 = scmp.eq.s32.totalorder %s16, 1
    %p103 = por %p101, %p102
    %p105 = scmp.ne.s32.totalorder %s88, %s104
    %p106 = scmp.eq.s32.totalorder %s16, 0
    %p107 = por %p105, %p106
    %s108 = ssub.s32 %s18, %s25
    %p109 = scmp.eq.s32.totalorder %s108, 0
    %s111 = sadd.s32 %s110, 1
    %s112 = scalar_select %p109, %s110, %s111
    %p115 = pneg %p109
    %p116 = scmp.eq.s32.totalorder %s10, 1
    %p117 = por %p115, %p116
    %p118 = scmp.ne.s32.totalorder %s110, %s113
    %p119 = scmp.eq.s32.totalorder %s10, 0
    %p120 = por %p118, %p119
    %p121 = scmp.ne.s32.totalorder %s110, %s113
    %p122 = scmp.eq.s32.totalorder %s15, 1
    %p123 = por %p121, %p122
    %p124 = scmp.ne.s32.totalorder %s113, %s114
    %p125 = scmp.eq.s32.totalorder %s15, 0
    %p126 = por %p124, %p125
    %p127 = scmp.ne.s32.totalorder %s113, %s114
    %p128 = scmp.eq.s32.totalorder %s16, 1
    %p129 = por %p127, %p128
    %p131 = scmp.ne.s32.totalorder %s114, %s130
    %p132 = scmp.eq.s32.totalorder %s16, 0
    %p133 = por %p131, %p132
    %s134 = ssub.s32 %s17, %s29
    %s135 = ssub.s32 %s18, %s25
    %s136 = sor.u32 %s134, %s135
    %p137 = scmp.eq.s32.totalorder %s136, 0
    %s139 = sadd.s32 %s138, 1
    %s140 = scalar_select %p137, %s138, %s139
    %p143 = pneg %p137
    %p144 = scmp.eq.s32.totalorder %s10, 1
    %p145 = por %p143, %p144
    %p146 = scmp.ne.s32.totalorder %s138, %s141
    %p147 = scmp.eq.s32.totalorder %s10, 0
    %p148 = por %p146, %p147
    %p149 = scmp.ne.s32.totalorder %s138, %s141
    %p150 = scmp.eq.s32.totalorder %s15, 1
    %p151 = por %p149, %p150
    %p152 = scmp.ne.s32.totalorder %s141, %s142
    %p153 = scmp.eq.s32.totalorder %s15, 0
    %p154 = por %p152, %p153
    %p155 = scmp.ne.s32.totalorder %s141, %s142
    %p156 = scmp.eq.s32.totalorder %s16, 1
    %p157 = por %p155, %p156
    %p159 = scmp.ne.s32.totalorder %s142, %s158
    %p160 = scmp.eq.s32.totalorder %s16, 0
    %p161 = por %p159, %p160
    %p162 = scmp.le.s32.totalorder 1, %s10
    %p163 = scmp.lt.s32.totalorder %s10, 3
    %p164 = pnand %p162, %p163
    %p165 = pneg %p164
    // Predicated region
    $region9: #{network_block_forward.7} parent=5 // pred_check
      _
    $region10: #{network_block_forward.7} parent=5 // pred_check_branch
      %167 = sbr.rel (%p164) target = $region12
    $region11: #{network_block_forward.7} parent=5 // pred_region
      %s168 = ssub.s32 %s10, 1
      // Predicated region
      $region13: #{network_block_forward.7} parent=11 // pred_check
        %p169 = pneg %p74
      $region14: #{network_block_forward.7} parent=11 // pred_check_branch
        %171 = sbr.rel (%p169) target = $region16
      $region15: #{network_block_forward.7} parent=11 // pred_region
        %p172 = scmp.lt.s32.totalorder %s20, 0
        %s173 = scalar_select %p172, %s20, 0
        %s174 = smul.addr %s173, 4
        %s175 = scalar_lea.vmem %s1, %s174
      $region16: #{network_block_forward.7} parent=11 // pred_fallthru
        _
      // Predicated region
      $region17: #{network_block_forward.7} parent=11 // pred_check
        %p176 = pneg %p100
      $region18: #{network_block_forward.7} parent=11 // pred_check_branch
        %178 = sbr.rel (%p176) target = $region20
      $region19: #{network_block_forward.7} parent=11 // pred_region
        %p179 = scmp.lt.s32.totalorder %s20, 0
        %s180 = scalar_select %p179, %s20, 0
        %s181 = scalar_lea.vmem %s2, %s180
      $region20: #{network_block_forward.7} parent=11 // pred_fallthru
        _
      // Predicated region
      $region21: #{network_block_forward.7} parent=11 // pred_check
        %p182 = pneg %p126
      $region22: #{network_block_forward.7} parent=11 // pred_check_branch
        %184 = sbr.rel (%p182) target = $region24
      $region23: #{network_block_forward.7} parent=11 // pred_region
        %p185 = scmp.lt.s32.totalorder %s20, 0
        %s186 = scalar_select %p185, %s20, 0
        %s187 = scalar_lea.vmem %s3, %s186
      $region24: #{network_block_forward.7} parent=11 // pred_fallthru
        _
    $region12: #{network_block_forward.7} parent=5 // pred_fallthru
      _
    %p188 = scmp.lt.s32.totalorder %s10, 2
    // Predicated region
    $region25: #{network_block_forward.7} parent=5 // pred_check
      %p189 = pneg %p188
    $region26: #{network_block_forward.7} parent=5 // pred_check_branch
      %191 = sbr.rel (%p189) target = $region28
    $region27: #{network_block_forward.7} parent=5 // pred_region
      // Predicated region
      $region29: #{network_block_forward.7} parent=27 // pred_check
        %p192 = pneg %p42
      $region30: #{network_block_forward.7} parent=27 // pred_check_branch
        %194 = sbr.rel (%p192) target = $region32
      $region31: #{network_block_forward.7} parent=27 // pred_region
        %p195 = scmp.lt.s32.totalorder %s17, 1
        %s196 = scalar_select %p195, %s17, 1
        %s197 = smul.addr %s196, 44
        %s198 = smul.addr %s197, 4
        %s199 = scalar_lea.vmem %s0, %s198
      $region32: #{network_block_forward.7} parent=27 // pred_fallthru
        _
    $region28: #{network_block_forward.7} parent=5 // pred_fallthru
      _
    %p200 = scmp.le.s32.totalorder 1, %s10
    %p201 = scmp.lt.s32.totalorder %s10, 3
    %p202 = pnand %p200, %p201
    %p203 = pneg %p202
    // Predicated region
    $region33: #{network_block_forward.7} parent=5 // pred_check
      _
    $region34: #{network_block_forward.7} parent=5 // pred_check_branch
      %205 = sbr.rel (%p202) target = $region36
    $region35: #{network_block_forward.7} parent=5 // pred_region
      %s206 = ssub.s32 %s10, 1
      %p207 = scmp.lt.s32.totalorder %s19, 1
      %s208 = scalar_select %p207, %s19, 1
      %s209 = smul.addr %s208, 44
      %s210 = smul.addr %s209, 4
      %s211 = scalar_lea.vmem %s0, %s210
      %p212 = pneg %p48
      %p213 = pneg %p45
      %p214 = scmp.lt.s32.totalorder %s20, 0
      %s215 = scalar_select %p214, %s20, 0
      %s216 = smul.addr %s215, 4
      %s217 = scalar_lea.vmem %s1, %s216
      %p218 = pneg %p74
      %p219 = pneg %p71
      %p220 = scmp.lt.s32.totalorder %s20, 0
      %s221 = scalar_select %p220, %s20, 0
      %s222 = scalar_lea.vmem %s2, %s221
      %p223 = pneg %p100
      %p224 = pneg %p97
      %p225 = scmp.lt.s32.totalorder %s20, 0
      %s226 = scalar_select %p225, %s20, 0
      %s227 = scalar_lea.vmem %s3, %s226
      %p228 = pneg %p126
      %p229 = pneg %p123
      %p230 = pneg %p154
      %p231 = pneg %p151
      %p232 = scmp.lt.s32.totalorder %s19, 1
      %s233 = scalar_select %p232, %s19, 1
      %p234 = scmp.lt.s32.totalorder %s20, 0
      %s235 = scalar_select %p234, %s20, 0
      %s236 = smul.addr %s233, 9
      %s237 = sadd.s32 %s235, %s236
      %s238 = smul.addr %s237, 8
      %s239 = scalar_lea.vmem %s4, %s238
      %p240 = scmp.lt.s32.totalorder %s19, 1
      %s241 = scalar_select %p240, %s19, 1
      %s242 = smul.addr %s241, 44
      %s243 = smul.addr %s242, 4
      %s244 = scalar_lea.vmem %s0, %s243
      %p245 = scmp.lt.s32.totalorder %s20, 0
      %s246 = scalar_select %p245, %s20, 0
      %s247 = smul.addr %s246, 4
      %s248 = scalar_lea.vmem %s1, %s247
      %p249 = scmp.lt.s32.totalorder %s20, 0
      %s250 = scalar_select %p249, %s20, 0
      %s251 = scalar_lea.vmem %s2, %s250
      %p252 = scmp.lt.s32.totalorder %s20, 0
      %s253 = scalar_select %p252, %s20, 0
      %s254 = scalar_lea.vmem %s3, %s253
      %p255 = scmp.lt.s32.totalorder %s19, 1
      %s256 = scalar_select %p255, %s19, 1
      %p257 = scmp.lt.s32.totalorder %s20, 0
      %s258 = scalar_select %p257, %s20, 0
      %s259 = smul.addr %s256, 9
      %s260 = sadd.s32 %s258, %s259
      %s261 = smul.addr %s260, 8
      %s262 = scalar_lea.vmem %s4, %s261
      %v264 = vld [vmem:[%s244] sm:$0xf]
      %v265 = vld [vmem:[%s244 + $0x4] sm:$0xf]
      %v266 = vld [vmem:[%s244 + $0x8] sm:$0xf]
      %v267 = vld [vmem:[%s244 + $0xc] sm:$0xf]
      %v268 = vld [vmem:[%s244 + $0x10] sm:$0xf]
      %v269 = vld [vmem:[%s244 + $0x14] sm:$0xf]
      %v270 = vld [vmem:[%s244 + $0x18] sm:$0xf]
      %v271 = vld [vmem:[%s244 + $0x1c] sm:$0xf]
      %v272 = vld [vmem:[%s244 + $0x20] sm:$0xf]
      %v273 = vld [vmem:[%s248] sm:$0xf]
      %v274 = vld [vmem:[%s244 + $0x2c] sm:$0xf]
      %v275 = vld [vmem:[%s244 + $0x30] sm:$0xf]
      %v276 = vld [vmem:[%s244 + $0x34] sm:$0xf]
      %v277 = vld [vmem:[%s244 + $0x38] sm:$0xf]
      %v278 = vld [vmem:[%s244 + $0x3c] sm:$0xf]
      %v279 = vld [vmem:[%s244 + $0x40] sm:$0xf]
      %v280 = vld [vmem:[%s244 + $0x44] sm:$0xf]
      %v281 = vld [vmem:[%s244 + $0x48] sm:$0xf]
      %v282 = vld [vmem:[%s244 + $0x4c] sm:$0xf]
      %s283 = scalar_lea.vmem %s248, 4
      %v284 = vld [vmem:[%s283] sm:$0xf]
      %v294 = vunpack.c.l.b16 %v274
      %v295 = vunpack.c.l.b16 %v275
      %v296 = vunpack.c.l.b16 %v276
      %v297 = vunpack.c.l.b16 %v277
      %v298 = vunpack.c.l.b16 %v278
      %v299 = vunpack.c.l.b16 %v279
      %v300 = vunpack.c.l.b16 %v280
      %v301 = vunpack.c.l.b16 %v281
      %v302 = vunpack.c.l.b16 %v282
      %v303 = vpack.c.b16 %v295, %v294
      %v304 = vpack.c.b16 %v297, %v296
      %v305 = vpack.c.b16 %v299, %v298
      %v306 = vpack.c.b16 %v301, %v300
      %v307 = vpack.c.b16 %v302, %v302
      %vm308 = vcmask 64512
      %v310 = vsel %vm308, %v303, 0
      %v313 = vsel %vm308, %v304, 0
      %v316 = vsel %vm308, %v305, 0
      %v319 = vsel %vm308, %v306, 0
      %v322 = vsel %vm308, %v307, 0
      %vm324 = vcmask 1043456
      %v326 = vsel %vm324, %v284, 0
      %328 = vmatprep.subr.bf16.mxu0 0
      %329 = vmatpush1.bf16.msra.mxu0 %v326
      %330 = vmatprep.subr.bf16.mxu0 0
      %331 = vmatpush1.bf16.msra.mxu0 0
      %332 = vmatprep.subr.bf16.mxu0 0
      %333 = vmatpush1.bf16.msra.mxu0 0
      %334 = vmatprep.subr.bf16.mxu0 0
      %335 = vmatpush1.bf16.msra.mxu0 0
      %336 = vmatprep.subr.bf16.mxu0 0
      %337 = vmatpush1.bf16.msra.mxu0 0
      %338 = vmatprep.subr.bf16.mxu0 0
      %339 = vmatpush1.bf16.msra.mxu0 0
      %340 = vmatprep.subr.bf16.mxu0 0
      %341 = vmatpush1.bf16.msra.mxu0 0
      %342 = vmatprep.subr.bf16.mxu0 0
      %343 = vmatpush1.bf16.msra.mxu0 0
      %344 = vmatprep.subr.bf16.mxu0 0
      %345 = vmatpush1.bf16.msra.mxu0 0
      %346 = vmatprep.subr.bf16.mxu0 0
      %347 = vmatpush1.bf16.msra.mxu0 0
      %348 = vmatprep.subr.bf16.mxu0 0
      %349 = vmatpush1.bf16.msra.mxu0 0
      %350 = vmatprep.subr.bf16.mxu0 0
      %351 = vmatpush1.bf16.msra.mxu0 0
      %352 = vmatprep.subr.bf16.mxu0 0
      %353 = vmatpush1.bf16.msra.mxu0 0
      %354 = vmatprep.subr.bf16.mxu0 0
      %355 = vmatpush1.bf16.msra.mxu0 0
      %356 = vmatprep.subr.bf16.mxu0 0
      %357 = vmatpush1.bf16.msra.mxu0 0
      %358 = vmatprep.subr.bf16.mxu0 0
      %359 = vmatpush1.bf16.msra.mxu0 0
      %360 = vmatprep.mubr.bf16.mxu0 0
      %361 = vmatmul.mubr.bf16.gmra.mrb[0].mxu0 %v310
      %v362 = vpop.f32.mrb[0].mxu0
      %v363 = vadd.f32 0.0, %v362
      %v364 = vpop.f32.mrb[0].mxu0
      %v365 = vpop.f32.mrb[0].mxu0
      %v366 = vadd.f32 0.0, %v365
      %v367 = vpop.f32.mrb[0].mxu0
      %368 = vmatprep.mubr.bf16.mxu0 0
      %369 = vmatmul.mubr.bf16.gmra.mrb[0].mxu0 %v313
      %v370 = vpop.f32.mrb[0].mxu0
      %v371 = vadd.f32 0.0, %v370
      %v372 = vpop.f32.mrb[0].mxu0
      %v373 = vpop.f32.mrb[0].mxu0
      %v374 = vadd.f32 0.0, %v373
      %v375 = vpop.f32.mrb[0].mxu0
      %376 = vmatprep.mubr.bf16.mxu0 0
      %377 = vmatmul.mubr.bf16.gmra.mrb[0].mxu0 %v316
      %v378 = vpop.f32.mrb[0].mxu0
      %v379 = vadd.f32 0.0, %v378
      %v380 = vpop.f32.mrb[0].mxu0
      %v381 = vpop.f32.mrb[0].mxu0
      %v382 = vadd.f32 0.0, %v381
      %v383 = vpop.f32.mrb[0].mxu0
      %384 = vmatprep.mubr.bf16.mxu0 0
      %385 = vmatmul.mubr.bf16.gmra.mrb[0].mxu0 %v319
      %v386 = vpop.f32.mrb[0].mxu0
      %v387 = vadd.f32 0.0, %v386
      %v388 = vpop.f32.mrb[0].mxu0
      %v389 = vpop.f32.mrb[0].mxu0
      %v390 = vadd.f32 0.0, %v389
      %v391 = vpop.f32.mrb[0].mxu0
      %392 = vmatprep.mubr.bf16.mxu0 0
      %393 = vmatmul.mubr.bf16.gmra.mrb[0].mxu0 %v322
      %v394 = vpop.f32.mrb[0].mxu0
      %v395 = vadd.f32 0.0, %v394
      %v396 = vpop.f32.mrb[0].mxu0
      %v397 = vpop.f32.mrb[0].mxu0
      %v398 = vpop.f32.mrb[0].mxu0
      %399 = vdwg.mxu0
      %v409 = vunpack.c.l.b16 %v264
      %v410 = vunpack.c.l.b16 %v265
      %v411 = vunpack.c.l.b16 %v266
      %v412 = vunpack.c.l.b16 %v267
      %v413 = vunpack.c.l.b16 %v268
      %v414 = vunpack.c.l.b16 %v269
      %v415 = vunpack.c.l.b16 %v270
      %v416 = vunpack.c.l.b16 %v271
      %v417 = vunpack.c.l.b16 %v272
      %v418 = vpack.c.b16 %v410, %v409
      %v419 = vpack.c.b16 %v412, %v411
      %v420 = vpack.c.b16 %v414, %v413
      %v421 = vpack.c.b16 %v416, %v415
      %v422 = vpack.c.b16 %v417, %v417
      %v424 = vsel %vm308, %v418, 0
      %v427 = vsel %vm308, %v419, 0
      %v430 = vsel %vm308, %v420, 0
      %v433 = vsel %vm308, %v421, 0
      %v436 = vsel %vm308, %v422, 0
      %v439 = vsel %vm324, %v273, 0
      %441 = vmatprep.subr.bf16.mxu0 0
      %442 = vmatpush1.bf16.msra.mxu0 %v439
      %443 = vmatprep.subr.bf16.mxu0 0
      %444 = vmatpush1.bf16.msra.mxu0 0
      %445 = vmatprep.subr.bf16.mxu0 0
      %446 = vmatpush1.bf16.msra.mxu0 0
      %447 = vmatprep.subr.bf16.mxu0 0
      %448 = vmatpush1.bf16.msra.mxu0 0
      %449 = vmatprep.subr.bf16.mxu0 0
      %450 = vmatpush1.bf16.msra.mxu0 0
      %451 = vmatprep.subr.bf16.mxu0 0
      %452 = vmatpush1.bf16.msra.mxu0 0
      %453 = vmatprep.subr.bf16.mxu0 0
      %454 = vmatpush1.bf16.msra.mxu0 0
      %455 = vmatprep.subr.bf16.mxu0 0
      %456 = vmatpush1.bf16.msra.mxu0 0
      %457 = vmatprep.subr.bf16.mxu0 0
      %458 = vmatpush1.bf16.msra.mxu0 0
      %459 = vmatprep.subr.bf16.mxu0 0
      %460 = vmatpush1.bf16.msra.mxu0 0
      %461 = vmatprep.subr.bf16.mxu0 0
      %462 = vmatpush1.bf16.msra.mxu0 0
      %463 = vmatprep.subr.bf16.mxu0 0
      %464 = vmatpush1.bf16.msra.mxu0 0
      %465 = vmatprep.subr.bf16.mxu0 0
      %466 = vmatpush1.bf16.msra.mxu0 0
      %467 = vmatprep.subr.bf16.mxu0 0
      %468 = vmatpush1.bf16.msra.mxu0 0
      %469 = vmatprep.subr.bf16.mxu0 0
      %470 = vmatpush1.bf16.msra.mxu0 0
      %471 = vmatprep.subr.bf16.mxu0 0
      %472 = vmatpush1.bf16.msra.mxu0 0
      %473 = vmatprep.mubr.bf16.mxu0 0
      %474 = vmatmul.mubr.bf16.gmra.mrb[0].mxu0 %v424
      %v475 = vpop.f32.mrb[0].mxu0
      %v476 = vadd.f32 %v363, %v475
      %v477 = vpop.f32.mrb[0].mxu0
      %v478 = vpop.f32.mrb[0].mxu0
      %v479 = vadd.f32 %v366, %v478
      %v480 = vpop.f32.mrb[0].mxu0
      %481 = vmatprep.mubr.bf16.mxu0 0
      %482 = vmatmul.mubr.bf16.gmra.mrb[0].mxu0 %v427
      %v483 = vpop.f32.mrb[0].mxu0
      %v484 = vadd.f32 %v371, %v483
      %v485 = vpop.f32.mrb[0].mxu0
      %v486 = vpop.f32.mrb[0].mxu0
      %v487 = vadd.f32 %v374, %v486
      %v488 = vpop.f32.mrb[0].mxu0
      %489 = vmatprep.mubr.bf16.mxu0 0
      %490 = vmatmul.mubr.bf16.gmra.mrb[0].mxu0 %v430
      %v491 = vpop.f32.mrb[0].mxu0
      %v492 = vadd.f32 %v379, %v491
      %v493 = vpop.f32.mrb[0].mxu0
      %v494 = vpop.f32.mrb[0].mxu0
      %v495 = vadd.f32 %v382, %v494
      %v496 = vpop.f32.mrb[0].mxu0
      %497 = vmatprep.mubr.bf16.mxu0 0
      %498 = vmatmul.mubr.bf16.gmra.mrb[0].mxu0 %v433
      %v499 = vpop.f32.mrb[0].mxu0
      %v500 = vadd.f32 %v387, %v499
      %v501 = vpop.f32.mrb[0].mxu0
      %v502 = vpop.f32.mrb[0].mxu0
      %v503 = vadd.f32 %v390, %v502
      %v504 = vpop.f32.mrb[0].mxu0
      %505 = vmatprep.mubr.bf16.mxu0 0
      %506 = vmatmul.mubr.bf16.gmra.mrb[0].mxu0 %v436
      %v507 = vpop.f32.mrb[0].mxu0
      %v508 = vadd.f32 %v395, %v507
      %v509 = vpop.f32.mrb[0].mxu0
      %v510 = vpop.f32.mrb[0].mxu0
      %v511 = vpop.f32.mrb[0].mxu0
      %512 = vdwg.mxu0
      %v513 = vld [vmem:[%s244] sm:$0xf]
      %v514 = vld [vmem:[%s244 + $0x4] sm:$0xf]
      %v515 = vld [vmem:[%s244 + $0x8] sm:$0xf]
      %v516 = vld [vmem:[%s244 + $0xc] sm:$0xf]
      %v517 = vld [vmem:[%s244 + $0x10] sm:$0xf]
      %v518 = vld [vmem:[%s244 + $0x14] sm:$0xf]
      %v519 = vld [vmem:[%s244 + $0x18] sm:$0xf]
      %v520 = vld [vmem:[%s244 + $0x1c] sm:$0xf]
      %v521 = vld [vmem:[%s244 + $0x20] sm:$0xf]
      %v522 = vld [vmem:[%s244 + $0x24] sm:$0x1]
      %s523 = scalar_lea.vmem %s248, 8
      %v524 = vld [vmem:[%s523] sm:$0xf]
      %v535 = vunpack.c.l.b16 %v513
      %v536 = vunpack.c.l.b16 %v514
      %v537 = vunpack.c.l.b16 %v515
      %v538 = vunpack.c.l.b16 %v516
      %v539 = vunpack.c.l.b16 %v517
      %v540 = vunpack.c.l.b16 %v518
      %v541 = vunpack.c.l.b16 %v519
      %v542 = vunpack.c.l.b16 %v520
      %v543 = vunpack.c.l.b16 %v521
      %v544 = vunpack.c.l.b16 %v522
      %v545 = vpack.c.b16 %v536, %v535
      %v546 = vpack.c.b16 %v538, %v537
      %v547 = vpack.c.b16 %v540, %v539
      %v548 = vpack.c.b16 %v542, %v541
      %v549 = vpack.c.b16 %v544, %v543
      %vm550 = vsmask.f32 7424
      %v552 = vshrl.u32 %v545, 16
      %v554 = vshll.u32 %v545, 16
      %v556 = vrot.slane %v554, 1
      %v557 = vor.u32 %v552, %v556
      %v559 = vshll.u32 %v546, 16
      %v561 = vrot.slane %v559, 1
      %v562 = vsel %vm550, %v557, %v561
      %v563 = vshrl.u32 %v546, 16
      %v565 = vor.u32 %v563, %v561
      %v567 = vshll.u32 %v547, 16
      %v569 = vrot.slane %v567, 1
      %v570 = vsel %vm550, %v565, %v569
      %v571 = vshrl.u32 %v547, 16
      %v573 = vor.u32 %v571, %v569
      %v575 = vshll.u32 %v548, 16
      %v577 = vrot.slane %v575, 1
      %v578 = vsel %vm550, %v573, %v577
      %v579 = vshrl.u32 %v548, 16
      %v581 = vor.u32 %v579, %v577
      %v583 = vshll.u32 %v549, 16
      %v585 = vrot.slane %v583, 1
      %v586 = vsel %vm550, %v581, %v585
      %v587 = vshrl.u32 %v549, 16
      %v589 = vor.u32 %v587, %v585
      %v591 = vsel %vm308, %v562, 0
      %v594 = vsel %vm308, %v570, 0
      %v597 = vsel %vm308, %v578, 0
      %v600 = vsel %vm308, %v586, 0
      %v603 = vsel %vm308, %v589, 0
      %v606 = vsel %vm324, %v524, 0
      %608 = vmatprep.subr.bf16.mxu0 0
      %609 = vmatpush1.bf16.msra.mxu0 %v606
      %610 = vmatprep.subr.bf16.mxu0 0
      %611 = vmatpush1.bf16.msra.mxu0 0
      %612 = vmatprep.subr.bf16.mxu0 0
      %613 = vmatpush1.bf16.msra.mxu0 0
      %614 = vmatprep.subr.bf16.mxu0 0
      %615 = vmatpush1.bf16.msra.mxu0 0
      %616 = vmatprep.subr.bf16.mxu0 0
      %617 = vmatpush1.bf16.msra.mxu0 0
      %618 = vmatprep.subr.bf16.mxu0 0
      %619 = vmatpush1.bf16.msra.mxu0 0
      %620 = vmatprep.subr.bf16.mxu0 0
      %621 = vmatpush1.bf16.msra.mxu0 0
      %622 = vmatprep.subr.bf16.mxu0 0
      %623 = vmatpush1.bf16.msra.mxu0 0
      %624 = vmatprep.subr.bf16.mxu0 0
      %625 = vmatpush1.bf16.msra.mxu0 0
      %626 = vmatprep.subr.bf16.mxu0 0
      %627 = vmatpush1.bf16.msra.mxu0 0
      %628 = vmatprep.subr.bf16.mxu0 0
      %629 = vmatpush1.bf16.msra.mxu0 0
      %630 = vmatprep.subr.bf16.mxu0 0
      %631 = vmatpush1.bf16.msra.mxu0 0
      %632 = vmatprep.subr.bf16.mxu0 0
      %633 = vmatpush1.bf16.msra.mxu0 0
      %634 = vmatprep.subr.bf16.mxu0 0
      %635 = vmatpush1.bf16.msra.mxu0 0
      %636 = vmatprep.subr.bf16.mxu0 0
      %637 = vmatpush1.bf16.msra.mxu0 0
      %638 = vmatprep.subr.bf16.mxu0 0
      %639 = vmatpush1.bf16.msra.mxu0 0
      %640 = vmatprep.mubr.bf16.mxu0 0
      %641 = vmatmul.mubr.bf16.gmra.mrb[0].mxu0 %v591
      %v642 = vpop.f32.mrb[0].mxu0
      %v643 = vadd.f32 0.0, %v642
      %v644 = vpop.f32.mrb[0].mxu0
      %v645 = vpop.f32.mrb[0].mxu0
      %v646 = vadd.f32 0.0, %v645
      %v647 = vpop.f32.mrb[0].mxu0
      %648 = vmatprep.mubr.bf16.mxu0 0
      %649 = vmatmul.mubr.bf16.gmra.mrb[0].mxu0 %v594
      %v650 = vpop.f32.mrb[0].mxu0
      %v651 = vadd.f32 0.0, %v650
      %v652 = vpop.f32.mrb[0].mxu0
      %v653 = vpop.f32.mrb[0].mxu0
      %v654 = vadd.f32 0.0, %v653
      %v655 = vpop.f32.mrb[0].mxu0
      %656 = vmatprep.mubr.bf16.mxu0 0
      %657 = vmatmul.mubr.bf16.gmra.mrb[0].mxu0 %v597
      %v658 = vpop.f32.mrb[0].mxu0
      %v659 = vadd.f32 0.0, %v658
      %v660 = vpop.f32.mrb[0].mxu0
      %v661 = vpop.f32.mrb[0].mxu0
      %v662 = vadd.f32 0.0, %v661
      %v663 = vpop.f32.mrb[0].mxu0
      %664 = vmatprep.mubr.bf16.mxu0 0
      %665 = vmatmul.mubr.bf16.gmra.mrb[0].mxu0 %v600
      %v666 = vpop.f32.mrb[0].mxu0
      %v667 = vadd.f32 0.0, %v666
      %v668 = vpop.f32.mrb[0].mxu0
      %v669 = vpop.f32.mrb[0].mxu0
      %v670 = vadd.f32 0.0, %v669
      %v671 = vpop.f32.mrb[0].mxu0
      %672 = vmatprep.mubr.bf16.mxu0 0
      %673 = vmatmul.mubr.bf16.gmra.mrb[0].mxu0 %v603
      %v674 = vpop.f32.mrb[0].mxu0
      %v675 = vadd.f32 0.0, %v674
      %v676 = vpop.f32.mrb[0].mxu0
      %v677 = vpop.f32.mrb[0].mxu0
      %v678 = vpop.f32.mrb[0].mxu0
      %679 = vdwg.mxu0
      %v680 = vadd.f32 %v476, %v643
      %v681 = vadd.f32 %v479, %v646
      %v682 = vadd.f32 %v484, %v651
      %v683 = vadd.f32 %v487, %v654
      %v684 = vadd.f32 %v492, %v659
      %v685 = vadd.f32 %v495, %v662
      %v686 = vadd.f32 %v500, %v667
      %v687 = vadd.f32 %v503, %v670
      %v688 = vadd.f32 %v508, %v675
      %v689 = vld [vmem:[%s244 + $0x58] sm:$0xf]
      %v690 = vld [vmem:[%s244 + $0x5c] sm:$0xf]
      %v691 = vld [vmem:[%s244 + $0x60] sm:$0xf]
      %v692 = vld [vmem:[%s244 + $0x64] sm:$0xf]
      %v693 = vld [vmem:[%s244 + $0x68] sm:$0xf]
      %v694 = vld [vmem:[%s244 + $0x6c] sm:$0xf]
      %v695 = vld [vmem:[%s244 + $0x70] sm:$0xf]
      %v696 = vld [vmem:[%s244 + $0x74] sm:$0xf]
      %v697 = vld [vmem:[%s244 + $0x78] sm:$0xf]
      %s698 = scalar_lea.vmem %s248, 12
      %v699 = vld [vmem:[%s698] sm:$0xf]
      %v709 = vunpack.c.l.b16 %v689
      %v710 = vunpack.c.l.b16 %v690
      %v711 = vunpack.c.l.b16 %v691
      %v712 = vunpack.c.l.b16 %v692
      %v713 = vunpack.c.l.b16 %v693
      %v714 = vunpack.c.l.b16 %v694
      %v715 = vunpack.c.l.b16 %v695
      %v716 = vunpack.c.l.b16 %v696
      %v717 = vunpack.c.l.b16 %v697
      %v718 = vpack.c.b16 %v710, %v709
      %v719 = vpack.c.b16 %v712, %v711
      %v720 = vpack.c.b16 %v714, %v713
      %v721 = vpack.c.b16 %v716, %v715
      %v722 = vpack.c.b16 %v717, %v717
      %v724 = vsel %vm308, %v718, 0
      %v727 = vsel %vm308, %v719, 0
      %v730 = vsel %vm308, %v720, 0
      %v733 = vsel %vm308, %v721, 0
      %v736 = vsel %vm308, %v722, 0
      %v739 = vsel %vm324, %v699, 0
      %741 = vmatprep.subr.bf16.mxu0 0
      %742 = vmatpush1.bf16.msra.mxu0 %v739
      %743 = vmatprep.subr.bf16.mxu0 0
      %744 = vmatpush1.bf16.msra.mxu0 0
      %745 = vmatprep.subr.bf16.mxu0 0
      %746 = vmatpush1.bf16.msra.mxu0 0
      %747 = vmatprep.subr.bf16.mxu0 0
      %748 = vmatpush1.bf16.msra.mxu0 0
      %749 = vmatprep.subr.bf16.mxu0 0
      %750 = vmatpush1.bf16.msra.mxu0 0
      %751 = vmatprep.subr.bf16.mxu0 0
      %752 = vmatpush1.bf16.msra.mxu0 0
      %753 = vmatprep.subr.bf16.mxu0 0
      %754 = vmatpush1.bf16.msra.mxu0 0
      %755 = vmatprep.subr.bf16.mxu0 0
      %756 = vmatpush1.bf16.msra.mxu0 0
      %757 = vmatprep.subr.bf16.mxu0 0
      %758 = vmatpush1.bf16.msra.mxu0 0
      %759 = vmatprep.subr.bf16.mxu0 0
      %760 = vmatpush1.bf16.msra.mxu0 0
      %761 = vmatprep.subr.bf16.mxu0 0
      %762 = vmatpush1.bf16.msra.mxu0 0
      %763 = vmatprep.subr.bf16.mxu0 0
      %764 = vmatpush1.bf16.msra.mxu0 0
      %765 = vmatprep.subr.bf16.mxu0 0
      %766 = vmatpush1.bf16.msra.mxu0 0
      %767 = vmatprep.subr.bf16.mxu0 0
      %768 = vmatpush1.bf16.msra.mxu0 0
      %769 = vmatprep.subr.bf16.mxu0 0
      %770 = vmatpush1.bf16.msra.mxu0 0
      %771 = vmatprep.subr.bf16.mxu0 0
      %772 = vmatpush1.bf16.msra.mxu0 0
      %773 = vmatprep.mubr.bf16.mxu0 0
      %774 = vmatmul.mubr.bf16.gmra.mrb[0].mxu0 %v724
      %v775 = vpop.f32.mrb[0].mxu0
      %v776 = vadd.f32 0.0, %v775
      %v777 = vpop.f32.mrb[0].mxu0
      %v778 = vpop.f32.mrb[0].mxu0
      %v779 = vadd.f32 0.0, %v778
      %v780 = vpop.f32.mrb[0].mxu0
      %781 = vmatprep.mubr.bf16.mxu0 0
      %782 = vmatmul.mubr.bf16.gmra.mrb[0].mxu0 %v727
      %v783 = vpop.f32.mrb[0].mxu0
      %v784 = vadd.f32 0.0, %v783
      %v785 = vpop.f32.mrb[0].mxu0
      %v786 = vpop.f32.mrb[0].mxu0
      %v787 = vadd.f32 0.0, %v786
      %v788 = vpop.f32.mrb[0].mxu0
      %789 = vmatprep.mubr.bf16.mxu0 0
      %790 = vmatmul.mubr.bf16.gmra.mrb[0].mxu0 %v730
      %v791 = vpop.f32.mrb[0].mxu0
      %v792 = vadd.f32 0.0, %v791
      %v793 = vpop.f32.mrb[0].mxu0
      %v794 = vpop.f32.mrb[0].mxu0
      %v795 = vadd.f32 0.0, %v794
      %v796 = vpop.f32.mrb[0].mxu0
      %797 = vmatprep.mubr.bf16.mxu0 0
      %798 = vmatmul.mubr.bf16.gmra.mrb[0].mxu0 %v733
      %v799 = vpop.f32.mrb[0].mxu0
      %v800 = vadd.f32 0.0, %v799
      %v801 = vpop.f32.mrb[0].mxu0
      %v802 = vpop.f32.mrb[0].mxu0
      %v803 = vadd.f32 0.0, %v802
      %v804 = vpop.f32.mrb[0].mxu0
      %805 = vmatprep.mubr.bf16.mxu0 0
      %806 = vmatmul.mubr.bf16.gmra.mrb[0].mxu0 %v736
      %v807 = vpop.f32.mrb[0].mxu0
      %v808 = vadd.f32 0.0, %v807
      %v809 = vpop.f32.mrb[0].mxu0
      %v810 = vpop.f32.mrb[0].mxu0
      %v811 = vpop.f32.mrb[0].mxu0
      %812 = vdwg.mxu0
      %v813 = vadd.f32 %v680, %v776
      %v814 = vadd.f32 %v681, %v779
      %v815 = vadd.f32 %v682, %v784
      %v816 = vadd.f32 %v683, %v787
      %v817 = vadd.f32 %v684, %v792
      %v818 = vadd.f32 %v685, %v795
      %v819 = vadd.f32 %v686, %v800
      %v820 = vadd.f32 %v687, %v803
      %v821 = vadd.f32 %v688, %v808
      %v822 = vld [vmem:[%s244 + $0x84] sm:$0xf]
      %v823 = vld [vmem:[%s244 + $0x88] sm:$0xf]
      %v824 = vld [vmem:[%s244 + $0x8c] sm:$0xf]
      %v825 = vld [vmem:[%s244 + $0x90] sm:$0xf]
      %v826 = vld [vmem:[%s244 + $0x94] sm:$0xf]
      %v827 = vld [vmem:[%s244 + $0x98] sm:$0xf]
      %v828 = vld [vmem:[%s244 + $0x9c] sm:$0xf]
      %v829 = vld [vmem:[%s244 + $0xa0] sm:$0xf]
      %v830 = vld [vmem:[%s244 + $0xa4] sm:$0xf]
      %s831 = scalar_lea.vmem %s248, 16
      %v832 = vld [vmem:[%s831] sm:$0xf]
      %v842 = vunpack.c.l.b16 %v822
      %v843 = vunpack.c.l.b16 %v823
      %v844 = vunpack.c.l.b16 %v824
      %v845 = vunpack.c.l.b16 %v825
      %v846 = vunpack.c.l.b16 %v826
      %v847 = vunpack.c.l.b16 %v827
      %v848 = vunpack.c.l.b16 %v828
      %v849 = vunpack.c.l.b16 %v829
      %v850 = vunpack.c.l.b16 %v830
      %v851 = vpack.c.b16 %v843, %v842
      %v852 = vpack.c.b16 %v845, %v844
      %v853 = vpack.c.b16 %v847, %v846
      %v854 = vpack.c.b16 %v849, %v848
      %v855 = vpack.c.b16 %v850, %v850
      %v857 = vsel %vm308, %v851, 0
      %v860 = vsel %vm308, %v852, 0
      %v863 = vsel %vm308, %v853, 0
      %v866 = vsel %vm308, %v854, 0
      %v869 = vsel %vm308, %v855, 0
      %v872 = vsel %vm324, %v832, 0
      %874 = vmatprep.subr.bf16.mxu0 0
      %875 = vmatpush1.bf16.msra.mxu0 %v872
      %876 = vmatprep.subr.bf16.mxu0 0
      %877 = vmatpush1.bf16.msra.mxu0 0
      %878 = vmatprep.subr.bf16.mxu0 0
      %879 = vmatpush1.bf16.msra.mxu0 0
      %880 = vmatprep.subr.bf16.mxu0 0
      %881 = vmatpush1.bf16.msra.mxu0 0
      %882 = vmatprep.subr.bf16.mxu0 0
      %883 = vmatpush1.bf16.msra.mxu0 0
      %884 = vmatprep.subr.bf16.mxu0 0
      %885 = vmatpush1.bf16.msra.mxu0 0
      %886 = vmatprep.subr.bf16.mxu0 0
      %887 = vmatpush1.bf16.msra.mxu0 0
      %888 = vmatprep.subr.bf16.mxu0 0
      %889 = vmatpush1.bf16.msra.mxu0 0
      %890 = vmatprep.subr.bf16.mxu0 0
      %891 = vmatpush1.bf16.msra.mxu0 0
      %892 = vmatprep.subr.bf16.mxu0 0
      %893 = vmatpush1.bf16.msra.mxu0 0
      %894 = vmatprep.subr.bf16.mxu0 0
      %895 = vmatpush1.bf16.msra.mxu0 0
      %896 = vmatprep.subr.bf16.mxu0 0
      %897 = vmatpush1.bf16.msra.mxu0 0
      %898 = vmatprep.subr.bf16.mxu0 0
      %899 = vmatpush1.bf16.msra.mxu0 0
      %900 = vmatprep.subr.bf16.mxu0 0
      %901 = vmatpush1.bf16.msra.mxu0 0
      %902 = vmatprep.subr.bf16.mxu0 0
      %903 = vmatpush1.bf16.msra.mxu0 0
      %904 = vmatprep.subr.bf16.mxu0 0
      %905 = vmatpush1.bf16.msra.mxu0 0
      %906 = vmatprep.mubr.bf16.mxu0 0
      %907 = vmatmul.mubr.bf16.gmra.mrb[0].mxu0 %v857
      %v908 = vpop.f32.mrb[0].mxu0
      %v909 = vadd.f32 0.0, %v908
      %v910 = vpop.f32.mrb[0].mxu0
      %v911 = vpop.f32.mrb[0].mxu0
      %v912 = vadd.f32 0.0, %v911
      %v913 = vpop.f32.mrb[0].mxu0
      %914 = vmatprep.mubr.bf16.mxu0 0
      %915 = vmatmul.mubr.bf16.gmra.mrb[0].mxu0 %v860
      %v916 = vpop.f32.mrb[0].mxu0
      %v917 = vadd.f32 0.0, %v916
      %v918 = vpop.f32.mrb[0].mxu0
      %v919 = vpop.f32.mrb[0].mxu0
      %v920 = vadd.f32 0.0, %v919
      %v921 = vpop.f32.mrb[0].mxu0
      %922 = vmatprep.mubr.bf16.mxu0 0
      %923 = vmatmul.mubr.bf16.gmra.mrb[0].mxu0 %v863
      %v924 = vpop.f32.mrb[0].mxu0
      %v925 = vadd.f32 0.0, %v924
      %v926 = vpop.f32.mrb[0].mxu0
      %v927 = vpop.f32.mrb[0].mxu0
      %v928 = vadd.f32 0.0, %v927
      %v929 = vpop.f32.mrb[0].mxu0
      %930 = vmatprep.mubr.bf16.mxu0 0
      %931 = vmatmul.mubr.bf16.gmra.mrb[0].mxu0 %v866
      %v932 = vpop.f32.mrb[0].mxu0
      %v933 = vadd.f32 0.0, %v932
      %v934 = vpop.f32.mrb[0].mxu0
      %v935 = vpop.f32.mrb[0].mxu0
      %v936 = vadd.f32 0.0, %v935
      %v937 = vpop.f32.mrb[0].mxu0
      %938 = vmatprep.mubr.bf16.mxu0 0
      %939 = vmatmul.mubr.bf16.gmra.mrb[0].mxu0 %v869
      %v940 = vpop.f32.mrb[0].mxu0
      %v941 = vadd.f32 0.0, %v940
      %v942 = vpop.f32.mrb[0].mxu0
      %v943 = vpop.f32.mrb[0].mxu0
      %v944 = vpop.f32.mrb[0].mxu0
      %945 = vdwg.mxu0
      %v946 = vadd.f32 %v813, %v909
      %v947 = vadd.f32 %v814, %v912
      %v948 = vadd.f32 %v815, %v917
      %v949 = vadd.f32 %v816, %v920
      %v950 = vadd.f32 %v817, %v925
      %v951 = vadd.f32 %v818, %v928
      %v952 = vadd.f32 %v819, %v933
      %v953 = vadd.f32 %v820, %v936
      %v954 = vadd.f32 %v821, %v941
      %v955 = vld [vmem:[%s244 + $0x58] sm:$0xf]
      %v956 = vld [vmem:[%s244 + $0x5c] sm:$0xf]
      %v957 = vld [vmem:[%s244 + $0x60] sm:$0xf]
      %v958 = vld [vmem:[%s244 + $0x64] sm:$0xf]
      %v959 = vld [vmem:[%s244 + $0x68] sm:$0xf]
      %v960 = vld [vmem:[%s244 + $0x6c] sm:$0xf]
      %v961 = vld [vmem:[%s244 + $0x70] sm:$0xf]
      %v962 = vld [vmem:[%s244 + $0x74] sm:$0xf]
      %v963 = vld [vmem:[%s244 + $0x78] sm:$0xf]
      %v964 = vld [vmem:[%s244 + $0x7c] sm:$0x1]
      %s965 = scalar_lea.vmem %s248, 20
      %v966 = vld [vmem:[%s965] sm:$0xf]
      %v977 = vunpack.c.l.b16 %v955
      %v978 = vunpack.c.l.b16 %v956
      %v979 = vunpack.c.l.b16 %v957
      %v980 = vunpack.c.l.b16 %v958
      %v981 = vunpack.c.l.b16 %v959
      %v982 = vunpack.c.l.b16 %v960
      %v983 = vunpack.c.l.b16 %v961
      %v984 = vunpack.c.l.b16 %v962
      %v985 = vunpack.c.l.b16 %v963
      %v986 = vunpack.c.l.b16 %v964
      %v987 = vpack.c.b16 %v978, %v977
      %v988 = vpack.c.b16 %v980, %v979
      %v989 = vpack.c.b16 %v982, %v981
      %v990 = vpack.c.b16 %v984, %v983
      %v991 = vpack.c.b16 %v986, %v985
      %v993 = vshrl.u32 %v987, 16
      %v995 = vshll.u32 %v987, 16
      %v997 = vrot.slane %v995, 1
      %v998 = vor.u32 %v993, %v997
      %v1000 = vshll.u32 %v988, 16
      %v1002 = vrot.slane %v1000, 1
      %v1003 = vsel %vm550, %v998, %v1002
      %v1004 = vshrl.u32 %v988, 16
      %v1006 = vor.u32 %v1004, %v1002
      %v1008 = vshll.u32 %v989, 16
      %v1010 = vrot.slane %v1008, 1
      %v1011 = vsel %vm550, %v1006, %v1010
      %v1012 = vshrl.u32 %v989, 16
      %v1014 = vor.u32 %v1012, %v1010
      %v1016 = vshll.u32 %v990, 16
      %v1018 = vrot.slane %v1016, 1
      %v1019 = vsel %vm550, %v1014, %v1018
      %v1020 = vshrl.u32 %v990, 16
      %v1022 = vor.u32 %v1020, %v1018
      %v1024 = vshll.u32 %v991, 16
      %v1026 = vrot.slane %v1024, 1
      %v1027 = vsel %vm550, %v1022, %v1026
      %v1028 = vshrl.u32 %v991, 16
      %v1030 = vor.u32 %v1028, %v1026
      %v1032 = vsel %vm308, %v1003, 0
      %v1035 = vsel %vm308, %v1011, 0
      %v1038 = vsel %vm308, %v1019, 0
      %v1041 = vsel %vm308, %v1027, 0
      %v1044 = vsel %vm308, %v1030, 0
      %v1047 = vsel %vm324, %v966, 0
      %1049 = vmatprep.subr.bf16.mxu0 0
      %1050 = vmatpush1.bf16.msra.mxu0 %v1047
      %1051 = vmatprep.subr.bf16.mxu0 0
      %1052 = vmatpush1.bf16.msra.mxu0 0
      %1053 = vmatprep.subr.bf16.mxu0 0
      %1054 = vmatpush1.bf16.msra.mxu0 0
      %1055 = vmatprep.subr.bf16.mxu0 0
      %1056 = vmatpush1.bf16.msra.mxu0 0
      %1057 = vmatprep.subr.bf16.mxu0 0
      %1058 = vmatpush1.bf16.msra.mxu0 0
      %1059 = vmatprep.subr.bf16.mxu0 0
      %1060 = vmatpush1.bf16.msra.mxu0 0
      %1061 = vmatprep.subr.bf16.mxu0 0
      %1062 = vmatpush1.bf16.msra.mxu0 0
      %1063 = vmatprep.subr.bf16.mxu0 0
      %1064 = vmatpush1.bf16.msra.mxu0 0
      %1065 = vmatprep.subr.bf16.mxu0 0
      %1066 = vmatpush1.bf16.msra.mxu0 0
      %1067 = vmatprep.subr.bf16.mxu0 0
      %1068 = vmatpush1.bf16.msra.mxu0 0
      %1069 = vmatprep.subr.bf16.mxu0 0
      %1070 = vmatpush1.bf16.msra.mxu0 0
      %1071 = vmatprep.subr.bf16.mxu0 0
      %1072 = vmatpush1.bf16.msra.mxu0 0
      %1073 = vmatprep.subr.bf16.mxu0 0
      %1074 = vmatpush1.bf16.msra.mxu0 0
      %1075 = vmatprep.subr.bf16.mxu0 0
      %1076 = vmatpush1.bf16.msra.mxu0 0
      %1077 = vmatprep.subr.bf16.mxu0 0
      %1078 = vmatpush1.bf16.msra.mxu0 0
      %1079 = vmatprep.subr.bf16.mxu0 0
      %1080 = vmatpush1.bf16.msra.mxu0 0
      %1081 = vmatprep.mubr.bf16.mxu0 0
      %1082 = vmatmul.mubr.bf16.gmra.mrb[0].mxu0 %v1032
      %v1083 = vpop.f32.mrb[0].mxu0
      %v1084 = vadd.f32 0.0, %v1083
      %v1085 = vpop.f32.mrb[0].mxu0
      %v1086 = vpop.f32.mrb[0].mxu0
      %v1087 = vadd.f32 0.0, %v1086
      %v1088 = vpop.f32.mrb[0].mxu0
      %1089 = vmatprep.mubr.bf16.mxu0 0
      %1090 = vmatmul.mubr.bf16.gmra.mrb[0].mxu0 %v1035
      %v1091 = vpop.f32.mrb[0].mxu0
      %v1092 = vadd.f32 0.0, %v1091
      %v1093 = vpop.f32.mrb[0].mxu0
      %v1094 = vpop.f32.mrb[0].mxu0
      %v1095 = vadd.f32 0.0, %v1094
      %v1096 = vpop.f32.mrb[0].mxu0
      %1097 = vmatprep.mubr.bf16.mxu0 0
      %1098 = vmatmul.mubr.bf16.gmra.mrb[0].mxu0 %v1038
      %v1099 = vpop.f32.mrb[0].mxu0
      %v1100 = vadd.f32 0.0, %v1099
      %v1101 = vpop.f32.mrb[0].mxu0
      %v1102 = vpop.f32.mrb[0].mxu0
      %v1103 = vadd.f32 0.0, %v1102
      %v1104 = vpop.f32.mrb[0].mxu0
      %1105 = vmatprep.mubr.bf16.mxu0 0
      %1106 = vmatmul.mubr.bf16.gmra.mrb[0].mxu0 %v1041
      %v1107 = vpop.f32.mrb[0].mxu0
      %v1108 = vadd.f32 0.0, %v1107
      %v1109 = vpop.f32.mrb[0].mxu0
      %v1110 = vpop.f32.mrb[0].mxu0
      %v1111 = vadd.f32 0.0, %v1110
      %v1112 = vpop.f32.mrb[0].mxu0
      %1113 = vmatprep.mubr.bf16.mxu0 0
      %1114 = vmatmul.mubr.bf16.gmra.mrb[0].mxu0 %v1044
      %v1115 = vpop.f32.mrb[0].mxu0
      %v1116 = vadd.f32 0.0, %v1115
      %v1117 = vpop.f32.mrb[0].mxu0
      %v1118 = vpop.f32.mrb[0].mxu0
      %v1119 = vpop.f32.mrb[0].mxu0
      %1120 = vdwg.mxu0
      %v1121 = vadd.f32 %v946, %v1084
      %v1122 = vadd.f32 %v947, %v1087
      %v1123 = vadd.f32 %v948, %v1092
      %v1124 = vadd.f32 %v949, %v1095
      %v1125 = vadd.f32 %v950, %v1100
      %v1126 = vadd.f32 %v951, %v1103
      %v1127 = vadd.f32 %v952, %v1108
      %v1128 = vadd.f32 %v953, %v1111
      %v1129 = vadd.f32 %v954, %v1116
      %v1130 = vld [vmem:[%s244 + $0x4] sm:$0xf]
      %v1131 = vld [vmem:[%s244 + $0x8] sm:$0xf]
      %v1132 = vld [vmem:[%s244 + $0xc] sm:$0xf]
      %v1133 = vld [vmem:[%s244 + $0x10] sm:$0xf]
      %v1134 = vld [vmem:[%s244 + $0x14] sm:$0xf]
      %v1135 = vld [vmem:[%s244 + $0x18] sm:$0xf]
      %v1136 = vld [vmem:[%s244 + $0x1c] sm:$0xf]
      %v1137 = vld [vmem:[%s244 + $0x20] sm:$0xf]
      %v1138 = vld [vmem:[%s244 + $0x24] sm:$0xf]
      %v1139 = vld [vmem:[%s244 + $0x28] sm:$0x1]
      %s1140 = scalar_lea.vmem %s248, 24
      %v1141 = vld [vmem:[%s1140] sm:$0xf]
      %v1152 = vunpack.c.l.b16 %v1130
      %v1153 = vunpack.c.l.b16 %v1131
      %v1154 = vunpack.c.l.b16 %v1132
      %v1155 = vunpack.c.l.b16 %v1133
      %v1156 = vunpack.c.l.b16 %v1134
      %v1157 = vunpack.c.l.b16 %v1135
      %v1158 = vunpack.c.l.b16 %v1136
      %v1159 = vunpack.c.l.b16 %v1137
      %v1160 = vunpack.c.l.b16 %v1138
      %v1161 = vunpack.c.l.b16 %v1139
      %v1162 = vpack.c.b16 %v1153, %v1152
      %v1163 = vpack.c.b16 %v1155, %v1154
      %v1164 = vpack.c.b16 %v1157, %v1156
      %v1165 = vpack.c.b16 %v1159, %v1158
      %v1166 = vpack.c.b16 %v1161, %v1160
      %v1168 = vshrl.u32 %v1162, 16
      %v1170 = vshll.u32 %v1162, 16
      %v1172 = vrot.slane %v1170, 1
      %v1173 = vor.u32 %v1168, %v1172
      %v1175 = vshll.u32 %v1163, 16
      %v1177 = vrot.slane %v1175, 1
      %v1178 = vsel %vm550, %v1173, %v1177
      %v1179 = vshrl.u32 %v1163, 16
      %v1181 = vor.u32 %v1179, %v1177
      %v1183 = vshll.u32 %v1164, 16
      %v1185 = vrot.slane %v1183, 1
      %v1186 = vsel %vm550, %v1181, %v1185
      %v1187 = vshrl.u32 %v1164, 16
      %v1189 = vor.u32 %v1187, %v1185
      %v1191 = vshll.u32 %v1165, 16
      %v1193 = vrot.slane %v1191, 1
      %v1194 = vsel %vm550, %v1189, %v1193
      %v1195 = vshrl.u32 %v1165, 16
      %v1197 = vor.u32 %v1195, %v1193
      %v1199 = vshll.u32 %v1166, 16
      %v1201 = vrot.slane %v1199, 1
      %v1202 = vsel %vm550, %v1197, %v1201
      %v1203 = vshrl.u32 %v1166, 16
      %v1205 = vor.u32 %v1203, %v1201
      %v1207 = vsel %vm308, %v1178, 0
      %v1210 = vsel %vm308, %v1186, 0
      %v1213 = vsel %vm308, %v1194, 0
      %v1216 = vsel %vm308, %v1202, 0
      %v1219 = vsel %vm308, %v1205, 0
      %v1222 = vsel %vm324, %v1141, 0
      %1224 = vmatprep.subr.bf16.mxu0 0
      %1225 = vmatpush1.bf16.msra.mxu0 %v1222
      %1226 = vmatprep.subr.bf16.mxu0 0
      %1227 = vmatpush1.bf16.msra.mxu0 0
      %1228 = vmatprep.subr.bf16.mxu0 0
      %1229 = vmatpush1.bf16.msra.mxu0 0
      %1230 = vmatprep.subr.bf16.mxu0 0
      %1231 = vmatpush1.bf16.msra.mxu0 0
      %1232 = vmatprep.subr.bf16.mxu0 0
      %1233 = vmatpush1.bf16.msra.mxu0 0
      %1234 = vmatprep.subr.bf16.mxu0 0
      %1235 = vmatpush1.bf16.msra.mxu0 0
      %1236 = vmatprep.subr.bf16.mxu0 0
      %1237 = vmatpush1.bf16.msra.mxu0 0
      %1238 = vmatprep.subr.bf16.mxu0 0
      %1239 = vmatpush1.bf16.msra.mxu0 0
      %1240 = vmatprep.subr.bf16.mxu0 0
      %1241 = vmatpush1.bf16.msra.mxu0 0
      %1242 = vmatprep.subr.bf16.mxu0 0
      %1243 = vmatpush1.bf16.msra.mxu0 0
      %1244 = vmatprep.subr.bf16.mxu0 0
      %1245 = vmatpush1.bf16.msra.mxu0 0
      %1246 = vmatprep.subr.bf16.mxu0 0
      %1247 = vmatpush1.bf16.msra.mxu0 0
      %1248 = vmatprep.subr.bf16.mxu0 0
      %1249 = vmatpush1.bf16.msra.mxu0 0
      %1250 = vmatprep.subr.bf16.mxu0 0
      %1251 = vmatpush1.bf16.msra.mxu0 0
      %1252 = vmatprep.subr.bf16.mxu0 0
      %1253 = vmatpush1.bf16.msra.mxu0 0
      %1254 = vmatprep.subr.bf16.mxu0 0
      %1255 = vmatpush1.bf16.msra.mxu0 0
      %1256 = vmatprep.mubr.bf16.mxu0 0
      %1257 = vmatmul.mubr.bf16.gmra.mrb[0].mxu0 %v1207
      %v1258 = vpop.f32.mrb[0].mxu0
      %v1259 = vadd.f32 0.0, %v1258
      %v1260 = vpop.f32.mrb[0].mxu0
      %v1261 = vpop.f32.mrb[0].mxu0
      %v1262 = vadd.f32 0.0, %v1261
      %v1263 = vpop.f32.mrb[0].mxu0
      %1264 = vmatprep.mubr.bf16.mxu0 0
      %1265 = vmatmul.mubr.bf16.gmra.mrb[0].mxu0 %v1210
      %v1266 = vpop.f32.mrb[0].mxu0
      %v1267 = vadd.f32 0.0, %v1266
      %v1268 = vpop.f32.mrb[0].mxu0
      %v1269 = vpop.f32.mrb[0].mxu0
      %v1270 = vadd.f32 0.0, %v1269
      %v1271 = vpop.f32.mrb[0].mxu0
      %1272 = vmatprep.mubr.bf16.mxu0 0
      %1273 = vmatmul.mubr.bf16.gmra.mrb[0].mxu0 %v1213
      %v1274 = vpop.f32.mrb[0].mxu0
      %v1275 = vadd.f32 0.0, %v1274
      %v1276 = vpop.f32.mrb[0].mxu0
      %v1277 = vpop.f32.mrb[0].mxu0
      %v1278 = vadd.f32 0.0, %v1277
      %v1279 = vpop.f32.mrb[0].mxu0
      %1280 = vmatprep.mubr.bf16.mxu0 0
      %1281 = vmatmul.mubr.bf16.gmra.mrb[0].mxu0 %v1216
      %v1282 = vpop.f32.mrb[0].mxu0
      %v1283 = vadd.f32 0.0, %v1282
      %v1284 = vpop.f32.mrb[0].mxu0
      %v1285 = vpop.f32.mrb[0].mxu0
      %v1286 = vadd.f32 0.0, %v1285
      %v1287 = vpop.f32.mrb[0].mxu0
      %1288 = vmatprep.mubr.bf16.mxu0 0
      %1289 = vmatmul.mubr.bf16.gmra.mrb[0].mxu0 %v1219
      %v1290 = vpop.f32.mrb[0].mxu0
      %v1291 = vadd.f32 0.0, %v1290
      %v1292 = vpop.f32.mrb[0].mxu0
      %v1293 = vpop.f32.mrb[0].mxu0
      %v1294 = vpop.f32.mrb[0].mxu0
      %1295 = vdwg.mxu0
      %v1296 = vadd.f32 %v1121, %v1259
      %v1297 = vadd.f32 %v1122, %v1262
      %v1298 = vadd.f32 %v1123, %v1267
      %v1299 = vadd.f32 %v1124, %v1270
      %v1300 = vadd.f32 %v1125, %v1275
      %v1301 = vadd.f32 %v1126, %v1278
      %v1302 = vadd.f32 %v1127, %v1283
      %v1303 = vadd.f32 %v1128, %v1286
      %v1304 = vadd.f32 %v1129, %v1291
      %v1305 = vld [vmem:[%s244 + $0x30] sm:$0xf]
      %v1306 = vld [vmem:[%s244 + $0x34] sm:$0xf]
      %v1307 = vld [vmem:[%s244 + $0x38] sm:$0xf]
      %v1308 = vld [vmem:[%s244 + $0x3c] sm:$0xf]
      %v1309 = vld [vmem:[%s244 + $0x40] sm:$0xf]
      %v1310 = vld [vmem:[%s244 + $0x44] sm:$0xf]
      %v1311 = vld [vmem:[%s244 + $0x48] sm:$0xf]
      %v1312 = vld [vmem:[%s244 + $0x4c] sm:$0xf]
      %v1313 = vld [vmem:[%s244 + $0x50] sm:$0xf]
      %v1314 = vld [vmem:[%s244 + $0x54] sm:$0x1]
      %s1315 = scalar_lea.vmem %s248, 28
      %v1316 = vld [vmem:[%s1315] sm:$0xf]
      %v1327 = vunpack.c.l.b16 %v1305
      %v1328 = vunpack.c.l.b16 %v1306
      %v1329 = vunpack.c.l.b16 %v1307
      %v1330 = vunpack.c.l.b16 %v1308
      %v1331 = vunpack.c.l.b16 %v1309
      %v1332 = vunpack.c.l.b16 %v1310
      %v1333 = vunpack.c.l.b16 %v1311
      %v1334 = vunpack.c.l.b16 %v1312
      %v1335 = vunpack.c.l.b16 %v1313
      %v1336 = vunpack.c.l.b16 %v1314
      %v1337 = vpack.c.b16 %v1328, %v1327
      %v1338 = vpack.c.b16 %v1330, %v1329
      %v1339 = vpack.c.b16 %v1332, %v1331
      %v1340 = vpack.c.b16 %v1334, %v1333
      %v1341 = vpack.c.b16 %v1336, %v1335
      %v1343 = vshrl.u32 %v1337, 16
      %v1345 = vshll.u32 %v1337, 16
      %v1347 = vrot.slane %v1345, 1
      %v1348 = vor.u32 %v1343, %v1347
      %v1350 = vshll.u32 %v1338, 16
      %v1352 = vrot.slane %v1350, 1
      %v1353 = vsel %vm550, %v1348, %v1352
      %v1354 = vshrl.u32 %v1338, 16
      %v1356 = vor.u32 %v1354, %v1352
      %v1358 = vshll.u32 %v1339, 16
      %v1360 = vrot.slane %v1358, 1
      %v1361 = vsel %vm550, %v1356, %v1360
      %v1362 = vshrl.u32 %v1339, 16
      %v1364 = vor.u32 %v1362, %v1360
      %v1366 = vshll.u32 %v1340, 16
      %v1368 = vrot.slane %v1366, 1
      %v1369 = vsel %vm550, %v1364, %v1368
      %v1370 = vshrl.u32 %v1340, 16
      %v1372 = vor.u32 %v1370, %v1368
      %v1374 = vshll.u32 %v1341, 16
      %v1376 = vrot.slane %v1374, 1
      %v1377 = vsel %vm550, %v1372, %v1376
      %v1378 = vshrl.u32 %v1341, 16
      %v1380 = vor.u32 %v1378, %v1376
      %v1382 = vsel %vm308, %v1353, 0
      %v1385 = vsel %vm308, %v1361, 0
      %v1388 = vsel %vm308, %v1369, 0
      %v1391 = vsel %vm308, %v1377, 0
      %v1394 = vsel %vm308, %v1380, 0
      %v1397 = vsel %vm324, %v1316, 0
      %1399 = vmatprep.subr.bf16.mxu0 0
      %1400 = vmatpush1.bf16.msra.mxu0 %v1397
      %1401 = vmatprep.subr.bf16.mxu0 0
      %1402 = vmatpush1.bf16.msra.mxu0 0
      %1403 = vmatprep.subr.bf16.mxu0 0
      %1404 = vmatpush1.bf16.msra.mxu0 0
      %1405 = vmatprep.subr.bf16.mxu0 0
      %1406 = vmatpush1.bf16.msra.mxu0 0
      %1407 = vmatprep.subr.bf16.mxu0 0
      %1408 = vmatpush1.bf16.msra.mxu0 0
      %1409 = vmatprep.subr.bf16.mxu0 0
      %1410 = vmatpush1.bf16.msra.mxu0 0
      %1411 = vmatprep.subr.bf16.mxu0 0
      %1412 = vmatpush1.bf16.msra.mxu0 0
      %1413 = vmatprep.subr.bf16.mxu0 0
      %1414 = vmatpush1.bf16.msra.mxu0 0
      %1415 = vmatprep.subr.bf16.mxu0 0
      %1416 = vmatpush1.bf16.msra.mxu0 0
      %1417 = vmatprep.subr.bf16.mxu0 0
      %1418 = vmatpush1.bf16.msra.mxu0 0
      %1419 = vmatprep.subr.bf16.mxu0 0
      %1420 = vmatpush1.bf16.msra.mxu0 0
      %1421 = vmatprep.subr.bf16.mxu0 0
      %1422 = vmatpush1.bf16.msra.mxu0 0
      %1423 = vmatprep.subr.bf16.mxu0 0
      %1424 = vmatpush1.bf16.msra.mxu0 0
      %1425 = vmatprep.subr.bf16.mxu0 0
      %1426 = vmatpush1.bf16.msra.mxu0 0
      %1427 = vmatprep.subr.bf16.mxu0 0
      %1428 = vmatpush1.bf16.msra.mxu0 0
      %1429 = vmatprep.subr.bf16.mxu0 0
      %1430 = vmatpush1.bf16.msra.mxu0 0
      %1431 = vmatprep.mubr.bf16.mxu0 0
      %1432 = vmatmul.mubr.bf16.gmra.mrb[0].mxu0 %v1382
      %v1433 = vpop.f32.mrb[0].mxu0
      %v1434 = vadd.f32 0.0, %v1433
      %v1435 = vpop.f32.mrb[0].mxu0
      %v1436 = vpop.f32.mrb[0].mxu0
      %v1437 = vadd.f32 0.0, %v1436
      %v1438 = vpop.f32.mrb[0].mxu0
      %1439 = vmatprep.mubr.bf16.mxu0 0
      %1440 = vmatmul.mubr.bf16.gmra.mrb[0].mxu0 %v1385
      %v1441 = vpop.f32.mrb[0].mxu0
      %v1442 = vadd.f32 0.0, %v1441
      %v1443 = vpop.f32.mrb[0].mxu0
      %v1444 = vpop.f32.mrb[0].mxu0
      %v1445 = vadd.f32 0.0, %v1444
      %v1446 = vpop.f32.mrb[0].mxu0
      %1447 = vmatprep.mubr.bf16.mxu0 0
      %1448 = vmatmul.mubr.bf16.gmra.mrb[0].mxu0 %v1388
      %v1449 = vpop.f32.mrb[0].mxu0
      %v1450 = vadd.f32 0.0, %v1449
      %v1451 = vpop.f32.mrb[0].mxu0
      %v1452 = vpop.f32.mrb[0].mxu0
      %v1453 = vadd.f32 0.0, %v1452
      %v1454 = vpop.f32.mrb[0].mxu0
      %1455 = vmatprep.mubr.bf16.mxu0 0
      %1456 = vmatmul.mubr.bf16.gmra.mrb[0].mxu0 %v1391
      %v1457 = vpop.f32.mrb[0].mxu0
      %v1458 = vadd.f32 0.0, %v1457
      %v1459 = vpop.f32.mrb[0].mxu0
      %v1460 = vpop.f32.mrb[0].mxu0
      %v1461 = vadd.f32 0.0, %v1460
      %v1462 = vpop.f32.mrb[0].mxu0
      %1463 = vmatprep.mubr.bf16.mxu0 0
      %1464 = vmatmul.mubr.bf16.gmra.mrb[0].mxu0 %v1394
      %v1465 = vpop.f32.mrb[0].mxu0
      %v1466 = vadd.f32 0.0, %v1465
      %v1467 = vpop.f32.mrb[0].mxu0
      %v1468 = vpop.f32.mrb[0].mxu0
      %v1469 = vpop.f32.mrb[0].mxu0
      %1470 = vdwg.mxu0
      %v1471 = vadd.f32 %v1296, %v1434
      %v1472 = vadd.f32 %v1297, %v1437
      %v1473 = vadd.f32 %v1298, %v1442
      %v1474 = vadd.f32 %v1299, %v1445
      %v1475 = vadd.f32 %v1300, %v1450
      %v1476 = vadd.f32 %v1301, %v1453
      %v1477 = vadd.f32 %v1302, %v1458
      %v1478 = vadd.f32 %v1303, %v1461
      %v1479 = vadd.f32 %v1304, %v1466
      %v1480 = vld [vmem:[%s244 + $0x4] sm:$0xe]
      %s1481 = scalar_lea.vmem %s248, 32
      %v1482 = vld [vmem:[%s1481] sm:$0xf]
      %v1484 = vunpack.c.l.b16 %v1480
      %v1485 = vpack.c.b16 %v1153, %v1484
      %vm1486 = vcmask 1046528
      %v1487 = vrot.slane %v1485, 1
      %v1488 = vrot.slane %v1163, 1
      %v1489 = vsel %vm1486, %v1487, %v1488
      %v1490 = vrot.slane %v1164, 1
      %v1491 = vsel %vm1486, %v1488, %v1490
      %v1492 = vrot.slane %v1165, 1
      %v1493 = vsel %vm1486, %v1490, %v1492
      %v1494 = vrot.slane %v1166, 1
      %v1495 = vsel %vm1486, %v1492, %v1494
      %v1497 = vsel %vm308, %v1489, 0
      %v1500 = vsel %vm308, %v1491, 0
      %v1503 = vsel %vm308, %v1493, 0
      %v1506 = vsel %vm308, %v1495, 0
      %v1509 = vsel %vm308, %v1494, 0
      %v1512 = vsel %vm324, %v1482, 0
      %1514 = vmatprep.subr.bf16.mxu0 0
      %1515 = vmatpush1.bf16.msra.mxu0 %v1512
      %1516 = vmatprep.subr.bf16.mxu0 0
      %1517 = vmatpush1.bf16.msra.mxu0 0
      %1518 = vmatprep.subr.bf16.mxu0 0
      %1519 = vmatpush1.bf16.msra.mxu0 0
      %1520 = vmatprep.subr.bf16.mxu0 0
      %1521 = vmatpush1.bf16.msra.mxu0 0
      %1522 = vmatprep.subr.bf16.mxu0 0
      %1523 = vmatpush1.bf16.msra.mxu0 0
      %1524 = vmatprep.subr.bf16.mxu0 0
      %1525 = vmatpush1.bf16.msra.mxu0 0
      %1526 = vmatprep.subr.bf16.mxu0 0
      %1527 = vmatpush1.bf16.msra.mxu0 0
      %1528 = vmatprep.subr.bf16.mxu0 0
      %1529 = vmatpush1.bf16.msra.mxu0 0
      %1530 = vmatprep.subr.bf16.mxu0 0
      %1531 = vmatpush1.bf16.msra.mxu0 0
      %1532 = vmatprep.subr.bf16.mxu0 0
      %1533 = vmatpush1.bf16.msra.mxu0 0
      %1534 = vmatprep.subr.bf16.mxu0 0
      %1535 = vmatpush1.bf16.msra.mxu0 0
      %1536 = vmatprep.subr.bf16.mxu0 0
      %1537 = vmatpush1.bf16.msra.mxu0 0
      %1538 = vmatprep.subr.bf16.mxu0 0
      %1539 = vmatpush1.bf16.msra.mxu0 0
      %1540 = vmatprep.subr.bf16.mxu0 0
      %1541 = vmatpush1.bf16.msra.mxu0 0
      %1542 = vmatprep.subr.bf16.mxu0 0
      %1543 = vmatpush1.bf16.msra.mxu0 0
      %1544 = vmatprep.subr.bf16.mxu0 0
      %1545 = vmatpush1.bf16.msra.mxu0 0
      %1546 = vmatprep.mubr.bf16.mxu0 0
      %1547 = vmatmul.mubr.bf16.gmra.mrb[0].mxu0 %v1497
      %v1548 = vpop.f32.mrb[0].mxu0
      %v1549 = vadd.f32 0.0, %v1548
      %v1550 = vpop.f32.mrb[0].mxu0
      %v1551 = vpop.f32.mrb[0].mxu0
      %v1552 = vadd.f32 0.0, %v1551
      %v1553 = vpop.f32.mrb[0].mxu0
      %1554 = vmatprep.mubr.bf16.mxu0 0
      %1555 = vmatmul.mubr.bf16.gmra.mrb[0].mxu0 %v1500
      %v1556 = vpop.f32.mrb[0].mxu0
      %v1557 = vadd.f32 0.0, %v1556
      %v1558 = vpop.f32.mrb[0].mxu0
      %v1559 = vpop.f32.mrb[0].mxu0
      %v1560 = vadd.f32 0.0, %v1559
      %v1561 = vpop.f32.mrb[0].mxu0
      %1562 = vmatprep.mubr.bf16.mxu0 0
      %1563 = vmatmul.mubr.bf16.gmra.mrb[0].mxu0 %v1503
      %v1564 = vpop.f32.mrb[0].mxu0
      %v1565 = vadd.f32 0.0, %v1564
      %v1566 = vpop.f32.mrb[0].mxu0
      %v1567 = vpop.f32.mrb[0].mxu0
      %v1568 = vadd.f32 0.0, %v1567
      %v1569 = vpop.f32.mrb[0].mxu0
      %1570 = vmatprep.mubr.bf16.mxu0 0
      %1571 = vmatmul.mubr.bf16.gmra.mrb[0].mxu0 %v1506
      %v1572 = vpop.f32.mrb[0].mxu0
      %v1573 = vadd.f32 0.0, %v1572
      %v1574 = vpop.f32.mrb[0].mxu0
      %v1575 = vpop.f32.mrb[0].mxu0
      %v1576 = vadd.f32 0.0, %v1575
      %v1577 = vpop.f32.mrb[0].mxu0
      %1578 = vmatprep.mubr.bf16.mxu0 0
      %1579 = vmatmul.mubr.bf16.gmra.mrb[0].mxu0 %v1509
      %v1580 = vpop.f32.mrb[0].mxu0
      %v1581 = vadd.f32 0.0, %v1580
      %v1582 = vpop.f32.mrb[0].mxu0
      %v1583 = vpop.f32.mrb[0].mxu0
      %v1584 = vpop.f32.mrb[0].mxu0
      %1585 = vdwg.mxu0
      %v1586 = vadd.f32 %v1471, %v1549
      %v1587 = vadd.f32 %v1472, %v1552
      %v1588 = vadd.f32 %v1473, %v1557
      %v1589 = vadd.f32 %v1474, %v1560
      %v1590 = vadd.f32 %v1475, %v1565
      %v1591 = vadd.f32 %v1476, %v1568
      %v1592 = vadd.f32 %v1477, %v1573
      %v1593 = vadd.f32 %v1478, %v1576
      %v1594 = vadd.f32 %v1479, %v1581
      %v1595 = vld [vmem:[%s251] sm:$0x1]
      %v1597 = vlaneseq
      %v1598 = vshrl.u32 %v1597, 7
      %v1599 = vsub.s32 0, %v1598
      %v1600 = vrot.slane %v1595, %v1599
      %v1602 = vmul.f32 %v1586, %v1600
      %v1603 = vmul.f32 %v1587, %v1600
      %v1604 = vmul.f32 %v1588, %v1600
      %v1605 = vmul.f32 %v1589, %v1600
      %v1606 = vmul.f32 %v1590, %v1600
      %v1607 = vmul.f32 %v1591, %v1600
      %v1608 = vmul.f32 %v1592, %v1600
      %v1609 = vmul.f32 %v1593, %v1600
      %v1610 = vmul.f32 %v1594, %v1600
      %v1611 = vld [vmem:[%s254] sm:$0x1]
      %v1613 = vlaneseq
      %v1614 = vshrl.u32 %v1613, 7
      %v1615 = vsub.s32 0, %v1614
      %v1616 = vrot.slane %v1611, %v1615
      %v1618 = vadd.f32 %v1602, %v1616
      %v1619 = vadd.f32 %v1603, %v1616
      %v1620 = vadd.f32 %v1604, %v1616
      %v1621 = vadd.f32 %v1605, %v1616
      %v1622 = vadd.f32 %v1606, %v1616
      %v1623 = vadd.f32 %v1607, %v1616
      %v1624 = vadd.f32 %v1608, %v1616
      %v1625 = vadd.f32 %v1609, %v1616
      %v1626 = vadd.f32 %v1610, %v1616
      %v1627 = vmax.f32 %v1618, 0.0
      %v1628 = vmax.f32 %v1619, 0.0
      %v1629 = vmax.f32 %v1620, 0.0
      %v1630 = vmax.f32 %v1621, 0.0
      %v1631 = vmax.f32 %v1622, 0.0
      %v1632 = vmax.f32 %v1623, 0.0
      %v1633 = vmax.f32 %v1624, 0.0
      %v1634 = vmax.f32 %v1625, 0.0
      %v1635 = vmax.f32 %v1626, 0.0
      %vm1636 = vcmask 130048
      %1637 = vst.msk [vmem:[%s262] sm:$0xff] %vm1636, %v1627
      %1638 = vst.msk [vmem:[%s262 + $0x8] sm:$0xff] %vm1636, %v1628
      %1639 = vst.msk [vmem:[%s262 + $0x10] sm:$0xff] %vm1636, %v1629
      %1640 = vst.msk [vmem:[%s262 + $0x18] sm:$0xff] %vm1636, %v1630
      %1641 = vst.msk [vmem:[%s262 + $0x20] sm:$0xff] %vm1636, %v1631
      %1642 = vst.msk [vmem:[%s262 + $0x28] sm:$0xff] %vm1636, %v1632
      %1643 = vst.msk [vmem:[%s262 + $0x30] sm:$0xff] %vm1636, %v1633
      %1644 = vst.msk [vmem:[%s262 + $0x38] sm:$0xff] %vm1636, %v1634
      %1645 = vst.msk [vmem:[%s262 + $0x40] sm:$0xff] %vm1636, %v1635
      %p1646 = scmp.lt.s32.totalorder %s19, 1
      %s1647 = scalar_select %p1646, %s19, 1
      %p1648 = scmp.lt.s32.totalorder %s20, 0
      %s1649 = scalar_select %p1648, %s20, 0
      %s1650 = smul.addr %s1647, 9
      %s1651 = sadd.s32 %s1649, %s1650
      %s1652 = smul.addr %s1651, 8
      %s1653 = scalar_lea.vmem %s4, %s1652
      // Predicated region
      $region37: #{network_block_forward.7} parent=35 // pred_check
        %p1654 = pneg %p151
      $region38: #{network_block_forward.7} parent=35 // pred_check_branch
        %1656 = sbr.rel (%p1654) target = $region40
      $region39: #{network_block_forward.7} parent=35 // pred_region
        _
      $region40: #{network_block_forward.7} parent=35 // pred_fallthru
        _
    $region36: #{network_block_forward.7} parent=5 // pred_fallthru
      _
    %p1657 = scmp.le.s32.totalorder 2, %s10
    // Predicated region
    $region41: #{network_block_forward.7} parent=5 // pred_check
      %p1658 = pneg %p1657
    $region42: #{network_block_forward.7} parent=5 // pred_check_branch
      %1660 = sbr.rel (%p1658) target = $region44
    $region43: #{network_block_forward.7} parent=5 // pred_region
      %s1661 = ssub.s32 %s10, 2
      // Predicated region
      $region45: #{network_block_forward.7} parent=43 // pred_check
        %p1662 = pneg %p157
      $region46: #{network_block_forward.7} parent=43 // pred_check_branch
        %1664 = sbr.rel (%p1662) target = $region48
      $region47: #{network_block_forward.7} parent=43 // pred_region
        %p1665 = scmp.lt.s32.totalorder %s21, 1
        %s1666 = scalar_select %p1665, %s21, 1
        %p1667 = scmp.lt.s32.totalorder %s22, 0
        %s1668 = scalar_select %p1667, %s22, 0
        %s1669 = smul.addr %s1666, 9
        %s1670 = sadd.s32 %s1668, %s1669
        %s1671 = smul.addr %s1670, 8
        %s1672 = scalar_lea.vmem %s4, %s1671
      $region48: #{network_block_forward.7} parent=43 // pred_fallthru
        _
    $region44: #{network_block_forward.7} parent=5 // pred_fallthru
      _
  $region6: #{network_block_forward.7} parent=0 // loop_footer
    %s14 = sadd.s32 1, %s10
  $region7: #{network_block_forward.7} parent=0 // loop_footer_branch
    %9 = sbr.rel target = $region3
  $region8: #{network_block_forward.7} parent=0 // loop_exit
    _

// kernel: network_block_forward.9
$region0: #{network_block_forward.9}
  #allocation0 [shape = 'u32[]', space=smem, size = 0x4, offset = 0x4, fixed_abs, tag = 'smem constant byte address 0x4 - core index']
  #allocation1 [shape = 'u32[144,128]{1,0:T(1,128)}', space=vmem, size = 0x12000, scoped, tag = 'internal scratch']
  %s0 = inlined_call_operand.vmem [shape: f32[128,16], index: 0, kind: input, shape index: {}]
  %s1 = inlined_call_operand.vmem [shape: f32[1,16], index: 1, kind: input, shape index: {}]
  %s2 = inlined_call_operand.vmem [shape: f32[1,16], index: 2, kind: input, shape index: {}]
  %s3 = inlined_call_operand.vmem [shape: f32[128,16], index: 3, kind: output, shape index: {}]
  %s4 = sld [smem:[#allocation0]]
  $region22: #{network_block_forward.9} parent=0
    _
  %s6 = ssub.s32 1, %s4
  %s7 = scalar_select 0, %s6, %s4
  // Predicated region
  $region2: #{network_block_forward.9} parent=0 // pred_check
    _
  $region3: #{network_block_forward.9} parent=0 // pred_check_branch
    %9 = sbr.rel (0) target = $region5
  $region4: #{network_block_forward.9} parent=0 // pred_region
    _
  $region5: #{network_block_forward.9} parent=0 // pred_fallthru
    _
  // Predicated region
  $region6: #{network_block_forward.9} parent=0 // pred_check
    _
  $region7: #{network_block_forward.9} parent=0 // pred_check_branch
    %11 = sbr.rel (0) target = $region9
  $region8: #{network_block_forward.9} parent=0 // pred_region
    _
  $region9: #{network_block_forward.9} parent=0 // pred_fallthru
    _
  // Predicated region
  $region10: #{network_block_forward.9} parent=0 // pred_check
    _
  $region11: #{network_block_forward.9} parent=0 // pred_check_branch
    %13 = sbr.rel (0) target = $region13
  $region12: #{network_block_forward.9} parent=0 // pred_region
    _
  $region13: #{network_block_forward.9} parent=0 // pred_fallthru
    _
  %v14 = vld [vmem:[%s0] sm:$0xff]
  %v15 = vld [vmem:[%s0 + $0x8] sm:$0xff]
  %v16 = vld [vmem:[%s0 + $0x10] sm:$0xff]
  %v17 = vld [vmem:[%s0 + $0x18] sm:$0xff]
  %v18 = vld [vmem:[%s0 + $0x20] sm:$0xff]
  %v19 = vld [vmem:[%s0 + $0x28] sm:$0xff]
  %v20 = vld [vmem:[%s0 + $0x30] sm:$0xff]
  %v21 = vld [vmem:[%s0 + $0x38] sm:$0xff]
  %v22 = vld [vmem:[%s0 + $0x40] sm:$0xff]
  %v23 = vld [vmem:[%s0 + $0x48] sm:$0xff]
  %v24 = vld [vmem:[%s0 + $0x50] sm:$0xff]
  %v25 = vld [vmem:[%s0 + $0x58] sm:$0xff]
  %v26 = vld [vmem:[%s0 + $0x60] sm:$0xff]
  %v27 = vld [vmem:[%s0 + $0x68] sm:$0xff]
  %v28 = vld [vmem:[%s0 + $0x70] sm:$0xff]
  %v29 = vld [vmem:[%s0 + $0x78] sm:$0xff]
  %v30 = vld [vmem:[%s1] sm:$0x1]
  %v32 = vlaneseq
  %v33 = vshrl.u32 %v32, 7
  %v34 = vsub.s32 0, %v33
  %v35 = vrot.slane %v30, %v34
  %v37 = vmul.f32 %v14, %v35
  %v38 = vmul.f32 %v15, %v35
  %v39 = vmul.f32 %v16, %v35
  %v40 = vmul.f32 %v17, %v35
  %v41 = vmul.f32 %v18, %v35
  %v42 = vmul.f32 %v19, %v35
  %v43 = vmul.f32 %v20, %v35
  %v44 = vmul.f32 %v21, %v35
  %v45 = vmul.f32 %v22, %v35
  %v46 = vmul.f32 %v23, %v35
  %v47 = vmul.f32 %v24, %v35
  %v48 = vmul.f32 %v25, %v35
  %v49 = vmul.f32 %v26, %v35
  %v50 = vmul.f32 %v27, %v35
  %v51 = vmul.f32 %v28, %v35
  %v52 = vmul.f32 %v29, %v35
  %v53 = vld [vmem:[%s2] sm:$0x1]
  %v55 = vlaneseq
  %v56 = vshrl.u32 %v55, 7
  %v57 = vsub.s32 0, %v56
  %v58 = vrot.slane %v53, %v57
  %v60 = vadd.f32 %v37, %v58
  %v61 = vadd.f32 %v38, %v58
  %v62 = vadd.f32 %v39, %v58
  %v63 = vadd.f32 %v40, %v58
  %v64 = vadd.f32 %v41, %v58
  %v65 = vadd.f32 %v42, %v58
  %v66 = vadd.f32 %v43, %v58
  %v67 = vadd.f32 %v44, %v58
  %v68 = vadd.f32 %v45, %v58
  %v69 = vadd.f32 %v46, %v58
  %v70 = vadd.f32 %v47, %v58
  %v71 = vadd.f32 %v48, %v58
  %v72 = vadd.f32 %v49, %v58
  %v73 = vadd.f32 %v50, %v58
  %v74 = vadd.f32 %v51, %v58
  %v75 = vadd.f32 %v52, %v58
  %v76 = vmax.f32 %v60, 0.0
  %v77 = vmax.f32 %v61, 0.0
  %v78 = vmax.f32 %v62, 0.0
  %v79 = vmax.f32 %v63, 0.0
  %v80 = vmax.f32 %v64, 0.0
  %v81 = vmax.f32 %v65, 0.0
  %v82 = vmax.f32 %v66, 0.0
  %v83 = vmax.f32 %v67, 0.0
  %v84 = vmax.f32 %v68, 0.0
  %v85 = vmax.f32 %v69, 0.0
  %v86 = vmax.f32 %v70, 0.0
  %v87 = vmax.f32 %v71, 0.0
  %v88 = vmax.f32 %v72, 0.0
  %v89 = vmax.f32 %v73, 0.0
  %v90 = vmax.f32 %v74, 0.0
  %v91 = vmax.f32 %v75, 0.0
  %vm92 = vcmask 130048
  %93 = vst.msk [vmem:[%s3] sm:$0xff] %vm92, %v76
  %94 = vst.msk [vmem:[%s3 + $0x8] sm:$0xff] %vm92, %v77
  %95 = vst.msk [vmem:[%s3 + $0x10] sm:$0xff] %vm92, %v78
  %96 = vst.msk [vmem:[%s3 + $0x18] sm:$0xff] %vm92, %v79
  %97 = vst.msk [vmem:[%s3 + $0x20] sm:$0xff] %vm92, %v80
  %98 = vst.msk [vmem:[%s3 + $0x28] sm:$0xff] %vm92, %v81
  %99 = vst.msk [vmem:[%s3 + $0x30] sm:$0xff] %vm92, %v82
  %100 = vst.msk [vmem:[%s3 + $0x38] sm:$0xff] %vm92, %v83
  %101 = vst.msk [vmem:[%s3 + $0x40] sm:$0xff] %vm92, %v84
  %102 = vst.msk [vmem:[%s3 + $0x48] sm:$0xff] %vm92, %v85
  %103 = vst.msk [vmem:[%s3 + $0x50] sm:$0xff] %vm92, %v86
  %104 = vst.msk [vmem:[%s3 + $0x58] sm:$0xff] %vm92, %v87
  %105 = vst.msk [vmem:[%s3 + $0x60] sm:$0xff] %vm92, %v88
  %106 = vst.msk [vmem:[%s3 + $0x68] sm:$0xff] %vm92, %v89
  %107 = vst.msk [vmem:[%s3 + $0x70] sm:$0xff] %vm92, %v90
  %108 = vst.msk [vmem:[%s3 + $0x78] sm:$0xff] %vm92, %v91
  // Predicated region
  $region14: #{network_block_forward.9} parent=0 // pred_check
    _
  $region15: #{network_block_forward.9} parent=0 // pred_check_branch
    %110 = sbr.rel (0) target = $region17
  $region16: #{network_block_forward.9} parent=0 // pred_region
    _
  $region17: #{network_block_forward.9} parent=0 // pred_fallthru
    _
  // Predicated region
  $region18: #{network_block_forward.9} parent=0 // pred_check
    _
  $region19: #{network_block_forward.9} parent=0 // pred_check_branch
    %112 = sbr.rel (0) target = $region21
  $region20: #{network_block_forward.9} parent=0 // pred_region
    _
  $region21: #{network_block_forward.9} parent=0 // pred_fallthru
    _

// kernel: network_block_forward.8
$region0: #{network_block_forward.8}
  #allocation0 [shape = 'u32[]', space=smem, size = 0x4, offset = 0x4, fixed_abs, tag = 'smem constant byte address 0x4 - core index']
  #allocation1 [shape = 'u32[144,128]{1,0:T(1,128)}', space=vmem, size = 0x12000, scoped, tag = 'internal scratch']
  %s0 = inlined_call_operand.vmem [shape: bf16[2,104,16], index: 0, kind: input, shape index: {}]
  %s1 = inlined_call_operand.vmem [shape: bf16[9,16,16], index: 1, kind: input, shape index: {}]
  %s2 = inlined_call_operand.vmem [shape: bf16[2,80,8], index: 2, kind: input, shape index: {}]
  %s3 = inlined_call_operand.vmem [shape: bf16[8,16], index: 3, kind: input, shape index: {}]
  %s4 = inlined_call_operand.vmem [shape: f32[2,80,16], index: 4, kind: output, shape index: {}]
  %s5 = sld [smem:[#allocation0]]
  $region49: #{network_block_forward.8} parent=0
    _
  %s7 = ssub.s32 1, %s5
  %s8 = scalar_select 0, %s7, %s5
  loop: start=0, step=1, limit=4
  $region2: #{network_block_forward.8} parent=0 // loop_pre_header
    _
  $region3: #{network_block_forward.8} parent=0 // loop_header
    %s10 = sphi 0, %s14
    %p11 = scmp.ge.s32.totalorder %s10, 4
    %s17 = sphi 0, %s29
    %s18 = sphi 0, %s25
    %s19 = sphi 0, %s17
    %s20 = sphi 0, %s18
    %s21 = sphi 0, %s19
    %s22 = sphi 0, %s20
    %s32 = sphi 0, %s34
    %s35 = sphi 0, %s32
    %s36 = sphi 0, %s35
    %s52 = sphi 0, %s36
    %s58 = sphi 0, %s60
    %s61 = sphi 0, %s58
    %s62 = sphi 0, %s61
    %s78 = sphi 0, %s62
    %s84 = sphi 0, %s86
    %s87 = sphi 0, %s84
    %s88 = sphi 0, %s87
    %s104 = sphi 0, %s88
    %s110 = sphi 0, %s112
    %s113 = sphi 0, %s110
    %s114 = sphi 0, %s113
    %s130 = sphi 0, %s114
    %s138 = sphi 0, %s140
    %s141 = sphi 0, %s138
    %s142 = sphi 0, %s141
    %s158 = sphi 0, %s142
  $region4: #{network_block_forward.8} parent=0 // loop_header_branch
    %13 = sbr.rel (%p11) target = $region8
  $region5: #{network_block_forward.8} parent=0 // loop_body
    %s15 = ssub.s32 %s10, 1
    %s16 = ssub.s32 %s10, 2
    %s23 = sadd.s32 1, %s18
    %p24 = scmp.ge.s32.totalorder %s23, 1
    %s25 = scalar_select %p24, 0, %s23
    %s26 = sadd.s32 1, %s17
    %s27 = scalar_select %p24, %s26, %s17
    %p28 = scmp.ge.s32.totalorder %s27, 2
    %s29 = scalar_select %p28, 0, %s27
    %s30 = ssub.s32 %s17, %s29
    %p31 = scmp.eq.s32.totalorder %s30, 0
    %s33 = sadd.s32 %s32, 1
    %s34 = scalar_select %p31, %s32, %s33
    %p37 = pneg %p31
    %p38 = scmp.eq.s32.totalorder %s10, 1
    %p39 = por %p37, %p38
    %p40 = scmp.ne.s32.totalorder %s32, %s35
    %p41 = scmp.eq.s32.totalorder %s10, 0
    %p42 = por %p40, %p41
    %p43 = scmp.ne.s32.totalorder %s32, %s35
    %p44 = scmp.eq.s32.totalorder %s15, 1
    %p45 = por %p43, %p44
    %p46 = scmp.ne.s32.totalorder %s35, %s36
    %p47 = scmp.eq.s32.totalorder %s15, 0
    %p48 = por %p46, %p47
    %p49 = scmp.ne.s32.totalorder %s35, %s36
    %p50 = scmp.eq.s32.totalorder %s16, 1
    %p51 = por %p49, %p50
    %p53 = scmp.ne.s32.totalorder %s36, %s52
    %p54 = scmp.eq.s32.totalorder %s16, 0
    %p55 = por %p53, %p54
    %s56 = ssub.s32 %s18, %s25
    %p57 = scmp.eq.s32.totalorder %s56, 0
    %s59 = sadd.s32 %s58, 1
    %s60 = scalar_select %p57, %s58, %s59
    %p63 = pneg %p57
    %p64 = scmp.eq.s32.totalorder %s10, 1
    %p65 = por %p63, %p64
    %p66 = scmp.ne.s32.totalorder %s58, %s61
    %p67 = scmp.eq.s32.totalorder %s10, 0
    %p68 = por %p66, %p67
    %p69 = scmp.ne.s32.totalorder %s58, %s61
    %p70 = scmp.eq.s32.totalorder %s15, 1
    %p71 = por %p69, %p70
    %p72 = scmp.ne.s32.totalorder %s61, %s62
    %p73 = scmp.eq.s32.totalorder %s15, 0
    %p74 = por %p72, %p73
    %p75 = scmp.ne.s32.totalorder %s61, %s62
    %p76 = scmp.eq.s32.totalorder %s16, 1
    %p77 = por %p75, %p76
    %p79 = scmp.ne.s32.totalorder %s62, %s78
    %p80 = scmp.eq.s32.totalorder %s16, 0
    %p81 = por %p79, %p80
    %s82 = ssub.s32 %s17, %s29
    %p83 = scmp.eq.s32.totalorder %s82, 0
    %s85 = sadd.s32 %s84, 1
    %s86 = scalar_select %p83, %s84, %s85
    %p89 = pneg %p83
    %p90 = scmp.eq.s32.totalorder %s10, 1
    %p91 = por %p89, %p90
    %p92 = scmp.ne.s32.totalorder %s84, %s87
    %p93 = scmp.eq.s32.totalorder %s10, 0
    %p94 = por %p92, %p93
    %p95 = scmp.ne.s32.totalorder %s84, %s87
    %p96 = scmp.eq.s32.totalorder %s15, 1
    %p97 = por %p95, %p96
    %p98 = scmp.ne.s32.totalorder %s87, %s88
    %p99 = scmp.eq.s32.totalorder %s15, 0
    %p100 = por %p98, %p99
    %p101 = scmp.ne.s32.totalorder %s87, %s88
    %p102 = scmp.eq.s32.totalorder %s16, 1
    %p103 = por %p101, %p102
    %p105 = scmp.ne.s32.totalorder %s88, %s104
    %p106 = scmp.eq.s32.totalorder %s16, 0
    %p107 = por %p105, %p106
    %s108 = ssub.s32 %s18, %s25
    %p109 = scmp.eq.s32.totalorder %s108, 0
    %s111 = sadd.s32 %s110, 1
    %s112 = scalar_select %p109, %s110, %s111
    %p115 = pneg %p109
    %p116 = scmp.eq.s32.totalorder %s10, 1
    %p117 = por %p115, %p116
    %p118 = scmp.ne.s32.totalorder %s110, %s113
    %p119 = scmp.eq.s32.totalorder %s10, 0
    %p120 = por %p118, %p119
    %p121 = scmp.ne.s32.totalorder %s110, %s113
    %p122 = scmp.eq.s32.totalorder %s15, 1
    %p123 = por %p121, %p122
    %p124 = scmp.ne.s32.totalorder %s113, %s114
    %p125 = scmp.eq.s32.totalorder %s15, 0
    %p126 = por %p124, %p125
    %p127 = scmp.ne.s32.totalorder %s113, %s114
    %p128 = scmp.eq.s32.totalorder %s16, 1
    %p129 = por %p127, %p128
    %p131 = scmp.ne.s32.totalorder %s114, %s130
    %p132 = scmp.eq.s32.totalorder %s16, 0
    %p133 = por %p131, %p132
    %s134 = ssub.s32 %s17, %s29
    %s135 = ssub.s32 %s18, %s25
    %s136 = sor.u32 %s134, %s135
    %p137 = scmp.eq.s32.totalorder %s136, 0
    %s139 = sadd.s32 %s138, 1
    %s140 = scalar_select %p137, %s138, %s139
    %p143 = pneg %p137
    %p144 = scmp.eq.s32.totalorder %s10, 1
    %p145 = por %p143, %p144
    %p146 = scmp.ne.s32.totalorder %s138, %s141
    %p147 = scmp.eq.s32.totalorder %s10, 0
    %p148 = por %p146, %p147
    %p149 = scmp.ne.s32.totalorder %s138, %s141
    %p150 = scmp.eq.s32.totalorder %s15, 1
    %p151 = por %p149, %p150
    %p152 = scmp.ne.s32.totalorder %s141, %s142
    %p153 = scmp.eq.s32.totalorder %s15, 0
    %p154 = por %p152, %p153
    %p155 = scmp.ne.s32.totalorder %s141, %s142
    %p156 = scmp.eq.s32.totalorder %s16, 1
    %p157 = por %p155, %p156
    %p159 = scmp.ne.s32.totalorder %s142, %s158
    %p160 = scmp.eq.s32.totalorder %s16, 0
    %p161 = por %p159, %p160
    %p162 = scmp.le.s32.totalorder 1, %s10
    %p163 = scmp.lt.s32.totalorder %s10, 3
    %p164 = pnand %p162, %p163
    %p165 = pneg %p164
    // Predicated region
    $region9: #{network_block_forward.8} parent=5 // pred_check
      _
    $region10: #{network_block_forward.8} parent=5 // pred_check_branch
      %167 = sbr.rel (%p164) target = $region12
    $region11: #{network_block_forward.8} parent=5 // pred_region
      %s168 = ssub.s32 %s10, 1
      // Predicated region
      $region13: #{network_block_forward.8} parent=11 // pred_check
        %p169 = pneg %p74
      $region14: #{network_block_forward.8} parent=11 // pred_check_branch
        %171 = sbr.rel (%p169) target = $region16
      $region15: #{network_block_forward.8} parent=11 // pred_region
        %p172 = scmp.lt.s32.totalorder %s20, 0
        %s173 = scalar_select %p172, %s20, 0
        %s174 = smul.addr %s173, 4
        %s175 = scalar_lea.vmem %s1, %s174
      $region16: #{network_block_forward.8} parent=11 // pred_fallthru
        _
      // Predicated region
      $region17: #{network_block_forward.8} parent=11 // pred_check
        %p176 = pneg %p126
      $region18: #{network_block_forward.8} parent=11 // pred_check_branch
        %178 = sbr.rel (%p176) target = $region20
      $region19: #{network_block_forward.8} parent=11 // pred_region
        %p179 = scmp.lt.s32.totalorder %s20, 0
        %s180 = scalar_select %p179, %s20, 0
        %s181 = smul.addr %s180, 4
        %s182 = scalar_lea.vmem %s3, %s181
      $region20: #{network_block_forward.8} parent=11 // pred_fallthru
        _
    $region12: #{network_block_forward.8} parent=5 // pred_fallthru
      _
    %p183 = scmp.lt.s32.totalorder %s10, 2
    // Predicated region
    $region21: #{network_block_forward.8} parent=5 // pred_check
      %p184 = pneg %p183
    $region22: #{network_block_forward.8} parent=5 // pred_check_branch
      %186 = sbr.rel (%p184) target = $region24
    $region23: #{network_block_forward.8} parent=5 // pred_region
      // Predicated region
      $region25: #{network_block_forward.8} parent=23 // pred_check
        %p187 = pneg %p42
      $region26: #{network_block_forward.8} parent=23 // pred_check_branch
        %189 = sbr.rel (%p187) target = $region28
      $region27: #{network_block_forward.8} parent=23 // pred_region
        %p190 = scmp.lt.s32.totalorder %s17, 1
        %s191 = scalar_select %p190, %s17, 1
        %s192 = smul.addr %s191, 13
        %s193 = smul.addr %s192, 4
        %s194 = scalar_lea.vmem %s0, %s193
      $region28: #{network_block_forward.8} parent=23 // pred_fallthru
        _
      // Predicated region
      $region29: #{network_block_forward.8} parent=23 // pred_check
        %p195 = pneg %p94
      $region30: #{network_block_forward.8} parent=23 // pred_check_branch
        %197 = sbr.rel (%p195) target = $region32
      $region31: #{network_block_forward.8} parent=23 // pred_region
        %p198 = scmp.lt.s32.totalorder %s17, 1
        %s199 = scalar_select %p198, %s17, 1
        %s200 = smul.addr %s199, 10
        %s201 = smul.addr %s200, 4
        %s202 = scalar_lea.vmem %s2, %s201
      $region32: #{network_block_forward.8} parent=23 // pred_fallthru
        _
    $region24: #{network_block_forward.8} parent=5 // pred_fallthru
      _
    %p203 = scmp.le.s32.totalorder 1, %s10
    %p204 = scmp.lt.s32.totalorder %s10, 3
    %p205 = pnand %p203, %p204
    %p206 = pneg %p205
    // Predicated region
    $region33: #{network_block_forward.8} parent=5 // pred_check
      _
    $region34: #{network_block_forward.8} parent=5 // pred_check_branch
      %208 = sbr.rel (%p205) target = $region36
    $region35: #{network_block_forward.8} parent=5 // pred_region
      %s209 = ssub.s32 %s10, 1
      %p210 = scmp.lt.s32.totalorder %s19, 1
      %s211 = scalar_select %p210, %s19, 1
      %s212 = smul.addr %s211, 13
      %s213 = smul.addr %s212, 4
      %s214 = scalar_lea.vmem %s0, %s213
      %p215 = pneg %p48
      %p216 = pneg %p45
      %p217 = scmp.lt.s32.totalorder %s20, 0
      %s218 = scalar_select %p217, %s20, 0
      %s219 = smul.addr %s218, 4
      %s220 = scalar_lea.vmem %s1, %s219
      %p221 = pneg %p74
      %p222 = pneg %p71
      %p223 = scmp.lt.s32.totalorder %s19, 1
      %s224 = scalar_select %p223, %s19, 1
      %s225 = smul.addr %s224, 10
      %s226 = smul.addr %s225, 4
      %s227 = scalar_lea.vmem %s2, %s226
      %p228 = pneg %p100
      %p229 = pneg %p97
      %p230 = scmp.lt.s32.totalorder %s20, 0
      %s231 = scalar_select %p230, %s20, 0
      %s232 = smul.addr %s231, 4
      %s233 = scalar_lea.vmem %s3, %s232
      %p234 = pneg %p126
      %p235 = pneg %p123
      %p236 = pneg %p154
      %p237 = pneg %p151
      %p238 = scmp.lt.s32.totalorder %s19, 1
      %s239 = scalar_select %p238, %s19, 1
      %p240 = scmp.lt.s32.totalorder %s20, 0
      %s241 = scalar_select %p240, %s20, 0
      %s242 = smul.addr %s239, 10
      %s243 = sadd.s32 %s241, %s242
      %s244 = smul.addr %s243, 8
      %s245 = scalar_lea.vmem %s4, %s244
      %p246 = scmp.lt.s32.totalorder %s19, 1
      %s247 = scalar_select %p246, %s19, 1
      %s248 = smul.addr %s247, 13
      %s249 = smul.addr %s248, 4
      %s250 = scalar_lea.vmem %s0, %s249
      %p251 = scmp.lt.s32.totalorder %s20, 0
      %s252 = scalar_select %p251, %s20, 0
      %s253 = smul.addr %s252, 4
      %s254 = scalar_lea.vmem %s1, %s253
      %p255 = scmp.lt.s32.totalorder %s19, 1
      %s256 = scalar_select %p255, %s19, 1
      %s257 = smul.addr %s256, 10
      %s258 = smul.addr %s257, 4
      %s259 = scalar_lea.vmem %s2, %s258
      %p260 = scmp.lt.s32.totalorder %s20, 0
      %s261 = scalar_select %p260, %s20, 0
      %s262 = smul.addr %s261, 4
      %s263 = scalar_lea.vmem %s3, %s262
      %p264 = scmp.lt.s32.totalorder %s19, 1
      %s265 = scalar_select %p264, %s19, 1
      %p266 = scmp.lt.s32.totalorder %s20, 0
      %s267 = scalar_select %p266, %s20, 0
      %s268 = smul.addr %s265, 10
      %s269 = sadd.s32 %s267, %s268
      %s270 = smul.addr %s269, 8
      %s271 = scalar_lea.vmem %s4, %s270
      %v273 = vld [vmem:[%s250] sm:$0xf]
      %v274 = vld [vmem:[%s250 + $0x4] sm:$0xf]
      %v275 = vld [vmem:[%s250 + $0x8] sm:$0xf]
      %v276 = vld [vmem:[%s250 + $0xc] sm:$0xf]
      %v277 = vld [vmem:[%s250 + $0x10] sm:$0xf]
      %v278 = vld [vmem:[%s250 + $0x14] sm:$0xf]
      %v279 = vld [vmem:[%s250 + $0x18] sm:$0xf]
      %v280 = vld [vmem:[%s250 + $0x1c] sm:$0xf]
      %v281 = vld [vmem:[%s250 + $0x20] sm:$0xf]
      %v282 = vld [vmem:[%s250 + $0x24] sm:$0xf]
      %v283 = vld [vmem:[%s254] sm:$0xf]
      %v284 = vld [vmem:[%s254 + $0x4] sm:$0xf]
      %v285 = vld [vmem:[%s250 + $0x28] sm:$0x1]
      %s286 = scalar_lea.vmem %s254, 8
      %v287 = vld [vmem:[%s286] sm:$0xf]
      %v288 = vld [vmem:[%s286 + $0x4] sm:$0xf]
      %v300 = vunpack.c.l.b16 %v273
      %v301 = vunpack.c.l.b16 %v274
      %v302 = vunpack.c.l.b16 %v275
      %v303 = vunpack.c.l.b16 %v276
      %v304 = vunpack.c.l.b16 %v277
      %v305 = vunpack.c.l.b16 %v278
      %v306 = vunpack.c.l.b16 %v279
      %v307 = vunpack.c.l.b16 %v280
      %v308 = vunpack.c.l.b16 %v281
      %v309 = vunpack.c.l.b16 %v282
      %v310 = vunpack.c.l.b16 %v285
      %v311 = vpack.c.b16 %v301, %v300
      %v312 = vpack.c.b16 %v303, %v302
      %v313 = vpack.c.b16 %v305, %v304
      %v314 = vpack.c.b16 %v307, %v306
      %v315 = vpack.c.b16 %v309, %v308
      %v316 = vpack.c.b16 %v310, %v310
      %vm317 = vsmask.f32 7424
      %v319 = vshrl.u32 %v311, 16
      %v321 = vshll.u32 %v311, 16
      %v323 = vrot.slane %v321, 1
      %v324 = vor.u32 %v319, %v323
      %v326 = vshll.u32 %v312, 16
      %v328 = vrot.slane %v326, 1
      %v329 = vsel %vm317, %v324, %v328
      %v330 = vshrl.u32 %v312, 16
      %v332 = vor.u32 %v330, %v328
      %v334 = vshll.u32 %v313, 16
      %v336 = vrot.slane %v334, 1
      %v337 = vsel %vm317, %v332, %v336
      %v338 = vshrl.u32 %v313, 16
      %v340 = vor.u32 %v338, %v336
      %v342 = vshll.u32 %v314, 16
      %v344 = vrot.slane %v342, 1
      %v345 = vsel %vm317, %v340, %v344
      %v346 = vshrl.u32 %v314, 16
      %v348 = vor.u32 %v346, %v344
      %v350 = vshll.u32 %v315, 16
      %v352 = vrot.slane %v350, 1
      %v353 = vsel %vm317, %v348, %v352
      %v354 = vshrl.u32 %v315, 16
      %v356 = vor.u32 %v354, %v352
      %v358 = vshll.u32 %v316, 16
      %v360 = vrot.slane %v358, 1
      %v361 = vsel %vm317, %v356, %v360
      %v364 = vunpack.c.l.b16 %v287
      %v365 = vunpack.c.l.b16 %v288
      %v366 = vpack.c.b16 %v365, %v364
      %vm368 = vcmask 130048
      %v370 = vsel %vm368, %v329, 0
      %v373 = vsel %vm368, %v337, 0
      %v376 = vsel %vm368, %v345, 0
      %v379 = vsel %vm368, %v353, 0
      %v382 = vsel %vm368, %v361, 0
      %384 = vmatprep.subr.bf16.mxu0 0
      %385 = vmatpush1.bf16.msra.mxu0 %v366
      %386 = vmatprep.subr.bf16.mxu0 0
      %387 = vmatpush1.bf16.msra.mxu0 0
      %388 = vmatprep.subr.bf16.mxu0 0
      %389 = vmatpush1.bf16.msra.mxu0 0
      %390 = vmatprep.subr.bf16.mxu0 0
      %391 = vmatpush1.bf16.msra.mxu0 0
      %392 = vmatprep.subr.bf16.mxu0 0
      %393 = vmatpush1.bf16.msra.mxu0 0
      %394 = vmatprep.subr.bf16.mxu0 0
      %395 = vmatpush1.bf16.msra.mxu0 0
      %396 = vmatprep.subr.bf16.mxu0 0
      %397 = vmatpush1.bf16.msra.mxu0 0
      %398 = vmatprep.subr.bf16.mxu0 0
      %399 = vmatpush1.bf16.msra.mxu0 0
      %400 = vmatprep.subr.bf16.mxu0 0
      %401 = vmatpush1.bf16.msra.mxu0 0
      %402 = vmatprep.subr.bf16.mxu0 0
      %403 = vmatpush1.bf16.msra.mxu0 0
      %404 = vmatprep.subr.bf16.mxu0 0
      %405 = vmatpush1.bf16.msra.mxu0 0
      %406 = vmatprep.subr.bf16.mxu0 0
      %407 = vmatpush1.bf16.msra.mxu0 0
      %408 = vmatprep.subr.bf16.mxu0 0
      %409 = vmatpush1.bf16.msra.mxu0 0
      %410 = vmatprep.subr.bf16.mxu0 0
      %411 = vmatpush1.bf16.msra.mxu0 0
      %412 = vmatprep.subr.bf16.mxu0 0
      %413 = vmatpush1.bf16.msra.mxu0 0
      %414 = vmatprep.subr.bf16.mxu0 0
      %415 = vmatpush1.bf16.msra.mxu0 0
      %416 = vmatprep.mubr.bf16.mxu0 0
      %417 = vmatmul.mubr.bf16.gmra.mrb[0].mxu0 %v370
      %v418 = vpop.f32.mrb[0].mxu0
      %v419 = vadd.f32 0.0, %v418
      %v420 = vpop.f32.mrb[0].mxu0
      %v421 = vpop.f32.mrb[0].mxu0
      %v422 = vadd.f32 0.0, %v421
      %v423 = vpop.f32.mrb[0].mxu0
      %424 = vmatprep.mubr.bf16.mxu0 0
      %425 = vmatmul.mubr.bf16.gmra.mrb[0].mxu0 %v373
      %v426 = vpop.f32.mrb[0].mxu0
      %v427 = vadd.f32 0.0, %v426
      %v428 = vpop.f32.mrb[0].mxu0
      %v429 = vpop.f32.mrb[0].mxu0
      %v430 = vadd.f32 0.0, %v429
      %v431 = vpop.f32.mrb[0].mxu0
      %432 = vmatprep.mubr.bf16.mxu0 0
      %433 = vmatmul.mubr.bf16.gmra.mrb[0].mxu0 %v376
      %v434 = vpop.f32.mrb[0].mxu0
      %v435 = vadd.f32 0.0, %v434
      %v436 = vpop.f32.mrb[0].mxu0
      %v437 = vpop.f32.mrb[0].mxu0
      %v438 = vadd.f32 0.0, %v437
      %v439 = vpop.f32.mrb[0].mxu0
      %440 = vmatprep.mubr.bf16.mxu0 0
      %441 = vmatmul.mubr.bf16.gmra.mrb[0].mxu0 %v379
      %v442 = vpop.f32.mrb[0].mxu0
      %v443 = vadd.f32 0.0, %v442
      %v444 = vpop.f32.mrb[0].mxu0
      %v445 = vpop.f32.mrb[0].mxu0
      %v446 = vadd.f32 0.0, %v445
      %v447 = vpop.f32.mrb[0].mxu0
      %448 = vmatprep.mubr.bf16.mxu0 0
      %449 = vmatmul.mubr.bf16.gmra.mrb[0].mxu0 %v382
      %v450 = vpop.f32.mrb[0].mxu0
      %v451 = vadd.f32 0.0, %v450
      %v452 = vpop.f32.mrb[0].mxu0
      %v453 = vpop.f32.mrb[0].mxu0
      %v454 = vadd.f32 0.0, %v453
      %v455 = vpop.f32.mrb[0].mxu0
      %456 = vdwg.mxu0
      %v459 = vunpack.c.l.b16 %v283
      %v460 = vunpack.c.l.b16 %v284
      %v461 = vpack.c.b16 %v460, %v459
      %v463 = vsel %vm368, %v311, 0
      %v465 = vsel %vm368, %v312, 0
      %v467 = vsel %vm368, %v313, 0
      %v469 = vsel %vm368, %v314, 0
      %v471 = vsel %vm368, %v315, 0
      %473 = vmatprep.subr.bf16.mxu0 0
      %474 = vmatpush1.bf16.msra.mxu0 %v461
      %475 = vmatprep.subr.bf16.mxu0 0
      %476 = vmatpush1.bf16.msra.mxu0 0
      %477 = vmatprep.subr.bf16.mxu0 0
      %478 = vmatpush1.bf16.msra.mxu0 0
      %479 = vmatprep.subr.bf16.mxu0 0
      %480 = vmatpush1.bf16.msra.mxu0 0
      %481 = vmatprep.subr.bf16.mxu0 0
      %482 = vmatpush1.bf16.msra.mxu0 0
      %483 = vmatprep.subr.bf16.mxu0 0
      %484 = vmatpush1.bf16.msra.mxu0 0
      %485 = vmatprep.subr.bf16.mxu0 0
      %486 = vmatpush1.bf16.msra.mxu0 0
      %487 = vmatprep.subr.bf16.mxu0 0
      %488 = vmatpush1.bf16.msra.mxu0 0
      %489 = vmatprep.subr.bf16.mxu0 0
      %490 = vmatpush1.bf16.msra.mxu0 0
      %491 = vmatprep.subr.bf16.mxu0 0
      %492 = vmatpush1.bf16.msra.mxu0 0
      %493 = vmatprep.subr.bf16.mxu0 0
      %494 = vmatpush1.bf16.msra.mxu0 0
      %495 = vmatprep.subr.bf16.mxu0 0
      %496 = vmatpush1.bf16.msra.mxu0 0
      %497 = vmatprep.subr.bf16.mxu0 0
      %498 = vmatpush1.bf16.msra.mxu0 0
      %499 = vmatprep.subr.bf16.mxu0 0
      %500 = vmatpush1.bf16.msra.mxu0 0
      %501 = vmatprep.subr.bf16.mxu0 0
      %502 = vmatpush1.bf16.msra.mxu0 0
      %503 = vmatprep.subr.bf16.mxu0 0
      %504 = vmatpush1.bf16.msra.mxu0 0
      %505 = vmatprep.mubr.bf16.mxu0 0
      %506 = vmatmul.mubr.bf16.gmra.mrb[0].mxu0 %v463
      %v507 = vpop.f32.mrb[0].mxu0
      %v508 = vadd.f32 %v419, %v507
      %v509 = vpop.f32.mrb[0].mxu0
      %v510 = vpop.f32.mrb[0].mxu0
      %v511 = vadd.f32 %v422, %v510
      %v512 = vpop.f32.mrb[0].mxu0
      %513 = vmatprep.mubr.bf16.mxu0 0
      %514 = vmatmul.mubr.bf16.gmra.mrb[0].mxu0 %v465
      %v515 = vpop.f32.mrb[0].mxu0
      %v516 = vadd.f32 %v427, %v515
      %v517 = vpop.f32.mrb[0].mxu0
      %v518 = vpop.f32.mrb[0].mxu0
      %v519 = vadd.f32 %v430, %v518
      %v520 = vpop.f32.mrb[0].mxu0
      %521 = vmatprep.mubr.bf16.mxu0 0
      %522 = vmatmul.mubr.bf16.gmra.mrb[0].mxu0 %v467
      %v523 = vpop.f32.mrb[0].mxu0
      %v524 = vadd.f32 %v435, %v523
      %v525 = vpop.f32.mrb[0].mxu0
      %v526 = vpop.f32.mrb[0].mxu0
      %v527 = vadd.f32 %v438, %v526
      %v528 = vpop.f32.mrb[0].mxu0
      %529 = vmatprep.mubr.bf16.mxu0 0
      %530 = vmatmul.mubr.bf16.gmra.mrb[0].mxu0 %v469
      %v531 = vpop.f32.mrb[0].mxu0
      %v532 = vadd.f32 %v443, %v531
      %v533 = vpop.f32.mrb[0].mxu0
      %v534 = vpop.f32.mrb[0].mxu0
      %v535 = vadd.f32 %v446, %v534
      %v536 = vpop.f32.mrb[0].mxu0
      %537 = vmatprep.mubr.bf16.mxu0 0
      %538 = vmatmul.mubr.bf16.gmra.mrb[0].mxu0 %v471
      %v539 = vpop.f32.mrb[0].mxu0
      %v540 = vadd.f32 %v451, %v539
      %v541 = vpop.f32.mrb[0].mxu0
      %v542 = vpop.f32.mrb[0].mxu0
      %v543 = vadd.f32 %v454, %v542
      %v544 = vpop.f32.mrb[0].mxu0
      %545 = vdwg.mxu0
      %v546 = vld [vmem:[%s250] sm:$0xe]
      %s547 = scalar_lea.vmem %s254, 16
      %v548 = vld [vmem:[%s547] sm:$0xf]
      %v549 = vld [vmem:[%s547 + $0x4] sm:$0xf]
      %v551 = vunpack.c.l.b16 %v546
      %v552 = vpack.c.b16 %v301, %v551
      %vm553 = vcmask 1046528
      %v554 = vrot.slane %v552, 1
      %v555 = vrot.slane %v312, 1
      %v556 = vsel %vm553, %v554, %v555
      %v557 = vrot.slane %v313, 1
      %v558 = vsel %vm553, %v555, %v557
      %v559 = vrot.slane %v314, 1
      %v560 = vsel %vm553, %v557, %v559
      %v561 = vrot.slane %v315, 1
      %v562 = vsel %vm553, %v559, %v561
      %v563 = vrot.slane %v316, 1
      %v564 = vsel %vm553, %v561, %v563
      %v567 = vunpack.c.l.b16 %v548
      %v568 = vunpack.c.l.b16 %v549
      %v569 = vpack.c.b16 %v568, %v567
      %v572 = vsel %vm368, %v556, 0
      %v575 = vsel %vm368, %v558, 0
      %v578 = vsel %vm368, %v560, 0
      %v581 = vsel %vm368, %v562, 0
      %v584 = vsel %vm368, %v564, 0
      %586 = vmatprep.subr.bf16.mxu0 0
      %587 = vmatpush1.bf16.msra.mxu0 %v569
      %588 = vmatprep.subr.bf16.mxu0 0
      %589 = vmatpush1.bf16.msra.mxu0 0
      %590 = vmatprep.subr.bf16.mxu0 0
      %591 = vmatpush1.bf16.msra.mxu0 0
      %592 = vmatprep.subr.bf16.mxu0 0
      %593 = vmatpush1.bf16.msra.mxu0 0
      %594 = vmatprep.subr.bf16.mxu0 0
      %595 = vmatpush1.bf16.msra.mxu0 0
      %596 = vmatprep.subr.bf16.mxu0 0
      %597 = vmatpush1.bf16.msra.mxu0 0
      %598 = vmatprep.subr.bf16.mxu0 0
      %599 = vmatpush1.bf16.msra.mxu0 0
      %600 = vmatprep.subr.bf16.mxu0 0
      %601 = vmatpush1.bf16.msra.mxu0 0
      %602 = vmatprep.subr.bf16.mxu0 0
      %603 = vmatpush1.bf16.msra.mxu0 0
      %604 = vmatprep.subr.bf16.mxu0 0
      %605 = vmatpush1.bf16.msra.mxu0 0
      %606 = vmatprep.subr.bf16.mxu0 0
      %607 = vmatpush1.bf16.msra.mxu0 0
      %608 = vmatprep.subr.bf16.mxu0 0
      %609 = vmatpush1.bf16.msra.mxu0 0
      %610 = vmatprep.subr.bf16.mxu0 0
      %611 = vmatpush1.bf16.msra.mxu0 0
      %612 = vmatprep.subr.bf16.mxu0 0
      %613 = vmatpush1.bf16.msra.mxu0 0
      %614 = vmatprep.subr.bf16.mxu0 0
      %615 = vmatpush1.bf16.msra.mxu0 0
      %616 = vmatprep.subr.bf16.mxu0 0
      %617 = vmatpush1.bf16.msra.mxu0 0
      %618 = vmatprep.mubr.bf16.mxu0 0
      %619 = vmatmul.mubr.bf16.gmra.mrb[0].mxu0 %v572
      %v620 = vpop.f32.mrb[0].mxu0
      %v621 = vadd.f32 0.0, %v620
      %v622 = vpop.f32.mrb[0].mxu0
      %v623 = vpop.f32.mrb[0].mxu0
      %v624 = vadd.f32 0.0, %v623
      %v625 = vpop.f32.mrb[0].mxu0
      %626 = vmatprep.mubr.bf16.mxu0 0
      %627 = vmatmul.mubr.bf16.gmra.mrb[0].mxu0 %v575
      %v628 = vpop.f32.mrb[0].mxu0
      %v629 = vadd.f32 0.0, %v628
      %v630 = vpop.f32.mrb[0].mxu0
      %v631 = vpop.f32.mrb[0].mxu0
      %v632 = vadd.f32 0.0, %v631
      %v633 = vpop.f32.mrb[0].mxu0
      %634 = vmatprep.mubr.bf16.mxu0 0
      %635 = vmatmul.mubr.bf16.gmra.mrb[0].mxu0 %v578
      %v636 = vpop.f32.mrb[0].mxu0
      %v637 = vadd.f32 0.0, %v636
      %v638 = vpop.f32.mrb[0].mxu0
      %v639 = vpop.f32.mrb[0].mxu0
      %v640 = vadd.f32 0.0, %v639
      %v641 = vpop.f32.mrb[0].mxu0
      %642 = vmatprep.mubr.bf16.mxu0 0
      %643 = vmatmul.mubr.bf16.gmra.mrb[0].mxu0 %v581
      %v644 = vpop.f32.mrb[0].mxu0
      %v645 = vadd.f32 0.0, %v644
      %v646 = vpop.f32.mrb[0].mxu0
      %v647 = vpop.f32.mrb[0].mxu0
      %v648 = vadd.f32 0.0, %v647
      %v649 = vpop.f32.mrb[0].mxu0
      %650 = vmatprep.mubr.bf16.mxu0 0
      %651 = vmatmul.mubr.bf16.gmra.mrb[0].mxu0 %v584
      %v652 = vpop.f32.mrb[0].mxu0
      %v653 = vadd.f32 0.0, %v652
      %v654 = vpop.f32.mrb[0].mxu0
      %v655 = vpop.f32.mrb[0].mxu0
      %v656 = vadd.f32 0.0, %v655
      %v657 = vpop.f32.mrb[0].mxu0
      %658 = vdwg.mxu0
      %v659 = vadd.f32 %v508, %v621
      %v660 = vadd.f32 %v511, %v624
      %v661 = vadd.f32 %v516, %v629
      %v662 = vadd.f32 %v519, %v632
      %v663 = vadd.f32 %v524, %v637
      %v664 = vadd.f32 %v527, %v640
      %v665 = vadd.f32 %v532, %v645
      %v666 = vadd.f32 %v535, %v648
      %v667 = vadd.f32 %v540, %v653
      %v668 = vadd.f32 %v543, %v656
      %v669 = vld [vmem:[%s250 + $0x4] sm:$0xe]
      %v670 = vld [vmem:[%s250 + $0x8] sm:$0xf]
      %v671 = vld [vmem:[%s250 + $0xc] sm:$0xf]
      %v672 = vld [vmem:[%s250 + $0x10] sm:$0xf]
      %v673 = vld [vmem:[%s250 + $0x14] sm:$0xf]
      %v674 = vld [vmem:[%s250 + $0x18] sm:$0xf]
      %v675 = vld [vmem:[%s250 + $0x1c] sm:$0xf]
      %v676 = vld [vmem:[%s250 + $0x20] sm:$0xf]
      %v677 = vld [vmem:[%s250 + $0x24] sm:$0xf]
      %v678 = vld [vmem:[%s250 + $0x28] sm:$0xf]
      %v679 = vld [vmem:[%s250 + $0x2c] sm:$0x1]
      %s680 = scalar_lea.vmem %s254, 24
      %v681 = vld [vmem:[%s680] sm:$0xf]
      %v682 = vld [vmem:[%s680 + $0x4] sm:$0xf]
      %v694 = vunpack.c.l.b16 %v669
      %v695 = vunpack.c.l.b16 %v670
      %v696 = vunpack.c.l.b16 %v671
      %v697 = vunpack.c.l.b16 %v672
      %v698 = vunpack.c.l.b16 %v673
      %v699 = vunpack.c.l.b16 %v674
      %v700 = vunpack.c.l.b16 %v675
      %v701 = vunpack.c.l.b16 %v676
      %v702 = vunpack.c.l.b16 %v677
      %v703 = vunpack.c.l.b16 %v678
      %v704 = vunpack.c.l.b16 %v679
      %v705 = vpack.c.b16 %v695, %v694
      %v706 = vpack.c.b16 %v697, %v696
      %v707 = vpack.c.b16 %v699, %v698
      %v708 = vpack.c.b16 %v701, %v700
      %v709 = vpack.c.b16 %v703, %v702
      %v710 = vpack.c.b16 %v704, %v704
      %v711 = vrot.slane %v705, 1
      %v712 = vrot.slane %v706, 1
      %v713 = vsel %vm553, %v711, %v712
      %v714 = vrot.slane %v707, 1
      %v715 = vsel %vm553, %v712, %v714
      %v716 = vrot.slane %v708, 1
      %v717 = vsel %vm553, %v714, %v716
      %v718 = vrot.slane %v709, 1
      %v719 = vsel %vm553, %v716, %v718
      %v720 = vrot.slane %v710, 1
      %v721 = vsel %vm553, %v718, %v720
      %v724 = vunpack.c.l.b16 %v681
      %v725 = vunpack.c.l.b16 %v682
      %v726 = vpack.c.b16 %v725, %v724
      %v729 = vsel %vm368, %v713, 0
      %v732 = vsel %vm368, %v715, 0
      %v735 = vsel %vm368, %v717, 0
      %v738 = vsel %vm368, %v719, 0
      %v741 = vsel %vm368, %v721, 0
      %743 = vmatprep.subr.bf16.mxu0 0
      %744 = vmatpush1.bf16.msra.mxu0 %v726
      %745 = vmatprep.subr.bf16.mxu0 0
      %746 = vmatpush1.bf16.msra.mxu0 0
      %747 = vmatprep.subr.bf16.mxu0 0
      %748 = vmatpush1.bf16.msra.mxu0 0
      %749 = vmatprep.subr.bf16.mxu0 0
      %750 = vmatpush1.bf16.msra.mxu0 0
      %751 = vmatprep.subr.bf16.mxu0 0
      %752 = vmatpush1.bf16.msra.mxu0 0
      %753 = vmatprep.subr.bf16.mxu0 0
      %754 = vmatpush1.bf16.msra.mxu0 0
      %755 = vmatprep.subr.bf16.mxu0 0
      %756 = vmatpush1.bf16.msra.mxu0 0
      %757 = vmatprep.subr.bf16.mxu0 0
      %758 = vmatpush1.bf16.msra.mxu0 0
      %759 = vmatprep.subr.bf16.mxu0 0
      %760 = vmatpush1.bf16.msra.mxu0 0
      %761 = vmatprep.subr.bf16.mxu0 0
      %762 = vmatpush1.bf16.msra.mxu0 0
      %763 = vmatprep.subr.bf16.mxu0 0
      %764 = vmatpush1.bf16.msra.mxu0 0
      %765 = vmatprep.subr.bf16.mxu0 0
      %766 = vmatpush1.bf16.msra.mxu0 0
      %767 = vmatprep.subr.bf16.mxu0 0
      %768 = vmatpush1.bf16.msra.mxu0 0
      %769 = vmatprep.subr.bf16.mxu0 0
      %770 = vmatpush1.bf16.msra.mxu0 0
      %771 = vmatprep.subr.bf16.mxu0 0
      %772 = vmatpush1.bf16.msra.mxu0 0
      %773 = vmatprep.subr.bf16.mxu0 0
      %774 = vmatpush1.bf16.msra.mxu0 0
      %775 = vmatprep.mubr.bf16.mxu0 0
      %776 = vmatmul.mubr.bf16.gmra.mrb[0].mxu0 %v729
      %v777 = vpop.f32.mrb[0].mxu0
      %v778 = vadd.f32 0.0, %v777
      %v779 = vpop.f32.mrb[0].mxu0
      %v780 = vpop.f32.mrb[0].mxu0
      %v781 = vadd.f32 0.0, %v780
      %v782 = vpop.f32.mrb[0].mxu0
      %783 = vmatprep.mubr.bf16.mxu0 0
      %784 = vmatmul.mubr.bf16.gmra.mrb[0].mxu0 %v732
      %v785 = vpop.f32.mrb[0].mxu0
      %v786 = vadd.f32 0.0, %v785
      %v787 = vpop.f32.mrb[0].mxu0
      %v788 = vpop.f32.mrb[0].mxu0
      %v789 = vadd.f32 0.0, %v788
      %v790 = vpop.f32.mrb[0].mxu0
      %791 = vmatprep.mubr.bf16.mxu0 0
      %792 = vmatmul.mubr.bf16.gmra.mrb[0].mxu0 %v735
      %v793 = vpop.f32.mrb[0].mxu0
      %v794 = vadd.f32 0.0, %v793
      %v795 = vpop.f32.mrb[0].mxu0
      %v796 = vpop.f32.mrb[0].mxu0
      %v797 = vadd.f32 0.0, %v796
      %v798 = vpop.f32.mrb[0].mxu0
      %799 = vmatprep.mubr.bf16.mxu0 0
      %800 = vmatmul.mubr.bf16.gmra.mrb[0].mxu0 %v738
      %v801 = vpop.f32.mrb[0].mxu0
      %v802 = vadd.f32 0.0, %v801
      %v803 = vpop.f32.mrb[0].mxu0
      %v804 = vpop.f32.mrb[0].mxu0
      %v805 = vadd.f32 0.0, %v804
      %v806 = vpop.f32.mrb[0].mxu0
      %807 = vmatprep.mubr.bf16.mxu0 0
      %808 = vmatmul.mubr.bf16.gmra.mrb[0].mxu0 %v741
      %v809 = vpop.f32.mrb[0].mxu0
      %v810 = vadd.f32 0.0, %v809
      %v811 = vpop.f32.mrb[0].mxu0
      %v812 = vpop.f32.mrb[0].mxu0
      %v813 = vadd.f32 0.0, %v812
      %v814 = vpop.f32.mrb[0].mxu0
      %815 = vdwg.mxu0
      %v816 = vadd.f32 %v659, %v778
      %v817 = vadd.f32 %v660, %v781
      %v818 = vadd.f32 %v661, %v786
      %v819 = vadd.f32 %v662, %v789
      %v820 = vadd.f32 %v663, %v794
      %v821 = vadd.f32 %v664, %v797
      %v822 = vadd.f32 %v665, %v802
      %v823 = vadd.f32 %v666, %v805
      %v824 = vadd.f32 %v667, %v810
      %v825 = vadd.f32 %v668, %v813
      %v826 = vld [vmem:[%s250 + $0x2c] sm:$0x3]
      %s827 = scalar_lea.vmem %s254, 32
      %v828 = vld [vmem:[%s827] sm:$0xf]
      %v829 = vld [vmem:[%s827 + $0x4] sm:$0xf]
      %v831 = vunpack.c.l.b16 %v826
      %v832 = vpack.c.b16 %v831, %v831
      %vm833 = vsmask.f32 6400
      %v835 = vshrl.u32 %v705, 16
      %v837 = vrot.slane %v835, 1
      %v838 = vshll.u32 %v705, 16
      %v840 = vrot.slane %v838, 2
      %v841 = vor.u32 %v837, %v840
      %v843 = vshrl.u32 %v706, 16
      %v845 = vrot.slane %v843, 1
      %v846 = vshll.u32 %v706, 16
      %v848 = vrot.slane %v846, 2
      %v849 = vor.u32 %v845, %v848
      %v850 = vsel %vm833, %v841, %v849
      %v852 = vshrl.u32 %v707, 16
      %v854 = vrot.slane %v852, 1
      %v855 = vshll.u32 %v707, 16
      %v857 = vrot.slane %v855, 2
      %v858 = vor.u32 %v854, %v857
      %v859 = vsel %vm833, %v849, %v858
      %v861 = vshrl.u32 %v708, 16
      %v863 = vrot.slane %v861, 1
      %v864 = vshll.u32 %v708, 16
      %v866 = vrot.slane %v864, 2
      %v867 = vor.u32 %v863, %v866
      %v868 = vsel %vm833, %v858, %v867
      %v870 = vshrl.u32 %v709, 16
      %v872 = vrot.slane %v870, 1
      %v873 = vshll.u32 %v709, 16
      %v875 = vrot.slane %v873, 2
      %v876 = vor.u32 %v872, %v875
      %v877 = vsel %vm833, %v867, %v876
      %v879 = vshrl.u32 %v832, 16
      %v881 = vrot.slane %v879, 1
      %v882 = vshll.u32 %v832, 16
      %v884 = vrot.slane %v882, 2
      %v885 = vor.u32 %v881, %v884
      %v886 = vsel %vm833, %v876, %v885
      %v889 = vunpack.c.l.b16 %v828
      %v890 = vunpack.c.l.b16 %v829
      %v891 = vpack.c.b16 %v890, %v889
      %v894 = vsel %vm368, %v850, 0
      %v897 = vsel %vm368, %v859, 0
      %v900 = vsel %vm368, %v868, 0
      %v903 = vsel %vm368, %v877, 0
      %v906 = vsel %vm368, %v886, 0
      %908 = vmatprep.subr.bf16.mxu0 0
      %909 = vmatpush1.bf16.msra.mxu0 %v891
      %910 = vmatprep.subr.bf16.mxu0 0
      %911 = vmatpush1.bf16.msra.mxu0 0
      %912 = vmatprep.subr.bf16.mxu0 0
      %913 = vmatpush1.bf16.msra.mxu0 0
      %914 = vmatprep.subr.bf16.mxu0 0
      %915 = vmatpush1.bf16.msra.mxu0 0
      %916 = vmatprep.subr.bf16.mxu0 0
      %917 = vmatpush1.bf16.msra.mxu0 0
      %918 = vmatprep.subr.bf16.mxu0 0
      %919 = vmatpush1.bf16.msra.mxu0 0
      %920 = vmatprep.subr.bf16.mxu0 0
      %921 = vmatpush1.bf16.msra.mxu0 0
      %922 = vmatprep.subr.bf16.mxu0 0
      %923 = vmatpush1.bf16.msra.mxu0 0
      %924 = vmatprep.subr.bf16.mxu0 0
      %925 = vmatpush1.bf16.msra.mxu0 0
      %926 = vmatprep.subr.bf16.mxu0 0
      %927 = vmatpush1.bf16.msra.mxu0 0
      %928 = vmatprep.subr.bf16.mxu0 0
      %929 = vmatpush1.bf16.msra.mxu0 0
      %930 = vmatprep.subr.bf16.mxu0 0
      %931 = vmatpush1.bf16.msra.mxu0 0
      %932 = vmatprep.subr.bf16.mxu0 0
      %933 = vmatpush1.bf16.msra.mxu0 0
      %934 = vmatprep.subr.bf16.mxu0 0
      %935 = vmatpush1.bf16.msra.mxu0 0
      %936 = vmatprep.subr.bf16.mxu0 0
      %937 = vmatpush1.bf16.msra.mxu0 0
      %938 = vmatprep.subr.bf16.mxu0 0
      %939 = vmatpush1.bf16.msra.mxu0 0
      %940 = vmatprep.mubr.bf16.mxu0 0
      %941 = vmatmul.mubr.bf16.gmra.mrb[0].mxu0 %v894
      %v942 = vpop.f32.mrb[0].mxu0
      %v943 = vadd.f32 0.0, %v942
      %v944 = vpop.f32.mrb[0].mxu0
      %v945 = vpop.f32.mrb[0].mxu0
      %v946 = vadd.f32 0.0, %v945
      %v947 = vpop.f32.mrb[0].mxu0
      %948 = vmatprep.mubr.bf16.mxu0 0
      %949 = vmatmul.mubr.bf16.gmra.mrb[0].mxu0 %v897
      %v950 = vpop.f32.mrb[0].mxu0
      %v951 = vadd.f32 0.0, %v950
      %v952 = vpop.f32.mrb[0].mxu0
      %v953 = vpop.f32.mrb[0].mxu0
      %v954 = vadd.f32 0.0, %v953
      %v955 = vpop.f32.mrb[0].mxu0
      %956 = vmatprep.mubr.bf16.mxu0 0
      %957 = vmatmul.mubr.bf16.gmra.mrb[0].mxu0 %v900
      %v958 = vpop.f32.mrb[0].mxu0
      %v959 = vadd.f32 0.0, %v958
      %v960 = vpop.f32.mrb[0].mxu0
      %v961 = vpop.f32.mrb[0].mxu0
      %v962 = vadd.f32 0.0, %v961
      %v963 = vpop.f32.mrb[0].mxu0
      %964 = vmatprep.mubr.bf16.mxu0 0
      %965 = vmatmul.mubr.bf16.gmra.mrb[0].mxu0 %v903
      %v966 = vpop.f32.mrb[0].mxu0
      %v967 = vadd.f32 0.0, %v966
      %v968 = vpop.f32.mrb[0].mxu0
      %v969 = vpop.f32.mrb[0].mxu0
      %v970 = vadd.f32 0.0, %v969
      %v971 = vpop.f32.mrb[0].mxu0
      %972 = vmatprep.mubr.bf16.mxu0 0
      %973 = vmatmul.mubr.bf16.gmra.mrb[0].mxu0 %v906
      %v974 = vpop.f32.mrb[0].mxu0
      %v975 = vadd.f32 0.0, %v974
      %v976 = vpop.f32.mrb[0].mxu0
      %v977 = vpop.f32.mrb[0].mxu0
      %v978 = vadd.f32 0.0, %v977
      %v979 = vpop.f32.mrb[0].mxu0
      %980 = vdwg.mxu0
      %v981 = vadd.f32 %v816, %v943
      %v982 = vadd.f32 %v817, %v946
      %v983 = vadd.f32 %v818, %v951
      %v984 = vadd.f32 %v819, %v954
      %v985 = vadd.f32 %v820, %v959
      %v986 = vadd.f32 %v821, %v962
      %v987 = vadd.f32 %v822, %v967
      %v988 = vadd.f32 %v823, %v970
      %v989 = vadd.f32 %v824, %v975
      %v990 = vadd.f32 %v825, %v978
      %v991 = vld [vmem:[%s250 + $0x4] sm:$0xc]
      %s992 = scalar_lea.vmem %s254, 40
      %v993 = vld [vmem:[%s992] sm:$0xf]
      %v994 = vld [vmem:[%s992 + $0x4] sm:$0xf]
      %v996 = vunpack.c.l.b16 %v991
      %v997 = vpack.c.b16 %v695, %v996
      %vm998 = vcmask 1045504
      %v999 = vrot.slane %v997, 2
      %v1000 = vrot.slane %v706, 2
      %v1001 = vsel %vm998, %v999, %v1000
      %v1002 = vrot.slane %v707, 2
      %v1003 = vsel %vm998, %v1000, %v1002
      %v1004 = vrot.slane %v708, 2
      %v1005 = vsel %vm998, %v1002, %v1004
      %v1006 = vrot.slane %v709, 2
      %v1007 = vsel %vm998, %v1004, %v1006
      %v1008 = vrot.slane %v832, 2
      %v1009 = vsel %vm998, %v1006, %v1008
      %v1012 = vunpack.c.l.b16 %v993
      %v1013 = vunpack.c.l.b16 %v994
      %v1014 = vpack.c.b16 %v1013, %v1012
      %v1017 = vsel %vm368, %v1001, 0
      %v1020 = vsel %vm368, %v1003, 0
      %v1023 = vsel %vm368, %v1005, 0
      %v1026 = vsel %vm368, %v1007, 0
      %v1029 = vsel %vm368, %v1009, 0
      %1031 = vmatprep.subr.bf16.mxu0 0
      %1032 = vmatpush1.bf16.msra.mxu0 %v1014
      %1033 = vmatprep.subr.bf16.mxu0 0
      %1034 = vmatpush1.bf16.msra.mxu0 0
      %1035 = vmatprep.subr.bf16.mxu0 0
      %1036 = vmatpush1.bf16.msra.mxu0 0
      %1037 = vmatprep.subr.bf16.mxu0 0
      %1038 = vmatpush1.bf16.msra.mxu0 0
      %1039 = vmatprep.subr.bf16.mxu0 0
      %1040 = vmatpush1.bf16.msra.mxu0 0
      %1041 = vmatprep.subr.bf16.mxu0 0
      %1042 = vmatpush1.bf16.msra.mxu0 0
      %1043 = vmatprep.subr.bf16.mxu0 0
      %1044 = vmatpush1.bf16.msra.mxu0 0
      %1045 = vmatprep.subr.bf16.mxu0 0
      %1046 = vmatpush1.bf16.msra.mxu0 0
      %1047 = vmatprep.subr.bf16.mxu0 0
      %1048 = vmatpush1.bf16.msra.mxu0 0
      %1049 = vmatprep.subr.bf16.mxu0 0
      %1050 = vmatpush1.bf16.msra.mxu0 0
      %1051 = vmatprep.subr.bf16.mxu0 0
      %1052 = vmatpush1.bf16.msra.mxu0 0
      %1053 = vmatprep.subr.bf16.mxu0 0
      %1054 = vmatpush1.bf16.msra.mxu0 0
      %1055 = vmatprep.subr.bf16.mxu0 0
      %1056 = vmatpush1.bf16.msra.mxu0 0
      %1057 = vmatprep.subr.bf16.mxu0 0
      %1058 = vmatpush1.bf16.msra.mxu0 0
      %1059 = vmatprep.subr.bf16.mxu0 0
      %1060 = vmatpush1.bf16.msra.mxu0 0
      %1061 = vmatprep.subr.bf16.mxu0 0
      %1062 = vmatpush1.bf16.msra.mxu0 0
      %1063 = vmatprep.mubr.bf16.mxu0 0
      %1064 = vmatmul.mubr.bf16.gmra.mrb[0].mxu0 %v1017
      %v1065 = vpop.f32.mrb[0].mxu0
      %v1066 = vadd.f32 0.0, %v1065
      %v1067 = vpop.f32.mrb[0].mxu0
      %v1068 = vpop.f32.mrb[0].mxu0
      %v1069 = vadd.f32 0.0, %v1068
      %v1070 = vpop.f32.mrb[0].mxu0
      %1071 = vmatprep.mubr.bf16.mxu0 0
      %1072 = vmatmul.mubr.bf16.gmra.mrb[0].mxu0 %v1020
      %v1073 = vpop.f32.mrb[0].mxu0
      %v1074 = vadd.f32 0.0, %v1073
      %v1075 = vpop.f32.mrb[0].mxu0
      %v1076 = vpop.f32.mrb[0].mxu0
      %v1077 = vadd.f32 0.0, %v1076
      %v1078 = vpop.f32.mrb[0].mxu0
      %1079 = vmatprep.mubr.bf16.mxu0 0
      %1080 = vmatmul.mubr.bf16.gmra.mrb[0].mxu0 %v1023
      %v1081 = vpop.f32.mrb[0].mxu0
      %v1082 = vadd.f32 0.0, %v1081
      %v1083 = vpop.f32.mrb[0].mxu0
      %v1084 = vpop.f32.mrb[0].mxu0
      %v1085 = vadd.f32 0.0, %v1084
      %v1086 = vpop.f32.mrb[0].mxu0
      %1087 = vmatprep.mubr.bf16.mxu0 0
      %1088 = vmatmul.mubr.bf16.gmra.mrb[0].mxu0 %v1026
      %v1089 = vpop.f32.mrb[0].mxu0
      %v1090 = vadd.f32 0.0, %v1089
      %v1091 = vpop.f32.mrb[0].mxu0
      %v1092 = vpop.f32.mrb[0].mxu0
      %v1093 = vadd.f32 0.0, %v1092
      %v1094 = vpop.f32.mrb[0].mxu0
      %1095 = vmatprep.mubr.bf16.mxu0 0
      %1096 = vmatmul.mubr.bf16.gmra.mrb[0].mxu0 %v1029
      %v1097 = vpop.f32.mrb[0].mxu0
      %v1098 = vadd.f32 0.0, %v1097
      %v1099 = vpop.f32.mrb[0].mxu0
      %v1100 = vpop.f32.mrb[0].mxu0
      %v1101 = vadd.f32 0.0, %v1100
      %v1102 = vpop.f32.mrb[0].mxu0
      %1103 = vdwg.mxu0
      %v1104 = vadd.f32 %v981, %v1066
      %v1105 = vadd.f32 %v982, %v1069
      %v1106 = vadd.f32 %v983, %v1074
      %v1107 = vadd.f32 %v984, %v1077
      %v1108 = vadd.f32 %v985, %v1082
      %v1109 = vadd.f32 %v986, %v1085
      %v1110 = vadd.f32 %v987, %v1090
      %v1111 = vadd.f32 %v988, %v1093
      %v1112 = vadd.f32 %v989, %v1098
      %v1113 = vadd.f32 %v990, %v1101
      %v1114 = vld [vmem:[%s250 + $0x8] sm:$0xc]
      %v1115 = vld [vmem:[%s250 + $0xc] sm:$0xf]
      %v1116 = vld [vmem:[%s250 + $0x10] sm:$0xf]
      %v1117 = vld [vmem:[%s250 + $0x14] sm:$0xf]
      %v1118 = vld [vmem:[%s250 + $0x18] sm:$0xf]
      %v1119 = vld [vmem:[%s250 + $0x1c] sm:$0xf]
      %v1120 = vld [vmem:[%s250 + $0x20] sm:$0xf]
      %v1121 = vld [vmem:[%s250 + $0x24] sm:$0xf]
      %v1122 = vld [vmem:[%s250 + $0x28] sm:$0xf]
      %v1123 = vld [vmem:[%s250 + $0x2c] sm:$0xf]
      %v1124 = vld [vmem:[%s250 + $0x30] sm:$0x3]
      %s1125 = scalar_lea.vmem %s254, 48
      %v1126 = vld [vmem:[%s1125] sm:$0xf]
      %v1127 = vld [vmem:[%s1125 + $0x4] sm:$0xf]
      %v1139 = vunpack.c.l.b16 %v1114
      %v1140 = vunpack.c.l.b16 %v1115
      %v1141 = vunpack.c.l.b16 %v1116
      %v1142 = vunpack.c.l.b16 %v1117
      %v1143 = vunpack.c.l.b16 %v1118
      %v1144 = vunpack.c.l.b16 %v1119
      %v1145 = vunpack.c.l.b16 %v1120
      %v1146 = vunpack.c.l.b16 %v1121
      %v1147 = vunpack.c.l.b16 %v1122
      %v1148 = vunpack.c.l.b16 %v1123
      %v1149 = vunpack.c.l.b16 %v1124
      %v1150 = vpack.c.b16 %v1140, %v1139
      %v1151 = vpack.c.b16 %v1142, %v1141
      %v1152 = vpack.c.b16 %v1144, %v1143
      %v1153 = vpack.c.b16 %v1146, %v1145
      %v1154 = vpack.c.b16 %v1148, %v1147
      %v1155 = vpack.c.b16 %v1149, %v1149
      %v1156 = vrot.slane %v1150, 2
      %v1157 = vrot.slane %v1151, 2
      %v1158 = vsel %vm998, %v1156, %v1157
      %v1159 = vrot.slane %v1152, 2
      %v1160 = vsel %vm998, %v1157, %v1159
      %v1161 = vrot.slane %v1153, 2
      %v1162 = vsel %vm998, %v1159, %v1161
      %v1163 = vrot.slane %v1154, 2
      %v1164 = vsel %vm998, %v1161, %v1163
      %v1165 = vrot.slane %v1155, 2
      %v1166 = vsel %vm998, %v1163, %v1165
      %v1169 = vunpack.c.l.b16 %v1126
      %v1170 = vunpack.c.l.b16 %v1127
      %v1171 = vpack.c.b16 %v1170, %v1169
      %v1174 = vsel %vm368, %v1158, 0
      %v1177 = vsel %vm368, %v1160, 0
      %v1180 = vsel %vm368, %v1162, 0
      %v1183 = vsel %vm368, %v1164, 0
      %v1186 = vsel %vm368, %v1166, 0
      %1188 = vmatprep.subr.bf16.mxu0 0
      %1189 = vmatpush1.bf16.msra.mxu0 %v1171
      %1190 = vmatprep.subr.bf16.mxu0 0
      %1191 = vmatpush1.bf16.msra.mxu0 0
      %1192 = vmatprep.subr.bf16.mxu0 0
      %1193 = vmatpush1.bf16.msra.mxu0 0
      %1194 = vmatprep.subr.bf16.mxu0 0
      %1195 = vmatpush1.bf16.msra.mxu0 0
      %1196 = vmatprep.subr.bf16.mxu0 0
      %1197 = vmatpush1.bf16.msra.mxu0 0
      %1198 = vmatprep.subr.bf16.mxu0 0
      %1199 = vmatpush1.bf16.msra.mxu0 0
      %1200 = vmatprep.subr.bf16.mxu0 0
      %1201 = vmatpush1.bf16.msra.mxu0 0
      %1202 = vmatprep.subr.bf16.mxu0 0
      %1203 = vmatpush1.bf16.msra.mxu0 0
      %1204 = vmatprep.subr.bf16.mxu0 0
      %1205 = vmatpush1.bf16.msra.mxu0 0
      %1206 = vmatprep.subr.bf16.mxu0 0
      %1207 = vmatpush1.bf16.msra.mxu0 0
      %1208 = vmatprep.subr.bf16.mxu0 0
      %1209 = vmatpush1.bf16.msra.mxu0 0
      %1210 = vmatprep.subr.bf16.mxu0 0
      %1211 = vmatpush1.bf16.msra.mxu0 0
      %1212 = vmatprep.subr.bf16.mxu0 0
      %1213 = vmatpush1.bf16.msra.mxu0 0
      %1214 = vmatprep.subr.bf16.mxu0 0
      %1215 = vmatpush1.bf16.msra.mxu0 0
      %1216 = vmatprep.subr.bf16.mxu0 0
      %1217 = vmatpush1.bf16.msra.mxu0 0
      %1218 = vmatprep.subr.bf16.mxu0 0
      %1219 = vmatpush1.bf16.msra.mxu0 0
      %1220 = vmatprep.mubr.bf16.mxu0 0
      %1221 = vmatmul.mubr.bf16.gmra.mrb[0].mxu0 %v1174
      %v1222 = vpop.f32.mrb[0].mxu0
      %v1223 = vadd.f32 0.0, %v1222
      %v1224 = vpop.f32.mrb[0].mxu0
      %v1225 = vpop.f32.mrb[0].mxu0
      %v1226 = vadd.f32 0.0, %v1225
      %v1227 = vpop.f32.mrb[0].mxu0
      %1228 = vmatprep.mubr.bf16.mxu0 0
      %1229 = vmatmul.mubr.bf16.gmra.mrb[0].mxu0 %v1177
      %v1230 = vpop.f32.mrb[0].mxu0
      %v1231 = vadd.f32 0.0, %v1230
      %v1232 = vpop.f32.mrb[0].mxu0
      %v1233 = vpop.f32.mrb[0].mxu0
      %v1234 = vadd.f32 0.0, %v1233
      %v1235 = vpop.f32.mrb[0].mxu0
      %1236 = vmatprep.mubr.bf16.mxu0 0
      %1237 = vmatmul.mubr.bf16.gmra.mrb[0].mxu0 %v1180
      %v1238 = vpop.f32.mrb[0].mxu0
      %v1239 = vadd.f32 0.0, %v1238
      %v1240 = vpop.f32.mrb[0].mxu0
      %v1241 = vpop.f32.mrb[0].mxu0
      %v1242 = vadd.f32 0.0, %v1241
      %v1243 = vpop.f32.mrb[0].mxu0
      %1244 = vmatprep.mubr.bf16.mxu0 0
      %1245 = vmatmul.mubr.bf16.gmra.mrb[0].mxu0 %v1183
      %v1246 = vpop.f32.mrb[0].mxu0
      %v1247 = vadd.f32 0.0, %v1246
      %v1248 = vpop.f32.mrb[0].mxu0
      %v1249 = vpop.f32.mrb[0].mxu0
      %v1250 = vadd.f32 0.0, %v1249
      %v1251 = vpop.f32.mrb[0].mxu0
      %1252 = vmatprep.mubr.bf16.mxu0 0
      %1253 = vmatmul.mubr.bf16.gmra.mrb[0].mxu0 %v1186
      %v1254 = vpop.f32.mrb[0].mxu0
      %v1255 = vadd.f32 0.0, %v1254
      %v1256 = vpop.f32.mrb[0].mxu0
      %v1257 = vpop.f32.mrb[0].mxu0
      %v1258 = vadd.f32 0.0, %v1257
      %v1259 = vpop.f32.mrb[0].mxu0
      %1260 = vdwg.mxu0
      %v1261 = vadd.f32 %v1104, %v1223
      %v1262 = vadd.f32 %v1105, %v1226
      %v1263 = vadd.f32 %v1106, %v1231
      %v1264 = vadd.f32 %v1107, %v1234
      %v1265 = vadd.f32 %v1108, %v1239
      %v1266 = vadd.f32 %v1109, %v1242
      %v1267 = vadd.f32 %v1110, %v1247
      %v1268 = vadd.f32 %v1111, %v1250
      %v1269 = vadd.f32 %v1112, %v1255
      %v1270 = vadd.f32 %v1113, %v1258
      %v1271 = vld [vmem:[%s250 + $0x30] sm:$0x7]
      %s1272 = scalar_lea.vmem %s254, 56
      %v1273 = vld [vmem:[%s1272] sm:$0xf]
      %v1274 = vld [vmem:[%s1272 + $0x4] sm:$0xf]
      %v1276 = vunpack.c.l.b16 %v1271
      %v1277 = vpack.c.b16 %v1276, %v1276
      %vm1278 = vsmask.f32 5376
      %v1280 = vshrl.u32 %v1150, 16
      %v1282 = vrot.slane %v1280, 2
      %v1283 = vshll.u32 %v1150, 16
      %v1285 = vrot.slane %v1283, 3
      %v1286 = vor.u32 %v1282, %v1285
      %v1288 = vshrl.u32 %v1151, 16
      %v1290 = vrot.slane %v1288, 2
      %v1291 = vshll.u32 %v1151, 16
      %v1293 = vrot.slane %v1291, 3
      %v1294 = vor.u32 %v1290, %v1293
      %v1295 = vsel %vm1278, %v1286, %v1294
      %v1297 = vshrl.u32 %v1152, 16
      %v1299 = vrot.slane %v1297, 2
      %v1300 = vshll.u32 %v1152, 16
      %v1302 = vrot.slane %v1300, 3
      %v1303 = vor.u32 %v1299, %v1302
      %v1304 = vsel %vm1278, %v1294, %v1303
      %v1306 = vshrl.u32 %v1153, 16
      %v1308 = vrot.slane %v1306, 2
      %v1309 = vshll.u32 %v1153, 16
      %v1311 = vrot.slane %v1309, 3
      %v1312 = vor.u32 %v1308, %v1311
      %v1313 = vsel %vm1278, %v1303, %v1312
      %v1315 = vshrl.u32 %v1154, 16
      %v1317 = vrot.slane %v1315, 2
      %v1318 = vshll.u32 %v1154, 16
      %v1320 = vrot.slane %v1318, 3
      %v1321 = vor.u32 %v1317, %v1320
      %v1322 = vsel %vm1278, %v1312, %v1321
      %v1324 = vshrl.u32 %v1277, 16
      %v1326 = vrot.slane %v1324, 2
      %v1327 = vshll.u32 %v1277, 16
      %v1329 = vrot.slane %v1327, 3
      %v1330 = vor.u32 %v1326, %v1329
      %v1331 = vsel %vm1278, %v1321, %v1330
      %v1334 = vunpack.c.l.b16 %v1273
      %v1335 = vunpack.c.l.b16 %v1274
      %v1336 = vpack.c.b16 %v1335, %v1334
      %v1339 = vsel %vm368, %v1295, 0
      %v1342 = vsel %vm368, %v1304, 0
      %v1345 = vsel %vm368, %v1313, 0
      %v1348 = vsel %vm368, %v1322, 0
      %v1351 = vsel %vm368, %v1331, 0
      %1353 = vmatprep.subr.bf16.mxu0 0
      %1354 = vmatpush1.bf16.msra.mxu0 %v1336
      %1355 = vmatprep.subr.bf16.mxu0 0
      %1356 = vmatpush1.bf16.msra.mxu0 0
      %1357 = vmatprep.subr.bf16.mxu0 0
      %1358 = vmatpush1.bf16.msra.mxu0 0
      %1359 = vmatprep.subr.bf16.mxu0 0
      %1360 = vmatpush1.bf16.msra.mxu0 0
      %1361 = vmatprep.subr.bf16.mxu0 0
      %1362 = vmatpush1.bf16.msra.mxu0 0
      %1363 = vmatprep.subr.bf16.mxu0 0
      %1364 = vmatpush1.bf16.msra.mxu0 0
      %1365 = vmatprep.subr.bf16.mxu0 0
      %1366 = vmatpush1.bf16.msra.mxu0 0
      %1367 = vmatprep.subr.bf16.mxu0 0
      %1368 = vmatpush1.bf16.msra.mxu0 0
      %1369 = vmatprep.subr.bf16.mxu0 0
      %1370 = vmatpush1.bf16.msra.mxu0 0
      %1371 = vmatprep.subr.bf16.mxu0 0
      %1372 = vmatpush1.bf16.msra.mxu0 0
      %1373 = vmatprep.subr.bf16.mxu0 0
      %1374 = vmatpush1.bf16.msra.mxu0 0
      %1375 = vmatprep.subr.bf16.mxu0 0
      %1376 = vmatpush1.bf16.msra.mxu0 0
      %1377 = vmatprep.subr.bf16.mxu0 0
      %1378 = vmatpush1.bf16.msra.mxu0 0
      %1379 = vmatprep.subr.bf16.mxu0 0
      %1380 = vmatpush1.bf16.msra.mxu0 0
      %1381 = vmatprep.subr.bf16.mxu0 0
      %1382 = vmatpush1.bf16.msra.mxu0 0
      %1383 = vmatprep.subr.bf16.mxu0 0
      %1384 = vmatpush1.bf16.msra.mxu0 0
      %1385 = vmatprep.mubr.bf16.mxu0 0
      %1386 = vmatmul.mubr.bf16.gmra.mrb[0].mxu0 %v1339
      %v1387 = vpop.f32.mrb[0].mxu0
      %v1388 = vadd.f32 0.0, %v1387
      %v1389 = vpop.f32.mrb[0].mxu0
      %v1390 = vpop.f32.mrb[0].mxu0
      %v1391 = vadd.f32 0.0, %v1390
      %v1392 = vpop.f32.mrb[0].mxu0
      %1393 = vmatprep.mubr.bf16.mxu0 0
      %1394 = vmatmul.mubr.bf16.gmra.mrb[0].mxu0 %v1342
      %v1395 = vpop.f32.mrb[0].mxu0
      %v1396 = vadd.f32 0.0, %v1395
      %v1397 = vpop.f32.mrb[0].mxu0
      %v1398 = vpop.f32.mrb[0].mxu0
      %v1399 = vadd.f32 0.0, %v1398
      %v1400 = vpop.f32.mrb[0].mxu0
      %1401 = vmatprep.mubr.bf16.mxu0 0
      %1402 = vmatmul.mubr.bf16.gmra.mrb[0].mxu0 %v1345
      %v1403 = vpop.f32.mrb[0].mxu0
      %v1404 = vadd.f32 0.0, %v1403
      %v1405 = vpop.f32.mrb[0].mxu0
      %v1406 = vpop.f32.mrb[0].mxu0
      %v1407 = vadd.f32 0.0, %v1406
      %v1408 = vpop.f32.mrb[0].mxu0
      %1409 = vmatprep.mubr.bf16.mxu0 0
      %1410 = vmatmul.mubr.bf16.gmra.mrb[0].mxu0 %v1348
      %v1411 = vpop.f32.mrb[0].mxu0
      %v1412 = vadd.f32 0.0, %v1411
      %v1413 = vpop.f32.mrb[0].mxu0
      %v1414 = vpop.f32.mrb[0].mxu0
      %v1415 = vadd.f32 0.0, %v1414
      %v1416 = vpop.f32.mrb[0].mxu0
      %1417 = vmatprep.mubr.bf16.mxu0 0
      %1418 = vmatmul.mubr.bf16.gmra.mrb[0].mxu0 %v1351
      %v1419 = vpop.f32.mrb[0].mxu0
      %v1420 = vadd.f32 0.0, %v1419
      %v1421 = vpop.f32.mrb[0].mxu0
      %v1422 = vpop.f32.mrb[0].mxu0
      %v1423 = vadd.f32 0.0, %v1422
      %v1424 = vpop.f32.mrb[0].mxu0
      %1425 = vdwg.mxu0
      %v1426 = vadd.f32 %v1261, %v1388
      %v1427 = vadd.f32 %v1262, %v1391
      %v1428 = vadd.f32 %v1263, %v1396
      %v1429 = vadd.f32 %v1264, %v1399
      %v1430 = vadd.f32 %v1265, %v1404
      %v1431 = vadd.f32 %v1266, %v1407
      %v1432 = vadd.f32 %v1267, %v1412
      %v1433 = vadd.f32 %v1268, %v1415
      %v1434 = vadd.f32 %v1269, %v1420
      %v1435 = vadd.f32 %v1270, %v1423
      %v1436 = vld [vmem:[%s250 + $0x8] sm:$0x8]
      %s1437 = scalar_lea.vmem %s254, 64
      %v1438 = vld [vmem:[%s1437] sm:$0xf]
      %v1439 = vld [vmem:[%s1437 + $0x4] sm:$0xf]
      %v1441 = vunpack.c.l.b16 %v1436
      %v1442 = vpack.c.b16 %v1140, %v1441
      %vm1443 = vcmask 1044480
      %v1444 = vrot.slane %v1442, 3
      %v1445 = vrot.slane %v1151, 3
      %v1446 = vsel %vm1443, %v1444, %v1445
      %v1447 = vrot.slane %v1152, 3
      %v1448 = vsel %vm1443, %v1445, %v1447
      %v1449 = vrot.slane %v1153, 3
      %v1450 = vsel %vm1443, %v1447, %v1449
      %v1451 = vrot.slane %v1154, 3
      %v1452 = vsel %vm1443, %v1449, %v1451
      %v1453 = vrot.slane %v1277, 3
      %v1454 = vsel %vm1443, %v1451, %v1453
      %v1457 = vunpack.c.l.b16 %v1438
      %v1458 = vunpack.c.l.b16 %v1439
      %v1459 = vpack.c.b16 %v1458, %v1457
      %v1462 = vsel %vm368, %v1446, 0
      %v1465 = vsel %vm368, %v1448, 0
      %v1468 = vsel %vm368, %v1450, 0
      %v1471 = vsel %vm368, %v1452, 0
      %v1474 = vsel %vm368, %v1454, 0
      %1476 = vmatprep.subr.bf16.mxu0 0
      %1477 = vmatpush1.bf16.msra.mxu0 %v1459
      %1478 = vmatprep.subr.bf16.mxu0 0
      %1479 = vmatpush1.bf16.msra.mxu0 0
      %1480 = vmatprep.subr.bf16.mxu0 0
      %1481 = vmatpush1.bf16.msra.mxu0 0
      %1482 = vmatprep.subr.bf16.mxu0 0
      %1483 = vmatpush1.bf16.msra.mxu0 0
      %1484 = vmatprep.subr.bf16.mxu0 0
      %1485 = vmatpush1.bf16.msra.mxu0 0
      %1486 = vmatprep.subr.bf16.mxu0 0
      %1487 = vmatpush1.bf16.msra.mxu0 0
      %1488 = vmatprep.subr.bf16.mxu0 0
      %1489 = vmatpush1.bf16.msra.mxu0 0
      %1490 = vmatprep.subr.bf16.mxu0 0
      %1491 = vmatpush1.bf16.msra.mxu0 0
      %1492 = vmatprep.subr.bf16.mxu0 0
      %1493 = vmatpush1.bf16.msra.mxu0 0
      %1494 = vmatprep.subr.bf16.mxu0 0
      %1495 = vmatpush1.bf16.msra.mxu0 0
      %1496 = vmatprep.subr.bf16.mxu0 0
      %1497 = vmatpush1.bf16.msra.mxu0 0
      %1498 = vmatprep.subr.bf16.mxu0 0
      %1499 = vmatpush1.bf16.msra.mxu0 0
      %1500 = vmatprep.subr.bf16.mxu0 0
      %1501 = vmatpush1.bf16.msra.mxu0 0
      %1502 = vmatprep.subr.bf16.mxu0 0
      %1503 = vmatpush1.bf16.msra.mxu0 0
      %1504 = vmatprep.subr.bf16.mxu0 0
      %1505 = vmatpush1.bf16.msra.mxu0 0
      %1506 = vmatprep.subr.bf16.mxu0 0
      %1507 = vmatpush1.bf16.msra.mxu0 0
      %1508 = vmatprep.mubr.bf16.mxu0 0
      %1509 = vmatmul.mubr.bf16.gmra.mrb[0].mxu0 %v1462
      %v1510 = vpop.f32.mrb[0].mxu0
      %v1511 = vadd.f32 0.0, %v1510
      %v1512 = vpop.f32.mrb[0].mxu0
      %v1513 = vpop.f32.mrb[0].mxu0
      %v1514 = vadd.f32 0.0, %v1513
      %v1515 = vpop.f32.mrb[0].mxu0
      %1516 = vmatprep.mubr.bf16.mxu0 0
      %1517 = vmatmul.mubr.bf16.gmra.mrb[0].mxu0 %v1465
      %v1518 = vpop.f32.mrb[0].mxu0
      %v1519 = vadd.f32 0.0, %v1518
      %v1520 = vpop.f32.mrb[0].mxu0
      %v1521 = vpop.f32.mrb[0].mxu0
      %v1522 = vadd.f32 0.0, %v1521
      %v1523 = vpop.f32.mrb[0].mxu0
      %1524 = vmatprep.mubr.bf16.mxu0 0
      %1525 = vmatmul.mubr.bf16.gmra.mrb[0].mxu0 %v1468
      %v1526 = vpop.f32.mrb[0].mxu0
      %v1527 = vadd.f32 0.0, %v1526
      %v1528 = vpop.f32.mrb[0].mxu0
      %v1529 = vpop.f32.mrb[0].mxu0
      %v1530 = vadd.f32 0.0, %v1529
      %v1531 = vpop.f32.mrb[0].mxu0
      %1532 = vmatprep.mubr.bf16.mxu0 0
      %1533 = vmatmul.mubr.bf16.gmra.mrb[0].mxu0 %v1471
      %v1534 = vpop.f32.mrb[0].mxu0
      %v1535 = vadd.f32 0.0, %v1534
      %v1536 = vpop.f32.mrb[0].mxu0
      %v1537 = vpop.f32.mrb[0].mxu0
      %v1538 = vadd.f32 0.0, %v1537
      %v1539 = vpop.f32.mrb[0].mxu0
      %1540 = vmatprep.mubr.bf16.mxu0 0
      %1541 = vmatmul.mubr.bf16.gmra.mrb[0].mxu0 %v1474
      %v1542 = vpop.f32.mrb[0].mxu0
      %v1543 = vadd.f32 0.0, %v1542
      %v1544 = vpop.f32.mrb[0].mxu0
      %v1545 = vpop.f32.mrb[0].mxu0
      %v1546 = vadd.f32 0.0, %v1545
      %v1547 = vpop.f32.mrb[0].mxu0
      %1548 = vdwg.mxu0
      %v1549 = vadd.f32 %v1426, %v1511
      %v1550 = vadd.f32 %v1427, %v1514
      %v1551 = vadd.f32 %v1428, %v1519
      %v1552 = vadd.f32 %v1429, %v1522
      %v1553 = vadd.f32 %v1430, %v1527
      %v1554 = vadd.f32 %v1431, %v1530
      %v1555 = vadd.f32 %v1432, %v1535
      %v1556 = vadd.f32 %v1433, %v1538
      %v1557 = vadd.f32 %v1434, %v1543
      %v1558 = vadd.f32 %v1435, %v1546
      %v1559 = vld [vmem:[%s259] sm:$0xf]
      %v1560 = vld [vmem:[%s259 + $0x4] sm:$0xf]
      %v1561 = vld [vmem:[%s259 + $0x8] sm:$0xf]
      %v1562 = vld [vmem:[%s259 + $0xc] sm:$0xf]
      %v1563 = vld [vmem:[%s259 + $0x10] sm:$0xf]
      %v1564 = vld [vmem:[%s259 + $0x14] sm:$0xf]
      %v1565 = vld [vmem:[%s259 + $0x18] sm:$0xf]
      %v1566 = vld [vmem:[%s259 + $0x1c] sm:$0xf]
      %v1567 = vld [vmem:[%s259 + $0x20] sm:$0xf]
      %v1568 = vld [vmem:[%s259 + $0x24] sm:$0xf]
      %v1569 = vld [vmem:[%s263] sm:$0xf]
      %v1580 = vunpack.c.l.b16 %v1559
      %v1581 = vunpack.c.l.b16 %v1560
      %v1582 = vunpack.c.l.b16 %v1561
      %v1583 = vunpack.c.l.b16 %v1562
      %v1584 = vunpack.c.l.b16 %v1563
      %v1585 = vunpack.c.l.b16 %v1564
      %v1586 = vunpack.c.l.b16 %v1565
      %v1587 = vunpack.c.l.b16 %v1566
      %v1588 = vunpack.c.l.b16 %v1567
      %v1589 = vunpack.c.l.b16 %v1568
      %v1590 = vpack.c.b16 %v1581, %v1580
      %v1591 = vpack.c.b16 %v1583, %v1582
      %v1592 = vpack.c.b16 %v1585, %v1584
      %v1593 = vpack.c.b16 %v1587, %v1586
      %v1594 = vpack.c.b16 %v1589, %v1588
      %vm1595 = vcmask 64512
      %v1597 = vsel %vm1595, %v1590, 0
      %v1600 = vsel %vm1595, %v1591, 0
      %v1603 = vsel %vm1595, %v1592, 0
      %v1606 = vsel %vm1595, %v1593, 0
      %v1609 = vsel %vm1595, %v1594, 0
      %vm1611 = vcmask 1043456
      %v1613 = vsel %vm1611, %v1569, 0
      %1615 = vmatprep.subr.bf16.mxu0 0
      %1616 = vmatpush1.bf16.msra.mxu0 %v1613
      %1617 = vmatprep.subr.bf16.mxu0 0
      %1618 = vmatpush1.bf16.msra.mxu0 0
      %1619 = vmatprep.subr.bf16.mxu0 0
      %1620 = vmatpush1.bf16.msra.mxu0 0
      %1621 = vmatprep.subr.bf16.mxu0 0
      %1622 = vmatpush1.bf16.msra.mxu0 0
      %1623 = vmatprep.subr.bf16.mxu0 0
      %1624 = vmatpush1.bf16.msra.mxu0 0
      %1625 = vmatprep.subr.bf16.mxu0 0
      %1626 = vmatpush1.bf16.msra.mxu0 0
      %1627 = vmatprep.subr.bf16.mxu0 0
      %1628 = vmatpush1.bf16.msra.mxu0 0
      %1629 = vmatprep.subr.bf16.mxu0 0
      %1630 = vmatpush1.bf16.msra.mxu0 0
      %1631 = vmatprep.subr.bf16.mxu0 0
      %1632 = vmatpush1.bf16.msra.mxu0 0
      %1633 = vmatprep.subr.bf16.mxu0 0
      %1634 = vmatpush1.bf16.msra.mxu0 0
      %1635 = vmatprep.subr.bf16.mxu0 0
      %1636 = vmatpush1.bf16.msra.mxu0 0
      %1637 = vmatprep.subr.bf16.mxu0 0
      %1638 = vmatpush1.bf16.msra.mxu0 0
      %1639 = vmatprep.subr.bf16.mxu0 0
      %1640 = vmatpush1.bf16.msra.mxu0 0
      %1641 = vmatprep.subr.bf16.mxu0 0
      %1642 = vmatpush1.bf16.msra.mxu0 0
      %1643 = vmatprep.subr.bf16.mxu0 0
      %1644 = vmatpush1.bf16.msra.mxu0 0
      %1645 = vmatprep.subr.bf16.mxu0 0
      %1646 = vmatpush1.bf16.msra.mxu0 0
      %1647 = vmatprep.mubr.bf16.mxu0 0
      %1648 = vmatmul.mubr.bf16.gmra.mrb[0].mxu0 %v1597
      %v1649 = vpop.f32.mrb[0].mxu0
      %v1650 = vadd.f32 0.0, %v1649
      %v1651 = vpop.f32.mrb[0].mxu0
      %v1652 = vpop.f32.mrb[0].mxu0
      %v1653 = vadd.f32 0.0, %v1652
      %v1654 = vpop.f32.mrb[0].mxu0
      %1655 = vmatprep.mubr.bf16.mxu0 0
      %1656 = vmatmul.mubr.bf16.gmra.mrb[0].mxu0 %v1600
      %v1657 = vpop.f32.mrb[0].mxu0
      %v1658 = vadd.f32 0.0, %v1657
      %v1659 = vpop.f32.mrb[0].mxu0
      %v1660 = vpop.f32.mrb[0].mxu0
      %v1661 = vadd.f32 0.0, %v1660
      %v1662 = vpop.f32.mrb[0].mxu0
      %1663 = vmatprep.mubr.bf16.mxu0 0
      %1664 = vmatmul.mubr.bf16.gmra.mrb[0].mxu0 %v1603
      %v1665 = vpop.f32.mrb[0].mxu0
      %v1666 = vadd.f32 0.0, %v1665
      %v1667 = vpop.f32.mrb[0].mxu0
      %v1668 = vpop.f32.mrb[0].mxu0
      %v1669 = vadd.f32 0.0, %v1668
      %v1670 = vpop.f32.mrb[0].mxu0
      %1671 = vmatprep.mubr.bf16.mxu0 0
      %1672 = vmatmul.mubr.bf16.gmra.mrb[0].mxu0 %v1606
      %v1673 = vpop.f32.mrb[0].mxu0
      %v1674 = vadd.f32 0.0, %v1673
      %v1675 = vpop.f32.mrb[0].mxu0
      %v1676 = vpop.f32.mrb[0].mxu0
      %v1677 = vadd.f32 0.0, %v1676
      %v1678 = vpop.f32.mrb[0].mxu0
      %1679 = vmatprep.mubr.bf16.mxu0 0
      %1680 = vmatmul.mubr.bf16.gmra.mrb[0].mxu0 %v1609
      %v1681 = vpop.f32.mrb[0].mxu0
      %v1682 = vadd.f32 0.0, %v1681
      %v1683 = vpop.f32.mrb[0].mxu0
      %v1684 = vpop.f32.mrb[0].mxu0
      %v1685 = vadd.f32 0.0, %v1684
      %v1686 = vpop.f32.mrb[0].mxu0
      %1687 = vdwg.mxu0
      %v1688 = vadd.f32 %v1549, %v1650
      %v1689 = vadd.f32 %v1550, %v1653
      %v1690 = vadd.f32 %v1551, %v1658
      %v1691 = vadd.f32 %v1552, %v1661
      %v1692 = vadd.f32 %v1553, %v1666
      %v1693 = vadd.f32 %v1554, %v1669
      %v1694 = vadd.f32 %v1555, %v1674
      %v1695 = vadd.f32 %v1556, %v1677
      %v1696 = vadd.f32 %v1557, %v1682
      %v1697 = vadd.f32 %v1558, %v1685
      %1698 = vst.msk [vmem:[%s271] sm:$0xff] %vm368, %v1688
      %1699 = vst.msk [vmem:[%s271 + $0x8] sm:$0xff] %vm368, %v1689
      %1700 = vst.msk [vmem:[%s271 + $0x10] sm:$0xff] %vm368, %v1690
      %1701 = vst.msk [vmem:[%s271 + $0x18] sm:$0xff] %vm368, %v1691
      %1702 = vst.msk [vmem:[%s271 + $0x20] sm:$0xff] %vm368, %v1692
      %1703 = vst.msk [vmem:[%s271 + $0x28] sm:$0xff] %vm368, %v1693
      %1704 = vst.msk [vmem:[%s271 + $0x30] sm:$0xff] %vm368, %v1694
      %1705 = vst.msk [vmem:[%s271 + $0x38] sm:$0xff] %vm368, %v1695
      %1706 = vst.msk [vmem:[%s271 + $0x40] sm:$0xff] %vm368, %v1696
      %1707 = vst.msk [vmem:[%s271 + $0x48] sm:$0xff] %vm368, %v1697
      %p1708 = scmp.lt.s32.totalorder %s19, 1
      %s1709 = scalar_select %p1708, %s19, 1
      %p1710 = scmp.lt.s32.totalorder %s20, 0
      %s1711 = scalar_select %p1710, %s20, 0
      %s1712 = smul.addr %s1709, 10
      %s1713 = sadd.s32 %s1711, %s1712
      %s1714 = smul.addr %s1713, 8
      %s1715 = scalar_lea.vmem %s4, %s1714
      // Predicated region
      $region37: #{network_block_forward.8} parent=35 // pred_check
        %p1716 = pneg %p151
      $region38: #{network_block_forward.8} parent=35 // pred_check_branch
        %1718 = sbr.rel (%p1716) target = $region40
      $region39: #{network_block_forward.8} parent=35 // pred_region
        _
      $region40: #{network_block_forward.8} parent=35 // pred_fallthru
        _
    $region36: #{network_block_forward.8} parent=5 // pred_fallthru
      _
    %p1719 = scmp.le.s32.totalorder 2, %s10
    // Predicated region
    $region41: #{network_block_forward.8} parent=5 // pred_check
      %p1720 = pneg %p1719
    $region42: #{network_block_forward.8} parent=5 // pred_check_branch
      %1722 = sbr.rel (%p1720) target = $region44
    $region43: #{network_block_forward.8} parent=5 // pred_region
      %s1723 = ssub.s32 %s10, 2
      // Predicated region
      $region45: #{network_block_forward.8} parent=43 // pred_check
        %p1724 = pneg %p157
      $region46: #{network_block_forward.8} parent=43 // pred_check_branch
        %1726 = sbr.rel (%p1724) target = $region48
      $region47: #{network_block_forward.8} parent=43 // pred_region
        %p1727 = scmp.lt.s32.totalorder %s21, 1
        %s1728 = scalar_select %p1727, %s21, 1
        %p1729 = scmp.lt.s32.totalorder %s22, 0
        %s1730 = scalar_select %p1729, %s22, 0
        %s1731 = smul.addr %s1728, 10
        %s1732 = sadd.s32 %s1730, %s1731
        %s1733 = smul.addr %s1732, 8
        %s1734 = scalar_lea.vmem %s4, %s1733
      $region48: #{network_block_forward.8} parent=43 // pred_fallthru
        _
    $region44: #{network_block_forward.8} parent=5 // pred_fallthru
      _
  $region6: #{network_block_forward.8} parent=0 // loop_footer
    %s14 = sadd.s32 1, %s10
  $region7: #{network_block_forward.8} parent=0 // loop_footer_branch
    %9 = sbr.rel target = $region3
  $region8: #{network_block_forward.8} parent=0 // loop_exit
    _

// kernel: network_block_forward.10
$region0: #{network_block_forward.10}
  #allocation0 [shape = 'u32[]', space=smem, size = 0x4, offset = 0x4, fixed_abs, tag = 'smem constant byte address 0x4 - core index']
  #allocation1 [shape = 'u32[144,128]{1,0:T(1,128)}', space=vmem, size = 0x12000, scoped, tag = 'internal scratch']
  %s0 = inlined_call_operand.vmem [shape: bf16[2,104,16], index: 0, kind: input, shape index: {}]
  %s1 = inlined_call_operand.vmem [shape: bf16[9,16,16], index: 1, kind: input, shape index: {}]
  %s2 = inlined_call_operand.vmem [shape: f32[1,16], index: 2, kind: input, shape index: {}]
  %s3 = inlined_call_operand.vmem [shape: f32[1,16], index: 3, kind: input, shape index: {}]
  %s4 = inlined_call_operand.vmem [shape: f32[2,80,16], index: 4, kind: output, shape index: {}]
  %s5 = sld [smem:[#allocation0]]
  $region49: #{network_block_forward.10} parent=0
    _
  %s7 = ssub.s32 1, %s5
  %s8 = scalar_select 0, %s7, %s5
  loop: start=0, step=1, limit=4
  $region2: #{network_block_forward.10} parent=0 // loop_pre_header
    _
  $region3: #{network_block_forward.10} parent=0 // loop_header
    %s10 = sphi 0, %s14
    %p11 = scmp.ge.s32.totalorder %s10, 4
    %s17 = sphi 0, %s29
    %s18 = sphi 0, %s25
    %s19 = sphi 0, %s17
    %s20 = sphi 0, %s18
    %s21 = sphi 0, %s19
    %s22 = sphi 0, %s20
    %s32 = sphi 0, %s34
    %s35 = sphi 0, %s32
    %s36 = sphi 0, %s35
    %s52 = sphi 0, %s36
    %s58 = sphi 0, %s60
    %s61 = sphi 0, %s58
    %s62 = sphi 0, %s61
    %s78 = sphi 0, %s62
    %s84 = sphi 0, %s86
    %s87 = sphi 0, %s84
    %s88 = sphi 0, %s87
    %s104 = sphi 0, %s88
    %s110 = sphi 0, %s112
    %s113 = sphi 0, %s110
    %s114 = sphi 0, %s113
    %s130 = sphi 0, %s114
    %s138 = sphi 0, %s140
    %s141 = sphi 0, %s138
    %s142 = sphi 0, %s141
    %s158 = sphi 0, %s142
  $region4: #{network_block_forward.10} parent=0 // loop_header_branch
    %13 = sbr.rel (%p11) target = $region8
  $region5: #{network_block_forward.10} parent=0 // loop_body
    %s15 = ssub.s32 %s10, 1
    %s16 = ssub.s32 %s10, 2
    %s23 = sadd.s32 1, %s18
    %p24 = scmp.ge.s32.totalorder %s23, 1
    %s25 = scalar_select %p24, 0, %s23
    %s26 = sadd.s32 1, %s17
    %s27 = scalar_select %p24, %s26, %s17
    %p28 = scmp.ge.s32.totalorder %s27, 2
    %s29 = scalar_select %p28, 0, %s27
    %s30 = ssub.s32 %s17, %s29
    %p31 = scmp.eq.s32.totalorder %s30, 0
    %s33 = sadd.s32 %s32, 1
    %s34 = scalar_select %p31, %s32, %s33
    %p37 = pneg %p31
    %p38 = scmp.eq.s32.totalorder %s10, 1
    %p39 = por %p37, %p38
    %p40 = scmp.ne.s32.totalorder %s32, %s35
    %p41 = scmp.eq.s32.totalorder %s10, 0
    %p42 = por %p40, %p41
    %p43 = scmp.ne.s32.totalorder %s32, %s35
    %p44 = scmp.eq.s32.totalorder %s15, 1
    %p45 = por %p43, %p44
    %p46 = scmp.ne.s32.totalorder %s35, %s36
    %p47 = scmp.eq.s32.totalorder %s15, 0
    %p48 = por %p46, %p47
    %p49 = scmp.ne.s32.totalorder %s35, %s36
    %p50 = scmp.eq.s32.totalorder %s16, 1
    %p51 = por %p49, %p50
    %p53 = scmp.ne.s32.totalorder %s36, %s52
    %p54 = scmp.eq.s32.totalorder %s16, 0
    %p55 = por %p53, %p54
    %s56 = ssub.s32 %s18, %s25
    %p57 = scmp.eq.s32.totalorder %s56, 0
    %s59 = sadd.s32 %s58, 1
    %s60 = scalar_select %p57, %s58, %s59
    %p63 = pneg %p57
    %p64 = scmp.eq.s32.totalorder %s10, 1
    %p65 = por %p63, %p64
    %p66 = scmp.ne.s32.totalorder %s58, %s61
    %p67 = scmp.eq.s32.totalorder %s10, 0
    %p68 = por %p66, %p67
    %p69 = scmp.ne.s32.totalorder %s58, %s61
    %p70 = scmp.eq.s32.totalorder %s15, 1
    %p71 = por %p69, %p70
    %p72 = scmp.ne.s32.totalorder %s61, %s62
    %p73 = scmp.eq.s32.totalorder %s15, 0
    %p74 = por %p72, %p73
    %p75 = scmp.ne.s32.totalorder %s61, %s62
    %p76 = scmp.eq.s32.totalorder %s16, 1
    %p77 = por %p75, %p76
    %p79 = scmp.ne.s32.totalorder %s62, %s78
    %p80 = scmp.eq.s32.totalorder %s16, 0
    %p81 = por %p79, %p80
    %s82 = ssub.s32 %s18, %s25
    %p83 = scmp.eq.s32.totalorder %s82, 0
    %s85 = sadd.s32 %s84, 1
    %s86 = scalar_select %p83, %s84, %s85
    %p89 = pneg %p83
    %p90 = scmp.eq.s32.totalorder %s10, 1
    %p91 = por %p89, %p90
    %p92 = scmp.ne.s32.totalorder %s84, %s87
    %p93 = scmp.eq.s32.totalorder %s10, 0
    %p94 = por %p92, %p93
    %p95 = scmp.ne.s32.totalorder %s84, %s87
    %p96 = scmp.eq.s32.totalorder %s15, 1
    %p97 = por %p95, %p96
    %p98 = scmp.ne.s32.totalorder %s87, %s88
    %p99 = scmp.eq.s32.totalorder %s15, 0
    %p100 = por %p98, %p99
    %p101 = scmp.ne.s32.totalorder %s87, %s88
    %p102 = scmp.eq.s32.totalorder %s16, 1
    %p103 = por %p101, %p102
    %p105 = scmp.ne.s32.totalorder %s88, %s104
    %p106 = scmp.eq.s32.totalorder %s16, 0
    %p107 = por %p105, %p106
    %s108 = ssub.s32 %s18, %s25
    %p109 = scmp.eq.s32.totalorder %s108, 0
    %s111 = sadd.s32 %s110, 1
    %s112 = scalar_select %p109, %s110, %s111
    %p115 = pneg %p109
    %p116 = scmp.eq.s32.totalorder %s10, 1
    %p117 = por %p115, %p116
    %p118 = scmp.ne.s32.totalorder %s110, %s113
    %p119 = scmp.eq.s32.totalorder %s10, 0
    %p120 = por %p118, %p119
    %p121 = scmp.ne.s32.totalorder %s110, %s113
    %p122 = scmp.eq.s32.totalorder %s15, 1
    %p123 = por %p121, %p122
    %p124 = scmp.ne.s32.totalorder %s113, %s114
    %p125 = scmp.eq.s32.totalorder %s15, 0
    %p126 = por %p124, %p125
    %p127 = scmp.ne.s32.totalorder %s113, %s114
    %p128 = scmp.eq.s32.totalorder %s16, 1
    %p129 = por %p127, %p128
    %p131 = scmp.ne.s32.totalorder %s114, %s130
    %p132 = scmp.eq.s32.totalorder %s16, 0
    %p133 = por %p131, %p132
    %s134 = ssub.s32 %s17, %s29
    %s135 = ssub.s32 %s18, %s25
    %s136 = sor.u32 %s134, %s135
    %p137 = scmp.eq.s32.totalorder %s136, 0
    %s139 = sadd.s32 %s138, 1
    %s140 = scalar_select %p137, %s138, %s139
    %p143 = pneg %p137
    %p144 = scmp.eq.s32.totalorder %s10, 1
    %p145 = por %p143, %p144
    %p146 = scmp.ne.s32.totalorder %s138, %s141
    %p147 = scmp.eq.s32.totalorder %s10, 0
    %p148 = por %p146, %p147
    %p149 = scmp.ne.s32.totalorder %s138, %s141
    %p150 = scmp.eq.s32.totalorder %s15, 1
    %p151 = por %p149, %p150
    %p152 = scmp.ne.s32.totalorder %s141, %s142
    %p153 = scmp.eq.s32.totalorder %s15, 0
    %p154 = por %p152, %p153
    %p155 = scmp.ne.s32.totalorder %s141, %s142
    %p156 = scmp.eq.s32.totalorder %s16, 1
    %p157 = por %p155, %p156
    %p159 = scmp.ne.s32.totalorder %s142, %s158
    %p160 = scmp.eq.s32.totalorder %s16, 0
    %p161 = por %p159, %p160
    %p162 = scmp.le.s32.totalorder 1, %s10
    %p163 = scmp.lt.s32.totalorder %s10, 3
    %p164 = pnand %p162, %p163
    %p165 = pneg %p164
    // Predicated region
    $region9: #{network_block_forward.10} parent=5 // pred_check
      _
    $region10: #{network_block_forward.10} parent=5 // pred_check_branch
      %167 = sbr.rel (%p164) target = $region12
    $region11: #{network_block_forward.10} parent=5 // pred_region
      %s168 = ssub.s32 %s10, 1
      // Predicated region
      $region13: #{network_block_forward.10} parent=11 // pred_check
        %p169 = pneg %p74
      $region14: #{network_block_forward.10} parent=11 // pred_check_branch
        %171 = sbr.rel (%p169) target = $region16
      $region15: #{network_block_forward.10} parent=11 // pred_region
        %p172 = scmp.lt.s32.totalorder %s20, 0
        %s173 = scalar_select %p172, %s20, 0
        %s174 = smul.addr %s173, 4
        %s175 = scalar_lea.vmem %s1, %s174
      $region16: #{network_block_forward.10} parent=11 // pred_fallthru
        _
      // Predicated region
      $region17: #{network_block_forward.10} parent=11 // pred_check
        %p176 = pneg %p100
      $region18: #{network_block_forward.10} parent=11 // pred_check_branch
        %178 = sbr.rel (%p176) target = $region20
      $region19: #{network_block_forward.10} parent=11 // pred_region
        %p179 = scmp.lt.s32.totalorder %s20, 0
        %s180 = scalar_select %p179, %s20, 0
        %s181 = scalar_lea.vmem %s2, %s180
      $region20: #{network_block_forward.10} parent=11 // pred_fallthru
        _
      // Predicated region
      $region21: #{network_block_forward.10} parent=11 // pred_check
        %p182 = pneg %p126
      $region22: #{network_block_forward.10} parent=11 // pred_check_branch
        %184 = sbr.rel (%p182) target = $region24
      $region23: #{network_block_forward.10} parent=11 // pred_region
        %p185 = scmp.lt.s32.totalorder %s20, 0
        %s186 = scalar_select %p185, %s20, 0
        %s187 = scalar_lea.vmem %s3, %s186
      $region24: #{network_block_forward.10} parent=11 // pred_fallthru
        _
    $region12: #{network_block_forward.10} parent=5 // pred_fallthru
      _
    %p188 = scmp.lt.s32.totalorder %s10, 2
    // Predicated region
    $region25: #{network_block_forward.10} parent=5 // pred_check
      %p189 = pneg %p188
    $region26: #{network_block_forward.10} parent=5 // pred_check_branch
      %191 = sbr.rel (%p189) target = $region28
    $region27: #{network_block_forward.10} parent=5 // pred_region
      // Predicated region
      $region29: #{network_block_forward.10} parent=27 // pred_check
        %p192 = pneg %p42
      $region30: #{network_block_forward.10} parent=27 // pred_check_branch
        %194 = sbr.rel (%p192) target = $region32
      $region31: #{network_block_forward.10} parent=27 // pred_region
        %p195 = scmp.lt.s32.totalorder %s17, 1
        %s196 = scalar_select %p195, %s17, 1
        %s197 = smul.addr %s196, 13
        %s198 = smul.addr %s197, 4
        %s199 = scalar_lea.vmem %s0, %s198
      $region32: #{network_block_forward.10} parent=27 // pred_fallthru
        _
    $region28: #{network_block_forward.10} parent=5 // pred_fallthru
      _
    %p200 = scmp.le.s32.totalorder 1, %s10
    %p201 = scmp.lt.s32.totalorder %s10, 3
    %p202 = pnand %p200, %p201
    %p203 = pneg %p202
    // Predicated region
    $region33: #{network_block_forward.10} parent=5 // pred_check
      _
    $region34: #{network_block_forward.10} parent=5 // pred_check_branch
      %205 = sbr.rel (%p202) target = $region36
    $region35: #{network_block_forward.10} parent=5 // pred_region
      %s206 = ssub.s32 %s10, 1
      %p207 = scmp.lt.s32.totalorder %s19, 1
      %s208 = scalar_select %p207, %s19, 1
      %s209 = smul.addr %s208, 13
      %s210 = smul.addr %s209, 4
      %s211 = scalar_lea.vmem %s0, %s210
      %p212 = pneg %p48
      %p213 = pneg %p45
      %p214 = scmp.lt.s32.totalorder %s20, 0
      %s215 = scalar_select %p214, %s20, 0
      %s216 = smul.addr %s215, 4
      %s217 = scalar_lea.vmem %s1, %s216
      %p218 = pneg %p74
      %p219 = pneg %p71
      %p220 = scmp.lt.s32.totalorder %s20, 0
      %s221 = scalar_select %p220, %s20, 0
      %s222 = scalar_lea.vmem %s2, %s221
      %p223 = pneg %p100
      %p224 = pneg %p97
      %p225 = scmp.lt.s32.totalorder %s20, 0
      %s226 = scalar_select %p225, %s20, 0
      %s227 = scalar_lea.vmem %s3, %s226
      %p228 = pneg %p126
      %p229 = pneg %p123
      %p230 = pneg %p154
      %p231 = pneg %p151
      %p232 = scmp.lt.s32.totalorder %s19, 1
      %s233 = scalar_select %p232, %s19, 1
      %p234 = scmp.lt.s32.totalorder %s20, 0
      %s235 = scalar_select %p234, %s20, 0
      %s236 = smul.addr %s233, 10
      %s237 = sadd.s32 %s235, %s236
      %s238 = smul.addr %s237, 8
      %s239 = scalar_lea.vmem %s4, %s238
      %p240 = scmp.lt.s32.totalorder %s19, 1
      %s241 = scalar_select %p240, %s19, 1
      %s242 = smul.addr %s241, 13
      %s243 = smul.addr %s242, 4
      %s244 = scalar_lea.vmem %s0, %s243
      %p245 = scmp.lt.s32.totalorder %s20, 0
      %s246 = scalar_select %p245, %s20, 0
      %s247 = smul.addr %s246, 4
      %s248 = scalar_lea.vmem %s1, %s247
      %p249 = scmp.lt.s32.totalorder %s20, 0
      %s250 = scalar_select %p249, %s20, 0
      %s251 = scalar_lea.vmem %s2, %s250
      %p252 = scmp.lt.s32.totalorder %s20, 0
      %s253 = scalar_select %p252, %s20, 0
      %s254 = scalar_lea.vmem %s3, %s253
      %p255 = scmp.lt.s32.totalorder %s19, 1
      %s256 = scalar_select %p255, %s19, 1
      %p257 = scmp.lt.s32.totalorder %s20, 0
      %s258 = scalar_select %p257, %s20, 0
      %s259 = smul.addr %s256, 10
      %s260 = sadd.s32 %s258, %s259
      %s261 = smul.addr %s260, 8
      %s262 = scalar_lea.vmem %s4, %s261
      %v264 = vld [vmem:[%s244] sm:$0xf]
      %v265 = vld [vmem:[%s244 + $0x4] sm:$0xf]
      %v266 = vld [vmem:[%s244 + $0x8] sm:$0xf]
      %v267 = vld [vmem:[%s244 + $0xc] sm:$0xf]
      %v268 = vld [vmem:[%s244 + $0x10] sm:$0xf]
      %v269 = vld [vmem:[%s244 + $0x14] sm:$0xf]
      %v270 = vld [vmem:[%s244 + $0x18] sm:$0xf]
      %v271 = vld [vmem:[%s244 + $0x1c] sm:$0xf]
      %v272 = vld [vmem:[%s244 + $0x20] sm:$0xf]
      %v273 = vld [vmem:[%s244 + $0x24] sm:$0xf]
      %v274 = vld [vmem:[%s248] sm:$0xf]
      %v275 = vld [vmem:[%s248 + $0x4] sm:$0xf]
      %v276 = vld [vmem:[%s244 + $0x28] sm:$0x1]
      %s277 = scalar_lea.vmem %s248, 8
      %v278 = vld [vmem:[%s277] sm:$0xf]
      %v279 = vld [vmem:[%s277 + $0x4] sm:$0xf]
      %v291 = vunpack.c.l.b16 %v264
      %v292 = vunpack.c.l.b16 %v265
      %v293 = vunpack.c.l.b16 %v266
      %v294 = vunpack.c.l.b16 %v267
      %v295 = vunpack.c.l.b16 %v268
      %v296 = vunpack.c.l.b16 %v269
      %v297 = vunpack.c.l.b16 %v270
      %v298 = vunpack.c.l.b16 %v271
      %v299 = vunpack.c.l.b16 %v272
      %v300 = vunpack.c.l.b16 %v273
      %v301 = vunpack.c.l.b16 %v276
      %v302 = vpack.c.b16 %v292, %v291
      %v303 = vpack.c.b16 %v294, %v293
      %v304 = vpack.c.b16 %v296, %v295
      %v305 = vpack.c.b16 %v298, %v297
      %v306 = vpack.c.b16 %v300, %v299
      %v307 = vpack.c.b16 %v301, %v301
      %vm308 = vsmask.f32 7424
      %v310 = vshrl.u32 %v302, 16
      %v312 = vshll.u32 %v302, 16
      %v314 = vrot.slane %v312, 1
      %v315 = vor.u32 %v310, %v314
      %v317 = vshll.u32 %v303, 16
      %v319 = vrot.slane %v317, 1
      %v320 = vsel %vm308, %v315, %v319
      %v321 = vshrl.u32 %v303, 16
      %v323 = vor.u32 %v321, %v319
      %v325 = vshll.u32 %v304, 16
      %v327 = vrot.slane %v325, 1
      %v328 = vsel %vm308, %v323, %v327
      %v329 = vshrl.u32 %v304, 16
      %v331 = vor.u32 %v329, %v327
      %v333 = vshll.u32 %v305, 16
      %v335 = vrot.slane %v333, 1
      %v336 = vsel %vm308, %v331, %v335
      %v337 = vshrl.u32 %v305, 16
      %v339 = vor.u32 %v337, %v335
      %v341 = vshll.u32 %v306, 16
      %v343 = vrot.slane %v341, 1
      %v344 = vsel %vm308, %v339, %v343
      %v345 = vshrl.u32 %v306, 16
      %v347 = vor.u32 %v345, %v343
      %v349 = vshll.u32 %v307, 16
      %v351 = vrot.slane %v349, 1
      %v352 = vsel %vm308, %v347, %v351
      %v355 = vunpack.c.l.b16 %v278
      %v356 = vunpack.c.l.b16 %v279
      %v357 = vpack.c.b16 %v356, %v355
      %vm359 = vcmask 130048
      %v361 = vsel %vm359, %v320, 0
      %v364 = vsel %vm359, %v328, 0
      %v367 = vsel %vm359, %v336, 0
      %v370 = vsel %vm359, %v344, 0
      %v373 = vsel %vm359, %v352, 0
      %375 = vmatprep.subr.bf16.mxu0 0
      %376 = vmatpush1.bf16.msra.mxu0 %v357
      %377 = vmatprep.subr.bf16.mxu0 0
      %378 = vmatpush1.bf16.msra.mxu0 0
      %379 = vmatprep.subr.bf16.mxu0 0
      %380 = vmatpush1.bf16.msra.mxu0 0
      %381 = vmatprep.subr.bf16.mxu0 0
      %382 = vmatpush1.bf16.msra.mxu0 0
      %383 = vmatprep.subr.bf16.mxu0 0
      %384 = vmatpush1.bf16.msra.mxu0 0
      %385 = vmatprep.subr.bf16.mxu0 0
      %386 = vmatpush1.bf16.msra.mxu0 0
      %387 = vmatprep.subr.bf16.mxu0 0
      %388 = vmatpush1.bf16.msra.mxu0 0
      %389 = vmatprep.subr.bf16.mxu0 0
      %390 = vmatpush1.bf16.msra.mxu0 0
      %391 = vmatprep.subr.bf16.mxu0 0
      %392 = vmatpush1.bf16.msra.mxu0 0
      %393 = vmatprep.subr.bf16.mxu0 0
      %394 = vmatpush1.bf16.msra.mxu0 0
      %395 = vmatprep.subr.bf16.mxu0 0
      %396 = vmatpush1.bf16.msra.mxu0 0
      %397 = vmatprep.subr.bf16.mxu0 0
      %398 = vmatpush1.bf16.msra.mxu0 0
      %399 = vmatprep.subr.bf16.mxu0 0
      %400 = vmatpush1.bf16.msra.mxu0 0
      %401 = vmatprep.subr.bf16.mxu0 0
      %402 = vmatpush1.bf16.msra.mxu0 0
      %403 = vmatprep.subr.bf16.mxu0 0
      %404 = vmatpush1.bf16.msra.mxu0 0
      %405 = vmatprep.subr.bf16.mxu0 0
      %406 = vmatpush1.bf16.msra.mxu0 0
      %407 = vmatprep.mubr.bf16.mxu0 0
      %408 = vmatmul.mubr.bf16.gmra.mrb[0].mxu0 %v361
      %v409 = vpop.f32.mrb[0].mxu0
      %v410 = vadd.f32 0.0, %v409
      %v411 = vpop.f32.mrb[0].mxu0
      %v412 = vpop.f32.mrb[0].mxu0
      %v413 = vadd.f32 0.0, %v412
      %v414 = vpop.f32.mrb[0].mxu0
      %415 = vmatprep.mubr.bf16.mxu0 0
      %416 = vmatmul.mubr.bf16.gmra.mrb[0].mxu0 %v364
      %v417 = vpop.f32.mrb[0].mxu0
      %v418 = vadd.f32 0.0, %v417
      %v419 = vpop.f32.mrb[0].mxu0
      %v420 = vpop.f32.mrb[0].mxu0
      %v421 = vadd.f32 0.0, %v420
      %v422 = vpop.f32.mrb[0].mxu0
      %423 = vmatprep.mubr.bf16.mxu0 0
      %424 = vmatmul.mubr.bf16.gmra.mrb[0].mxu0 %v367
      %v425 = vpop.f32.mrb[0].mxu0
      %v426 = vadd.f32 0.0, %v425
      %v427 = vpop.f32.mrb[0].mxu0
      %v428 = vpop.f32.mrb[0].mxu0
      %v429 = vadd.f32 0.0, %v428
      %v430 = vpop.f32.mrb[0].mxu0
      %431 = vmatprep.mubr.bf16.mxu0 0
      %432 = vmatmul.mubr.bf16.gmra.mrb[0].mxu0 %v370
      %v433 = vpop.f32.mrb[0].mxu0
      %v434 = vadd.f32 0.0, %v433
      %v435 = vpop.f32.mrb[0].mxu0
      %v436 = vpop.f32.mrb[0].mxu0
      %v437 = vadd.f32 0.0, %v436
      %v438 = vpop.f32.mrb[0].mxu0
      %439 = vmatprep.mubr.bf16.mxu0 0
      %440 = vmatmul.mubr.bf16.gmra.mrb[0].mxu0 %v373
      %v441 = vpop.f32.mrb[0].mxu0
      %v442 = vadd.f32 0.0, %v441
      %v443 = vpop.f32.mrb[0].mxu0
      %v444 = vpop.f32.mrb[0].mxu0
      %v445 = vadd.f32 0.0, %v444
      %v446 = vpop.f32.mrb[0].mxu0
      %447 = vdwg.mxu0
      %v450 = vunpack.c.l.b16 %v274
      %v451 = vunpack.c.l.b16 %v275
      %v452 = vpack.c.b16 %v451, %v450
      %v454 = vsel %vm359, %v302, 0
      %v456 = vsel %vm359, %v303, 0
      %v458 = vsel %vm359, %v304, 0
      %v460 = vsel %vm359, %v305, 0
      %v462 = vsel %vm359, %v306, 0
      %464 = vmatprep.subr.bf16.mxu0 0
      %465 = vmatpush1.bf16.msra.mxu0 %v452
      %466 = vmatprep.subr.bf16.mxu0 0
      %467 = vmatpush1.bf16.msra.mxu0 0
      %468 = vmatprep.subr.bf16.mxu0 0
      %469 = vmatpush1.bf16.msra.mxu0 0
      %470 = vmatprep.subr.bf16.mxu0 0
      %471 = vmatpush1.bf16.msra.mxu0 0
      %472 = vmatprep.subr.bf16.mxu0 0
      %473 = vmatpush1.bf16.msra.mxu0 0
      %474 = vmatprep.subr.bf16.mxu0 0
      %475 = vmatpush1.bf16.msra.mxu0 0
      %476 = vmatprep.subr.bf16.mxu0 0
      %477 = vmatpush1.bf16.msra.mxu0 0
      %478 = vmatprep.subr.bf16.mxu0 0
      %479 = vmatpush1.bf16.msra.mxu0 0
      %480 = vmatprep.subr.bf16.mxu0 0
      %481 = vmatpush1.bf16.msra.mxu0 0
      %482 = vmatprep.subr.bf16.mxu0 0
      %483 = vmatpush1.bf16.msra.mxu0 0
      %484 = vmatprep.subr.bf16.mxu0 0
      %485 = vmatpush1.bf16.msra.mxu0 0
      %486 = vmatprep.subr.bf16.mxu0 0
      %487 = vmatpush1.bf16.msra.mxu0 0
      %488 = vmatprep.subr.bf16.mxu0 0
      %489 = vmatpush1.bf16.msra.mxu0 0
      %490 = vmatprep.subr.bf16.mxu0 0
      %491 = vmatpush1.bf16.msra.mxu0 0
      %492 = vmatprep.subr.bf16.mxu0 0
      %493 = vmatpush1.bf16.msra.mxu0 0
      %494 = vmatprep.subr.bf16.mxu0 0
      %495 = vmatpush1.bf16.msra.mxu0 0
      %496 = vmatprep.mubr.bf16.mxu0 0
      %497 = vmatmul.mubr.bf16.gmra.mrb[0].mxu0 %v454
      %v498 = vpop.f32.mrb[0].mxu0
      %v499 = vadd.f32 %v410, %v498
      %v500 = vpop.f32.mrb[0].mxu0
      %v501 = vpop.f32.mrb[0].mxu0
      %v502 = vadd.f32 %v413, %v501
      %v503 = vpop.f32.mrb[0].mxu0
      %504 = vmatprep.mubr.bf16.mxu0 0
      %505 = vmatmul.mubr.bf16.gmra.mrb[0].mxu0 %v456
      %v506 = vpop.f32.mrb[0].mxu0
      %v507 = vadd.f32 %v418, %v506
      %v508 = vpop.f32.mrb[0].mxu0
      %v509 = vpop.f32.mrb[0].mxu0
      %v510 = vadd.f32 %v421, %v509
      %v511 = vpop.f32.mrb[0].mxu0
      %512 = vmatprep.mubr.bf16.mxu0 0
      %513 = vmatmul.mubr.bf16.gmra.mrb[0].mxu0 %v458
      %v514 = vpop.f32.mrb[0].mxu0
      %v515 = vadd.f32 %v426, %v514
      %v516 = vpop.f32.mrb[0].mxu0
      %v517 = vpop.f32.mrb[0].mxu0
      %v518 = vadd.f32 %v429, %v517
      %v519 = vpop.f32.mrb[0].mxu0
      %520 = vmatprep.mubr.bf16.mxu0 0
      %521 = vmatmul.mubr.bf16.gmra.mrb[0].mxu0 %v460
      %v522 = vpop.f32.mrb[0].mxu0
      %v523 = vadd.f32 %v434, %v522
      %v524 = vpop.f32.mrb[0].mxu0
      %v525 = vpop.f32.mrb[0].mxu0
      %v526 = vadd.f32 %v437, %v525
      %v527 = vpop.f32.mrb[0].mxu0
      %528 = vmatprep.mubr.bf16.mxu0 0
      %529 = vmatmul.mubr.bf16.gmra.mrb[0].mxu0 %v462
      %v530 = vpop.f32.mrb[0].mxu0
      %v531 = vadd.f32 %v442, %v530
      %v532 = vpop.f32.mrb[0].mxu0
      %v533 = vpop.f32.mrb[0].mxu0
      %v534 = vadd.f32 %v445, %v533
      %v535 = vpop.f32.mrb[0].mxu0
      %536 = vdwg.mxu0
      %v537 = vld [vmem:[%s244] sm:$0xe]
      %s538 = scalar_lea.vmem %s248, 16
      %v539 = vld [vmem:[%s538] sm:$0xf]
      %v540 = vld [vmem:[%s538 + $0x4] sm:$0xf]
      %v542 = vunpack.c.l.b16 %v537
      %v543 = vpack.c.b16 %v292, %v542
      %vm544 = vcmask 1046528
      %v545 = vrot.slane %v543, 1
      %v546 = vrot.slane %v303, 1
      %v547 = vsel %vm544, %v545, %v546
      %v548 = vrot.slane %v304, 1
      %v549 = vsel %vm544, %v546, %v548
      %v550 = vrot.slane %v305, 1
      %v551 = vsel %vm544, %v548, %v550
      %v552 = vrot.slane %v306, 1
      %v553 = vsel %vm544, %v550, %v552
      %v554 = vrot.slane %v307, 1
      %v555 = vsel %vm544, %v552, %v554
      %v558 = vunpack.c.l.b16 %v539
      %v559 = vunpack.c.l.b16 %v540
      %v560 = vpack.c.b16 %v559, %v558
      %v563 = vsel %vm359, %v547, 0
      %v566 = vsel %vm359, %v549, 0
      %v569 = vsel %vm359, %v551, 0
      %v572 = vsel %vm359, %v553, 0
      %v575 = vsel %vm359, %v555, 0
      %577 = vmatprep.subr.bf16.mxu0 0
      %578 = vmatpush1.bf16.msra.mxu0 %v560
      %579 = vmatprep.subr.bf16.mxu0 0
      %580 = vmatpush1.bf16.msra.mxu0 0
      %581 = vmatprep.subr.bf16.mxu0 0
      %582 = vmatpush1.bf16.msra.mxu0 0
      %583 = vmatprep.subr.bf16.mxu0 0
      %584 = vmatpush1.bf16.msra.mxu0 0
      %585 = vmatprep.subr.bf16.mxu0 0
      %586 = vmatpush1.bf16.msra.mxu0 0
      %587 = vmatprep.subr.bf16.mxu0 0
      %588 = vmatpush1.bf16.msra.mxu0 0
      %589 = vmatprep.subr.bf16.mxu0 0
      %590 = vmatpush1.bf16.msra.mxu0 0
      %591 = vmatprep.subr.bf16.mxu0 0
      %592 = vmatpush1.bf16.msra.mxu0 0
      %593 = vmatprep.subr.bf16.mxu0 0
      %594 = vmatpush1.bf16.msra.mxu0 0
      %595 = vmatprep.subr.bf16.mxu0 0
      %596 = vmatpush1.bf16.msra.mxu0 0
      %597 = vmatprep.subr.bf16.mxu0 0
      %598 = vmatpush1.bf16.msra.mxu0 0
      %599 = vmatprep.subr.bf16.mxu0 0
      %600 = vmatpush1.bf16.msra.mxu0 0
      %601 = vmatprep.subr.bf16.mxu0 0
      %602 = vmatpush1.bf16.msra.mxu0 0
      %603 = vmatprep.subr.bf16.mxu0 0
      %604 = vmatpush1.bf16.msra.mxu0 0
      %605 = vmatprep.subr.bf16.mxu0 0
      %606 = vmatpush1.bf16.msra.mxu0 0
      %607 = vmatprep.subr.bf16.mxu0 0
      %608 = vmatpush1.bf16.msra.mxu0 0
      %609 = vmatprep.mubr.bf16.mxu0 0
      %610 = vmatmul.mubr.bf16.gmra.mrb[0].mxu0 %v563
      %v611 = vpop.f32.mrb[0].mxu0
      %v612 = vadd.f32 0.0, %v611
      %v613 = vpop.f32.mrb[0].mxu0
      %v614 = vpop.f32.mrb[0].mxu0
      %v615 = vadd.f32 0.0, %v614
      %v616 = vpop.f32.mrb[0].mxu0
      %617 = vmatprep.mubr.bf16.mxu0 0
      %618 = vmatmul.mubr.bf16.gmra.mrb[0].mxu0 %v566
      %v619 = vpop.f32.mrb[0].mxu0
      %v620 = vadd.f32 0.0, %v619
      %v621 = vpop.f32.mrb[0].mxu0
      %v622 = vpop.f32.mrb[0].mxu0
      %v623 = vadd.f32 0.0, %v622
      %v624 = vpop.f32.mrb[0].mxu0
      %625 = vmatprep.mubr.bf16.mxu0 0
      %626 = vmatmul.mubr.bf16.gmra.mrb[0].mxu0 %v569
      %v627 = vpop.f32.mrb[0].mxu0
      %v628 = vadd.f32 0.0, %v627
      %v629 = vpop.f32.mrb[0].mxu0
      %v630 = vpop.f32.mrb[0].mxu0
      %v631 = vadd.f32 0.0, %v630
      %v632 = vpop.f32.mrb[0].mxu0
      %633 = vmatprep.mubr.bf16.mxu0 0
      %634 = vmatmul.mubr.bf16.gmra.mrb[0].mxu0 %v572
      %v635 = vpop.f32.mrb[0].mxu0
      %v636 = vadd.f32 0.0, %v635
      %v637 = vpop.f32.mrb[0].mxu0
      %v638 = vpop.f32.mrb[0].mxu0
      %v639 = vadd.f32 0.0, %v638
      %v640 = vpop.f32.mrb[0].mxu0
      %641 = vmatprep.mubr.bf16.mxu0 0
      %642 = vmatmul.mubr.bf16.gmra.mrb[0].mxu0 %v575
      %v643 = vpop.f32.mrb[0].mxu0
      %v644 = vadd.f32 0.0, %v643
      %v645 = vpop.f32.mrb[0].mxu0
      %v646 = vpop.f32.mrb[0].mxu0
      %v647 = vadd.f32 0.0, %v646
      %v648 = vpop.f32.mrb[0].mxu0
      %649 = vdwg.mxu0
      %v650 = vadd.f32 %v499, %v612
      %v651 = vadd.f32 %v502, %v615
      %v652 = vadd.f32 %v507, %v620
      %v653 = vadd.f32 %v510, %v623
      %v654 = vadd.f32 %v515, %v628
      %v655 = vadd.f32 %v518, %v631
      %v656 = vadd.f32 %v523, %v636
      %v657 = vadd.f32 %v526, %v639
      %v658 = vadd.f32 %v531, %v644
      %v659 = vadd.f32 %v534, %v647
      %v660 = vld [vmem:[%s244 + $0x4] sm:$0xe]
      %v661 = vld [vmem:[%s244 + $0x8] sm:$0xf]
      %v662 = vld [vmem:[%s244 + $0xc] sm:$0xf]
      %v663 = vld [vmem:[%s244 + $0x10] sm:$0xf]
      %v664 = vld [vmem:[%s244 + $0x14] sm:$0xf]
      %v665 = vld [vmem:[%s244 + $0x18] sm:$0xf]
      %v666 = vld [vmem:[%s244 + $0x1c] sm:$0xf]
      %v667 = vld [vmem:[%s244 + $0x20] sm:$0xf]
      %v668 = vld [vmem:[%s244 + $0x24] sm:$0xf]
      %v669 = vld [vmem:[%s244 + $0x28] sm:$0xf]
      %v670 = vld [vmem:[%s244 + $0x2c] sm:$0x1]
      %s671 = scalar_lea.vmem %s248, 24
      %v672 = vld [vmem:[%s671] sm:$0xf]
      %v673 = vld [vmem:[%s671 + $0x4] sm:$0xf]
      %v685 = vunpack.c.l.b16 %v660
      %v686 = vunpack.c.l.b16 %v661
      %v687 = vunpack.c.l.b16 %v662
      %v688 = vunpack.c.l.b16 %v663
      %v689 = vunpack.c.l.b16 %v664
      %v690 = vunpack.c.l.b16 %v665
      %v691 = vunpack.c.l.b16 %v666
      %v692 = vunpack.c.l.b16 %v667
      %v693 = vunpack.c.l.b16 %v668
      %v694 = vunpack.c.l.b16 %v669
      %v695 = vunpack.c.l.b16 %v670
      %v696 = vpack.c.b16 %v686, %v685
      %v697 = vpack.c.b16 %v688, %v687
      %v698 = vpack.c.b16 %v690, %v689
      %v699 = vpack.c.b16 %v692, %v691
      %v700 = vpack.c.b16 %v694, %v693
      %v701 = vpack.c.b16 %v695, %v695
      %v702 = vrot.slane %v696, 1
      %v703 = vrot.slane %v697, 1
      %v704 = vsel %vm544, %v702, %v703
      %v705 = vrot.slane %v698, 1
      %v706 = vsel %vm544, %v703, %v705
      %v707 = vrot.slane %v699, 1
      %v708 = vsel %vm544, %v705, %v707
      %v709 = vrot.slane %v700, 1
      %v710 = vsel %vm544, %v707, %v709
      %v711 = vrot.slane %v701, 1
      %v712 = vsel %vm544, %v709, %v711
      %v715 = vunpack.c.l.b16 %v672
      %v716 = vunpack.c.l.b16 %v673
      %v717 = vpack.c.b16 %v716, %v715
      %v720 = vsel %vm359, %v704, 0
      %v723 = vsel %vm359, %v706, 0
      %v726 = vsel %vm359, %v708, 0
      %v729 = vsel %vm359, %v710, 0
      %v732 = vsel %vm359, %v712, 0
      %734 = vmatprep.subr.bf16.mxu0 0
      %735 = vmatpush1.bf16.msra.mxu0 %v717
      %736 = vmatprep.subr.bf16.mxu0 0
      %737 = vmatpush1.bf16.msra.mxu0 0
      %738 = vmatprep.subr.bf16.mxu0 0
      %739 = vmatpush1.bf16.msra.mxu0 0
      %740 = vmatprep.subr.bf16.mxu0 0
      %741 = vmatpush1.bf16.msra.mxu0 0
      %742 = vmatprep.subr.bf16.mxu0 0
      %743 = vmatpush1.bf16.msra.mxu0 0
      %744 = vmatprep.subr.bf16.mxu0 0
      %745 = vmatpush1.bf16.msra.mxu0 0
      %746 = vmatprep.subr.bf16.mxu0 0
      %747 = vmatpush1.bf16.msra.mxu0 0
      %748 = vmatprep.subr.bf16.mxu0 0
      %749 = vmatpush1.bf16.msra.mxu0 0
      %750 = vmatprep.subr.bf16.mxu0 0
      %751 = vmatpush1.bf16.msra.mxu0 0
      %752 = vmatprep.subr.bf16.mxu0 0
      %753 = vmatpush1.bf16.msra.mxu0 0
      %754 = vmatprep.subr.bf16.mxu0 0
      %755 = vmatpush1.bf16.msra.mxu0 0
      %756 = vmatprep.subr.bf16.mxu0 0
      %757 = vmatpush1.bf16.msra.mxu0 0
      %758 = vmatprep.subr.bf16.mxu0 0
      %759 = vmatpush1.bf16.msra.mxu0 0
      %760 = vmatprep.subr.bf16.mxu0 0
      %761 = vmatpush1.bf16.msra.mxu0 0
      %762 = vmatprep.subr.bf16.mxu0 0
      %763 = vmatpush1.bf16.msra.mxu0 0
      %764 = vmatprep.subr.bf16.mxu0 0
      %765 = vmatpush1.bf16.msra.mxu0 0
      %766 = vmatprep.mubr.bf16.mxu0 0
      %767 = vmatmul.mubr.bf16.gmra.mrb[0].mxu0 %v720
      %v768 = vpop.f32.mrb[0].mxu0
      %v769 = vadd.f32 0.0, %v768
      %v770 = vpop.f32.mrb[0].mxu0
      %v771 = vpop.f32.mrb[0].mxu0
      %v772 = vadd.f32 0.0, %v771
      %v773 = vpop.f32.mrb[0].mxu0
      %774 = vmatprep.mubr.bf16.mxu0 0
      %775 = vmatmul.mubr.bf16.gmra.mrb[0].mxu0 %v723
      %v776 = vpop.f32.mrb[0].mxu0
      %v777 = vadd.f32 0.0, %v776
      %v778 = vpop.f32.mrb[0].mxu0
      %v779 = vpop.f32.mrb[0].mxu0
      %v780 = vadd.f32 0.0, %v779
      %v781 = vpop.f32.mrb[0].mxu0
      %782 = vmatprep.mubr.bf16.mxu0 0
      %783 = vmatmul.mubr.bf16.gmra.mrb[0].mxu0 %v726
      %v784 = vpop.f32.mrb[0].mxu0
      %v785 = vadd.f32 0.0, %v784
      %v786 = vpop.f32.mrb[0].mxu0
      %v787 = vpop.f32.mrb[0].mxu0
      %v788 = vadd.f32 0.0, %v787
      %v789 = vpop.f32.mrb[0].mxu0
      %790 = vmatprep.mubr.bf16.mxu0 0
      %791 = vmatmul.mubr.bf16.gmra.mrb[0].mxu0 %v729
      %v792 = vpop.f32.mrb[0].mxu0
      %v793 = vadd.f32 0.0, %v792
      %v794 = vpop.f32.mrb[0].mxu0
      %v795 = vpop.f32.mrb[0].mxu0
      %v796 = vadd.f32 0.0, %v795
      %v797 = vpop.f32.mrb[0].mxu0
      %798 = vmatprep.mubr.bf16.mxu0 0
      %799 = vmatmul.mubr.bf16.gmra.mrb[0].mxu0 %v732
      %v800 = vpop.f32.mrb[0].mxu0
      %v801 = vadd.f32 0.0, %v800
      %v802 = vpop.f32.mrb[0].mxu0
      %v803 = vpop.f32.mrb[0].mxu0
      %v804 = vadd.f32 0.0, %v803
      %v805 = vpop.f32.mrb[0].mxu0
      %806 = vdwg.mxu0
      %v807 = vadd.f32 %v650, %v769
      %v808 = vadd.f32 %v651, %v772
      %v809 = vadd.f32 %v652, %v777
      %v810 = vadd.f32 %v653, %v780
      %v811 = vadd.f32 %v654, %v785
      %v812 = vadd.f32 %v655, %v788
      %v813 = vadd.f32 %v656, %v793
      %v814 = vadd.f32 %v657, %v796
      %v815 = vadd.f32 %v658, %v801
      %v816 = vadd.f32 %v659, %v804
      %v817 = vld [vmem:[%s244 + $0x2c] sm:$0x3]
      %s818 = scalar_lea.vmem %s248, 32
      %v819 = vld [vmem:[%s818] sm:$0xf]
      %v820 = vld [vmem:[%s818 + $0x4] sm:$0xf]
      %v822 = vunpack.c.l.b16 %v817
      %v823 = vpack.c.b16 %v822, %v822
      %vm824 = vsmask.f32 6400
      %v826 = vshrl.u32 %v696, 16
      %v828 = vrot.slane %v826, 1
      %v829 = vshll.u32 %v696, 16
      %v831 = vrot.slane %v829, 2
      %v832 = vor.u32 %v828, %v831
      %v834 = vshrl.u32 %v697, 16
      %v836 = vrot.slane %v834, 1
      %v837 = vshll.u32 %v697, 16
      %v839 = vrot.slane %v837, 2
      %v840 = vor.u32 %v836, %v839
      %v841 = vsel %vm824, %v832, %v840
      %v843 = vshrl.u32 %v698, 16
      %v845 = vrot.slane %v843, 1
      %v846 = vshll.u32 %v698, 16
      %v848 = vrot.slane %v846, 2
      %v849 = vor.u32 %v845, %v848
      %v850 = vsel %vm824, %v840, %v849
      %v852 = vshrl.u32 %v699, 16
      %v854 = vrot.slane %v852, 1
      %v855 = vshll.u32 %v699, 16
      %v857 = vrot.slane %v855, 2
      %v858 = vor.u32 %v854, %v857
      %v859 = vsel %vm824, %v849, %v858
      %v861 = vshrl.u32 %v700, 16
      %v863 = vrot.slane %v861, 1
      %v864 = vshll.u32 %v700, 16
      %v866 = vrot.slane %v864, 2
      %v867 = vor.u32 %v863, %v866
      %v868 = vsel %vm824, %v858, %v867
      %v870 = vshrl.u32 %v823, 16
      %v872 = vrot.slane %v870, 1
      %v873 = vshll.u32 %v823, 16
      %v875 = vrot.slane %v873, 2
      %v876 = vor.u32 %v872, %v875
      %v877 = vsel %vm824, %v867, %v876
      %v880 = vunpack.c.l.b16 %v819
      %v881 = vunpack.c.l.b16 %v820
      %v882 = vpack.c.b16 %v881, %v880
      %v885 = vsel %vm359, %v841, 0
      %v888 = vsel %vm359, %v850, 0
      %v891 = vsel %vm359, %v859, 0
      %v894 = vsel %vm359, %v868, 0
      %v897 = vsel %vm359, %v877, 0
      %899 = vmatprep.subr.bf16.mxu0 0
      %900 = vmatpush1.bf16.msra.mxu0 %v882
      %901 = vmatprep.subr.bf16.mxu0 0
      %902 = vmatpush1.bf16.msra.mxu0 0
      %903 = vmatprep.subr.bf16.mxu0 0
      %904 = vmatpush1.bf16.msra.mxu0 0
      %905 = vmatprep.subr.bf16.mxu0 0
      %906 = vmatpush1.bf16.msra.mxu0 0
      %907 = vmatprep.subr.bf16.mxu0 0
      %908 = vmatpush1.bf16.msra.mxu0 0
      %909 = vmatprep.subr.bf16.mxu0 0
      %910 = vmatpush1.bf16.msra.mxu0 0
      %911 = vmatprep.subr.bf16.mxu0 0
      %912 = vmatpush1.bf16.msra.mxu0 0
      %913 = vmatprep.subr.bf16.mxu0 0
      %914 = vmatpush1.bf16.msra.mxu0 0
      %915 = vmatprep.subr.bf16.mxu0 0
      %916 = vmatpush1.bf16.msra.mxu0 0
      %917 = vmatprep.subr.bf16.mxu0 0
      %918 = vmatpush1.bf16.msra.mxu0 0
      %919 = vmatprep.subr.bf16.mxu0 0
      %920 = vmatpush1.bf16.msra.mxu0 0
      %921 = vmatprep.subr.bf16.mxu0 0
      %922 = vmatpush1.bf16.msra.mxu0 0
      %923 = vmatprep.subr.bf16.mxu0 0
      %924 = vmatpush1.bf16.msra.mxu0 0
      %925 = vmatprep.subr.bf16.mxu0 0
      %926 = vmatpush1.bf16.msra.mxu0 0
      %927 = vmatprep.subr.bf16.mxu0 0
      %928 = vmatpush1.bf16.msra.mxu0 0
      %929 = vmatprep.subr.bf16.mxu0 0
      %930 = vmatpush1.bf16.msra.mxu0 0
      %931 = vmatprep.mubr.bf16.mxu0 0
      %932 = vmatmul.mubr.bf16.gmra.mrb[0].mxu0 %v885
      %v933 = vpop.f32.mrb[0].mxu0
      %v934 = vadd.f32 0.0, %v933
      %v935 = vpop.f32.mrb[0].mxu0
      %v936 = vpop.f32.mrb[0].mxu0
      %v937 = vadd.f32 0.0, %v936
      %v938 = vpop.f32.mrb[0].mxu0
      %939 = vmatprep.mubr.bf16.mxu0 0
      %940 = vmatmul.mubr.bf16.gmra.mrb[0].mxu0 %v888
      %v941 = vpop.f32.mrb[0].mxu0
      %v942 = vadd.f32 0.0, %v941
      %v943 = vpop.f32.mrb[0].mxu0
      %v944 = vpop.f32.mrb[0].mxu0
      %v945 = vadd.f32 0.0, %v944
      %v946 = vpop.f32.mrb[0].mxu0
      %947 = vmatprep.mubr.bf16.mxu0 0
      %948 = vmatmul.mubr.bf16.gmra.mrb[0].mxu0 %v891
      %v949 = vpop.f32.mrb[0].mxu0
      %v950 = vadd.f32 0.0, %v949
      %v951 = vpop.f32.mrb[0].mxu0
      %v952 = vpop.f32.mrb[0].mxu0
      %v953 = vadd.f32 0.0, %v952
      %v954 = vpop.f32.mrb[0].mxu0
      %955 = vmatprep.mubr.bf16.mxu0 0
      %956 = vmatmul.mubr.bf16.gmra.mrb[0].mxu0 %v894
      %v957 = vpop.f32.mrb[0].mxu0
      %v958 = vadd.f32 0.0, %v957
      %v959 = vpop.f32.mrb[0].mxu0
      %v960 = vpop.f32.mrb[0].mxu0
      %v961 = vadd.f32 0.0, %v960
      %v962 = vpop.f32.mrb[0].mxu0
      %963 = vmatprep.mubr.bf16.mxu0 0
      %964 = vmatmul.mubr.bf16.gmra.mrb[0].mxu0 %v897
      %v965 = vpop.f32.mrb[0].mxu0
      %v966 = vadd.f32 0.0, %v965
      %v967 = vpop.f32.mrb[0].mxu0
      %v968 = vpop.f32.mrb[0].mxu0
      %v969 = vadd.f32 0.0, %v968
      %v970 = vpop.f32.mrb[0].mxu0
      %971 = vdwg.mxu0
      %v972 = vadd.f32 %v807, %v934
      %v973 = vadd.f32 %v808, %v937
      %v974 = vadd.f32 %v809, %v942
      %v975 = vadd.f32 %v810, %v945
      %v976 = vadd.f32 %v811, %v950
      %v977 = vadd.f32 %v812, %v953
      %v978 = vadd.f32 %v813, %v958
      %v979 = vadd.f32 %v814, %v961
      %v980 = vadd.f32 %v815, %v966
      %v981 = vadd.f32 %v816, %v969
      %v982 = vld [vmem:[%s244 + $0x4] sm:$0xc]
      %s983 = scalar_lea.vmem %s248, 40
      %v984 = vld [vmem:[%s983] sm:$0xf]
      %v985 = vld [vmem:[%s983 + $0x4] sm:$0xf]
      %v987 = vunpack.c.l.b16 %v982
      %v988 = vpack.c.b16 %v686, %v987
      %vm989 = vcmask 1045504
      %v990 = vrot.slane %v988, 2
      %v991 = vrot.slane %v697, 2
      %v992 = vsel %vm989, %v990, %v991
      %v993 = vrot.slane %v698, 2
      %v994 = vsel %vm989, %v991, %v993
      %v995 = vrot.slane %v699, 2
      %v996 = vsel %vm989, %v993, %v995
      %v997 = vrot.slane %v700, 2
      %v998 = vsel %vm989, %v995, %v997
      %v999 = vrot.slane %v823, 2
      %v1000 = vsel %vm989, %v997, %v999
      %v1003 = vunpack.c.l.b16 %v984
      %v1004 = vunpack.c.l.b16 %v985
      %v1005 = vpack.c.b16 %v1004, %v1003
      %v1008 = vsel %vm359, %v992, 0
      %v1011 = vsel %vm359, %v994, 0
      %v1014 = vsel %vm359, %v996, 0
      %v1017 = vsel %vm359, %v998, 0
      %v1020 = vsel %vm359, %v1000, 0
      %1022 = vmatprep.subr.bf16.mxu0 0
      %1023 = vmatpush1.bf16.msra.mxu0 %v1005
      %1024 = vmatprep.subr.bf16.mxu0 0
      %1025 = vmatpush1.bf16.msra.mxu0 0
      %1026 = vmatprep.subr.bf16.mxu0 0
      %1027 = vmatpush1.bf16.msra.mxu0 0
      %1028 = vmatprep.subr.bf16.mxu0 0
      %1029 = vmatpush1.bf16.msra.mxu0 0
      %1030 = vmatprep.subr.bf16.mxu0 0
      %1031 = vmatpush1.bf16.msra.mxu0 0
      %1032 = vmatprep.subr.bf16.mxu0 0
      %1033 = vmatpush1.bf16.msra.mxu0 0
      %1034 = vmatprep.subr.bf16.mxu0 0
      %1035 = vmatpush1.bf16.msra.mxu0 0
      %1036 = vmatprep.subr.bf16.mxu0 0
      %1037 = vmatpush1.bf16.msra.mxu0 0
      %1038 = vmatprep.subr.bf16.mxu0 0
      %1039 = vmatpush1.bf16.msra.mxu0 0
      %1040 = vmatprep.subr.bf16.mxu0 0
      %1041 = vmatpush1.bf16.msra.mxu0 0
      %1042 = vmatprep.subr.bf16.mxu0 0
      %1043 = vmatpush1.bf16.msra.mxu0 0
      %1044 = vmatprep.subr.bf16.mxu0 0
      %1045 = vmatpush1.bf16.msra.mxu0 0
      %1046 = vmatprep.subr.bf16.mxu0 0
      %1047 = vmatpush1.bf16.msra.mxu0 0
      %1048 = vmatprep.subr.bf16.mxu0 0
      %1049 = vmatpush1.bf16.msra.mxu0 0
      %1050 = vmatprep.subr.bf16.mxu0 0
      %1051 = vmatpush1.bf16.msra.mxu0 0
      %1052 = vmatprep.subr.bf16.mxu0 0
      %1053 = vmatpush1.bf16.msra.mxu0 0
      %1054 = vmatprep.mubr.bf16.mxu0 0
      %1055 = vmatmul.mubr.bf16.gmra.mrb[0].mxu0 %v1008
      %v1056 = vpop.f32.mrb[0].mxu0
      %v1057 = vadd.f32 0.0, %v1056
      %v1058 = vpop.f32.mrb[0].mxu0
      %v1059 = vpop.f32.mrb[0].mxu0
      %v1060 = vadd.f32 0.0, %v1059
      %v1061 = vpop.f32.mrb[0].mxu0
      %1062 = vmatprep.mubr.bf16.mxu0 0
      %1063 = vmatmul.mubr.bf16.gmra.mrb[0].mxu0 %v1011
      %v1064 = vpop.f32.mrb[0].mxu0
      %v1065 = vadd.f32 0.0, %v1064
      %v1066 = vpop.f32.mrb[0].mxu0
      %v1067 = vpop.f32.mrb[0].mxu0
      %v1068 = vadd.f32 0.0, %v1067
      %v1069 = vpop.f32.mrb[0].mxu0
      %1070 = vmatprep.mubr.bf16.mxu0 0
      %1071 = vmatmul.mubr.bf16.gmra.mrb[0].mxu0 %v1014
      %v1072 = vpop.f32.mrb[0].mxu0
      %v1073 = vadd.f32 0.0, %v1072
      %v1074 = vpop.f32.mrb[0].mxu0
      %v1075 = vpop.f32.mrb[0].mxu0
      %v1076 = vadd.f32 0.0, %v1075
      %v1077 = vpop.f32.mrb[0].mxu0
      %1078 = vmatprep.mubr.bf16.mxu0 0
      %1079 = vmatmul.mubr.bf16.gmra.mrb[0].mxu0 %v1017
      %v1080 = vpop.f32.mrb[0].mxu0
      %v1081 = vadd.f32 0.0, %v1080
      %v1082 = vpop.f32.mrb[0].mxu0
      %v1083 = vpop.f32.mrb[0].mxu0
      %v1084 = vadd.f32 0.0, %v1083
      %v1085 = vpop.f32.mrb[0].mxu0
      %1086 = vmatprep.mubr.bf16.mxu0 0
      %1087 = vmatmul.mubr.bf16.gmra.mrb[0].mxu0 %v1020
      %v1088 = vpop.f32.mrb[0].mxu0
      %v1089 = vadd.f32 0.0, %v1088
      %v1090 = vpop.f32.mrb[0].mxu0
      %v1091 = vpop.f32.mrb[0].mxu0
      %v1092 = vadd.f32 0.0, %v1091
      %v1093 = vpop.f32.mrb[0].mxu0
      %1094 = vdwg.mxu0
      %v1095 = vadd.f32 %v972, %v1057
      %v1096 = vadd.f32 %v973, %v1060
      %v1097 = vadd.f32 %v974, %v1065
      %v1098 = vadd.f32 %v975, %v1068
      %v1099 = vadd.f32 %v976, %v1073
      %v1100 = vadd.f32 %v977, %v1076
      %v1101 = vadd.f32 %v978, %v1081
      %v1102 = vadd.f32 %v979, %v1084
      %v1103 = vadd.f32 %v980, %v1089
      %v1104 = vadd.f32 %v981, %v1092
      %v1105 = vld [vmem:[%s244 + $0x8] sm:$0xc]
      %v1106 = vld [vmem:[%s244 + $0xc] sm:$0xf]
      %v1107 = vld [vmem:[%s244 + $0x10] sm:$0xf]
      %v1108 = vld [vmem:[%s244 + $0x14] sm:$0xf]
      %v1109 = vld [vmem:[%s244 + $0x18] sm:$0xf]
      %v1110 = vld [vmem:[%s244 + $0x1c] sm:$0xf]
      %v1111 = vld [vmem:[%s244 + $0x20] sm:$0xf]
      %v1112 = vld [vmem:[%s244 + $0x24] sm:$0xf]
      %v1113 = vld [vmem:[%s244 + $0x28] sm:$0xf]
      %v1114 = vld [vmem:[%s244 + $0x2c] sm:$0xf]
      %v1115 = vld [vmem:[%s244 + $0x30] sm:$0x3]
      %s1116 = scalar_lea.vmem %s248, 48
      %v1117 = vld [vmem:[%s1116] sm:$0xf]
      %v1118 = vld [vmem:[%s1116 + $0x4] sm:$0xf]
      %v1130 = vunpack.c.l.b16 %v1105
      %v1131 = vunpack.c.l.b16 %v1106
      %v1132 = vunpack.c.l.b16 %v1107
      %v1133 = vunpack.c.l.b16 %v1108
      %v1134 = vunpack.c.l.b16 %v1109
      %v1135 = vunpack.c.l.b16 %v1110
      %v1136 = vunpack.c.l.b16 %v1111
      %v1137 = vunpack.c.l.b16 %v1112
      %v1138 = vunpack.c.l.b16 %v1113
      %v1139 = vunpack.c.l.b16 %v1114
      %v1140 = vunpack.c.l.b16 %v1115
      %v1141 = vpack.c.b16 %v1131, %v1130
      %v1142 = vpack.c.b16 %v1133, %v1132
      %v1143 = vpack.c.b16 %v1135, %v1134
      %v1144 = vpack.c.b16 %v1137, %v1136
      %v1145 = vpack.c.b16 %v1139, %v1138
      %v1146 = vpack.c.b16 %v1140, %v1140
      %v1147 = vrot.slane %v1141, 2
      %v1148 = vrot.slane %v1142, 2
      %v1149 = vsel %vm989, %v1147, %v1148
      %v1150 = vrot.slane %v1143, 2
      %v1151 = vsel %vm989, %v1148, %v1150
      %v1152 = vrot.slane %v1144, 2
      %v1153 = vsel %vm989, %v1150, %v1152
      %v1154 = vrot.slane %v1145, 2
      %v1155 = vsel %vm989, %v1152, %v1154
      %v1156 = vrot.slane %v1146, 2
      %v1157 = vsel %vm989, %v1154, %v1156
      %v1160 = vunpack.c.l.b16 %v1117
      %v1161 = vunpack.c.l.b16 %v1118
      %v1162 = vpack.c.b16 %v1161, %v1160
      %v1165 = vsel %vm359, %v1149, 0
      %v1168 = vsel %vm359, %v1151, 0
      %v1171 = vsel %vm359, %v1153, 0
      %v1174 = vsel %vm359, %v1155, 0
      %v1177 = vsel %vm359, %v1157, 0
      %1179 = vmatprep.subr.bf16.mxu0 0
      %1180 = vmatpush1.bf16.msra.mxu0 %v1162
      %1181 = vmatprep.subr.bf16.mxu0 0
      %1182 = vmatpush1.bf16.msra.mxu0 0
      %1183 = vmatprep.subr.bf16.mxu0 0
      %1184 = vmatpush1.bf16.msra.mxu0 0
      %1185 = vmatprep.subr.bf16.mxu0 0
      %1186 = vmatpush1.bf16.msra.mxu0 0
      %1187 = vmatprep.subr.bf16.mxu0 0
      %1188 = vmatpush1.bf16.msra.mxu0 0
      %1189 = vmatprep.subr.bf16.mxu0 0
      %1190 = vmatpush1.bf16.msra.mxu0 0
      %1191 = vmatprep.subr.bf16.mxu0 0
      %1192 = vmatpush1.bf16.msra.mxu0 0
      %1193 = vmatprep.subr.bf16.mxu0 0
      %1194 = vmatpush1.bf16.msra.mxu0 0
      %1195 = vmatprep.subr.bf16.mxu0 0
      %1196 = vmatpush1.bf16.msra.mxu0 0
      %1197 = vmatprep.subr.bf16.mxu0 0
      %1198 = vmatpush1.bf16.msra.mxu0 0
      %1199 = vmatprep.subr.bf16.mxu0 0
      %1200 = vmatpush1.bf16.msra.mxu0 0
      %1201 = vmatprep.subr.bf16.mxu0 0
      %1202 = vmatpush1.bf16.msra.mxu0 0
      %1203 = vmatprep.subr.bf16.mxu0 0
      %1204 = vmatpush1.bf16.msra.mxu0 0
      %1205 = vmatprep.subr.bf16.mxu0 0
      %1206 = vmatpush1.bf16.msra.mxu0 0
      %1207 = vmatprep.subr.bf16.mxu0 0
      %1208 = vmatpush1.bf16.msra.mxu0 0
      %1209 = vmatprep.subr.bf16.mxu0 0
      %1210 = vmatpush1.bf16.msra.mxu0 0
      %1211 = vmatprep.mubr.bf16.mxu0 0
      %1212 = vmatmul.mubr.bf16.gmra.mrb[0].mxu0 %v1165
      %v1213 = vpop.f32.mrb[0].mxu0
      %v1214 = vadd.f32 0.0, %v1213
      %v1215 = vpop.f32.mrb[0].mxu0
      %v1216 = vpop.f32.mrb[0].mxu0
      %v1217 = vadd.f32 0.0, %v1216
      %v1218 = vpop.f32.mrb[0].mxu0
      %1219 = vmatprep.mubr.bf16.mxu0 0
      %1220 = vmatmul.mubr.bf16.gmra.mrb[0].mxu0 %v1168
      %v1221 = vpop.f32.mrb[0].mxu0
      %v1222 = vadd.f32 0.0, %v1221
      %v1223 = vpop.f32.mrb[0].mxu0
      %v1224 = vpop.f32.mrb[0].mxu0
      %v1225 = vadd.f32 0.0, %v1224
      %v1226 = vpop.f32.mrb[0].mxu0
      %1227 = vmatprep.mubr.bf16.mxu0 0
      %1228 = vmatmul.mubr.bf16.gmra.mrb[0].mxu0 %v1171
      %v1229 = vpop.f32.mrb[0].mxu0
      %v1230 = vadd.f32 0.0, %v1229
      %v1231 = vpop.f32.mrb[0].mxu0
      %v1232 = vpop.f32.mrb[0].mxu0
      %v1233 = vadd.f32 0.0, %v1232
      %v1234 = vpop.f32.mrb[0].mxu0
      %1235 = vmatprep.mubr.bf16.mxu0 0
      %1236 = vmatmul.mubr.bf16.gmra.mrb[0].mxu0 %v1174
      %v1237 = vpop.f32.mrb[0].mxu0
      %v1238 = vadd.f32 0.0, %v1237
      %v1239 = vpop.f32.mrb[0].mxu0
      %v1240 = vpop.f32.mrb[0].mxu0
      %v1241 = vadd.f32 0.0, %v1240
      %v1242 = vpop.f32.mrb[0].mxu0
      %1243 = vmatprep.mubr.bf16.mxu0 0
      %1244 = vmatmul.mubr.bf16.gmra.mrb[0].mxu0 %v1177
      %v1245 = vpop.f32.mrb[0].mxu0
      %v1246 = vadd.f32 0.0, %v1245
      %v1247 = vpop.f32.mrb[0].mxu0
      %v1248 = vpop.f32.mrb[0].mxu0
      %v1249 = vadd.f32 0.0, %v1248
      %v1250 = vpop.f32.mrb[0].mxu0
      %1251 = vdwg.mxu0
      %v1252 = vadd.f32 %v1095, %v1214
      %v1253 = vadd.f32 %v1096, %v1217
      %v1254 = vadd.f32 %v1097, %v1222
      %v1255 = vadd.f32 %v1098, %v1225
      %v1256 = vadd.f32 %v1099, %v1230
      %v1257 = vadd.f32 %v1100, %v1233
      %v1258 = vadd.f32 %v1101, %v1238
      %v1259 = vadd.f32 %v1102, %v1241
      %v1260 = vadd.f32 %v1103, %v1246
      %v1261 = vadd.f32 %v1104, %v1249
      %v1262 = vld [vmem:[%s244 + $0x30] sm:$0x7]
      %s1263 = scalar_lea.vmem %s248, 56
      %v1264 = vld [vmem:[%s1263] sm:$0xf]
      %v1265 = vld [vmem:[%s1263 + $0x4] sm:$0xf]
      %v1267 = vunpack.c.l.b16 %v1262
      %v1268 = vpack.c.b16 %v1267, %v1267
      %vm1269 = vsmask.f32 5376
      %v1271 = vshrl.u32 %v1141, 16
      %v1273 = vrot.slane %v1271, 2
      %v1274 = vshll.u32 %v1141, 16
      %v1276 = vrot.slane %v1274, 3
      %v1277 = vor.u32 %v1273, %v1276
      %v1279 = vshrl.u32 %v1142, 16
      %v1281 = vrot.slane %v1279, 2
      %v1282 = vshll.u32 %v1142, 16
      %v1284 = vrot.slane %v1282, 3
      %v1285 = vor.u32 %v1281, %v1284
      %v1286 = vsel %vm1269, %v1277, %v1285
      %v1288 = vshrl.u32 %v1143, 16
      %v1290 = vrot.slane %v1288, 2
      %v1291 = vshll.u32 %v1143, 16
      %v1293 = vrot.slane %v1291, 3
      %v1294 = vor.u32 %v1290, %v1293
      %v1295 = vsel %vm1269, %v1285, %v1294
      %v1297 = vshrl.u32 %v1144, 16
      %v1299 = vrot.slane %v1297, 2
      %v1300 = vshll.u32 %v1144, 16
      %v1302 = vrot.slane %v1300, 3
      %v1303 = vor.u32 %v1299, %v1302
      %v1304 = vsel %vm1269, %v1294, %v1303
      %v1306 = vshrl.u32 %v1145, 16
      %v1308 = vrot.slane %v1306, 2
      %v1309 = vshll.u32 %v1145, 16
      %v1311 = vrot.slane %v1309, 3
      %v1312 = vor.u32 %v1308, %v1311
      %v1313 = vsel %vm1269, %v1303, %v1312
      %v1315 = vshrl.u32 %v1268, 16
      %v1317 = vrot.slane %v1315, 2
      %v1318 = vshll.u32 %v1268, 16
      %v1320 = vrot.slane %v1318, 3
      %v1321 = vor.u32 %v1317, %v1320
      %v1322 = vsel %vm1269, %v1312, %v1321
      %v1325 = vunpack.c.l.b16 %v1264
      %v1326 = vunpack.c.l.b16 %v1265
      %v1327 = vpack.c.b16 %v1326, %v1325
      %v1330 = vsel %vm359, %v1286, 0
      %v1333 = vsel %vm359, %v1295, 0
      %v1336 = vsel %vm359, %v1304, 0
      %v1339 = vsel %vm359, %v1313, 0
      %v1342 = vsel %vm359, %v1322, 0
      %1344 = vmatprep.subr.bf16.mxu0 0
      %1345 = vmatpush1.bf16.msra.mxu0 %v1327
      %1346 = vmatprep.subr.bf16.mxu0 0
      %1347 = vmatpush1.bf16.msra.mxu0 0
      %1348 = vmatprep.subr.bf16.mxu0 0
      %1349 = vmatpush1.bf16.msra.mxu0 0
      %1350 = vmatprep.subr.bf16.mxu0 0
      %1351 = vmatpush1.bf16.msra.mxu0 0
      %1352 = vmatprep.subr.bf16.mxu0 0
      %1353 = vmatpush1.bf16.msra.mxu0 0
      %1354 = vmatprep.subr.bf16.mxu0 0
      %1355 = vmatpush1.bf16.msra.mxu0 0
      %1356 = vmatprep.subr.bf16.mxu0 0
      %1357 = vmatpush1.bf16.msra.mxu0 0
      %1358 = vmatprep.subr.bf16.mxu0 0
      %1359 = vmatpush1.bf16.msra.mxu0 0
      %1360 = vmatprep.subr.bf16.mxu0 0
      %1361 = vmatpush1.bf16.msra.mxu0 0
      %1362 = vmatprep.subr.bf16.mxu0 0
      %1363 = vmatpush1.bf16.msra.mxu0 0
      %1364 = vmatprep.subr.bf16.mxu0 0
      %1365 = vmatpush1.bf16.msra.mxu0 0
      %1366 = vmatprep.subr.bf16.mxu0 0
      %1367 = vmatpush1.bf16.msra.mxu0 0
      %1368 = vmatprep.subr.bf16.mxu0 0
      %1369 = vmatpush1.bf16.msra.mxu0 0
      %1370 = vmatprep.subr.bf16.mxu0 0
      %1371 = vmatpush1.bf16.msra.mxu0 0
      %1372 = vmatprep.subr.bf16.mxu0 0
      %1373 = vmatpush1.bf16.msra.mxu0 0
      %1374 = vmatprep.subr.bf16.mxu0 0
      %1375 = vmatpush1.bf16.msra.mxu0 0
      %1376 = vmatprep.mubr.bf16.mxu0 0
      %1377 = vmatmul.mubr.bf16.gmra.mrb[0].mxu0 %v1330
      %v1378 = vpop.f32.mrb[0].mxu0
      %v1379 = vadd.f32 0.0, %v1378
      %v1380 = vpop.f32.mrb[0].mxu0
      %v1381 = vpop.f32.mrb[0].mxu0
      %v1382 = vadd.f32 0.0, %v1381
      %v1383 = vpop.f32.mrb[0].mxu0
      %1384 = vmatprep.mubr.bf16.mxu0 0
      %1385 = vmatmul.mubr.bf16.gmra.mrb[0].mxu0 %v1333
      %v1386 = vpop.f32.mrb[0].mxu0
      %v1387 = vadd.f32 0.0, %v1386
      %v1388 = vpop.f32.mrb[0].mxu0
      %v1389 = vpop.f32.mrb[0].mxu0
      %v1390 = vadd.f32 0.0, %v1389
      %v1391 = vpop.f32.mrb[0].mxu0
      %1392 = vmatprep.mubr.bf16.mxu0 0
      %1393 = vmatmul.mubr.bf16.gmra.mrb[0].mxu0 %v1336
      %v1394 = vpop.f32.mrb[0].mxu0
      %v1395 = vadd.f32 0.0, %v1394
      %v1396 = vpop.f32.mrb[0].mxu0
      %v1397 = vpop.f32.mrb[0].mxu0
      %v1398 = vadd.f32 0.0, %v1397
      %v1399 = vpop.f32.mrb[0].mxu0
      %1400 = vmatprep.mubr.bf16.mxu0 0
      %1401 = vmatmul.mubr.bf16.gmra.mrb[0].mxu0 %v1339
      %v1402 = vpop.f32.mrb[0].mxu0
      %v1403 = vadd.f32 0.0, %v1402
      %v1404 = vpop.f32.mrb[0].mxu0
      %v1405 = vpop.f32.mrb[0].mxu0
      %v1406 = vadd.f32 0.0, %v1405
      %v1407 = vpop.f32.mrb[0].mxu0
      %1408 = vmatprep.mubr.bf16.mxu0 0
      %1409 = vmatmul.mubr.bf16.gmra.mrb[0].mxu0 %v1342
      %v1410 = vpop.f32.mrb[0].mxu0
      %v1411 = vadd.f32 0.0, %v1410
      %v1412 = vpop.f32.mrb[0].mxu0
      %v1413 = vpop.f32.mrb[0].mxu0
      %v1414 = vadd.f32 0.0, %v1413
      %v1415 = vpop.f32.mrb[0].mxu0
      %1416 = vdwg.mxu0
      %v1417 = vadd.f32 %v1252, %v1379
      %v1418 = vadd.f32 %v1253, %v1382
      %v1419 = vadd.f32 %v1254, %v1387
      %v1420 = vadd.f32 %v1255, %v1390
      %v1421 = vadd.f32 %v1256, %v1395
      %v1422 = vadd.f32 %v1257, %v1398
      %v1423 = vadd.f32 %v1258, %v1403
      %v1424 = vadd.f32 %v1259, %v1406
      %v1425 = vadd.f32 %v1260, %v1411
      %v1426 = vadd.f32 %v1261, %v1414
      %v1427 = vld [vmem:[%s244 + $0x8] sm:$0x8]
      %s1428 = scalar_lea.vmem %s248, 64
      %v1429 = vld [vmem:[%s1428] sm:$0xf]
      %v1430 = vld [vmem:[%s1428 + $0x4] sm:$0xf]
      %v1432 = vunpack.c.l.b16 %v1427
      %v1433 = vpack.c.b16 %v1131, %v1432
      %vm1434 = vcmask 1044480
      %v1435 = vrot.slane %v1433, 3
      %v1436 = vrot.slane %v1142, 3
      %v1437 = vsel %vm1434, %v1435, %v1436
      %v1438 = vrot.slane %v1143, 3
      %v1439 = vsel %vm1434, %v1436, %v1438
      %v1440 = vrot.slane %v1144, 3
      %v1441 = vsel %vm1434, %v1438, %v1440
      %v1442 = vrot.slane %v1145, 3
      %v1443 = vsel %vm1434, %v1440, %v1442
      %v1444 = vrot.slane %v1268, 3
      %v1445 = vsel %vm1434, %v1442, %v1444
      %v1448 = vunpack.c.l.b16 %v1429
      %v1449 = vunpack.c.l.b16 %v1430
      %v1450 = vpack.c.b16 %v1449, %v1448
      %v1453 = vsel %vm359, %v1437, 0
      %v1456 = vsel %vm359, %v1439, 0
      %v1459 = vsel %vm359, %v1441, 0
      %v1462 = vsel %vm359, %v1443, 0
      %v1465 = vsel %vm359, %v1445, 0
      %1467 = vmatprep.subr.bf16.mxu0 0
      %1468 = vmatpush1.bf16.msra.mxu0 %v1450
      %1469 = vmatprep.subr.bf16.mxu0 0
      %1470 = vmatpush1.bf16.msra.mxu0 0
      %1471 = vmatprep.subr.bf16.mxu0 0
      %1472 = vmatpush1.bf16.msra.mxu0 0
      %1473 = vmatprep.subr.bf16.mxu0 0
      %1474 = vmatpush1.bf16.msra.mxu0 0
      %1475 = vmatprep.subr.bf16.mxu0 0
      %1476 = vmatpush1.bf16.msra.mxu0 0
      %1477 = vmatprep.subr.bf16.mxu0 0
      %1478 = vmatpush1.bf16.msra.mxu0 0
      %1479 = vmatprep.subr.bf16.mxu0 0
      %1480 = vmatpush1.bf16.msra.mxu0 0
      %1481 = vmatprep.subr.bf16.mxu0 0
      %1482 = vmatpush1.bf16.msra.mxu0 0
      %1483 = vmatprep.subr.bf16.mxu0 0
      %1484 = vmatpush1.bf16.msra.mxu0 0
      %1485 = vmatprep.subr.bf16.mxu0 0
      %1486 = vmatpush1.bf16.msra.mxu0 0
      %1487 = vmatprep.subr.bf16.mxu0 0
      %1488 = vmatpush1.bf16.msra.mxu0 0
      %1489 = vmatprep.subr.bf16.mxu0 0
      %1490 = vmatpush1.bf16.msra.mxu0 0
      %1491 = vmatprep.subr.bf16.mxu0 0
      %1492 = vmatpush1.bf16.msra.mxu0 0
      %1493 = vmatprep.subr.bf16.mxu0 0
      %1494 = vmatpush1.bf16.msra.mxu0 0
      %1495 = vmatprep.subr.bf16.mxu0 0
      %1496 = vmatpush1.bf16.msra.mxu0 0
      %1497 = vmatprep.subr.bf16.mxu0 0
      %1498 = vmatpush1.bf16.msra.mxu0 0
      %1499 = vmatprep.mubr.bf16.mxu0 0
      %1500 = vmatmul.mubr.bf16.gmra.mrb[0].mxu0 %v1453
      %v1501 = vpop.f32.mrb[0].mxu0
      %v1502 = vadd.f32 0.0, %v1501
      %v1503 = vpop.f32.mrb[0].mxu0
      %v1504 = vpop.f32.mrb[0].mxu0
      %v1505 = vadd.f32 0.0, %v1504
      %v1506 = vpop.f32.mrb[0].mxu0
      %1507 = vmatprep.mubr.bf16.mxu0 0
      %1508 = vmatmul.mubr.bf16.gmra.mrb[0].mxu0 %v1456
      %v1509 = vpop.f32.mrb[0].mxu0
      %v1510 = vadd.f32 0.0, %v1509
      %v1511 = vpop.f32.mrb[0].mxu0
      %v1512 = vpop.f32.mrb[0].mxu0
      %v1513 = vadd.f32 0.0, %v1512
      %v1514 = vpop.f32.mrb[0].mxu0
      %1515 = vmatprep.mubr.bf16.mxu0 0
      %1516 = vmatmul.mubr.bf16.gmra.mrb[0].mxu0 %v1459
      %v1517 = vpop.f32.mrb[0].mxu0
      %v1518 = vadd.f32 0.0, %v1517
      %v1519 = vpop.f32.mrb[0].mxu0
      %v1520 = vpop.f32.mrb[0].mxu0
      %v1521 = vadd.f32 0.0, %v1520
      %v1522 = vpop.f32.mrb[0].mxu0
      %1523 = vmatprep.mubr.bf16.mxu0 0
      %1524 = vmatmul.mubr.bf16.gmra.mrb[0].mxu0 %v1462
      %v1525 = vpop.f32.mrb[0].mxu0
      %v1526 = vadd.f32 0.0, %v1525
      %v1527 = vpop.f32.mrb[0].mxu0
      %v1528 = vpop.f32.mrb[0].mxu0
      %v1529 = vadd.f32 0.0, %v1528
      %v1530 = vpop.f32.mrb[0].mxu0
      %1531 = vmatprep.mubr.bf16.mxu0 0
      %1532 = vmatmul.mubr.bf16.gmra.mrb[0].mxu0 %v1465
      %v1533 = vpop.f32.mrb[0].mxu0
      %v1534 = vadd.f32 0.0, %v1533
      %v1535 = vpop.f32.mrb[0].mxu0
      %v1536 = vpop.f32.mrb[0].mxu0
      %v1537 = vadd.f32 0.0, %v1536
      %v1538 = vpop.f32.mrb[0].mxu0
      %1539 = vdwg.mxu0
      %v1540 = vadd.f32 %v1417, %v1502
      %v1541 = vadd.f32 %v1418, %v1505
      %v1542 = vadd.f32 %v1419, %v1510
      %v1543 = vadd.f32 %v1420, %v1513
      %v1544 = vadd.f32 %v1421, %v1518
      %v1545 = vadd.f32 %v1422, %v1521
      %v1546 = vadd.f32 %v1423, %v1526
      %v1547 = vadd.f32 %v1424, %v1529
      %v1548 = vadd.f32 %v1425, %v1534
      %v1549 = vadd.f32 %v1426, %v1537
      %v1550 = vld [vmem:[%s251] sm:$0x1]
      %v1552 = vlaneseq
      %v1553 = vshrl.u32 %v1552, 7
      %v1554 = vsub.s32 0, %v1553
      %v1555 = vrot.slane %v1550, %v1554
      %v1557 = vmul.f32 %v1540, %v1555
      %v1558 = vmul.f32 %v1541, %v1555
      %v1559 = vmul.f32 %v1542, %v1555
      %v1560 = vmul.f32 %v1543, %v1555
      %v1561 = vmul.f32 %v1544, %v1555
      %v1562 = vmul.f32 %v1545, %v1555
      %v1563 = vmul.f32 %v1546, %v1555
      %v1564 = vmul.f32 %v1547, %v1555
      %v1565 = vmul.f32 %v1548, %v1555
      %v1566 = vmul.f32 %v1549, %v1555
      %v1567 = vld [vmem:[%s254] sm:$0x1]
      %v1569 = vlaneseq
      %v1570 = vshrl.u32 %v1569, 7
      %v1571 = vsub.s32 0, %v1570
      %v1572 = vrot.slane %v1567, %v1571
      %v1574 = vadd.f32 %v1557, %v1572
      %v1575 = vadd.f32 %v1558, %v1572
      %v1576 = vadd.f32 %v1559, %v1572
      %v1577 = vadd.f32 %v1560, %v1572
      %v1578 = vadd.f32 %v1561, %v1572
      %v1579 = vadd.f32 %v1562, %v1572
      %v1580 = vadd.f32 %v1563, %v1572
      %v1581 = vadd.f32 %v1564, %v1572
      %v1582 = vadd.f32 %v1565, %v1572
      %v1583 = vadd.f32 %v1566, %v1572
      %v1584 = vmax.f32 %v1574, 0.0
      %v1585 = vmax.f32 %v1575, 0.0
      %v1586 = vmax.f32 %v1576, 0.0
      %v1587 = vmax.f32 %v1577, 0.0
      %v1588 = vmax.f32 %v1578, 0.0
      %v1589 = vmax.f32 %v1579, 0.0
      %v1590 = vmax.f32 %v1580, 0.0
      %v1591 = vmax.f32 %v1581, 0.0
      %v1592 = vmax.f32 %v1582, 0.0
      %v1593 = vmax.f32 %v1583, 0.0
      %1594 = vst.msk [vmem:[%s262] sm:$0xff] %vm359, %v1584
      %1595 = vst.msk [vmem:[%s262 + $0x8] sm:$0xff] %vm359, %v1585
      %1596 = vst.msk [vmem:[%s262 + $0x10] sm:$0xff] %vm359, %v1586
      %1597 = vst.msk [vmem:[%s262 + $0x18] sm:$0xff] %vm359, %v1587
      %1598 = vst.msk [vmem:[%s262 + $0x20] sm:$0xff] %vm359, %v1588
      %1599 = vst.msk [vmem:[%s262 + $0x28] sm:$0xff] %vm359, %v1589
      %1600 = vst.msk [vmem:[%s262 + $0x30] sm:$0xff] %vm359, %v1590
      %1601 = vst.msk [vmem:[%s262 + $0x38] sm:$0xff] %vm359, %v1591
      %1602 = vst.msk [vmem:[%s262 + $0x40] sm:$0xff] %vm359, %v1592
      %1603 = vst.msk [vmem:[%s262 + $0x48] sm:$0xff] %vm359, %v1593
      %p1604 = scmp.lt.s32.totalorder %s19, 1
      %s1605 = scalar_select %p1604, %s19, 1
      %p1606 = scmp.lt.s32.totalorder %s20, 0
      %s1607 = scalar_select %p1606, %s20, 0
      %s1608 = smul.addr %s1605, 10
      %s1609 = sadd.s32 %s1607, %s1608
      %s1610 = smul.addr %s1609, 8
      %s1611 = scalar_lea.vmem %s4, %s1610
      // Predicated region
      $region37: #{network_block_forward.10} parent=35 // pred_check
        %p1612 = pneg %p151
      $region38: #{network_block_forward.10} parent=35 // pred_check_branch
        %1614 = sbr.rel (%p1612) target = $region40
      $region39: #{network_block_forward.10} parent=35 // pred_region
        _
      $region40: #{network_block_forward.10} parent=35 // pred_fallthru
        _
    $region36: #{network_block_forward.10} parent=5 // pred_fallthru
      _
    %p1615 = scmp.le.s32.totalorder 2, %s10
    // Predicated region
    $region41: #{network_block_forward.10} parent=5 // pred_check
      %p1616 = pneg %p1615
    $region42: #{network_block_forward.10} parent=5 // pred_check_branch
      %1618 = sbr.rel (%p1616) target = $region44
    $region43: #{network_block_forward.10} parent=5 // pred_region
      %s1619 = ssub.s32 %s10, 2
      // Predicated region
      $region45: #{network_block_forward.10} parent=43 // pred_check
        %p1620 = pneg %p157
      $region46: #{network_block_forward.10} parent=43 // pred_check_branch
        %1622 = sbr.rel (%p1620) target = $region48
      $region47: #{network_block_forward.10} parent=43 // pred_region
        %p1623 = scmp.lt.s32.totalorder %s21, 1
        %s1624 = scalar_select %p1623, %s21, 1
        %p1625 = scmp.lt.s32.totalorder %s22, 0
        %s1626 = scalar_select %p1625, %s22, 0
        %s1627 = smul.addr %s1624, 10
        %s1628 = sadd.s32 %s1626, %s1627
        %s1629 = smul.addr %s1628, 8
        %s1630 = scalar_lea.vmem %s4, %s1629
      $region48: #{network_block_forward.10} parent=43 // pred_fallthru
        _
    $region44: #{network_block_forward.10} parent=5 // pred_fallthru
      _
  $region6: #{network_block_forward.10} parent=0 // loop_footer
    %s14 = sadd.s32 1, %s10
  $region7: #{network_block_forward.10} parent=0 // loop_footer_branch
    %9 = sbr.rel target = $region3
  $region8: #{network_block_forward.10} parent=0 // loop_exit
    _

// kernel: network_block_forward.11
$region0: #{network_block_forward.11}
  #allocation0 [shape = 'u32[]', space=smem, size = 0x4, offset = 0x4, fixed_abs, tag = 'smem constant byte address 0x4 - core index']
  #allocation1 [shape = 'u32[144,128]{1,0:T(1,128)}', space=vmem, size = 0x12000, scoped, tag = 'internal scratch']
  %s0 = inlined_call_operand.vmem [shape: bf16[2,104,16], index: 0, kind: input, shape index: {}]
  %s1 = inlined_call_operand.vmem [shape: bf16[9,16,16], index: 1, kind: input, shape index: {}]
  %s2 = inlined_call_operand.vmem [shape: f32[2,80,16], index: 2, kind: input, shape index: {}]
  %s3 = inlined_call_operand.vmem [shape: f32[2,80,16], index: 3, kind: output, shape index: {}]
  %s4 = sld [smem:[#allocation0]]
  $region45: #{network_block_forward.11} parent=0
    _
  %s6 = ssub.s32 1, %s4
  %s7 = scalar_select 0, %s6, %s4
  loop: start=0, step=1, limit=4
  $region2: #{network_block_forward.11} parent=0 // loop_pre_header
    _
  $region3: #{network_block_forward.11} parent=0 // loop_header
    %s9 = sphi 0, %s13
    %p10 = scmp.ge.s32.totalorder %s9, 4
    %s16 = sphi 0, %s28
    %s17 = sphi 0, %s24
    %s18 = sphi 0, %s16
    %s19 = sphi 0, %s17
    %s20 = sphi 0, %s18
    %s21 = sphi 0, %s19
    %s31 = sphi 0, %s33
    %s34 = sphi 0, %s31
    %s35 = sphi 0, %s34
    %s51 = sphi 0, %s35
    %s57 = sphi 0, %s59
    %s60 = sphi 0, %s57
    %s61 = sphi 0, %s60
    %s77 = sphi 0, %s61
    %s85 = sphi 0, %s87
    %s88 = sphi 0, %s85
    %s89 = sphi 0, %s88
    %s105 = sphi 0, %s89
    %s113 = sphi 0, %s115
    %s116 = sphi 0, %s113
    %s117 = sphi 0, %s116
    %s133 = sphi 0, %s117
  $region4: #{network_block_forward.11} parent=0 // loop_header_branch
    %12 = sbr.rel (%p10) target = $region8
  $region5: #{network_block_forward.11} parent=0 // loop_body
    %s14 = ssub.s32 %s9, 1
    %s15 = ssub.s32 %s9, 2
    %s22 = sadd.s32 1, %s17
    %p23 = scmp.ge.s32.totalorder %s22, 1
    %s24 = scalar_select %p23, 0, %s22
    %s25 = sadd.s32 1, %s16
    %s26 = scalar_select %p23, %s25, %s16
    %p27 = scmp.ge.s32.totalorder %s26, 2
    %s28 = scalar_select %p27, 0, %s26
    %s29 = ssub.s32 %s16, %s28
    %p30 = scmp.eq.s32.totalorder %s29, 0
    %s32 = sadd.s32 %s31, 1
    %s33 = scalar_select %p30, %s31, %s32
    %p36 = pneg %p30
    %p37 = scmp.eq.s32.totalorder %s9, 1
    %p38 = por %p36, %p37
    %p39 = scmp.ne.s32.totalorder %s31, %s34
    %p40 = scmp.eq.s32.totalorder %s9, 0
    %p41 = por %p39, %p40
    %p42 = scmp.ne.s32.totalorder %s31, %s34
    %p43 = scmp.eq.s32.totalorder %s14, 1
    %p44 = por %p42, %p43
    %p45 = scmp.ne.s32.totalorder %s34, %s35
    %p46 = scmp.eq.s32.totalorder %s14, 0
    %p47 = por %p45, %p46
    %p48 = scmp.ne.s32.totalorder %s34, %s35
    %p49 = scmp.eq.s32.totalorder %s15, 1
    %p50 = por %p48, %p49
    %p52 = scmp.ne.s32.totalorder %s35, %s51
    %p53 = scmp.eq.s32.totalorder %s15, 0
    %p54 = por %p52, %p53
    %s55 = ssub.s32 %s17, %s24
    %p56 = scmp.eq.s32.totalorder %s55, 0
    %s58 = sadd.s32 %s57, 1
    %s59 = scalar_select %p56, %s57, %s58
    %p62 = pneg %p56
    %p63 = scmp.eq.s32.totalorder %s9, 1
    %p64 = por %p62, %p63
    %p65 = scmp.ne.s32.totalorder %s57, %s60
    %p66 = scmp.eq.s32.totalorder %s9, 0
    %p67 = por %p65, %p66
    %p68 = scmp.ne.s32.totalorder %s57, %s60
    %p69 = scmp.eq.s32.totalorder %s14, 1
    %p70 = por %p68, %p69
    %p71 = scmp.ne.s32.totalorder %s60, %s61
    %p72 = scmp.eq.s32.totalorder %s14, 0
    %p73 = por %p71, %p72
    %p74 = scmp.ne.s32.totalorder %s60, %s61
    %p75 = scmp.eq.s32.totalorder %s15, 1
    %p76 = por %p74, %p75
    %p78 = scmp.ne.s32.totalorder %s61, %s77
    %p79 = scmp.eq.s32.totalorder %s15, 0
    %p80 = por %p78, %p79
    %s81 = ssub.s32 %s16, %s28
    %s82 = ssub.s32 %s17, %s24
    %s83 = sor.u32 %s81, %s82
    %p84 = scmp.eq.s32.totalorder %s83, 0
    %s86 = sadd.s32 %s85, 1
    %s87 = scalar_select %p84, %s85, %s86
    %p90 = pneg %p84
    %p91 = scmp.eq.s32.totalorder %s9, 1
    %p92 = por %p90, %p91
    %p93 = scmp.ne.s32.totalorder %s85, %s88
    %p94 = scmp.eq.s32.totalorder %s9, 0
    %p95 = por %p93, %p94
    %p96 = scmp.ne.s32.totalorder %s85, %s88
    %p97 = scmp.eq.s32.totalorder %s14, 1
    %p98 = por %p96, %p97
    %p99 = scmp.ne.s32.totalorder %s88, %s89
    %p100 = scmp.eq.s32.totalorder %s14, 0
    %p101 = por %p99, %p100
    %p102 = scmp.ne.s32.totalorder %s88, %s89
    %p103 = scmp.eq.s32.totalorder %s15, 1
    %p104 = por %p102, %p103
    %p106 = scmp.ne.s32.totalorder %s89, %s105
    %p107 = scmp.eq.s32.totalorder %s15, 0
    %p108 = por %p106, %p107
    %s109 = ssub.s32 %s16, %s28
    %s110 = ssub.s32 %s17, %s24
    %s111 = sor.u32 %s109, %s110
    %p112 = scmp.eq.s32.totalorder %s111, 0
    %s114 = sadd.s32 %s113, 1
    %s115 = scalar_select %p112, %s113, %s114
    %p118 = pneg %p112
    %p119 = scmp.eq.s32.totalorder %s9, 1
    %p120 = por %p118, %p119
    %p121 = scmp.ne.s32.totalorder %s113, %s116
    %p122 = scmp.eq.s32.totalorder %s9, 0
    %p123 = por %p121, %p122
    %p124 = scmp.ne.s32.totalorder %s113, %s116
    %p125 = scmp.eq.s32.totalorder %s14, 1
    %p126 = por %p124, %p125
    %p127 = scmp.ne.s32.totalorder %s116, %s117
    %p128 = scmp.eq.s32.totalorder %s14, 0
    %p129 = por %p127, %p128
    %p130 = scmp.ne.s32.totalorder %s116, %s117
    %p131 = scmp.eq.s32.totalorder %s15, 1
    %p132 = por %p130, %p131
    %p134 = scmp.ne.s32.totalorder %s117, %s133
    %p135 = scmp.eq.s32.totalorder %s15, 0
    %p136 = por %p134, %p135
    %p137 = scmp.le.s32.totalorder 1, %s9
    %p138 = scmp.lt.s32.totalorder %s9, 3
    %p139 = pnand %p137, %p138
    %p140 = pneg %p139
    // Predicated region
    $region9: #{network_block_forward.11} parent=5 // pred_check
      _
    $region10: #{network_block_forward.11} parent=5 // pred_check_branch
      %142 = sbr.rel (%p139) target = $region12
    $region11: #{network_block_forward.11} parent=5 // pred_region
      %s143 = ssub.s32 %s9, 1
      // Predicated region
      $region13: #{network_block_forward.11} parent=11 // pred_check
        %p144 = pneg %p73
      $region14: #{network_block_forward.11} parent=11 // pred_check_branch
        %146 = sbr.rel (%p144) target = $region16
      $region15: #{network_block_forward.11} parent=11 // pred_region
        %p147 = scmp.lt.s32.totalorder %s19, 0
        %s148 = scalar_select %p147, %s19, 0
        %s149 = smul.addr %s148, 4
        %s150 = scalar_lea.vmem %s1, %s149
      $region16: #{network_block_forward.11} parent=11 // pred_fallthru
        _
    $region12: #{network_block_forward.11} parent=5 // pred_fallthru
      _
    %p151 = scmp.lt.s32.totalorder %s9, 2
    // Predicated region
    $region17: #{network_block_forward.11} parent=5 // pred_check
      %p152 = pneg %p151
    $region18: #{network_block_forward.11} parent=5 // pred_check_branch
      %154 = sbr.rel (%p152) target = $region20
    $region19: #{network_block_forward.11} parent=5 // pred_region
      // Predicated region
      $region21: #{network_block_forward.11} parent=19 // pred_check
        %p155 = pneg %p41
      $region22: #{network_block_forward.11} parent=19 // pred_check_branch
        %157 = sbr.rel (%p155) target = $region24
      $region23: #{network_block_forward.11} parent=19 // pred_region
        %p158 = scmp.lt.s32.totalorder %s16, 1
        %s159 = scalar_select %p158, %s16, 1
        %s160 = smul.addr %s159, 13
        %s161 = smul.addr %s160, 4
        %s162 = scalar_lea.vmem %s0, %s161
      $region24: #{network_block_forward.11} parent=19 // pred_fallthru
        _
      // Predicated region
      $region25: #{network_block_forward.11} parent=19 // pred_check
        %p163 = pneg %p95
      $region26: #{network_block_forward.11} parent=19 // pred_check_branch
        %165 = sbr.rel (%p163) target = $region28
      $region27: #{network_block_forward.11} parent=19 // pred_region
        %p166 = scmp.lt.s32.totalorder %s16, 1
        %s167 = scalar_select %p166, %s16, 1
        %p168 = scmp.lt.s32.totalorder %s17, 0
        %s169 = scalar_select %p168, %s17, 0
        %s170 = smul.addr %s167, 10
        %s171 = sadd.s32 %s169, %s170
        %s172 = smul.addr %s171, 8
        %s173 = scalar_lea.vmem %s2, %s172
      $region28: #{network_block_forward.11} parent=19 // pred_fallthru
        _
    $region20: #{network_block_forward.11} parent=5 // pred_fallthru
      _
    %p174 = scmp.le.s32.totalorder 1, %s9
    %p175 = scmp.lt.s32.totalorder %s9, 3
    %p176 = pnand %p174, %p175
    %p177 = pneg %p176
    // Predicated region
    $region29: #{network_block_forward.11} parent=5 // pred_check
      _
    $region30: #{network_block_forward.11} parent=5 // pred_check_branch
      %179 = sbr.rel (%p176) target = $region32
    $region31: #{network_block_forward.11} parent=5 // pred_region
      %s180 = ssub.s32 %s9, 1
      %p181 = scmp.lt.s32.totalorder %s18, 1
      %s182 = scalar_select %p181, %s18, 1
      %s183 = smul.addr %s182, 13
      %s184 = smul.addr %s183, 4
      %s185 = scalar_lea.vmem %s0, %s184
      %p186 = pneg %p47
      %p187 = pneg %p44
      %p188 = scmp.lt.s32.totalorder %s19, 0
      %s189 = scalar_select %p188, %s19, 0
      %s190 = smul.addr %s189, 4
      %s191 = scalar_lea.vmem %s1, %s190
      %p192 = pneg %p73
      %p193 = pneg %p70
      %p194 = scmp.lt.s32.totalorder %s18, 1
      %s195 = scalar_select %p194, %s18, 1
      %p196 = scmp.lt.s32.totalorder %s19, 0
      %s197 = scalar_select %p196, %s19, 0
      %s198 = smul.addr %s195, 10
      %s199 = sadd.s32 %s197, %s198
      %s200 = smul.addr %s199, 8
      %s201 = scalar_lea.vmem %s2, %s200
      %p202 = pneg %p101
      %p203 = pneg %p98
      %p204 = pneg %p129
      %p205 = pneg %p126
      %p206 = scmp.lt.s32.totalorder %s18, 1
      %s207 = scalar_select %p206, %s18, 1
      %p208 = scmp.lt.s32.totalorder %s19, 0
      %s209 = scalar_select %p208, %s19, 0
      %s210 = smul.addr %s207, 10
      %s211 = sadd.s32 %s209, %s210
      %s212 = smul.addr %s211, 8
      %s213 = scalar_lea.vmem %s3, %s212
      %p214 = scmp.lt.s32.totalorder %s18, 1
      %s215 = scalar_select %p214, %s18, 1
      %s216 = smul.addr %s215, 13
      %s217 = smul.addr %s216, 4
      %s218 = scalar_lea.vmem %s0, %s217
      %p219 = scmp.lt.s32.totalorder %s19, 0
      %s220 = scalar_select %p219, %s19, 0
      %s221 = smul.addr %s220, 4
      %s222 = scalar_lea.vmem %s1, %s221
      %p223 = scmp.lt.s32.totalorder %s18, 1
      %s224 = scalar_select %p223, %s18, 1
      %p225 = scmp.lt.s32.totalorder %s19, 0
      %s226 = scalar_select %p225, %s19, 0
      %s227 = smul.addr %s224, 10
      %s228 = sadd.s32 %s226, %s227
      %s229 = smul.addr %s228, 8
      %s230 = scalar_lea.vmem %s2, %s229
      %p231 = scmp.lt.s32.totalorder %s18, 1
      %s232 = scalar_select %p231, %s18, 1
      %p233 = scmp.lt.s32.totalorder %s19, 0
      %s234 = scalar_select %p233, %s19, 0
      %s235 = smul.addr %s232, 10
      %s236 = sadd.s32 %s234, %s235
      %s237 = smul.addr %s236, 8
      %s238 = scalar_lea.vmem %s3, %s237
      %v240 = vld [vmem:[%s218] sm:$0xf]
      %v241 = vld [vmem:[%s218 + $0x4] sm:$0xf]
      %v242 = vld [vmem:[%s218 + $0x8] sm:$0xf]
      %v243 = vld [vmem:[%s218 + $0xc] sm:$0xf]
      %v244 = vld [vmem:[%s218 + $0x10] sm:$0xf]
      %v245 = vld [vmem:[%s218 + $0x14] sm:$0xf]
      %v246 = vld [vmem:[%s218 + $0x18] sm:$0xf]
      %v247 = vld [vmem:[%s218 + $0x1c] sm:$0xf]
      %v248 = vld [vmem:[%s218 + $0x20] sm:$0xf]
      %v249 = vld [vmem:[%s218 + $0x24] sm:$0xf]
      %v250 = vld [vmem:[%s222] sm:$0xf]
      %v251 = vld [vmem:[%s222 + $0x4] sm:$0xf]
      %v252 = vld [vmem:[%s218 + $0x28] sm:$0x1]
      %s253 = scalar_lea.vmem %s222, 8
      %v254 = vld [vmem:[%s253] sm:$0xf]
      %v255 = vld [vmem:[%s253 + $0x4] sm:$0xf]
      %v267 = vunpack.c.l.b16 %v240
      %v268 = vunpack.c.l.b16 %v241
      %v269 = vunpack.c.l.b16 %v242
      %v270 = vunpack.c.l.b16 %v243
      %v271 = vunpack.c.l.b16 %v244
      %v272 = vunpack.c.l.b16 %v245
      %v273 = vunpack.c.l.b16 %v246
      %v274 = vunpack.c.l.b16 %v247
      %v275 = vunpack.c.l.b16 %v248
      %v276 = vunpack.c.l.b16 %v249
      %v277 = vunpack.c.l.b16 %v252
      %v278 = vpack.c.b16 %v268, %v267
      %v279 = vpack.c.b16 %v270, %v269
      %v280 = vpack.c.b16 %v272, %v271
      %v281 = vpack.c.b16 %v274, %v273
      %v282 = vpack.c.b16 %v276, %v275
      %v283 = vpack.c.b16 %v277, %v277
      %vm284 = vsmask.f32 7424
      %v286 = vshrl.u32 %v278, 16
      %v288 = vshll.u32 %v278, 16
      %v290 = vrot.slane %v288, 1
      %v291 = vor.u32 %v286, %v290
      %v293 = vshll.u32 %v279, 16
      %v295 = vrot.slane %v293, 1
      %v296 = vsel %vm284, %v291, %v295
      %v297 = vshrl.u32 %v279, 16
      %v299 = vor.u32 %v297, %v295
      %v301 = vshll.u32 %v280, 16
      %v303 = vrot.slane %v301, 1
      %v304 = vsel %vm284, %v299, %v303
      %v305 = vshrl.u32 %v280, 16
      %v307 = vor.u32 %v305, %v303
      %v309 = vshll.u32 %v281, 16
      %v311 = vrot.slane %v309, 1
      %v312 = vsel %vm284, %v307, %v311
      %v313 = vshrl.u32 %v281, 16
      %v315 = vor.u32 %v313, %v311
      %v317 = vshll.u32 %v282, 16
      %v319 = vrot.slane %v317, 1
      %v320 = vsel %vm284, %v315, %v319
      %v321 = vshrl.u32 %v282, 16
      %v323 = vor.u32 %v321, %v319
      %v325 = vshll.u32 %v283, 16
      %v327 = vrot.slane %v325, 1
      %v328 = vsel %vm284, %v323, %v327
      %v331 = vunpack.c.l.b16 %v254
      %v332 = vunpack.c.l.b16 %v255
      %v333 = vpack.c.b16 %v332, %v331
      %vm335 = vcmask 130048
      %v337 = vsel %vm335, %v296, 0
      %v340 = vsel %vm335, %v304, 0
      %v343 = vsel %vm335, %v312, 0
      %v346 = vsel %vm335, %v320, 0
      %v349 = vsel %vm335, %v328, 0
      %351 = vmatprep.subr.bf16.mxu0 0
      %352 = vmatpush1.bf16.msra.mxu0 %v333
      %353 = vmatprep.subr.bf16.mxu0 0
      %354 = vmatpush1.bf16.msra.mxu0 0
      %355 = vmatprep.subr.bf16.mxu0 0
      %356 = vmatpush1.bf16.msra.mxu0 0
      %357 = vmatprep.subr.bf16.mxu0 0
      %358 = vmatpush1.bf16.msra.mxu0 0
      %359 = vmatprep.subr.bf16.mxu0 0
      %360 = vmatpush1.bf16.msra.mxu0 0
      %361 = vmatprep.subr.bf16.mxu0 0
      %362 = vmatpush1.bf16.msra.mxu0 0
      %363 = vmatprep.subr.bf16.mxu0 0
      %364 = vmatpush1.bf16.msra.mxu0 0
      %365 = vmatprep.subr.bf16.mxu0 0
      %366 = vmatpush1.bf16.msra.mxu0 0
      %367 = vmatprep.subr.bf16.mxu0 0
      %368 = vmatpush1.bf16.msra.mxu0 0
      %369 = vmatprep.subr.bf16.mxu0 0
      %370 = vmatpush1.bf16.msra.mxu0 0
      %371 = vmatprep.subr.bf16.mxu0 0
      %372 = vmatpush1.bf16.msra.mxu0 0
      %373 = vmatprep.subr.bf16.mxu0 0
      %374 = vmatpush1.bf16.msra.mxu0 0
      %375 = vmatprep.subr.bf16.mxu0 0
      %376 = vmatpush1.bf16.msra.mxu0 0
      %377 = vmatprep.subr.bf16.mxu0 0
      %378 = vmatpush1.bf16.msra.mxu0 0
      %379 = vmatprep.subr.bf16.mxu0 0
      %380 = vmatpush1.bf16.msra.mxu0 0
      %381 = vmatprep.subr.bf16.mxu0 0
      %382 = vmatpush1.bf16.msra.mxu0 0
      %383 = vmatprep.mubr.bf16.mxu0 0
      %384 = vmatmul.mubr.bf16.gmra.mrb[0].mxu0 %v337
      %v385 = vpop.f32.mrb[0].mxu0
      %v386 = vadd.f32 0.0, %v385
      %v387 = vpop.f32.mrb[0].mxu0
      %v388 = vpop.f32.mrb[0].mxu0
      %v389 = vadd.f32 0.0, %v388
      %v390 = vpop.f32.mrb[0].mxu0
      %391 = vmatprep.mubr.bf16.mxu0 0
      %392 = vmatmul.mubr.bf16.gmra.mrb[0].mxu0 %v340
      %v393 = vpop.f32.mrb[0].mxu0
      %v394 = vadd.f32 0.0, %v393
      %v395 = vpop.f32.mrb[0].mxu0
      %v396 = vpop.f32.mrb[0].mxu0
      %v397 = vadd.f32 0.0, %v396
      %v398 = vpop.f32.mrb[0].mxu0
      %399 = vmatprep.mubr.bf16.mxu0 0
      %400 = vmatmul.mubr.bf16.gmra.mrb[0].mxu0 %v343
      %v401 = vpop.f32.mrb[0].mxu0
      %v402 = vadd.f32 0.0, %v401
      %v403 = vpop.f32.mrb[0].mxu0
      %v404 = vpop.f32.mrb[0].mxu0
      %v405 = vadd.f32 0.0, %v404
      %v406 = vpop.f32.mrb[0].mxu0
      %407 = vmatprep.mubr.bf16.mxu0 0
      %408 = vmatmul.mubr.bf16.gmra.mrb[0].mxu0 %v346
      %v409 = vpop.f32.mrb[0].mxu0
      %v410 = vadd.f32 0.0, %v409
      %v411 = vpop.f32.mrb[0].mxu0
      %v412 = vpop.f32.mrb[0].mxu0
      %v413 = vadd.f32 0.0, %v412
      %v414 = vpop.f32.mrb[0].mxu0
      %415 = vmatprep.mubr.bf16.mxu0 0
      %416 = vmatmul.mubr.bf16.gmra.mrb[0].mxu0 %v349
      %v417 = vpop.f32.mrb[0].mxu0
      %v418 = vadd.f32 0.0, %v417
      %v419 = vpop.f32.mrb[0].mxu0
      %v420 = vpop.f32.mrb[0].mxu0
      %v421 = vadd.f32 0.0, %v420
      %v422 = vpop.f32.mrb[0].mxu0
      %423 = vdwg.mxu0
      %v426 = vunpack.c.l.b16 %v250
      %v427 = vunpack.c.l.b16 %v251
      %v428 = vpack.c.b16 %v427, %v426
      %v430 = vsel %vm335, %v278, 0
      %v432 = vsel %vm335, %v279, 0
      %v434 = vsel %vm335, %v280, 0
      %v436 = vsel %vm335, %v281, 0
      %v438 = vsel %vm335, %v282, 0
      %440 = vmatprep.subr.bf16.mxu0 0
      %441 = vmatpush1.bf16.msra.mxu0 %v428
      %442 = vmatprep.subr.bf16.mxu0 0
      %443 = vmatpush1.bf16.msra.mxu0 0
      %444 = vmatprep.subr.bf16.mxu0 0
      %445 = vmatpush1.bf16.msra.mxu0 0
      %446 = vmatprep.subr.bf16.mxu0 0
      %447 = vmatpush1.bf16.msra.mxu0 0
      %448 = vmatprep.subr.bf16.mxu0 0
      %449 = vmatpush1.bf16.msra.mxu0 0
      %450 = vmatprep.subr.bf16.mxu0 0
      %451 = vmatpush1.bf16.msra.mxu0 0
      %452 = vmatprep.subr.bf16.mxu0 0
      %453 = vmatpush1.bf16.msra.mxu0 0
      %454 = vmatprep.subr.bf16.mxu0 0
      %455 = vmatpush1.bf16.msra.mxu0 0
      %456 = vmatprep.subr.bf16.mxu0 0
      %457 = vmatpush1.bf16.msra.mxu0 0
      %458 = vmatprep.subr.bf16.mxu0 0
      %459 = vmatpush1.bf16.msra.mxu0 0
      %460 = vmatprep.subr.bf16.mxu0 0
      %461 = vmatpush1.bf16.msra.mxu0 0
      %462 = vmatprep.subr.bf16.mxu0 0
      %463 = vmatpush1.bf16.msra.mxu0 0
      %464 = vmatprep.subr.bf16.mxu0 0
      %465 = vmatpush1.bf16.msra.mxu0 0
      %466 = vmatprep.subr.bf16.mxu0 0
      %467 = vmatpush1.bf16.msra.mxu0 0
      %468 = vmatprep.subr.bf16.mxu0 0
      %469 = vmatpush1.bf16.msra.mxu0 0
      %470 = vmatprep.subr.bf16.mxu0 0
      %471 = vmatpush1.bf16.msra.mxu0 0
      %472 = vmatprep.mubr.bf16.mxu0 0
      %473 = vmatmul.mubr.bf16.gmra.mrb[0].mxu0 %v430
      %v474 = vpop.f32.mrb[0].mxu0
      %v475 = vadd.f32 %v386, %v474
      %v476 = vpop.f32.mrb[0].mxu0
      %v477 = vpop.f32.mrb[0].mxu0
      %v478 = vadd.f32 %v389, %v477
      %v479 = vpop.f32.mrb[0].mxu0
      %480 = vmatprep.mubr.bf16.mxu0 0
      %481 = vmatmul.mubr.bf16.gmra.mrb[0].mxu0 %v432
      %v482 = vpop.f32.mrb[0].mxu0
      %v483 = vadd.f32 %v394, %v482
      %v484 = vpop.f32.mrb[0].mxu0
      %v485 = vpop.f32.mrb[0].mxu0
      %v486 = vadd.f32 %v397, %v485
      %v487 = vpop.f32.mrb[0].mxu0
      %488 = vmatprep.mubr.bf16.mxu0 0
      %489 = vmatmul.mubr.bf16.gmra.mrb[0].mxu0 %v434
      %v490 = vpop.f32.mrb[0].mxu0
      %v491 = vadd.f32 %v402, %v490
      %v492 = vpop.f32.mrb[0].mxu0
      %v493 = vpop.f32.mrb[0].mxu0
      %v494 = vadd.f32 %v405, %v493
      %v495 = vpop.f32.mrb[0].mxu0
      %496 = vmatprep.mubr.bf16.mxu0 0
      %497 = vmatmul.mubr.bf16.gmra.mrb[0].mxu0 %v436
      %v498 = vpop.f32.mrb[0].mxu0
      %v499 = vadd.f32 %v410, %v498
      %v500 = vpop.f32.mrb[0].mxu0
      %v501 = vpop.f32.mrb[0].mxu0
      %v502 = vadd.f32 %v413, %v501
      %v503 = vpop.f32.mrb[0].mxu0
      %504 = vmatprep.mubr.bf16.mxu0 0
      %505 = vmatmul.mubr.bf16.gmra.mrb[0].mxu0 %v438
      %v506 = vpop.f32.mrb[0].mxu0
      %v507 = vadd.f32 %v418, %v506
      %v508 = vpop.f32.mrb[0].mxu0
      %v509 = vpop.f32.mrb[0].mxu0
      %v510 = vadd.f32 %v421, %v509
      %v511 = vpop.f32.mrb[0].mxu0
      %512 = vdwg.mxu0
      %v513 = vld [vmem:[%s218] sm:$0xe]
      %s514 = scalar_lea.vmem %s222, 16
      %v515 = vld [vmem:[%s514] sm:$0xf]
      %v516 = vld [vmem:[%s514 + $0x4] sm:$0xf]
      %v518 = vunpack.c.l.b16 %v513
      %v519 = vpack.c.b16 %v268, %v518
      %vm520 = vcmask 1046528
      %v521 = vrot.slane %v519, 1
      %v522 = vrot.slane %v279, 1
      %v523 = vsel %vm520, %v521, %v522
      %v524 = vrot.slane %v280, 1
      %v525 = vsel %vm520, %v522, %v524
      %v526 = vrot.slane %v281, 1
      %v527 = vsel %vm520, %v524, %v526
      %v528 = vrot.slane %v282, 1
      %v529 = vsel %vm520, %v526, %v528
      %v530 = vrot.slane %v283, 1
      %v531 = vsel %vm520, %v528, %v530
      %v534 = vunpack.c.l.b16 %v515
      %v535 = vunpack.c.l.b16 %v516
      %v536 = vpack.c.b16 %v535, %v534
      %v539 = vsel %vm335, %v523, 0
      %v542 = vsel %vm335, %v525, 0
      %v545 = vsel %vm335, %v527, 0
      %v548 = vsel %vm335, %v529, 0
      %v551 = vsel %vm335, %v531, 0
      %553 = vmatprep.subr.bf16.mxu0 0
      %554 = vmatpush1.bf16.msra.mxu0 %v536
      %555 = vmatprep.subr.bf16.mxu0 0
      %556 = vmatpush1.bf16.msra.mxu0 0
      %557 = vmatprep.subr.bf16.mxu0 0
      %558 = vmatpush1.bf16.msra.mxu0 0
      %559 = vmatprep.subr.bf16.mxu0 0
      %560 = vmatpush1.bf16.msra.mxu0 0
      %561 = vmatprep.subr.bf16.mxu0 0
      %562 = vmatpush1.bf16.msra.mxu0 0
      %563 = vmatprep.subr.bf16.mxu0 0
      %564 = vmatpush1.bf16.msra.mxu0 0
      %565 = vmatprep.subr.bf16.mxu0 0
      %566 = vmatpush1.bf16.msra.mxu0 0
      %567 = vmatprep.subr.bf16.mxu0 0
      %568 = vmatpush1.bf16.msra.mxu0 0
      %569 = vmatprep.subr.bf16.mxu0 0
      %570 = vmatpush1.bf16.msra.mxu0 0
      %571 = vmatprep.subr.bf16.mxu0 0
      %572 = vmatpush1.bf16.msra.mxu0 0
      %573 = vmatprep.subr.bf16.mxu0 0
      %574 = vmatpush1.bf16.msra.mxu0 0
      %575 = vmatprep.subr.bf16.mxu0 0
      %576 = vmatpush1.bf16.msra.mxu0 0
      %577 = vmatprep.subr.bf16.mxu0 0
      %578 = vmatpush1.bf16.msra.mxu0 0
      %579 = vmatprep.subr.bf16.mxu0 0
      %580 = vmatpush1.bf16.msra.mxu0 0
      %581 = vmatprep.subr.bf16.mxu0 0
      %582 = vmatpush1.bf16.msra.mxu0 0
      %583 = vmatprep.subr.bf16.mxu0 0
      %584 = vmatpush1.bf16.msra.mxu0 0
      %585 = vmatprep.mubr.bf16.mxu0 0
      %586 = vmatmul.mubr.bf16.gmra.mrb[0].mxu0 %v539
      %v587 = vpop.f32.mrb[0].mxu0
      %v588 = vadd.f32 0.0, %v587
      %v589 = vpop.f32.mrb[0].mxu0
      %v590 = vpop.f32.mrb[0].mxu0
      %v591 = vadd.f32 0.0, %v590
      %v592 = vpop.f32.mrb[0].mxu0
      %593 = vmatprep.mubr.bf16.mxu0 0
      %594 = vmatmul.mubr.bf16.gmra.mrb[0].mxu0 %v542
      %v595 = vpop.f32.mrb[0].mxu0
      %v596 = vadd.f32 0.0, %v595
      %v597 = vpop.f32.mrb[0].mxu0
      %v598 = vpop.f32.mrb[0].mxu0
      %v599 = vadd.f32 0.0, %v598
      %v600 = vpop.f32.mrb[0].mxu0
      %601 = vmatprep.mubr.bf16.mxu0 0
      %602 = vmatmul.mubr.bf16.gmra.mrb[0].mxu0 %v545
      %v603 = vpop.f32.mrb[0].mxu0
      %v604 = vadd.f32 0.0, %v603
      %v605 = vpop.f32.mrb[0].mxu0
      %v606 = vpop.f32.mrb[0].mxu0
      %v607 = vadd.f32 0.0, %v606
      %v608 = vpop.f32.mrb[0].mxu0
      %609 = vmatprep.mubr.bf16.mxu0 0
      %610 = vmatmul.mubr.bf16.gmra.mrb[0].mxu0 %v548
      %v611 = vpop.f32.mrb[0].mxu0
      %v612 = vadd.f32 0.0, %v611
      %v613 = vpop.f32.mrb[0].mxu0
      %v614 = vpop.f32.mrb[0].mxu0
      %v615 = vadd.f32 0.0, %v614
      %v616 = vpop.f32.mrb[0].mxu0
      %617 = vmatprep.mubr.bf16.mxu0 0
      %618 = vmatmul.mubr.bf16.gmra.mrb[0].mxu0 %v551
      %v619 = vpop.f32.mrb[0].mxu0
      %v620 = vadd.f32 0.0, %v619
      %v621 = vpop.f32.mrb[0].mxu0
      %v622 = vpop.f32.mrb[0].mxu0
      %v623 = vadd.f32 0.0, %v622
      %v624 = vpop.f32.mrb[0].mxu0
      %625 = vdwg.mxu0
      %v626 = vadd.f32 %v475, %v588
      %v627 = vadd.f32 %v478, %v591
      %v628 = vadd.f32 %v483, %v596
      %v629 = vadd.f32 %v486, %v599
      %v630 = vadd.f32 %v491, %v604
      %v631 = vadd.f32 %v494, %v607
      %v632 = vadd.f32 %v499, %v612
      %v633 = vadd.f32 %v502, %v615
      %v634 = vadd.f32 %v507, %v620
      %v635 = vadd.f32 %v510, %v623
      %v636 = vld [vmem:[%s218 + $0x4] sm:$0xe]
      %v637 = vld [vmem:[%s218 + $0x8] sm:$0xf]
      %v638 = vld [vmem:[%s218 + $0xc] sm:$0xf]
      %v639 = vld [vmem:[%s218 + $0x10] sm:$0xf]
      %v640 = vld [vmem:[%s218 + $0x14] sm:$0xf]
      %v641 = vld [vmem:[%s218 + $0x18] sm:$0xf]
      %v642 = vld [vmem:[%s218 + $0x1c] sm:$0xf]
      %v643 = vld [vmem:[%s218 + $0x20] sm:$0xf]
      %v644 = vld [vmem:[%s218 + $0x24] sm:$0xf]
      %v645 = vld [vmem:[%s218 + $0x28] sm:$0xf]
      %v646 = vld [vmem:[%s218 + $0x2c] sm:$0x1]
      %s647 = scalar_lea.vmem %s222, 24
      %v648 = vld [vmem:[%s647] sm:$0xf]
      %v649 = vld [vmem:[%s647 + $0x4] sm:$0xf]
      %v661 = vunpack.c.l.b16 %v636
      %v662 = vunpack.c.l.b16 %v637
      %v663 = vunpack.c.l.b16 %v638
      %v664 = vunpack.c.l.b16 %v639
      %v665 = vunpack.c.l.b16 %v640
      %v666 = vunpack.c.l.b16 %v641
      %v667 = vunpack.c.l.b16 %v642
      %v668 = vunpack.c.l.b16 %v643
      %v669 = vunpack.c.l.b16 %v644
      %v670 = vunpack.c.l.b16 %v645
      %v671 = vunpack.c.l.b16 %v646
      %v672 = vpack.c.b16 %v662, %v661
      %v673 = vpack.c.b16 %v664, %v663
      %v674 = vpack.c.b16 %v666, %v665
      %v675 = vpack.c.b16 %v668, %v667
      %v676 = vpack.c.b16 %v670, %v669
      %v677 = vpack.c.b16 %v671, %v671
      %v678 = vrot.slane %v672, 1
      %v679 = vrot.slane %v673, 1
      %v680 = vsel %vm520, %v678, %v679
      %v681 = vrot.slane %v674, 1
      %v682 = vsel %vm520, %v679, %v681
      %v683 = vrot.slane %v675, 1
      %v684 = vsel %vm520, %v681, %v683
      %v685 = vrot.slane %v676, 1
      %v686 = vsel %vm520, %v683, %v685
      %v687 = vrot.slane %v677, 1
      %v688 = vsel %vm520, %v685, %v687
      %v691 = vunpack.c.l.b16 %v648
      %v692 = vunpack.c.l.b16 %v649
      %v693 = vpack.c.b16 %v692, %v691
      %v696 = vsel %vm335, %v680, 0
      %v699 = vsel %vm335, %v682, 0
      %v702 = vsel %vm335, %v684, 0
      %v705 = vsel %vm335, %v686, 0
      %v708 = vsel %vm335, %v688, 0
      %710 = vmatprep.subr.bf16.mxu0 0
      %711 = vmatpush1.bf16.msra.mxu0 %v693
      %712 = vmatprep.subr.bf16.mxu0 0
      %713 = vmatpush1.bf16.msra.mxu0 0
      %714 = vmatprep.subr.bf16.mxu0 0
      %715 = vmatpush1.bf16.msra.mxu0 0
      %716 = vmatprep.subr.bf16.mxu0 0
      %717 = vmatpush1.bf16.msra.mxu0 0
      %718 = vmatprep.subr.bf16.mxu0 0
      %719 = vmatpush1.bf16.msra.mxu0 0
      %720 = vmatprep.subr.bf16.mxu0 0
      %721 = vmatpush1.bf16.msra.mxu0 0
      %722 = vmatprep.subr.bf16.mxu0 0
      %723 = vmatpush1.bf16.msra.mxu0 0
      %724 = vmatprep.subr.bf16.mxu0 0
      %725 = vmatpush1.bf16.msra.mxu0 0
      %726 = vmatprep.subr.bf16.mxu0 0
      %727 = vmatpush1.bf16.msra.mxu0 0
      %728 = vmatprep.subr.bf16.mxu0 0
      %729 = vmatpush1.bf16.msra.mxu0 0
      %730 = vmatprep.subr.bf16.mxu0 0
      %731 = vmatpush1.bf16.msra.mxu0 0
      %732 = vmatprep.subr.bf16.mxu0 0
      %733 = vmatpush1.bf16.msra.mxu0 0
      %734 = vmatprep.subr.bf16.mxu0 0
      %735 = vmatpush1.bf16.msra.mxu0 0
      %736 = vmatprep.subr.bf16.mxu0 0
      %737 = vmatpush1.bf16.msra.mxu0 0
      %738 = vmatprep.subr.bf16.mxu0 0
      %739 = vmatpush1.bf16.msra.mxu0 0
      %740 = vmatprep.subr.bf16.mxu0 0
      %741 = vmatpush1.bf16.msra.mxu0 0
      %742 = vmatprep.mubr.bf16.mxu0 0
      %743 = vmatmul.mubr.bf16.gmra.mrb[0].mxu0 %v696
      %v744 = vpop.f32.mrb[0].mxu0
      %v745 = vadd.f32 0.0, %v744
      %v746 = vpop.f32.mrb[0].mxu0
      %v747 = vpop.f32.mrb[0].mxu0
      %v748 = vadd.f32 0.0, %v747
      %v749 = vpop.f32.mrb[0].mxu0
      %750 = vmatprep.mubr.bf16.mxu0 0
      %751 = vmatmul.mubr.bf16.gmra.mrb[0].mxu0 %v699
      %v752 = vpop.f32.mrb[0].mxu0
      %v753 = vadd.f32 0.0, %v752
      %v754 = vpop.f32.mrb[0].mxu0
      %v755 = vpop.f32.mrb[0].mxu0
      %v756 = vadd.f32 0.0, %v755
      %v757 = vpop.f32.mrb[0].mxu0
      %758 = vmatprep.mubr.bf16.mxu0 0
      %759 = vmatmul.mubr.bf16.gmra.mrb[0].mxu0 %v702
      %v760 = vpop.f32.mrb[0].mxu0
      %v761 = vadd.f32 0.0, %v760
      %v762 = vpop.f32.mrb[0].mxu0
      %v763 = vpop.f32.mrb[0].mxu0
      %v764 = vadd.f32 0.0, %v763
      %v765 = vpop.f32.mrb[0].mxu0
      %766 = vmatprep.mubr.bf16.mxu0 0
      %767 = vmatmul.mubr.bf16.gmra.mrb[0].mxu0 %v705
      %v768 = vpop.f32.mrb[0].mxu0
      %v769 = vadd.f32 0.0, %v768
      %v770 = vpop.f32.mrb[0].mxu0
      %v771 = vpop.f32.mrb[0].mxu0
      %v772 = vadd.f32 0.0, %v771
      %v773 = vpop.f32.mrb[0].mxu0
      %774 = vmatprep.mubr.bf16.mxu0 0
      %775 = vmatmul.mubr.bf16.gmra.mrb[0].mxu0 %v708
      %v776 = vpop.f32.mrb[0].mxu0
      %v777 = vadd.f32 0.0, %v776
      %v778 = vpop.f32.mrb[0].mxu0
      %v779 = vpop.f32.mrb[0].mxu0
      %v780 = vadd.f32 0.0, %v779
      %v781 = vpop.f32.mrb[0].mxu0
      %782 = vdwg.mxu0
      %v783 = vadd.f32 %v626, %v745
      %v784 = vadd.f32 %v627, %v748
      %v785 = vadd.f32 %v628, %v753
      %v786 = vadd.f32 %v629, %v756
      %v787 = vadd.f32 %v630, %v761
      %v788 = vadd.f32 %v631, %v764
      %v789 = vadd.f32 %v632, %v769
      %v790 = vadd.f32 %v633, %v772
      %v791 = vadd.f32 %v634, %v777
      %v792 = vadd.f32 %v635, %v780
      %v793 = vld [vmem:[%s218 + $0x2c] sm:$0x3]
      %s794 = scalar_lea.vmem %s222, 32
      %v795 = vld [vmem:[%s794] sm:$0xf]
      %v796 = vld [vmem:[%s794 + $0x4] sm:$0xf]
      %v798 = vunpack.c.l.b16 %v793
      %v799 = vpack.c.b16 %v798, %v798
      %vm800 = vsmask.f32 6400
      %v802 = vshrl.u32 %v672, 16
      %v804 = vrot.slane %v802, 1
      %v805 = vshll.u32 %v672, 16
      %v807 = vrot.slane %v805, 2
      %v808 = vor.u32 %v804, %v807
      %v810 = vshrl.u32 %v673, 16
      %v812 = vrot.slane %v810, 1
      %v813 = vshll.u32 %v673, 16
      %v815 = vrot.slane %v813, 2
      %v816 = vor.u32 %v812, %v815
      %v817 = vsel %vm800, %v808, %v816
      %v819 = vshrl.u32 %v674, 16
      %v821 = vrot.slane %v819, 1
      %v822 = vshll.u32 %v674, 16
      %v824 = vrot.slane %v822, 2
      %v825 = vor.u32 %v821, %v824
      %v826 = vsel %vm800, %v816, %v825
      %v828 = vshrl.u32 %v675, 16
      %v830 = vrot.slane %v828, 1
      %v831 = vshll.u32 %v675, 16
      %v833 = vrot.slane %v831, 2
      %v834 = vor.u32 %v830, %v833
      %v835 = vsel %vm800, %v825, %v834
      %v837 = vshrl.u32 %v676, 16
      %v839 = vrot.slane %v837, 1
      %v840 = vshll.u32 %v676, 16
      %v842 = vrot.slane %v840, 2
      %v843 = vor.u32 %v839, %v842
      %v844 = vsel %vm800, %v834, %v843
      %v846 = vshrl.u32 %v799, 16
      %v848 = vrot.slane %v846, 1
      %v849 = vshll.u32 %v799, 16
      %v851 = vrot.slane %v849, 2
      %v852 = vor.u32 %v848, %v851
      %v853 = vsel %vm800, %v843, %v852
      %v856 = vunpack.c.l.b16 %v795
      %v857 = vunpack.c.l.b16 %v796
      %v858 = vpack.c.b16 %v857, %v856
      %v861 = vsel %vm335, %v817, 0
      %v864 = vsel %vm335, %v826, 0
      %v867 = vsel %vm335, %v835, 0
      %v870 = vsel %vm335, %v844, 0
      %v873 = vsel %vm335, %v853, 0
      %875 = vmatprep.subr.bf16.mxu0 0
      %876 = vmatpush1.bf16.msra.mxu0 %v858
      %877 = vmatprep.subr.bf16.mxu0 0
      %878 = vmatpush1.bf16.msra.mxu0 0
      %879 = vmatprep.subr.bf16.mxu0 0
      %880 = vmatpush1.bf16.msra.mxu0 0
      %881 = vmatprep.subr.bf16.mxu0 0
      %882 = vmatpush1.bf16.msra.mxu0 0
      %883 = vmatprep.subr.bf16.mxu0 0
      %884 = vmatpush1.bf16.msra.mxu0 0
      %885 = vmatprep.subr.bf16.mxu0 0
      %886 = vmatpush1.bf16.msra.mxu0 0
      %887 = vmatprep.subr.bf16.mxu0 0
      %888 = vmatpush1.bf16.msra.mxu0 0
      %889 = vmatprep.subr.bf16.mxu0 0
      %890 = vmatpush1.bf16.msra.mxu0 0
      %891 = vmatprep.subr.bf16.mxu0 0
      %892 = vmatpush1.bf16.msra.mxu0 0
      %893 = vmatprep.subr.bf16.mxu0 0
      %894 = vmatpush1.bf16.msra.mxu0 0
      %895 = vmatprep.subr.bf16.mxu0 0
      %896 = vmatpush1.bf16.msra.mxu0 0
      %897 = vmatprep.subr.bf16.mxu0 0
      %898 = vmatpush1.bf16.msra.mxu0 0
      %899 = vmatprep.subr.bf16.mxu0 0
      %900 = vmatpush1.bf16.msra.mxu0 0
      %901 = vmatprep.subr.bf16.mxu0 0
      %902 = vmatpush1.bf16.msra.mxu0 0
      %903 = vmatprep.subr.bf16.mxu0 0
      %904 = vmatpush1.bf16.msra.mxu0 0
      %905 = vmatprep.subr.bf16.mxu0 0
      %906 = vmatpush1.bf16.msra.mxu0 0
      %907 = vmatprep.mubr.bf16.mxu0 0
      %908 = vmatmul.mubr.bf16.gmra.mrb[0].mxu0 %v861
      %v909 = vpop.f32.mrb[0].mxu0
      %v910 = vadd.f32 0.0, %v909
      %v911 = vpop.f32.mrb[0].mxu0
      %v912 = vpop.f32.mrb[0].mxu0
      %v913 = vadd.f32 0.0, %v912
      %v914 = vpop.f32.mrb[0].mxu0
      %915 = vmatprep.mubr.bf16.mxu0 0
      %916 = vmatmul.mubr.bf16.gmra.mrb[0].mxu0 %v864
      %v917 = vpop.f32.mrb[0].mxu0
      %v918 = vadd.f32 0.0, %v917
      %v919 = vpop.f32.mrb[0].mxu0
      %v920 = vpop.f32.mrb[0].mxu0
      %v921 = vadd.f32 0.0, %v920
      %v922 = vpop.f32.mrb[0].mxu0
      %923 = vmatprep.mubr.bf16.mxu0 0
      %924 = vmatmul.mubr.bf16.gmra.mrb[0].mxu0 %v867
      %v925 = vpop.f32.mrb[0].mxu0
      %v926 = vadd.f32 0.0, %v925
      %v927 = vpop.f32.mrb[0].mxu0
      %v928 = vpop.f32.mrb[0].mxu0
      %v929 = vadd.f32 0.0, %v928
      %v930 = vpop.f32.mrb[0].mxu0
      %931 = vmatprep.mubr.bf16.mxu0 0
      %932 = vmatmul.mubr.bf16.gmra.mrb[0].mxu0 %v870
      %v933 = vpop.f32.mrb[0].mxu0
      %v934 = vadd.f32 0.0, %v933
      %v935 = vpop.f32.mrb[0].mxu0
      %v936 = vpop.f32.mrb[0].mxu0
      %v937 = vadd.f32 0.0, %v936
      %v938 = vpop.f32.mrb[0].mxu0
      %939 = vmatprep.mubr.bf16.mxu0 0
      %940 = vmatmul.mubr.bf16.gmra.mrb[0].mxu0 %v873
      %v941 = vpop.f32.mrb[0].mxu0
      %v942 = vadd.f32 0.0, %v941
      %v943 = vpop.f32.mrb[0].mxu0
      %v944 = vpop.f32.mrb[0].mxu0
      %v945 = vadd.f32 0.0, %v944
      %v946 = vpop.f32.mrb[0].mxu0
      %947 = vdwg.mxu0
      %v948 = vadd.f32 %v783, %v910
      %v949 = vadd.f32 %v784, %v913
      %v950 = vadd.f32 %v785, %v918
      %v951 = vadd.f32 %v786, %v921
      %v952 = vadd.f32 %v787, %v926
      %v953 = vadd.f32 %v788, %v929
      %v954 = vadd.f32 %v789, %v934
      %v955 = vadd.f32 %v790, %v937
      %v956 = vadd.f32 %v791, %v942
      %v957 = vadd.f32 %v792, %v945
      %v958 = vld [vmem:[%s218 + $0x4] sm:$0xc]
      %s959 = scalar_lea.vmem %s222, 40
      %v960 = vld [vmem:[%s959] sm:$0xf]
      %v961 = vld [vmem:[%s959 + $0x4] sm:$0xf]
      %v963 = vunpack.c.l.b16 %v958
      %v964 = vpack.c.b16 %v662, %v963
      %vm965 = vcmask 1045504
      %v966 = vrot.slane %v964, 2
      %v967 = vrot.slane %v673, 2
      %v968 = vsel %vm965, %v966, %v967
      %v969 = vrot.slane %v674, 2
      %v970 = vsel %vm965, %v967, %v969
      %v971 = vrot.slane %v675, 2
      %v972 = vsel %vm965, %v969, %v971
      %v973 = vrot.slane %v676, 2
      %v974 = vsel %vm965, %v971, %v973
      %v975 = vrot.slane %v799, 2
      %v976 = vsel %vm965, %v973, %v975
      %v979 = vunpack.c.l.b16 %v960
      %v980 = vunpack.c.l.b16 %v961
      %v981 = vpack.c.b16 %v980, %v979
      %v984 = vsel %vm335, %v968, 0
      %v987 = vsel %vm335, %v970, 0
      %v990 = vsel %vm335, %v972, 0
      %v993 = vsel %vm335, %v974, 0
      %v996 = vsel %vm335, %v976, 0
      %998 = vmatprep.subr.bf16.mxu0 0
      %999 = vmatpush1.bf16.msra.mxu0 %v981
      %1000 = vmatprep.subr.bf16.mxu0 0
      %1001 = vmatpush1.bf16.msra.mxu0 0
      %1002 = vmatprep.subr.bf16.mxu0 0
      %1003 = vmatpush1.bf16.msra.mxu0 0
      %1004 = vmatprep.subr.bf16.mxu0 0
      %1005 = vmatpush1.bf16.msra.mxu0 0
      %1006 = vmatprep.subr.bf16.mxu0 0
      %1007 = vmatpush1.bf16.msra.mxu0 0
      %1008 = vmatprep.subr.bf16.mxu0 0
      %1009 = vmatpush1.bf16.msra.mxu0 0
      %1010 = vmatprep.subr.bf16.mxu0 0
      %1011 = vmatpush1.bf16.msra.mxu0 0
      %1012 = vmatprep.subr.bf16.mxu0 0
      %1013 = vmatpush1.bf16.msra.mxu0 0
      %1014 = vmatprep.subr.bf16.mxu0 0
      %1015 = vmatpush1.bf16.msra.mxu0 0
      %1016 = vmatprep.subr.bf16.mxu0 0
      %1017 = vmatpush1.bf16.msra.mxu0 0
      %1018 = vmatprep.subr.bf16.mxu0 0
      %1019 = vmatpush1.bf16.msra.mxu0 0
      %1020 = vmatprep.subr.bf16.mxu0 0
      %1021 = vmatpush1.bf16.msra.mxu0 0
      %1022 = vmatprep.subr.bf16.mxu0 0
      %1023 = vmatpush1.bf16.msra.mxu0 0
      %1024 = vmatprep.subr.bf16.mxu0 0
      %1025 = vmatpush1.bf16.msra.mxu0 0
      %1026 = vmatprep.subr.bf16.mxu0 0
      %1027 = vmatpush1.bf16.msra.mxu0 0
      %1028 = vmatprep.subr.bf16.mxu0 0
      %1029 = vmatpush1.bf16.msra.mxu0 0
      %1030 = vmatprep.mubr.bf16.mxu0 0
      %1031 = vmatmul.mubr.bf16.gmra.mrb[0].mxu0 %v984
      %v1032 = vpop.f32.mrb[0].mxu0
      %v1033 = vadd.f32 0.0, %v1032
      %v1034 = vpop.f32.mrb[0].mxu0
      %v1035 = vpop.f32.mrb[0].mxu0
      %v1036 = vadd.f32 0.0, %v1035
      %v1037 = vpop.f32.mrb[0].mxu0
      %1038 = vmatprep.mubr.bf16.mxu0 0
      %1039 = vmatmul.mubr.bf16.gmra.mrb[0].mxu0 %v987
      %v1040 = vpop.f32.mrb[0].mxu0
      %v1041 = vadd.f32 0.0, %v1040
      %v1042 = vpop.f32.mrb[0].mxu0
      %v1043 = vpop.f32.mrb[0].mxu0
      %v1044 = vadd.f32 0.0, %v1043
      %v1045 = vpop.f32.mrb[0].mxu0
      %1046 = vmatprep.mubr.bf16.mxu0 0
      %1047 = vmatmul.mubr.bf16.gmra.mrb[0].mxu0 %v990
      %v1048 = vpop.f32.mrb[0].mxu0
      %v1049 = vadd.f32 0.0, %v1048
      %v1050 = vpop.f32.mrb[0].mxu0
      %v1051 = vpop.f32.mrb[0].mxu0
      %v1052 = vadd.f32 0.0, %v1051
      %v1053 = vpop.f32.mrb[0].mxu0
      %1054 = vmatprep.mubr.bf16.mxu0 0
      %1055 = vmatmul.mubr.bf16.gmra.mrb[0].mxu0 %v993
      %v1056 = vpop.f32.mrb[0].mxu0
      %v1057 = vadd.f32 0.0, %v1056
      %v1058 = vpop.f32.mrb[0].mxu0
      %v1059 = vpop.f32.mrb[0].mxu0
      %v1060 = vadd.f32 0.0, %v1059
      %v1061 = vpop.f32.mrb[0].mxu0
      %1062 = vmatprep.mubr.bf16.mxu0 0
      %1063 = vmatmul.mubr.bf16.gmra.mrb[0].mxu0 %v996
      %v1064 = vpop.f32.mrb[0].mxu0
      %v1065 = vadd.f32 0.0, %v1064
      %v1066 = vpop.f32.mrb[0].mxu0
      %v1067 = vpop.f32.mrb[0].mxu0
      %v1068 = vadd.f32 0.0, %v1067
      %v1069 = vpop.f32.mrb[0].mxu0
      %1070 = vdwg.mxu0
      %v1071 = vadd.f32 %v948, %v1033
      %v1072 = vadd.f32 %v949, %v1036
      %v1073 = vadd.f32 %v950, %v1041
      %v1074 = vadd.f32 %v951, %v1044
      %v1075 = vadd.f32 %v952, %v1049
      %v1076 = vadd.f32 %v953, %v1052
      %v1077 = vadd.f32 %v954, %v1057
      %v1078 = vadd.f32 %v955, %v1060
      %v1079 = vadd.f32 %v956, %v1065
      %v1080 = vadd.f32 %v957, %v1068
      %v1081 = vld [vmem:[%s218 + $0x8] sm:$0xc]
      %v1082 = vld [vmem:[%s218 + $0xc] sm:$0xf]
      %v1083 = vld [vmem:[%s218 + $0x10] sm:$0xf]
      %v1084 = vld [vmem:[%s218 + $0x14] sm:$0xf]
      %v1085 = vld [vmem:[%s218 + $0x18] sm:$0xf]
      %v1086 = vld [vmem:[%s218 + $0x1c] sm:$0xf]
      %v1087 = vld [vmem:[%s218 + $0x20] sm:$0xf]
      %v1088 = vld [vmem:[%s218 + $0x24] sm:$0xf]
      %v1089 = vld [vmem:[%s218 + $0x28] sm:$0xf]
      %v1090 = vld [vmem:[%s218 + $0x2c] sm:$0xf]
      %v1091 = vld [vmem:[%s218 + $0x30] sm:$0x3]
      %s1092 = scalar_lea.vmem %s222, 48
      %v1093 = vld [vmem:[%s1092] sm:$0xf]
      %v1094 = vld [vmem:[%s1092 + $0x4] sm:$0xf]
      %v1106 = vunpack.c.l.b16 %v1081
      %v1107 = vunpack.c.l.b16 %v1082
      %v1108 = vunpack.c.l.b16 %v1083
      %v1109 = vunpack.c.l.b16 %v1084
      %v1110 = vunpack.c.l.b16 %v1085
      %v1111 = vunpack.c.l.b16 %v1086
      %v1112 = vunpack.c.l.b16 %v1087
      %v1113 = vunpack.c.l.b16 %v1088
      %v1114 = vunpack.c.l.b16 %v1089
      %v1115 = vunpack.c.l.b16 %v1090
      %v1116 = vunpack.c.l.b16 %v1091
      %v1117 = vpack.c.b16 %v1107, %v1106
      %v1118 = vpack.c.b16 %v1109, %v1108
      %v1119 = vpack.c.b16 %v1111, %v1110
      %v1120 = vpack.c.b16 %v1113, %v1112
      %v1121 = vpack.c.b16 %v1115, %v1114
      %v1122 = vpack.c.b16 %v1116, %v1116
      %v1123 = vrot.slane %v1117, 2
      %v1124 = vrot.slane %v1118, 2
      %v1125 = vsel %vm965, %v1123, %v1124
      %v1126 = vrot.slane %v1119, 2
      %v1127 = vsel %vm965, %v1124, %v1126
      %v1128 = vrot.slane %v1120, 2
      %v1129 = vsel %vm965, %v1126, %v1128
      %v1130 = vrot.slane %v1121, 2
      %v1131 = vsel %vm965, %v1128, %v1130
      %v1132 = vrot.slane %v1122, 2
      %v1133 = vsel %vm965, %v1130, %v1132
      %v1136 = vunpack.c.l.b16 %v1093
      %v1137 = vunpack.c.l.b16 %v1094
      %v1138 = vpack.c.b16 %v1137, %v1136
      %v1141 = vsel %vm335, %v1125, 0
      %v1144 = vsel %vm335, %v1127, 0
      %v1147 = vsel %vm335, %v1129, 0
      %v1150 = vsel %vm335, %v1131, 0
      %v1153 = vsel %vm335, %v1133, 0
      %1155 = vmatprep.subr.bf16.mxu0 0
      %1156 = vmatpush1.bf16.msra.mxu0 %v1138
      %1157 = vmatprep.subr.bf16.mxu0 0
      %1158 = vmatpush1.bf16.msra.mxu0 0
      %1159 = vmatprep.subr.bf16.mxu0 0
      %1160 = vmatpush1.bf16.msra.mxu0 0
      %1161 = vmatprep.subr.bf16.mxu0 0
      %1162 = vmatpush1.bf16.msra.mxu0 0
      %1163 = vmatprep.subr.bf16.mxu0 0
      %1164 = vmatpush1.bf16.msra.mxu0 0
      %1165 = vmatprep.subr.bf16.mxu0 0
      %1166 = vmatpush1.bf16.msra.mxu0 0
      %1167 = vmatprep.subr.bf16.mxu0 0
      %1168 = vmatpush1.bf16.msra.mxu0 0
      %1169 = vmatprep.subr.bf16.mxu0 0
      %1170 = vmatpush1.bf16.msra.mxu0 0
      %1171 = vmatprep.subr.bf16.mxu0 0
      %1172 = vmatpush1.bf16.msra.mxu0 0
      %1173 = vmatprep.subr.bf16.mxu0 0
      %1174 = vmatpush1.bf16.msra.mxu0 0
      %1175 = vmatprep.subr.bf16.mxu0 0
      %1176 = vmatpush1.bf16.msra.mxu0 0
      %1177 = vmatprep.subr.bf16.mxu0 0
      %1178 = vmatpush1.bf16.msra.mxu0 0
      %1179 = vmatprep.subr.bf16.mxu0 0
      %1180 = vmatpush1.bf16.msra.mxu0 0
      %1181 = vmatprep.subr.bf16.mxu0 0
      %1182 = vmatpush1.bf16.msra.mxu0 0
      %1183 = vmatprep.subr.bf16.mxu0 0
      %1184 = vmatpush1.bf16.msra.mxu0 0
      %1185 = vmatprep.subr.bf16.mxu0 0
      %1186 = vmatpush1.bf16.msra.mxu0 0
      %1187 = vmatprep.mubr.bf16.mxu0 0
      %1188 = vmatmul.mubr.bf16.gmra.mrb[0].mxu0 %v1141
      %v1189 = vpop.f32.mrb[0].mxu0
      %v1190 = vadd.f32 0.0, %v1189
      %v1191 = vpop.f32.mrb[0].mxu0
      %v1192 = vpop.f32.mrb[0].mxu0
      %v1193 = vadd.f32 0.0, %v1192
      %v1194 = vpop.f32.mrb[0].mxu0
      %1195 = vmatprep.mubr.bf16.mxu0 0
      %1196 = vmatmul.mubr.bf16.gmra.mrb[0].mxu0 %v1144
      %v1197 = vpop.f32.mrb[0].mxu0
      %v1198 = vadd.f32 0.0, %v1197
      %v1199 = vpop.f32.mrb[0].mxu0
      %v1200 = vpop.f32.mrb[0].mxu0
      %v1201 = vadd.f32 0.0, %v1200
      %v1202 = vpop.f32.mrb[0].mxu0
      %1203 = vmatprep.mubr.bf16.mxu0 0
      %1204 = vmatmul.mubr.bf16.gmra.mrb[0].mxu0 %v1147
      %v1205 = vpop.f32.mrb[0].mxu0
      %v1206 = vadd.f32 0.0, %v1205
      %v1207 = vpop.f32.mrb[0].mxu0
      %v1208 = vpop.f32.mrb[0].mxu0
      %v1209 = vadd.f32 0.0, %v1208
      %v1210 = vpop.f32.mrb[0].mxu0
      %1211 = vmatprep.mubr.bf16.mxu0 0
      %1212 = vmatmul.mubr.bf16.gmra.mrb[0].mxu0 %v1150
      %v1213 = vpop.f32.mrb[0].mxu0
      %v1214 = vadd.f32 0.0, %v1213
      %v1215 = vpop.f32.mrb[0].mxu0
      %v1216 = vpop.f32.mrb[0].mxu0
      %v1217 = vadd.f32 0.0, %v1216
      %v1218 = vpop.f32.mrb[0].mxu0
      %1219 = vmatprep.mubr.bf16.mxu0 0
      %1220 = vmatmul.mubr.bf16.gmra.mrb[0].mxu0 %v1153
      %v1221 = vpop.f32.mrb[0].mxu0
      %v1222 = vadd.f32 0.0, %v1221
      %v1223 = vpop.f32.mrb[0].mxu0
      %v1224 = vpop.f32.mrb[0].mxu0
      %v1225 = vadd.f32 0.0, %v1224
      %v1226 = vpop.f32.mrb[0].mxu0
      %1227 = vdwg.mxu0
      %v1228 = vadd.f32 %v1071, %v1190
      %v1229 = vadd.f32 %v1072, %v1193
      %v1230 = vadd.f32 %v1073, %v1198
      %v1231 = vadd.f32 %v1074, %v1201
      %v1232 = vadd.f32 %v1075, %v1206
      %v1233 = vadd.f32 %v1076, %v1209
      %v1234 = vadd.f32 %v1077, %v1214
      %v1235 = vadd.f32 %v1078, %v1217
      %v1236 = vadd.f32 %v1079, %v1222
      %v1237 = vadd.f32 %v1080, %v1225
      %v1238 = vld [vmem:[%s218 + $0x30] sm:$0x7]
      %s1239 = scalar_lea.vmem %s222, 56
      %v1240 = vld [vmem:[%s1239] sm:$0xf]
      %v1241 = vld [vmem:[%s1239 + $0x4] sm:$0xf]
      %v1243 = vunpack.c.l.b16 %v1238
      %v1244 = vpack.c.b16 %v1243, %v1243
      %vm1245 = vsmask.f32 5376
      %v1247 = vshrl.u32 %v1117, 16
      %v1249 = vrot.slane %v1247, 2
      %v1250 = vshll.u32 %v1117, 16
      %v1252 = vrot.slane %v1250, 3
      %v1253 = vor.u32 %v1249, %v1252
      %v1255 = vshrl.u32 %v1118, 16
      %v1257 = vrot.slane %v1255, 2
      %v1258 = vshll.u32 %v1118, 16
      %v1260 = vrot.slane %v1258, 3
      %v1261 = vor.u32 %v1257, %v1260
      %v1262 = vsel %vm1245, %v1253, %v1261
      %v1264 = vshrl.u32 %v1119, 16
      %v1266 = vrot.slane %v1264, 2
      %v1267 = vshll.u32 %v1119, 16
      %v1269 = vrot.slane %v1267, 3
      %v1270 = vor.u32 %v1266, %v1269
      %v1271 = vsel %vm1245, %v1261, %v1270
      %v1273 = vshrl.u32 %v1120, 16
      %v1275 = vrot.slane %v1273, 2
      %v1276 = vshll.u32 %v1120, 16
      %v1278 = vrot.slane %v1276, 3
      %v1279 = vor.u32 %v1275, %v1278
      %v1280 = vsel %vm1245, %v1270, %v1279
      %v1282 = vshrl.u32 %v1121, 16
      %v1284 = vrot.slane %v1282, 2
      %v1285 = vshll.u32 %v1121, 16
      %v1287 = vrot.slane %v1285, 3
      %v1288 = vor.u32 %v1284, %v1287
      %v1289 = vsel %vm1245, %v1279, %v1288
      %v1291 = vshrl.u32 %v1244, 16
      %v1293 = vrot.slane %v1291, 2
      %v1294 = vshll.u32 %v1244, 16
      %v1296 = vrot.slane %v1294, 3
      %v1297 = vor.u32 %v1293, %v1296
      %v1298 = vsel %vm1245, %v1288, %v1297
      %v1301 = vunpack.c.l.b16 %v1240
      %v1302 = vunpack.c.l.b16 %v1241
      %v1303 = vpack.c.b16 %v1302, %v1301
      %v1306 = vsel %vm335, %v1262, 0
      %v1309 = vsel %vm335, %v1271, 0
      %v1312 = vsel %vm335, %v1280, 0
      %v1315 = vsel %vm335, %v1289, 0
      %v1318 = vsel %vm335, %v1298, 0
      %1320 = vmatprep.subr.bf16.mxu0 0
      %1321 = vmatpush1.bf16.msra.mxu0 %v1303
      %1322 = vmatprep.subr.bf16.mxu0 0
      %1323 = vmatpush1.bf16.msra.mxu0 0
      %1324 = vmatprep.subr.bf16.mxu0 0
      %1325 = vmatpush1.bf16.msra.mxu0 0
      %1326 = vmatprep.subr.bf16.mxu0 0
      %1327 = vmatpush1.bf16.msra.mxu0 0
      %1328 = vmatprep.subr.bf16.mxu0 0
      %1329 = vmatpush1.bf16.msra.mxu0 0
      %1330 = vmatprep.subr.bf16.mxu0 0
      %1331 = vmatpush1.bf16.msra.mxu0 0
      %1332 = vmatprep.subr.bf16.mxu0 0
      %1333 = vmatpush1.bf16.msra.mxu0 0
      %1334 = vmatprep.subr.bf16.mxu0 0
      %1335 = vmatpush1.bf16.msra.mxu0 0
      %1336 = vmatprep.subr.bf16.mxu0 0
      %1337 = vmatpush1.bf16.msra.mxu0 0
      %1338 = vmatprep.subr.bf16.mxu0 0
      %1339 = vmatpush1.bf16.msra.mxu0 0
      %1340 = vmatprep.subr.bf16.mxu0 0
      %1341 = vmatpush1.bf16.msra.mxu0 0
      %1342 = vmatprep.subr.bf16.mxu0 0
      %1343 = vmatpush1.bf16.msra.mxu0 0
      %1344 = vmatprep.subr.bf16.mxu0 0
      %1345 = vmatpush1.bf16.msra.mxu0 0
      %1346 = vmatprep.subr.bf16.mxu0 0
      %1347 = vmatpush1.bf16.msra.mxu0 0
      %1348 = vmatprep.subr.bf16.mxu0 0
      %1349 = vmatpush1.bf16.msra.mxu0 0
      %1350 = vmatprep.subr.bf16.mxu0 0
      %1351 = vmatpush1.bf16.msra.mxu0 0
      %1352 = vmatprep.mubr.bf16.mxu0 0
      %1353 = vmatmul.mubr.bf16.gmra.mrb[0].mxu0 %v1306
      %v1354 = vpop.f32.mrb[0].mxu0
      %v1355 = vadd.f32 0.0, %v1354
      %v1356 = vpop.f32.mrb[0].mxu0
      %v1357 = vpop.f32.mrb[0].mxu0
      %v1358 = vadd.f32 0.0, %v1357
      %v1359 = vpop.f32.mrb[0].mxu0
      %1360 = vmatprep.mubr.bf16.mxu0 0
      %1361 = vmatmul.mubr.bf16.gmra.mrb[0].mxu0 %v1309
      %v1362 = vpop.f32.mrb[0].mxu0
      %v1363 = vadd.f32 0.0, %v1362
      %v1364 = vpop.f32.mrb[0].mxu0
      %v1365 = vpop.f32.mrb[0].mxu0
      %v1366 = vadd.f32 0.0, %v1365
      %v1367 = vpop.f32.mrb[0].mxu0
      %1368 = vmatprep.mubr.bf16.mxu0 0
      %1369 = vmatmul.mubr.bf16.gmra.mrb[0].mxu0 %v1312
      %v1370 = vpop.f32.mrb[0].mxu0
      %v1371 = vadd.f32 0.0, %v1370
      %v1372 = vpop.f32.mrb[0].mxu0
      %v1373 = vpop.f32.mrb[0].mxu0
      %v1374 = vadd.f32 0.0, %v1373
      %v1375 = vpop.f32.mrb[0].mxu0
      %1376 = vmatprep.mubr.bf16.mxu0 0
      %1377 = vmatmul.mubr.bf16.gmra.mrb[0].mxu0 %v1315
      %v1378 = vpop.f32.mrb[0].mxu0
      %v1379 = vadd.f32 0.0, %v1378
      %v1380 = vpop.f32.mrb[0].mxu0
      %v1381 = vpop.f32.mrb[0].mxu0
      %v1382 = vadd.f32 0.0, %v1381
      %v1383 = vpop.f32.mrb[0].mxu0
      %1384 = vmatprep.mubr.bf16.mxu0 0
      %1385 = vmatmul.mubr.bf16.gmra.mrb[0].mxu0 %v1318
      %v1386 = vpop.f32.mrb[0].mxu0
      %v1387 = vadd.f32 0.0, %v1386
      %v1388 = vpop.f32.mrb[0].mxu0
      %v1389 = vpop.f32.mrb[0].mxu0
      %v1390 = vadd.f32 0.0, %v1389
      %v1391 = vpop.f32.mrb[0].mxu0
      %1392 = vdwg.mxu0
      %v1393 = vadd.f32 %v1228, %v1355
      %v1394 = vadd.f32 %v1229, %v1358
      %v1395 = vadd.f32 %v1230, %v1363
      %v1396 = vadd.f32 %v1231, %v1366
      %v1397 = vadd.f32 %v1232, %v1371
      %v1398 = vadd.f32 %v1233, %v1374
      %v1399 = vadd.f32 %v1234, %v1379
      %v1400 = vadd.f32 %v1235, %v1382
      %v1401 = vadd.f32 %v1236, %v1387
      %v1402 = vadd.f32 %v1237, %v1390
      %v1403 = vld [vmem:[%s218 + $0x8] sm:$0x8]
      %s1404 = scalar_lea.vmem %s222, 64
      %v1405 = vld [vmem:[%s1404] sm:$0xf]
      %v1406 = vld [vmem:[%s1404 + $0x4] sm:$0xf]
      %v1408 = vunpack.c.l.b16 %v1403
      %v1409 = vpack.c.b16 %v1107, %v1408
      %vm1410 = vcmask 1044480
      %v1411 = vrot.slane %v1409, 3
      %v1412 = vrot.slane %v1118, 3
      %v1413 = vsel %vm1410, %v1411, %v1412
      %v1414 = vrot.slane %v1119, 3
      %v1415 = vsel %vm1410, %v1412, %v1414
      %v1416 = vrot.slane %v1120, 3
      %v1417 = vsel %vm1410, %v1414, %v1416
      %v1418 = vrot.slane %v1121, 3
      %v1419 = vsel %vm1410, %v1416, %v1418
      %v1420 = vrot.slane %v1244, 3
      %v1421 = vsel %vm1410, %v1418, %v1420
      %v1424 = vunpack.c.l.b16 %v1405
      %v1425 = vunpack.c.l.b16 %v1406
      %v1426 = vpack.c.b16 %v1425, %v1424
      %v1429 = vsel %vm335, %v1413, 0
      %v1432 = vsel %vm335, %v1415, 0
      %v1435 = vsel %vm335, %v1417, 0
      %v1438 = vsel %vm335, %v1419, 0
      %v1441 = vsel %vm335, %v1421, 0
      %1443 = vmatprep.subr.bf16.mxu0 0
      %1444 = vmatpush1.bf16.msra.mxu0 %v1426
      %1445 = vmatprep.subr.bf16.mxu0 0
      %1446 = vmatpush1.bf16.msra.mxu0 0
      %1447 = vmatprep.subr.bf16.mxu0 0
      %1448 = vmatpush1.bf16.msra.mxu0 0
      %1449 = vmatprep.subr.bf16.mxu0 0
      %1450 = vmatpush1.bf16.msra.mxu0 0
      %1451 = vmatprep.subr.bf16.mxu0 0
      %1452 = vmatpush1.bf16.msra.mxu0 0
      %1453 = vmatprep.subr.bf16.mxu0 0
      %1454 = vmatpush1.bf16.msra.mxu0 0
      %1455 = vmatprep.subr.bf16.mxu0 0
      %1456 = vmatpush1.bf16.msra.mxu0 0
      %1457 = vmatprep.subr.bf16.mxu0 0
      %1458 = vmatpush1.bf16.msra.mxu0 0
      %1459 = vmatprep.subr.bf16.mxu0 0
      %1460 = vmatpush1.bf16.msra.mxu0 0
      %1461 = vmatprep.subr.bf16.mxu0 0
      %1462 = vmatpush1.bf16.msra.mxu0 0
      %1463 = vmatprep.subr.bf16.mxu0 0
      %1464 = vmatpush1.bf16.msra.mxu0 0
      %1465 = vmatprep.subr.bf16.mxu0 0
      %1466 = vmatpush1.bf16.msra.mxu0 0
      %1467 = vmatprep.subr.bf16.mxu0 0
      %1468 = vmatpush1.bf16.msra.mxu0 0
      %1469 = vmatprep.subr.bf16.mxu0 0
      %1470 = vmatpush1.bf16.msra.mxu0 0
      %1471 = vmatprep.subr.bf16.mxu0 0
      %1472 = vmatpush1.bf16.msra.mxu0 0
      %1473 = vmatprep.subr.bf16.mxu0 0
      %1474 = vmatpush1.bf16.msra.mxu0 0
      %1475 = vmatprep.mubr.bf16.mxu0 0
      %1476 = vmatmul.mubr.bf16.gmra.mrb[0].mxu0 %v1429
      %v1477 = vpop.f32.mrb[0].mxu0
      %v1478 = vadd.f32 0.0, %v1477
      %v1479 = vpop.f32.mrb[0].mxu0
      %v1480 = vpop.f32.mrb[0].mxu0
      %v1481 = vadd.f32 0.0, %v1480
      %v1482 = vpop.f32.mrb[0].mxu0
      %1483 = vmatprep.mubr.bf16.mxu0 0
      %1484 = vmatmul.mubr.bf16.gmra.mrb[0].mxu0 %v1432
      %v1485 = vpop.f32.mrb[0].mxu0
      %v1486 = vadd.f32 0.0, %v1485
      %v1487 = vpop.f32.mrb[0].mxu0
      %v1488 = vpop.f32.mrb[0].mxu0
      %v1489 = vadd.f32 0.0, %v1488
      %v1490 = vpop.f32.mrb[0].mxu0
      %1491 = vmatprep.mubr.bf16.mxu0 0
      %1492 = vmatmul.mubr.bf16.gmra.mrb[0].mxu0 %v1435
      %v1493 = vpop.f32.mrb[0].mxu0
      %v1494 = vadd.f32 0.0, %v1493
      %v1495 = vpop.f32.mrb[0].mxu0
      %v1496 = vpop.f32.mrb[0].mxu0
      %v1497 = vadd.f32 0.0, %v1496
      %v1498 = vpop.f32.mrb[0].mxu0
      %1499 = vmatprep.mubr.bf16.mxu0 0
      %1500 = vmatmul.mubr.bf16.gmra.mrb[0].mxu0 %v1438
      %v1501 = vpop.f32.mrb[0].mxu0
      %v1502 = vadd.f32 0.0, %v1501
      %v1503 = vpop.f32.mrb[0].mxu0
      %v1504 = vpop.f32.mrb[0].mxu0
      %v1505 = vadd.f32 0.0, %v1504
      %v1506 = vpop.f32.mrb[0].mxu0
      %1507 = vmatprep.mubr.bf16.mxu0 0
      %1508 = vmatmul.mubr.bf16.gmra.mrb[0].mxu0 %v1441
      %v1509 = vpop.f32.mrb[0].mxu0
      %v1510 = vadd.f32 0.0, %v1509
      %v1511 = vpop.f32.mrb[0].mxu0
      %v1512 = vpop.f32.mrb[0].mxu0
      %v1513 = vadd.f32 0.0, %v1512
      %v1514 = vpop.f32.mrb[0].mxu0
      %1515 = vdwg.mxu0
      %v1516 = vadd.f32 %v1393, %v1478
      %v1517 = vadd.f32 %v1394, %v1481
      %v1518 = vadd.f32 %v1395, %v1486
      %v1519 = vadd.f32 %v1396, %v1489
      %v1520 = vadd.f32 %v1397, %v1494
      %v1521 = vadd.f32 %v1398, %v1497
      %v1522 = vadd.f32 %v1399, %v1502
      %v1523 = vadd.f32 %v1400, %v1505
      %v1524 = vadd.f32 %v1401, %v1510
      %v1525 = vadd.f32 %v1402, %v1513
      %v1526 = vld [vmem:[%s230] sm:$0xff]
      %v1527 = vld [vmem:[%s230 + $0x8] sm:$0xff]
      %v1528 = vld [vmem:[%s230 + $0x10] sm:$0xff]
      %v1529 = vld [vmem:[%s230 + $0x18] sm:$0xff]
      %v1530 = vld [vmem:[%s230 + $0x20] sm:$0xff]
      %v1531 = vld [vmem:[%s230 + $0x28] sm:$0xff]
      %v1532 = vld [vmem:[%s230 + $0x30] sm:$0xff]
      %v1533 = vld [vmem:[%s230 + $0x38] sm:$0xff]
      %v1534 = vld [vmem:[%s230 + $0x40] sm:$0xff]
      %v1535 = vld [vmem:[%s230 + $0x48] sm:$0xff]
      %v1536 = vadd.f32 %v1516, %v1526
      %v1537 = vadd.f32 %v1517, %v1527
      %v1538 = vadd.f32 %v1518, %v1528
      %v1539 = vadd.f32 %v1519, %v1529
      %v1540 = vadd.f32 %v1520, %v1530
      %v1541 = vadd.f32 %v1521, %v1531
      %v1542 = vadd.f32 %v1522, %v1532
      %v1543 = vadd.f32 %v1523, %v1533
      %v1544 = vadd.f32 %v1524, %v1534
      %v1545 = vadd.f32 %v1525, %v1535
      %1546 = vst.msk [vmem:[%s238] sm:$0xff] %vm335, %v1536
      %1547 = vst.msk [vmem:[%s238 + $0x8] sm:$0xff] %vm335, %v1537
      %1548 = vst.msk [vmem:[%s238 + $0x10] sm:$0xff] %vm335, %v1538
      %1549 = vst.msk [vmem:[%s238 + $0x18] sm:$0xff] %vm335, %v1539
      %1550 = vst.msk [vmem:[%s238 + $0x20] sm:$0xff] %vm335, %v1540
      %1551 = vst.msk [vmem:[%s238 + $0x28] sm:$0xff] %vm335, %v1541
      %1552 = vst.msk [vmem:[%s238 + $0x30] sm:$0xff] %vm335, %v1542
      %1553 = vst.msk [vmem:[%s238 + $0x38] sm:$0xff] %vm335, %v1543
      %1554 = vst.msk [vmem:[%s238 + $0x40] sm:$0xff] %vm335, %v1544
      %1555 = vst.msk [vmem:[%s238 + $0x48] sm:$0xff] %vm335, %v1545
      %p1556 = scmp.lt.s32.totalorder %s18, 1
      %s1557 = scalar_select %p1556, %s18, 1
      %p1558 = scmp.lt.s32.totalorder %s19, 0
      %s1559 = scalar_select %p1558, %s19, 0
      %s1560 = smul.addr %s1557, 10
      %s1561 = sadd.s32 %s1559, %s1560
      %s1562 = smul.addr %s1561, 8
      %s1563 = scalar_lea.vmem %s3, %s1562
      // Predicated region
      $region33: #{network_block_forward.11} parent=31 // pred_check
        %p1564 = pneg %p126
      $region34: #{network_block_forward.11} parent=31 // pred_check_branch
        %1566 = sbr.rel (%p1564) target = $region36
      $region35: #{network_block_forward.11} parent=31 // pred_region
        _
      $region36: #{network_block_forward.11} parent=31 // pred_fallthru
        _
    $region32: #{network_block_forward.11} parent=5 // pred_fallthru
      _
    %p1567 = scmp.le.s32.totalorder 2, %s9
    // Predicated region
    $region37: #{network_block_forward.11} parent=5 // pred_check
      %p1568 = pneg %p1567
    $region38: #{network_block_forward.11} parent=5 // pred_check_branch
      %1570 = sbr.rel (%p1568) target = $region40
    $region39: #{network_block_forward.11} parent=5 // pred_region
      %s1571 = ssub.s32 %s9, 2
      // Predicated region
      $region41: #{network_block_forward.11} parent=39 // pred_check
        %p1572 = pneg %p132
      $region42: #{network_block_forward.11} parent=39 // pred_check_branch
        %1574 = sbr.rel (%p1572) target = $region44
      $region43: #{network_block_forward.11} parent=39 // pred_region
        %p1575 = scmp.lt.s32.totalorder %s20, 1
        %s1576 = scalar_select %p1575, %s20, 1
        %p1577 = scmp.lt.s32.totalorder %s21, 0
        %s1578 = scalar_select %p1577, %s21, 0
        %s1579 = smul.addr %s1576, 10
        %s1580 = sadd.s32 %s1578, %s1579
        %s1581 = smul.addr %s1580, 8
        %s1582 = scalar_lea.vmem %s3, %s1581
      $region44: #{network_block_forward.11} parent=39 // pred_fallthru
        _
    $region40: #{network_block_forward.11} parent=5 // pred_fallthru
      _
  $region6: #{network_block_forward.11} parent=0 // loop_footer
    %s13 = sadd.s32 1, %s9
  $region7: #{network_block_forward.11} parent=0 // loop_footer_branch
    %8 = sbr.rel target = $region3
  $region8: #{network_block_forward.11} parent=0 // loop_exit
    _

</llo_original>
